<compile_context>
chip_gen: v7x
topology: tpu7x:2x2x1
jax: 0.10.0
libtpu: 0.0.40
codegen_flags: <defaults>
</compile_context>

<pallas_src>
import functools

import jax
import jax.numpy as jnp
from jax.experimental import pallas as pl
from jax.experimental.pallas import tpu as pltpu


# ----------------------------------------------------------------------------
# LSTM cell math (PyTorch gate order i, f, g, o), shared by kernel & reference.
# All elementwise math in float32.
# ----------------------------------------------------------------------------
def _lstm_cell(gates, c_prev, hidden):
    i_g = jax.nn.sigmoid(gates[:, 0 * hidden:1 * hidden])
    f_g = jax.nn.sigmoid(gates[:, 1 * hidden:2 * hidden])
    g_g = jnp.tanh(gates[:, 2 * hidden:3 * hidden])
    o_g = jax.nn.sigmoid(gates[:, 3 * hidden:4 * hidden])
    c_new = f_g * c_prev + i_g * g_g
    h_new = o_g * jnp.tanh(c_new)
    return h_new, c_new


# ----------------------------------------------------------------------------
# Fused kernel: all LSTM layers + head, grid over time chunks.
# ----------------------------------------------------------------------------
def _fused_lstm_head_kernel(num_layers, t_chunk, *refs):
    """One grid step == t_chunk timesteps through ALL layers (+ head at the end).

    refs layout (inputs, then outputs, then scratch):
      g0                     (t_chunk, B, 4H)  precomputed x@W_ih0 + b0 (f32, time-major)
      w_hh0                  (H, 4H)
      [w_ih_l, w_hh_l, b_l]  for l = 1 .. num_layers-1
      w_lin (H, E), b_lin (1, E)
      out                    (B, E)
      h_0..h_{L-1}, c_0..c_{L-1}   (B, H) f32 VMEM carries
    """
    idx = 0
    g0_ref = refs[idx]; idx += 1
    w_hh0_ref = refs[idx]; idx += 1
    upper = []
    for _ in range(num_layers - 1):
        upper.append((refs[idx], refs[idx + 1], refs[idx + 2]))
        idx += 3
    w_lin_ref = refs[idx]; b_lin_ref = refs[idx + 1]; idx += 2
    out_ref = refs[idx]; idx += 1
    h_refs = refs[idx:idx + num_layers]
    c_refs = refs[idx + num_layers:idx + 2 * num_layers]

    hidden = h_refs[0].shape[1]
    tc = pl.program_id(0)

    @pl.when(tc == 0)
    def _init():
        for r in h_refs + c_refs:
            r[...] = jnp.zeros_like(r)

    hs = [r[...] for r in h_refs]
    cs = [r[...] for r in c_refs]

    # Statically-unrolled time chunk: amortizes per-grid-step pipeline overhead.
    for s in range(t_chunk):
        # Layer 0: input projection was hoisted out of the recurrence; only the
        # (B,H)@(H,4H) recurrent matmul is on the serial critical path.
        gates = g0_ref[s] + jnp.dot(
            hs[0].astype(w_hh0_ref.dtype), w_hh0_ref[...],
            preferred_element_type=jnp.float32)
        hs[0], cs[0] = _lstm_cell(gates, cs[0], hidden)
        for l in range(1, num_layers):
            w_ih_ref, w_hh_ref, b_ref = upper[l - 1]
            gates = (
                jnp.dot(hs[l - 1].astype(w_ih_ref.dtype), w_ih_ref[...],
                        preferred_element_type=jnp.float32)
                + jnp.dot(hs[l].astype(w_hh_ref.dtype), w_hh_ref[...],
                          preferred_element_type=jnp.float32)
                + b_ref[...]
            )
            hs[l], cs[l] = _lstm_cell(gates, cs[l], hidden)

    for l in range(num_layers):
        h_refs[l][...] = hs[l]
        c_refs[l][...] = cs[l]

    # Fused head (Linear -> ReLU -> L2 normalize) on the final time chunk only.
    @pl.when(tc == pl.num_programs(0) - 1)
    def _head():
        h_top = hs[num_layers - 1]   # == hidden[-1] (final hidden of top layer)
        e = jnp.dot(h_top.astype(w_lin_ref.dtype), w_lin_ref[...],
                    preferred_element_type=jnp.float32) + b_lin_ref[...]
        e = jnp.maximum(e, 0.0)
        # rsqrt runs on the (otherwise idle) EUP; eps avoids NaN on all-zero rows.
        inv_norm = jax.lax.rsqrt(jnp.sum(e * e, axis=1, keepdims=True) + 1e-12)
        out_ref[...] = e * inv_norm


def _pick_time_chunk(total_t, max_chunk):
    c = max(1, min(total_t, max_chunk))
    while total_t % c:
        c -= 1
    return c


# ----------------------------------------------------------------------------
# Forward: mirrors SpeakerEncoder.forward(mels), mels is (B, T, C) batch_first.
# (hidden[-1] == last timestep of top layer; holds for un-padded sequences.)
# ----------------------------------------------------------------------------
@functools.partial(jax.jit, static_argnames=("t_chunk_max",))
def speaker_encoder_forward(params, mels, *, t_chunk_max=16):
    B, T, C = mels.shape
    lstm = params["lstm"]
    num_layers = len(lstm)
    H = lstm[0]["w_hh_t"].shape[0]
    H4 = 4 * H
    E = params["linear"]["w_t"].shape[1]

    # Hoisted layer-0 input projection as one large pipelineable GEMM.  Writing
    # it time-major folds the batch->time transpose into the GEMM output layout,
    # so no extra HBM pass over the mel tensor is needed.
    gates0 = jnp.einsum("btc,cg->tbg", mels, lstm[0]["w_ih_t"],
                        preferred_element_type=jnp.float32) + lstm[0]["bias"]
    gates0 = gates0.astype(jnp.float32)          # (T, B, 4H)

    t_chunk = _pick_time_chunk(T, t_chunk_max)
    grid = (T // t_chunk,)

    def _resident(shape):
        # Constant index_map -> operand stays resident in VMEM across the grid.
        return pl.BlockSpec(shape, lambda tc: (0,) * len(shape))

    in_specs = [pl.BlockSpec((t_chunk, B, H4), lambda tc: (tc, 0, 0))]
    in_arrays = [gates0]
    in_specs.append(_resident((H, H4)))
    in_arrays.append(lstm[0]["w_hh_t"])
    for l in range(1, num_layers):
        in_specs += [_resident((H, H4)), _resident((H, H4)), _resident((1, H4))]
        in_arrays += [lstm[l]["w_ih_t"], lstm[l]["w_hh_t"], lstm[l]["bias"]]
    in_specs += [_resident((H, E)), _resident((1, E))]
    in_arrays += [params["linear"]["w_t"], params["linear"]["b"]]

    kernel = functools.partial(_fused_lstm_head_kernel, num_layers, t_chunk)

    return pl.pallas_call(
        kernel,
        out_shape=jax.ShapeDtypeStruct((B, E), jnp.float32),
        grid_spec=pltpu.PrefetchScalarGridSpec(
            num_scalar_prefetch=0,
            grid=grid,
            in_specs=in_specs,
            out_specs=pl.BlockSpec((B, E), lambda tc: (0, 0)),
            scratch_shapes=[pltpu.VMEM((B, H), jnp.float32)] * (2 * num_layers),
        ),
        # Recurrence: the time-chunk axis must run in order.
        # NOTE: for large H / long T on v7x (64 MiB VMEM, 32 MiB default scoped
        # limit), additionally set vmem_limit_bytes and consider
        # pipeline_mode=pl.Buffered(1) on the constant-index weight specs to cut
        # double-buffered residency; unnecessary at these sizes.
        compiler_params=pltpu.CompilerParams(
            dimension_semantics=("arbitrary",),
        ),
    )(*in_arrays)


# ----------------------------------------------------------------------------
# Parameter init (deterministic, PyTorch-style U(-1/sqrt(H), 1/sqrt(H))).
# Weights stored transposed (in, out); recurrent / head weights in `mxu_dtype`
# (bf16 MXU operands on v6e/v7x, also fine on v5e); biases & layer-0 input
# projection weight stay float32.
# ----------------------------------------------------------------------------
def init_speaker_encoder_params(key, mel_n_channels=80, hidden_size=192,
                                embedding_size=192, num_layers=3,
                                mxu_dtype=jnp.bfloat16):
    params = {"lstm": [], "linear": {}}
    bound = 1.0 / float(hidden_size) ** 0.5
    for layer in range(num_layers):
        din = mel_n_channels if layer == 0 else hidden_size
        key, k1, k2, k3, k4 = jax.random.split(key, 5)
        w_ih = jax.random.uniform(k1, (4 * hidden_size, din), jnp.float32, -bound, bound)
        w_hh = jax.random.uniform(k2, (4 * hidden_size, hidden_size), jnp.float32, -bound, bound)
        b_ih = jax.random.uniform(k3, (4 * hidden_size,), jnp.float32, -bound, bound)
        b_hh = jax.random.uniform(k4, (4 * hidden_size,), jnp.float32, -bound, bound)
        w_ih_dtype = jnp.float32 if layer == 0 else mxu_dtype  # layer-0 proj is the hoisted XLA GEMM
        params["lstm"].append({
            "w_ih_t": w_ih.T.astype(w_ih_dtype),            # (Din, 4H)
            "w_hh_t": w_hh.T.astype(mxu_dtype),              # (H, 4H)
            "bias": (b_ih + b_hh)[None, :].astype(jnp.float32),   # (1, 4H)
        })
    key, k5, k6 = jax.random.split(key, 3)
    w_lin = jax.random.uniform(k5, (embedding_size, hidden_size), jnp.float32, -bound, bound)
    b_lin = jax.random.uniform(k6, (embedding_size,), jnp.float32, -bound, bound)
    params["linear"] = {"w_t": w_lin.T.astype(mxu_dtype),          # (H, E)
                        "b": b_lin[None, :].astype(jnp.float32)}   # (1, E)
    return params


# ----------------------------------------------------------------------------
# Pure-JAX reference with identical numerics (same operand dtypes) for checking.
# ----------------------------------------------------------------------------
def reference_forward(params, mels):
    B, T, C = mels.shape
    lstm = params["lstm"]
    L = len(lstm)
    H = lstm[0]["w_hh_t"].shape[0]
    g0 = jnp.einsum("btc,cg->tbg", mels, lstm[0]["w_ih_t"],
                    preferred_element_type=jnp.float32) + lstm[0]["bias"]
    h = [jnp.zeros((B, H), jnp.float32) for _ in range(L)]
    c = [jnp.zeros((B, H), jnp.float32) for _ in range(L)]
    for t in range(T):
        g = g0[t] + jnp.dot(h[0].astype(lstm[0]["w_hh_t"].dtype), lstm[0]["w_hh_t"],
                            preferred_element_type=jnp.float32)
        h[0], c[0] = _lstm_cell(g, c[0], H)
        for l in range(1, L):
            g = (jnp.dot(h[l - 1].astype(lstm[l]["w_ih_t"].dtype), lstm[l]["w_ih_t"],
                         preferred_element_type=jnp.float32)
                 + jnp.dot(h[l].astype(lstm[l]["w_hh_t"].dtype), lstm[l]["w_hh_t"],
                           preferred_element_type=jnp.float32)
                 + lstm[l]["bias"])
            h[l], c[l] = _lstm_cell(g, c[l], H)
    w_t = params["linear"]["w_t"]
    e = jnp.dot(h[-1].astype(w_t.dtype), w_t,
                preferred_element_type=jnp.float32) + params["linear"]["b"]
    e = jnp.maximum(e, 0.0)
    return e * jax.lax.rsqrt(jnp.sum(e * e, axis=1, keepdims=True) + 1e-12)


if __name__ == "__main__":
    # Small, lane/sublane-friendly shapes consistent with the module's forward:
    # mels is (B, T, mel_channels), batch_first.
    B, T = 8, 16
    MEL, HIDDEN, EMB, LAYERS = 80, 128, 128, 3

    key = jax.random.PRNGKey(0)
    key_p, key_x = jax.random.split(key)
    params = init_speaker_encoder_params(key_p, MEL, HIDDEN, EMB, LAYERS)
    mels = jax.random.normal(key_x, (B, T, MEL), dtype=jnp.float32)

    # t_chunk_max=8 -> grid of 2 time chunks, exercising the cross-chunk carries.
    out = speaker_encoder_forward(params, mels, t_chunk_max=8)
    out = jax.block_until_ready(out)

    assert out.shape == (B, EMB)
    assert bool(jnp.all(jnp.isfinite(out)))
    norms = jnp.linalg.norm(out, axis=1)
    assert bool(jnp.all(jnp.abs(norms - 1.0) < 1e-3))

    ref = reference_forward(params, mels)
    max_err = float(jnp.max(jnp.abs(out - ref)))
    assert max_err < 5e-3, f"kernel deviates from reference: max abs err {max_err}"

    print("KERNEL_OK")
</pallas_src>

<mosaic_0001>
module attributes {stable_mosaic.version = 11 : i64} {
  func.func @_fused_lstm_head_kernel(%arg0: i32, %arg1: memref<8x8x512xf32, #tpu.memory_space<vmem>>, %arg2: memref<128x512xbf16, #tpu.memory_space<vmem>>, %arg3: memref<128x512xbf16, #tpu.memory_space<vmem>>, %arg4: memref<128x512xbf16, #tpu.memory_space<vmem>>, %arg5: memref<1x512xf32, #tpu.memory_space<vmem>>, %arg6: memref<128x512xbf16, #tpu.memory_space<vmem>>, %arg7: memref<128x512xbf16, #tpu.memory_space<vmem>>, %arg8: memref<1x512xf32, #tpu.memory_space<vmem>>, %arg9: memref<128x128xbf16, #tpu.memory_space<vmem>>, %arg10: memref<1x128xf32, #tpu.memory_space<vmem>>, %arg11: memref<8x128xf32, #tpu.memory_space<vmem>>, %arg12: memref<8x128xf32, #tpu.memory_space<vmem>>, %arg13: memref<8x128xf32, #tpu.memory_space<vmem>>, %arg14: memref<8x128xf32, #tpu.memory_space<vmem>>, %arg15: memref<8x128xf32, #tpu.memory_space<vmem>>, %arg16: memref<8x128xf32, #tpu.memory_space<vmem>>, %arg17: memref<8x128xf32, #tpu.memory_space<vmem>>) attributes {dimension_semantics = [#tpu.dimension_semantics<arbitrary>], iteration_bounds = array<i64: 2>, scalar_prefetch = 0 : i64, scratch_operands = 6 : i64, tpu.core_type = #tpu.core_type<tc>, window_params = [{transform_indices = @transform_0, window_bounds = array<i64: 8, 8, 512>}, {pipeline_mode = #tpu.pipeline_mode<synchronous>, transform_indices = @transform_1, window_bounds = array<i64: 128, 512>}, {pipeline_mode = #tpu.pipeline_mode<synchronous>, transform_indices = @transform_2, window_bounds = array<i64: 128, 512>}, {pipeline_mode = #tpu.pipeline_mode<synchronous>, transform_indices = @transform_3, window_bounds = array<i64: 128, 512>}, {pipeline_mode = #tpu.pipeline_mode<synchronous>, transform_indices = @transform_4, window_bounds = array<i64: 1, 512>}, {pipeline_mode = #tpu.pipeline_mode<synchronous>, transform_indices = @transform_5, window_bounds = array<i64: 128, 512>}, {pipeline_mode = #tpu.pipeline_mode<synchronous>, transform_indices = @transform_6, window_bounds = array<i64: 128, 512>}, {pipeline_mode = #tpu.pipeline_mode<synchronous>, transform_indices = @transform_7, window_bounds = array<i64: 1, 512>}, {pipeline_mode = #tpu.pipeline_mode<synchronous>, transform_indices = @transform_8, window_bounds = array<i64: 128, 128>}, {pipeline_mode = #tpu.pipeline_mode<synchronous>, transform_indices = @transform_9, window_bounds = array<i64: 1, 128>}, {pipeline_mode = #tpu.pipeline_mode<synchronous>, transform_indices = @transform_10, window_bounds = array<i64: 8, 128>}]} {
    %c0_i32 = arith.constant 0 : i32
    %0 = arith.cmpi eq, %arg0, %c0_i32 : i32
    %1 = arith.extui %0 : i1 to i32
    %c0_i32_0 = arith.constant 0 : i32
    %2 = arith.cmpi ne, %1, %c0_i32_0 : i32
    scf.if %2 {
      %cst_265 = arith.constant 0.000000e+00 : f32
      %826 = vector.broadcast %cst_265 : f32 to vector<8x128xf32>
      %c0_266 = arith.constant 0 : index
      %c0_267 = arith.constant 0 : index
      %827 = vector.load %arg12[%c0_266, %c0_267] : memref<8x128xf32, #tpu.memory_space<vmem>>, vector<8x128xf32>
      tpu.vector_store %arg12[%c0_266, %c0_267], %826 {strides = array<i32>} : memref<8x128xf32, #tpu.memory_space<vmem>>, vector<8x128xf32>,
      %cst_268 = arith.constant 0.000000e+00 : f32
      %828 = vector.broadcast %cst_268 : f32 to vector<8x128xf32>
      %c0_269 = arith.constant 0 : index
      %c0_270 = arith.constant 0 : index
      %829 = vector.load %arg13[%c0_269, %c0_270] : memref<8x128xf32, #tpu.memory_space<vmem>>, vector<8x128xf32>
      tpu.vector_store %arg13[%c0_269, %c0_270], %828 {strides = array<i32>} : memref<8x128xf32, #tpu.memory_space<vmem>>, vector<8x128xf32>,
      %cst_271 = arith.constant 0.000000e+00 : f32
      %830 = vector.broadcast %cst_271 : f32 to vector<8x128xf32>
      %c0_272 = arith.constant 0 : index
      %c0_273 = arith.constant 0 : index
      %831 = vector.load %arg14[%c0_272, %c0_273] : memref<8x128xf32, #tpu.memory_space<vmem>>, vector<8x128xf32>
      tpu.vector_store %arg14[%c0_272, %c0_273], %830 {strides = array<i32>} : memref<8x128xf32, #tpu.memory_space<vmem>>, vector<8x128xf32>,
      %cst_274 = arith.constant 0.000000e+00 : f32
      %832 = vector.broadcast %cst_274 : f32 to vector<8x128xf32>
      %c0_275 = arith.constant 0 : index
      %c0_276 = arith.constant 0 : index
      %833 = vector.load %arg15[%c0_275, %c0_276] : memref<8x128xf32, #tpu.memory_space<vmem>>, vector<8x128xf32>
      tpu.vector_store %arg15[%c0_275, %c0_276], %832 {strides = array<i32>} : memref<8x128xf32, #tpu.memory_space<vmem>>, vector<8x128xf32>,
      %cst_277 = arith.constant 0.000000e+00 : f32
      %834 = vector.broadcast %cst_277 : f32 to vector<8x128xf32>
      %c0_278 = arith.constant 0 : index
      %c0_279 = arith.constant 0 : index
      %835 = vector.load %arg16[%c0_278, %c0_279] : memref<8x128xf32, #tpu.memory_space<vmem>>, vector<8x128xf32>
      tpu.vector_store %arg16[%c0_278, %c0_279], %834 {strides = array<i32>} : memref<8x128xf32, #tpu.memory_space<vmem>>, vector<8x128xf32>,
      %cst_280 = arith.constant 0.000000e+00 : f32
      %836 = vector.broadcast %cst_280 : f32 to vector<8x128xf32>
      %c0_281 = arith.constant 0 : index
      %c0_282 = arith.constant 0 : index
      %837 = vector.load %arg17[%c0_281, %c0_282] : memref<8x128xf32, #tpu.memory_space<vmem>>, vector<8x128xf32>
      tpu.vector_store %arg17[%c0_281, %c0_282], %836 {strides = array<i32>} : memref<8x128xf32, #tpu.memory_space<vmem>>, vector<8x128xf32>,
    } else {
    }
    %c0 = arith.constant 0 : index
    %c0_1 = arith.constant 0 : index
    %3 = vector.load %arg12[%c0, %c0_1] : memref<8x128xf32, #tpu.memory_space<vmem>>, vector<8x128xf32>
    %c0_2 = arith.constant 0 : index
    %c0_3 = arith.constant 0 : index
    %4 = vector.load %arg13[%c0_2, %c0_3] : memref<8x128xf32, #tpu.memory_space<vmem>>, vector<8x128xf32>
    %c0_4 = arith.constant 0 : index
    %c0_5 = arith.constant 0 : index
    %5 = vector.load %arg14[%c0_4, %c0_5] : memref<8x128xf32, #tpu.memory_space<vmem>>, vector<8x128xf32>
    %c0_6 = arith.constant 0 : index
    %c0_7 = arith.constant 0 : index
    %6 = vector.load %arg15[%c0_6, %c0_7] : memref<8x128xf32, #tpu.memory_space<vmem>>, vector<8x128xf32>
    %c0_8 = arith.constant 0 : index
    %c0_9 = arith.constant 0 : index
    %7 = vector.load %arg16[%c0_8, %c0_9] : memref<8x128xf32, #tpu.memory_space<vmem>>, vector<8x128xf32>
    %c0_10 = arith.constant 0 : index
    %c0_11 = arith.constant 0 : index
    %8 = vector.load %arg17[%c0_10, %c0_11] : memref<8x128xf32, #tpu.memory_space<vmem>>, vector<8x128xf32>
    %c0_12 = arith.constant 0 : index
    %c0_13 = arith.constant 0 : index
    %c0_14 = arith.constant 0 : index
    %9 = vector.load %arg1[%c0_12, %c0_13, %c0_14] : memref<8x8x512xf32, #tpu.memory_space<vmem>>, vector<1x8x512xf32>
    %10 = vector.shape_cast %9 : vector<1x8x512xf32> to vector<8x512xf32>
    %11 = arith.truncf %3 : vector<8x128xf32> to vector<8x128xbf16>
    %c0_15 = arith.constant 0 : index
    %c0_16 = arith.constant 0 : index
    %12 = vector.load %arg2[%c0_15, %c0_16] : memref<128x512xbf16, #tpu.memory_space<vmem>>, vector<128x512xbf16>
    %cst = arith.constant dense<0.000000e+00> : vector<8x512xf32>
    %13 = tpu.matmul %11, %12, %cst {dimension_numbers = #tpu.dot_dimension_numbers<[1], [0], [0], [1], [0, 0, 1, 1], [], []>} : vector<8x128xbf16>, vector<128x512xbf16>, vector<8x512xf32> -> vector<8x512xf32>
    %14 = arith.addf %10, %13 : vector<8x512xf32>
    %15 = vector.extract_strided_slice %14 {offsets = [0, 0], sizes = [8, 128], strides = [1, 1]} : vector<8x512xf32> to vector<8x128xf32>
    %16 = arith.negf %15 : vector<8x128xf32>
    %17 = math.exp %16 : vector<8x128xf32>
    %cst_17 = arith.constant 1.000000e+00 : f32
    %18 = vector.broadcast %cst_17 : f32 to vector<8x128xf32>
    %19 = arith.addf %18, %17 : vector<8x128xf32>
    %20 = arith.divf %18, %19 : vector<8x128xf32>
    %21 = vector.extract_strided_slice %14 {offsets = [0, 128], sizes = [8, 128], strides = [1, 1]} : vector<8x512xf32> to vector<8x128xf32>
    %22 = arith.negf %21 : vector<8x128xf32>
    %23 = math.exp %22 : vector<8x128xf32>
    %cst_18 = arith.constant 1.000000e+00 : f32
    %24 = vector.broadcast %cst_18 : f32 to vector<8x128xf32>
    %25 = arith.addf %24, %23 : vector<8x128xf32>
    %26 = arith.divf %24, %25 : vector<8x128xf32>
    %27 = vector.extract_strided_slice %14 {offsets = [0, 256], sizes = [8, 128], strides = [1, 1]} : vector<8x512xf32> to vector<8x128xf32>
    %28 = math.tanh %27 : vector<8x128xf32>
    %29 = vector.extract_strided_slice %14 {offsets = [0, 384], sizes = [8, 128], strides = [1, 1]} : vector<8x512xf32> to vector<8x128xf32>
    %30 = arith.negf %29 : vector<8x128xf32>
    %31 = math.exp %30 : vector<8x128xf32>
    %cst_19 = arith.constant 1.000000e+00 : f32
    %32 = vector.broadcast %cst_19 : f32 to vector<8x128xf32>
    %33 = arith.addf %32, %31 : vector<8x128xf32>
    %34 = arith.divf %32, %33 : vector<8x128xf32>
    %35 = arith.mulf %26, %6 : vector<8x128xf32>
    %36 = arith.mulf %20, %28 : vector<8x128xf32>
    %37 = arith.addf %35, %36 : vector<8x128xf32>
    %38 = math.tanh %37 : vector<8x128xf32>
    %39 = arith.mulf %34, %38 : vector<8x128xf32>
    %40 = arith.truncf %39 : vector<8x128xf32> to vector<8x128xbf16>
    %c0_20 = arith.constant 0 : index
    %c0_21 = arith.constant 0 : index
    %41 = vector.load %arg3[%c0_20, %c0_21] : memref<128x512xbf16, #tpu.memory_space<vmem>>, vector<128x512xbf16>
    %cst_22 = arith.constant dense<0.000000e+00> : vector<8x512xf32>
    %42 = tpu.matmul %40, %41, %cst_22 {dimension_numbers = #tpu.dot_dimension_numbers<[1], [0], [0], [1], [0, 0, 1, 1], [], []>} : vector<8x128xbf16>, vector<128x512xbf16>, vector<8x512xf32> -> vector<8x512xf32>
    %43 = arith.truncf %4 : vector<8x128xf32> to vector<8x128xbf16>
    %c0_23 = arith.constant 0 : index
    %c0_24 = arith.constant 0 : index
    %44 = vector.load %arg4[%c0_23, %c0_24] : memref<128x512xbf16, #tpu.memory_space<vmem>>, vector<128x512xbf16>
    %cst_25 = arith.constant dense<0.000000e+00> : vector<8x512xf32>
    %45 = tpu.matmul %43, %44, %cst_25 {dimension_numbers = #tpu.dot_dimension_numbers<[1], [0], [0], [1], [0, 0, 1, 1], [], []>} : vector<8x128xbf16>, vector<128x512xbf16>, vector<8x512xf32> -> vector<8x512xf32>
    %46 = arith.addf %42, %45 : vector<8x512xf32>
    %c0_26 = arith.constant 0 : index
    %c0_27 = arith.constant 0 : index
    %47 = vector.load %arg5[%c0_26, %c0_27] : memref<1x512xf32, #tpu.memory_space<vmem>>, vector<1x512xf32>
    %48 = vector.broadcast %47 : vector<1x512xf32> to vector<8x512xf32>
    %49 = arith.addf %46, %48 : vector<8x512xf32>
    %50 = vector.extract_strided_slice %49 {offsets = [0, 0], sizes = [8, 128], strides = [1, 1]} : vector<8x512xf32> to vector<8x128xf32>
    %51 = arith.negf %50 : vector<8x128xf32>
    %52 = math.exp %51 : vector<8x128xf32>
    %cst_28 = arith.constant 1.000000e+00 : f32
    %53 = vector.broadcast %cst_28 : f32 to vector<8x128xf32>
    %54 = arith.addf %53, %52 : vector<8x128xf32>
    %55 = arith.divf %53, %54 : vector<8x128xf32>
    %56 = vector.extract_strided_slice %49 {offsets = [0, 128], sizes = [8, 128], strides = [1, 1]} : vector<8x512xf32> to vector<8x128xf32>
    %57 = arith.negf %56 : vector<8x128xf32>
    %58 = math.exp %57 : vector<8x128xf32>
    %cst_29 = arith.constant 1.000000e+00 : f32
    %59 = vector.broadcast %cst_29 : f32 to vector<8x128xf32>
    %60 = arith.addf %59, %58 : vector<8x128xf32>
    %61 = arith.divf %59, %60 : vector<8x128xf32>
    %62 = vector.extract_strided_slice %49 {offsets = [0, 256], sizes = [8, 128], strides = [1, 1]} : vector<8x512xf32> to vector<8x128xf32>
    %63 = math.tanh %62 : vector<8x128xf32>
    %64 = vector.extract_strided_slice %49 {offsets = [0, 384], sizes = [8, 128], strides = [1, 1]} : vector<8x512xf32> to vector<8x128xf32>
    %65 = arith.negf %64 : vector<8x128xf32>
    %66 = math.exp %65 : vector<8x128xf32>
    %cst_30 = arith.constant 1.000000e+00 : f32
    %67 = vector.broadcast %cst_30 : f32 to vector<8x128xf32>
    %68 = arith.addf %67, %66 : vector<8x128xf32>
    %69 = arith.divf %67, %68 : vector<8x128xf32>
    %70 = arith.mulf %61, %7 : vector<8x128xf32>
    %71 = arith.mulf %55, %63 : vector<8x128xf32>
    %72 = arith.addf %70, %71 : vector<8x128xf32>
    %73 = math.tanh %72 : vector<8x128xf32>
    %74 = arith.mulf %69, %73 : vector<8x128xf32>
    %75 = arith.truncf %74 : vector<8x128xf32> to vector<8x128xbf16>
    %c0_31 = arith.constant 0 : index
    %c0_32 = arith.constant 0 : index
    %76 = vector.load %arg6[%c0_31, %c0_32] : memref<128x512xbf16, #tpu.memory_space<vmem>>, vector<128x512xbf16>
    %cst_33 = arith.constant dense<0.000000e+00> : vector<8x512xf32>
    %77 = tpu.matmul %75, %76, %cst_33 {dimension_numbers = #tpu.dot_dimension_numbers<[1], [0], [0], [1], [0, 0, 1, 1], [], []>} : vector<8x128xbf16>, vector<128x512xbf16>, vector<8x512xf32> -> vector<8x512xf32>
    %78 = arith.truncf %5 : vector<8x128xf32> to vector<8x128xbf16>
    %c0_34 = arith.constant 0 : index
    %c0_35 = arith.constant 0 : index
    %79 = vector.load %arg7[%c0_34, %c0_35] : memref<128x512xbf16, #tpu.memory_space<vmem>>, vector<128x512xbf16>
    %cst_36 = arith.constant dense<0.000000e+00> : vector<8x512xf32>
    %80 = tpu.matmul %78, %79, %cst_36 {dimension_numbers = #tpu.dot_dimension_numbers<[1], [0], [0], [1], [0, 0, 1, 1], [], []>} : vector<8x128xbf16>, vector<128x512xbf16>, vector<8x512xf32> -> vector<8x512xf32>
    %81 = arith.addf %77, %80 : vector<8x512xf32>
    %c0_37 = arith.constant 0 : index
    %c0_38 = arith.constant 0 : index
    %82 = vector.load %arg8[%c0_37, %c0_38] : memref<1x512xf32, #tpu.memory_space<vmem>>, vector<1x512xf32>
    %83 = vector.broadcast %82 : vector<1x512xf32> to vector<8x512xf32>
    %84 = arith.addf %81, %83 : vector<8x512xf32>
    %85 = vector.extract_strided_slice %84 {offsets = [0, 0], sizes = [8, 128], strides = [1, 1]} : vector<8x512xf32> to vector<8x128xf32>
    %86 = arith.negf %85 : vector<8x128xf32>
    %87 = math.exp %86 : vector<8x128xf32>
    %cst_39 = arith.constant 1.000000e+00 : f32
    %88 = vector.broadcast %cst_39 : f32 to vector<8x128xf32>
    %89 = arith.addf %88, %87 : vector<8x128xf32>
    %90 = arith.divf %88, %89 : vector<8x128xf32>
    %91 = vector.extract_strided_slice %84 {offsets = [0, 128], sizes = [8, 128], strides = [1, 1]} : vector<8x512xf32> to vector<8x128xf32>
    %92 = arith.negf %91 : vector<8x128xf32>
    %93 = math.exp %92 : vector<8x128xf32>
    %cst_40 = arith.constant 1.000000e+00 : f32
    %94 = vector.broadcast %cst_40 : f32 to vector<8x128xf32>
    %95 = arith.addf %94, %93 : vector<8x128xf32>
    %96 = arith.divf %94, %95 : vector<8x128xf32>
    %97 = vector.extract_strided_slice %84 {offsets = [0, 256], sizes = [8, 128], strides = [1, 1]} : vector<8x512xf32> to vector<8x128xf32>
    %98 = math.tanh %97 : vector<8x128xf32>
    %99 = vector.extract_strided_slice %84 {offsets = [0, 384], sizes = [8, 128], strides = [1, 1]} : vector<8x512xf32> to vector<8x128xf32>
    %100 = arith.negf %99 : vector<8x128xf32>
    %101 = math.exp %100 : vector<8x128xf32>
    %cst_41 = arith.constant 1.000000e+00 : f32
    %102 = vector.broadcast %cst_41 : f32 to vector<8x128xf32>
    %103 = arith.addf %102, %101 : vector<8x128xf32>
    %104 = arith.divf %102, %103 : vector<8x128xf32>
    %105 = arith.mulf %96, %8 : vector<8x128xf32>
    %106 = arith.mulf %90, %98 : vector<8x128xf32>
    %107 = arith.addf %105, %106 : vector<8x128xf32>
    %108 = math.tanh %107 : vector<8x128xf32>
    %109 = arith.mulf %104, %108 : vector<8x128xf32>
    %c1 = arith.constant 1 : index
    %c0_42 = arith.constant 0 : index
    %c0_43 = arith.constant 0 : index
    %110 = vector.load %arg1[%c1, %c0_42, %c0_43] : memref<8x8x512xf32, #tpu.memory_space<vmem>>, vector<1x8x512xf32>
    %111 = vector.shape_cast %110 : vector<1x8x512xf32> to vector<8x512xf32>
    %112 = arith.truncf %39 : vector<8x128xf32> to vector<8x128xbf16>
    %c0_44 = arith.constant 0 : index
    %c0_45 = arith.constant 0 : index
    %113 = vector.load %arg2[%c0_44, %c0_45] : memref<128x512xbf16, #tpu.memory_space<vmem>>, vector<128x512xbf16>
    %cst_46 = arith.constant dense<0.000000e+00> : vector<8x512xf32>
    %114 = tpu.matmul %112, %113, %cst_46 {dimension_numbers = #tpu.dot_dimension_numbers<[1], [0], [0], [1], [0, 0, 1, 1], [], []>} : vector<8x128xbf16>, vector<128x512xbf16>, vector<8x512xf32> -> vector<8x512xf32>
    %115 = arith.addf %111, %114 : vector<8x512xf32>
    %116 = vector.extract_strided_slice %115 {offsets = [0, 0], sizes = [8, 128], strides = [1, 1]} : vector<8x512xf32> to vector<8x128xf32>
    %117 = arith.negf %116 : vector<8x128xf32>
    %118 = math.exp %117 : vector<8x128xf32>
    %cst_47 = arith.constant 1.000000e+00 : f32
    %119 = vector.broadcast %cst_47 : f32 to vector<8x128xf32>
    %120 = arith.addf %119, %118 : vector<8x128xf32>
    %121 = arith.divf %119, %120 : vector<8x128xf32>
    %122 = vector.extract_strided_slice %115 {offsets = [0, 128], sizes = [8, 128], strides = [1, 1]} : vector<8x512xf32> to vector<8x128xf32>
    %123 = arith.negf %122 : vector<8x128xf32>
    %124 = math.exp %123 : vector<8x128xf32>
    %cst_48 = arith.constant 1.000000e+00 : f32
    %125 = vector.broadcast %cst_48 : f32 to vector<8x128xf32>
    %126 = arith.addf %125, %124 : vector<8x128xf32>
    %127 = arith.divf %125, %126 : vector<8x128xf32>
    %128 = vector.extract_strided_slice %115 {offsets = [0, 256], sizes = [8, 128], strides = [1, 1]} : vector<8x512xf32> to vector<8x128xf32>
    %129 = math.tanh %128 : vector<8x128xf32>
    %130 = vector.extract_strided_slice %115 {offsets = [0, 384], sizes = [8, 128], strides = [1, 1]} : vector<8x512xf32> to vector<8x128xf32>
    %131 = arith.negf %130 : vector<8x128xf32>
    %132 = math.exp %131 : vector<8x128xf32>
    %cst_49 = arith.constant 1.000000e+00 : f32
    %133 = vector.broadcast %cst_49 : f32 to vector<8x128xf32>
    %134 = arith.addf %133, %132 : vector<8x128xf32>
    %135 = arith.divf %133, %134 : vector<8x128xf32>
    %136 = arith.mulf %127, %37 : vector<8x128xf32>
    %137 = arith.mulf %121, %129 : vector<8x128xf32>
    %138 = arith.addf %136, %137 : vector<8x128xf32>
    %139 = math.tanh %138 : vector<8x128xf32>
    %140 = arith.mulf %135, %139 : vector<8x128xf32>
    %141 = arith.truncf %140 : vector<8x128xf32> to vector<8x128xbf16>
    %c0_50 = arith.constant 0 : index
    %c0_51 = arith.constant 0 : index
    %142 = vector.load %arg3[%c0_50, %c0_51] : memref<128x512xbf16, #tpu.memory_space<vmem>>, vector<128x512xbf16>
    %cst_52 = arith.constant dense<0.000000e+00> : vector<8x512xf32>
    %143 = tpu.matmul %141, %142, %cst_52 {dimension_numbers = #tpu.dot_dimension_numbers<[1], [0], [0], [1], [0, 0, 1, 1], [], []>} : vector<8x128xbf16>, vector<128x512xbf16>, vector<8x512xf32> -> vector<8x512xf32>
    %144 = arith.truncf %74 : vector<8x128xf32> to vector<8x128xbf16>
    %c0_53 = arith.constant 0 : index
    %c0_54 = arith.constant 0 : index
    %145 = vector.load %arg4[%c0_53, %c0_54] : memref<128x512xbf16, #tpu.memory_space<vmem>>, vector<128x512xbf16>
    %cst_55 = arith.constant dense<0.000000e+00> : vector<8x512xf32>
    %146 = tpu.matmul %144, %145, %cst_55 {dimension_numbers = #tpu.dot_dimension_numbers<[1], [0], [0], [1], [0, 0, 1, 1], [], []>} : vector<8x128xbf16>, vector<128x512xbf16>, vector<8x512xf32> -> vector<8x512xf32>
    %147 = arith.addf %143, %146 : vector<8x512xf32>
    %c0_56 = arith.constant 0 : index
    %c0_57 = arith.constant 0 : index
    %148 = vector.load %arg5[%c0_56, %c0_57] : memref<1x512xf32, #tpu.memory_space<vmem>>, vector<1x512xf32>
    %149 = vector.broadcast %148 : vector<1x512xf32> to vector<8x512xf32>
    %150 = arith.addf %147, %149 : vector<8x512xf32>
    %151 = vector.extract_strided_slice %150 {offsets = [0, 0], sizes = [8, 128], strides = [1, 1]} : vector<8x512xf32> to vector<8x128xf32>
    %152 = arith.negf %151 : vector<8x128xf32>
    %153 = math.exp %152 : vector<8x128xf32>
    %cst_58 = arith.constant 1.000000e+00 : f32
    %154 = vector.broadcast %cst_58 : f32 to vector<8x128xf32>
    %155 = arith.addf %154, %153 : vector<8x128xf32>
    %156 = arith.divf %154, %155 : vector<8x128xf32>
    %157 = vector.extract_strided_slice %150 {offsets = [0, 128], sizes = [8, 128], strides = [1, 1]} : vector<8x512xf32> to vector<8x128xf32>
    %158 = arith.negf %157 : vector<8x128xf32>
    %159 = math.exp %158 : vector<8x128xf32>
    %cst_59 = arith.constant 1.000000e+00 : f32
    %160 = vector.broadcast %cst_59 : f32 to vector<8x128xf32>
    %161 = arith.addf %160, %159 : vector<8x128xf32>
    %162 = arith.divf %160, %161 : vector<8x128xf32>
    %163 = vector.extract_strided_slice %150 {offsets = [0, 256], sizes = [8, 128], strides = [1, 1]} : vector<8x512xf32> to vector<8x128xf32>
    %164 = math.tanh %163 : vector<8x128xf32>
    %165 = vector.extract_strided_slice %150 {offsets = [0, 384], sizes = [8, 128], strides = [1, 1]} : vector<8x512xf32> to vector<8x128xf32>
    %166 = arith.negf %165 : vector<8x128xf32>
    %167 = math.exp %166 : vector<8x128xf32>
    %cst_60 = arith.constant 1.000000e+00 : f32
    %168 = vector.broadcast %cst_60 : f32 to vector<8x128xf32>
    %169 = arith.addf %168, %167 : vector<8x128xf32>
    %170 = arith.divf %168, %169 : vector<8x128xf32>
    %171 = arith.mulf %162, %72 : vector<8x128xf32>
    %172 = arith.mulf %156, %164 : vector<8x128xf32>
    %173 = arith.addf %171, %172 : vector<8x128xf32>
    %174 = math.tanh %173 : vector<8x128xf32>
    %175 = arith.mulf %170, %174 : vector<8x128xf32>
    %176 = arith.truncf %175 : vector<8x128xf32> to vector<8x128xbf16>
    %c0_61 = arith.constant 0 : index
    %c0_62 = arith.constant 0 : index
    %177 = vector.load %arg6[%c0_61, %c0_62] : memref<128x512xbf16, #tpu.memory_space<vmem>>, vector<128x512xbf16>
    %cst_63 = arith.constant dense<0.000000e+00> : vector<8x512xf32>
    %178 = tpu.matmul %176, %177, %cst_63 {dimension_numbers = #tpu.dot_dimension_numbers<[1], [0], [0], [1], [0, 0, 1, 1], [], []>} : vector<8x128xbf16>, vector<128x512xbf16>, vector<8x512xf32> -> vector<8x512xf32>
    %179 = arith.truncf %109 : vector<8x128xf32> to vector<8x128xbf16>
    %c0_64 = arith.constant 0 : index
    %c0_65 = arith.constant 0 : index
    %180 = vector.load %arg7[%c0_64, %c0_65] : memref<128x512xbf16, #tpu.memory_space<vmem>>, vector<128x512xbf16>
    %cst_66 = arith.constant dense<0.000000e+00> : vector<8x512xf32>
    %181 = tpu.matmul %179, %180, %cst_66 {dimension_numbers = #tpu.dot_dimension_numbers<[1], [0], [0], [1], [0, 0, 1, 1], [], []>} : vector<8x128xbf16>, vector<128x512xbf16>, vector<8x512xf32> -> vector<8x512xf32>
    %182 = arith.addf %178, %181 : vector<8x512xf32>
    %c0_67 = arith.constant 0 : index
    %c0_68 = arith.constant 0 : index
    %183 = vector.load %arg8[%c0_67, %c0_68] : memref<1x512xf32, #tpu.memory_space<vmem>>, vector<1x512xf32>
    %184 = vector.broadcast %183 : vector<1x512xf32> to vector<8x512xf32>
    %185 = arith.addf %182, %184 : vector<8x512xf32>
    %186 = vector.extract_strided_slice %185 {offsets = [0, 0], sizes = [8, 128], strides = [1, 1]} : vector<8x512xf32> to vector<8x128xf32>
    %187 = arith.negf %186 : vector<8x128xf32>
    %188 = math.exp %187 : vector<8x128xf32>
    %cst_69 = arith.constant 1.000000e+00 : f32
    %189 = vector.broadcast %cst_69 : f32 to vector<8x128xf32>
    %190 = arith.addf %189, %188 : vector<8x128xf32>
    %191 = arith.divf %189, %190 : vector<8x128xf32>
    %192 = vector.extract_strided_slice %185 {offsets = [0, 128], sizes = [8, 128], strides = [1, 1]} : vector<8x512xf32> to vector<8x128xf32>
    %193 = arith.negf %192 : vector<8x128xf32>
    %194 = math.exp %193 : vector<8x128xf32>
    %cst_70 = arith.constant 1.000000e+00 : f32
    %195 = vector.broadcast %cst_70 : f32 to vector<8x128xf32>
    %196 = arith.addf %195, %194 : vector<8x128xf32>
    %197 = arith.divf %195, %196 : vector<8x128xf32>
    %198 = vector.extract_strided_slice %185 {offsets = [0, 256], sizes = [8, 128], strides = [1, 1]} : vector<8x512xf32> to vector<8x128xf32>
    %199 = math.tanh %198 : vector<8x128xf32>
    %200 = vector.extract_strided_slice %185 {offsets = [0, 384], sizes = [8, 128], strides = [1, 1]} : vector<8x512xf32> to vector<8x128xf32>
    %201 = arith.negf %200 : vector<8x128xf32>
    %202 = math.exp %201 : vector<8x128xf32>
    %cst_71 = arith.constant 1.000000e+00 : f32
    %203 = vector.broadcast %cst_71 : f32 to vector<8x128xf32>
    %204 = arith.addf %203, %202 : vector<8x128xf32>
    %205 = arith.divf %203, %204 : vector<8x128xf32>
    %206 = arith.mulf %197, %107 : vector<8x128xf32>
    %207 = arith.mulf %191, %199 : vector<8x128xf32>
    %208 = arith.addf %206, %207 : vector<8x128xf32>
    %209 = math.tanh %208 : vector<8x128xf32>
    %210 = arith.mulf %205, %209 : vector<8x128xf32>
    %c2 = arith.constant 2 : index
    %c0_72 = arith.constant 0 : index
    %c0_73 = arith.constant 0 : index
    %211 = vector.load %arg1[%c2, %c0_72, %c0_73] : memref<8x8x512xf32, #tpu.memory_space<vmem>>, vector<1x8x512xf32>
    %212 = vector.shape_cast %211 : vector<1x8x512xf32> to vector<8x512xf32>
    %213 = arith.truncf %140 : vector<8x128xf32> to vector<8x128xbf16>
    %c0_74 = arith.constant 0 : index
    %c0_75 = arith.constant 0 : index
    %214 = vector.load %arg2[%c0_74, %c0_75] : memref<128x512xbf16, #tpu.memory_space<vmem>>, vector<128x512xbf16>
    %cst_76 = arith.constant dense<0.000000e+00> : vector<8x512xf32>
    %215 = tpu.matmul %213, %214, %cst_76 {dimension_numbers = #tpu.dot_dimension_numbers<[1], [0], [0], [1], [0, 0, 1, 1], [], []>} : vector<8x128xbf16>, vector<128x512xbf16>, vector<8x512xf32> -> vector<8x512xf32>
    %216 = arith.addf %212, %215 : vector<8x512xf32>
    %217 = vector.extract_strided_slice %216 {offsets = [0, 0], sizes = [8, 128], strides = [1, 1]} : vector<8x512xf32> to vector<8x128xf32>
    %218 = arith.negf %217 : vector<8x128xf32>
    %219 = math.exp %218 : vector<8x128xf32>
    %cst_77 = arith.constant 1.000000e+00 : f32
    %220 = vector.broadcast %cst_77 : f32 to vector<8x128xf32>
    %221 = arith.addf %220, %219 : vector<8x128xf32>
    %222 = arith.divf %220, %221 : vector<8x128xf32>
    %223 = vector.extract_strided_slice %216 {offsets = [0, 128], sizes = [8, 128], strides = [1, 1]} : vector<8x512xf32> to vector<8x128xf32>
    %224 = arith.negf %223 : vector<8x128xf32>
    %225 = math.exp %224 : vector<8x128xf32>
    %cst_78 = arith.constant 1.000000e+00 : f32
    %226 = vector.broadcast %cst_78 : f32 to vector<8x128xf32>
    %227 = arith.addf %226, %225 : vector<8x128xf32>
    %228 = arith.divf %226, %227 : vector<8x128xf32>
    %229 = vector.extract_strided_slice %216 {offsets = [0, 256], sizes = [8, 128], strides = [1, 1]} : vector<8x512xf32> to vector<8x128xf32>
    %230 = math.tanh %229 : vector<8x128xf32>
    %231 = vector.extract_strided_slice %216 {offsets = [0, 384], sizes = [8, 128], strides = [1, 1]} : vector<8x512xf32> to vector<8x128xf32>
    %232 = arith.negf %231 : vector<8x128xf32>
    %233 = math.exp %232 : vector<8x128xf32>
    %cst_79 = arith.constant 1.000000e+00 : f32
    %234 = vector.broadcast %cst_79 : f32 to vector<8x128xf32>
    %235 = arith.addf %234, %233 : vector<8x128xf32>
    %236 = arith.divf %234, %235 : vector<8x128xf32>
    %237 = arith.mulf %228, %138 : vector<8x128xf32>
    %238 = arith.mulf %222, %230 : vector<8x128xf32>
    %239 = arith.addf %237, %238 : vector<8x128xf32>
    %240 = math.tanh %239 : vector<8x128xf32>
    %241 = arith.mulf %236, %240 : vector<8x128xf32>
    %242 = arith.truncf %241 : vector<8x128xf32> to vector<8x128xbf16>
    %c0_80 = arith.constant 0 : index
    %c0_81 = arith.constant 0 : index
    %243 = vector.load %arg3[%c0_80, %c0_81] : memref<128x512xbf16, #tpu.memory_space<vmem>>, vector<128x512xbf16>
    %cst_82 = arith.constant dense<0.000000e+00> : vector<8x512xf32>
    %244 = tpu.matmul %242, %243, %cst_82 {dimension_numbers = #tpu.dot_dimension_numbers<[1], [0], [0], [1], [0, 0, 1, 1], [], []>} : vector<8x128xbf16>, vector<128x512xbf16>, vector<8x512xf32> -> vector<8x512xf32>
    %245 = arith.truncf %175 : vector<8x128xf32> to vector<8x128xbf16>
    %c0_83 = arith.constant 0 : index
    %c0_84 = arith.constant 0 : index
    %246 = vector.load %arg4[%c0_83, %c0_84] : memref<128x512xbf16, #tpu.memory_space<vmem>>, vector<128x512xbf16>
    %cst_85 = arith.constant dense<0.000000e+00> : vector<8x512xf32>
    %247 = tpu.matmul %245, %246, %cst_85 {dimension_numbers = #tpu.dot_dimension_numbers<[1], [0], [0], [1], [0, 0, 1, 1], [], []>} : vector<8x128xbf16>, vector<128x512xbf16>, vector<8x512xf32> -> vector<8x512xf32>
    %248 = arith.addf %244, %247 : vector<8x512xf32>
    %c0_86 = arith.constant 0 : index
    %c0_87 = arith.constant 0 : index
    %249 = vector.load %arg5[%c0_86, %c0_87] : memref<1x512xf32, #tpu.memory_space<vmem>>, vector<1x512xf32>
    %250 = vector.broadcast %249 : vector<1x512xf32> to vector<8x512xf32>
    %251 = arith.addf %248, %250 : vector<8x512xf32>
    %252 = vector.extract_strided_slice %251 {offsets = [0, 0], sizes = [8, 128], strides = [1, 1]} : vector<8x512xf32> to vector<8x128xf32>
    %253 = arith.negf %252 : vector<8x128xf32>
    %254 = math.exp %253 : vector<8x128xf32>
    %cst_88 = arith.constant 1.000000e+00 : f32
    %255 = vector.broadcast %cst_88 : f32 to vector<8x128xf32>
    %256 = arith.addf %255, %254 : vector<8x128xf32>
    %257 = arith.divf %255, %256 : vector<8x128xf32>
    %258 = vector.extract_strided_slice %251 {offsets = [0, 128], sizes = [8, 128], strides = [1, 1]} : vector<8x512xf32> to vector<8x128xf32>
    %259 = arith.negf %258 : vector<8x128xf32>
    %260 = math.exp %259 : vector<8x128xf32>
    %cst_89 = arith.constant 1.000000e+00 : f32
    %261 = vector.broadcast %cst_89 : f32 to vector<8x128xf32>
    %262 = arith.addf %261, %260 : vector<8x128xf32>
    %263 = arith.divf %261, %262 : vector<8x128xf32>
    %264 = vector.extract_strided_slice %251 {offsets = [0, 256], sizes = [8, 128], strides = [1, 1]} : vector<8x512xf32> to vector<8x128xf32>
    %265 = math.tanh %264 : vector<8x128xf32>
    %266 = vector.extract_strided_slice %251 {offsets = [0, 384], sizes = [8, 128], strides = [1, 1]} : vector<8x512xf32> to vector<8x128xf32>
    %267 = arith.negf %266 : vector<8x128xf32>
    %268 = math.exp %267 : vector<8x128xf32>
    %cst_90 = arith.constant 1.000000e+00 : f32
    %269 = vector.broadcast %cst_90 : f32 to vector<8x128xf32>
    %270 = arith.addf %269, %268 : vector<8x128xf32>
    %271 = arith.divf %269, %270 : vector<8x128xf32>
    %272 = arith.mulf %263, %173 : vector<8x128xf32>
    %273 = arith.mulf %257, %265 : vector<8x128xf32>
    %274 = arith.addf %272, %273 : vector<8x128xf32>
    %275 = math.tanh %274 : vector<8x128xf32>
    %276 = arith.mulf %271, %275 : vector<8x128xf32>
    %277 = arith.truncf %276 : vector<8x128xf32> to vector<8x128xbf16>
    %c0_91 = arith.constant 0 : index
    %c0_92 = arith.constant 0 : index
    %278 = vector.load %arg6[%c0_91, %c0_92] : memref<128x512xbf16, #tpu.memory_space<vmem>>, vector<128x512xbf16>
    %cst_93 = arith.constant dense<0.000000e+00> : vector<8x512xf32>
    %279 = tpu.matmul %277, %278, %cst_93 {dimension_numbers = #tpu.dot_dimension_numbers<[1], [0], [0], [1], [0, 0, 1, 1], [], []>} : vector<8x128xbf16>, vector<128x512xbf16>, vector<8x512xf32> -> vector<8x512xf32>
    %280 = arith.truncf %210 : vector<8x128xf32> to vector<8x128xbf16>
    %c0_94 = arith.constant 0 : index
    %c0_95 = arith.constant 0 : index
    %281 = vector.load %arg7[%c0_94, %c0_95] : memref<128x512xbf16, #tpu.memory_space<vmem>>, vector<128x512xbf16>
    %cst_96 = arith.constant dense<0.000000e+00> : vector<8x512xf32>
    %282 = tpu.matmul %280, %281, %cst_96 {dimension_numbers = #tpu.dot_dimension_numbers<[1], [0], [0], [1], [0, 0, 1, 1], [], []>} : vector<8x128xbf16>, vector<128x512xbf16>, vector<8x512xf32> -> vector<8x512xf32>
    %283 = arith.addf %279, %282 : vector<8x512xf32>
    %c0_97 = arith.constant 0 : index
    %c0_98 = arith.constant 0 : index
    %284 = vector.load %arg8[%c0_97, %c0_98] : memref<1x512xf32, #tpu.memory_space<vmem>>, vector<1x512xf32>
    %285 = vector.broadcast %284 : vector<1x512xf32> to vector<8x512xf32>
    %286 = arith.addf %283, %285 : vector<8x512xf32>
    %287 = vector.extract_strided_slice %286 {offsets = [0, 0], sizes = [8, 128], strides = [1, 1]} : vector<8x512xf32> to vector<8x128xf32>
    %288 = arith.negf %287 : vector<8x128xf32>
    %289 = math.exp %288 : vector<8x128xf32>
    %cst_99 = arith.constant 1.000000e+00 : f32
    %290 = vector.broadcast %cst_99 : f32 to vector<8x128xf32>
    %291 = arith.addf %290, %289 : vector<8x128xf32>
    %292 = arith.divf %290, %291 : vector<8x128xf32>
    %293 = vector.extract_strided_slice %286 {offsets = [0, 128], sizes = [8, 128], strides = [1, 1]} : vector<8x512xf32> to vector<8x128xf32>
    %294 = arith.negf %293 : vector<8x128xf32>
    %295 = math.exp %294 : vector<8x128xf32>
    %cst_100 = arith.constant 1.000000e+00 : f32
    %296 = vector.broadcast %cst_100 : f32 to vector<8x128xf32>
    %297 = arith.addf %296, %295 : vector<8x128xf32>
    %298 = arith.divf %296, %297 : vector<8x128xf32>
    %299 = vector.extract_strided_slice %286 {offsets = [0, 256], sizes = [8, 128], strides = [1, 1]} : vector<8x512xf32> to vector<8x128xf32>
    %300 = math.tanh %299 : vector<8x128xf32>
    %301 = vector.extract_strided_slice %286 {offsets = [0, 384], sizes = [8, 128], strides = [1, 1]} : vector<8x512xf32> to vector<8x128xf32>
    %302 = arith.negf %301 : vector<8x128xf32>
    %303 = math.exp %302 : vector<8x128xf32>
    %cst_101 = arith.constant 1.000000e+00 : f32
    %304 = vector.broadcast %cst_101 : f32 to vector<8x128xf32>
    %305 = arith.addf %304, %303 : vector<8x128xf32>
    %306 = arith.divf %304, %305 : vector<8x128xf32>
    %307 = arith.mulf %298, %208 : vector<8x128xf32>
    %308 = arith.mulf %292, %300 : vector<8x128xf32>
    %309 = arith.addf %307, %308 : vector<8x128xf32>
    %310 = math.tanh %309 : vector<8x128xf32>
    %311 = arith.mulf %306, %310 : vector<8x128xf32>
    %c3 = arith.constant 3 : index
    %c0_102 = arith.constant 0 : index
    %c0_103 = arith.constant 0 : index
    %312 = vector.load %arg1[%c3, %c0_102, %c0_103] : memref<8x8x512xf32, #tpu.memory_space<vmem>>, vector<1x8x512xf32>
    %313 = vector.shape_cast %312 : vector<1x8x512xf32> to vector<8x512xf32>
    %314 = arith.truncf %241 : vector<8x128xf32> to vector<8x128xbf16>
    %c0_104 = arith.constant 0 : index
    %c0_105 = arith.constant 0 : index
    %315 = vector.load %arg2[%c0_104, %c0_105] : memref<128x512xbf16, #tpu.memory_space<vmem>>, vector<128x512xbf16>
    %cst_106 = arith.constant dense<0.000000e+00> : vector<8x512xf32>
    %316 = tpu.matmul %314, %315, %cst_106 {dimension_numbers = #tpu.dot_dimension_numbers<[1], [0], [0], [1], [0, 0, 1, 1], [], []>} : vector<8x128xbf16>, vector<128x512xbf16>, vector<8x512xf32> -> vector<8x512xf32>
    %317 = arith.addf %313, %316 : vector<8x512xf32>
    %318 = vector.extract_strided_slice %317 {offsets = [0, 0], sizes = [8, 128], strides = [1, 1]} : vector<8x512xf32> to vector<8x128xf32>
    %319 = arith.negf %318 : vector<8x128xf32>
    %320 = math.exp %319 : vector<8x128xf32>
    %cst_107 = arith.constant 1.000000e+00 : f32
    %321 = vector.broadcast %cst_107 : f32 to vector<8x128xf32>
    %322 = arith.addf %321, %320 : vector<8x128xf32>
    %323 = arith.divf %321, %322 : vector<8x128xf32>
    %324 = vector.extract_strided_slice %317 {offsets = [0, 128], sizes = [8, 128], strides = [1, 1]} : vector<8x512xf32> to vector<8x128xf32>
    %325 = arith.negf %324 : vector<8x128xf32>
    %326 = math.exp %325 : vector<8x128xf32>
    %cst_108 = arith.constant 1.000000e+00 : f32
    %327 = vector.broadcast %cst_108 : f32 to vector<8x128xf32>
    %328 = arith.addf %327, %326 : vector<8x128xf32>
    %329 = arith.divf %327, %328 : vector<8x128xf32>
    %330 = vector.extract_strided_slice %317 {offsets = [0, 256], sizes = [8, 128], strides = [1, 1]} : vector<8x512xf32> to vector<8x128xf32>
    %331 = math.tanh %330 : vector<8x128xf32>
    %332 = vector.extract_strided_slice %317 {offsets = [0, 384], sizes = [8, 128], strides = [1, 1]} : vector<8x512xf32> to vector<8x128xf32>
    %333 = arith.negf %332 : vector<8x128xf32>
    %334 = math.exp %333 : vector<8x128xf32>
    %cst_109 = arith.constant 1.000000e+00 : f32
    %335 = vector.broadcast %cst_109 : f32 to vector<8x128xf32>
    %336 = arith.addf %335, %334 : vector<8x128xf32>
    %337 = arith.divf %335, %336 : vector<8x128xf32>
    %338 = arith.mulf %329, %239 : vector<8x128xf32>
    %339 = arith.mulf %323, %331 : vector<8x128xf32>
    %340 = arith.addf %338, %339 : vector<8x128xf32>
    %341 = math.tanh %340 : vector<8x128xf32>
    %342 = arith.mulf %337, %341 : vector<8x128xf32>
    %343 = arith.truncf %342 : vector<8x128xf32> to vector<8x128xbf16>
    %c0_110 = arith.constant 0 : index
    %c0_111 = arith.constant 0 : index
    %344 = vector.load %arg3[%c0_110, %c0_111] : memref<128x512xbf16, #tpu.memory_space<vmem>>, vector<128x512xbf16>
    %cst_112 = arith.constant dense<0.000000e+00> : vector<8x512xf32>
    %345 = tpu.matmul %343, %344, %cst_112 {dimension_numbers = #tpu.dot_dimension_numbers<[1], [0], [0], [1], [0, 0, 1, 1], [], []>} : vector<8x128xbf16>, vector<128x512xbf16>, vector<8x512xf32> -> vector<8x512xf32>
    %346 = arith.truncf %276 : vector<8x128xf32> to vector<8x128xbf16>
    %c0_113 = arith.constant 0 : index
    %c0_114 = arith.constant 0 : index
    %347 = vector.load %arg4[%c0_113, %c0_114] : memref<128x512xbf16, #tpu.memory_space<vmem>>, vector<128x512xbf16>
    %cst_115 = arith.constant dense<0.000000e+00> : vector<8x512xf32>
    %348 = tpu.matmul %346, %347, %cst_115 {dimension_numbers = #tpu.dot_dimension_numbers<[1], [0], [0], [1], [0, 0, 1, 1], [], []>} : vector<8x128xbf16>, vector<128x512xbf16>, vector<8x512xf32> -> vector<8x512xf32>
    %349 = arith.addf %345, %348 : vector<8x512xf32>
    %c0_116 = arith.constant 0 : index
    %c0_117 = arith.constant 0 : index
    %350 = vector.load %arg5[%c0_116, %c0_117] : memref<1x512xf32, #tpu.memory_space<vmem>>, vector<1x512xf32>
    %351 = vector.broadcast %350 : vector<1x512xf32> to vector<8x512xf32>
    %352 = arith.addf %349, %351 : vector<8x512xf32>
    %353 = vector.extract_strided_slice %352 {offsets = [0, 0], sizes = [8, 128], strides = [1, 1]} : vector<8x512xf32> to vector<8x128xf32>
    %354 = arith.negf %353 : vector<8x128xf32>
    %355 = math.exp %354 : vector<8x128xf32>
    %cst_118 = arith.constant 1.000000e+00 : f32
    %356 = vector.broadcast %cst_118 : f32 to vector<8x128xf32>
    %357 = arith.addf %356, %355 : vector<8x128xf32>
    %358 = arith.divf %356, %357 : vector<8x128xf32>
    %359 = vector.extract_strided_slice %352 {offsets = [0, 128], sizes = [8, 128], strides = [1, 1]} : vector<8x512xf32> to vector<8x128xf32>
    %360 = arith.negf %359 : vector<8x128xf32>
    %361 = math.exp %360 : vector<8x128xf32>
    %cst_119 = arith.constant 1.000000e+00 : f32
    %362 = vector.broadcast %cst_119 : f32 to vector<8x128xf32>
    %363 = arith.addf %362, %361 : vector<8x128xf32>
    %364 = arith.divf %362, %363 : vector<8x128xf32>
    %365 = vector.extract_strided_slice %352 {offsets = [0, 256], sizes = [8, 128], strides = [1, 1]} : vector<8x512xf32> to vector<8x128xf32>
    %366 = math.tanh %365 : vector<8x128xf32>
    %367 = vector.extract_strided_slice %352 {offsets = [0, 384], sizes = [8, 128], strides = [1, 1]} : vector<8x512xf32> to vector<8x128xf32>
    %368 = arith.negf %367 : vector<8x128xf32>
    %369 = math.exp %368 : vector<8x128xf32>
    %cst_120 = arith.constant 1.000000e+00 : f32
    %370 = vector.broadcast %cst_120 : f32 to vector<8x128xf32>
    %371 = arith.addf %370, %369 : vector<8x128xf32>
    %372 = arith.divf %370, %371 : vector<8x128xf32>
    %373 = arith.mulf %364, %274 : vector<8x128xf32>
    %374 = arith.mulf %358, %366 : vector<8x128xf32>
    %375 = arith.addf %373, %374 : vector<8x128xf32>
    %376 = math.tanh %375 : vector<8x128xf32>
    %377 = arith.mulf %372, %376 : vector<8x128xf32>
    %378 = arith.truncf %377 : vector<8x128xf32> to vector<8x128xbf16>
    %c0_121 = arith.constant 0 : index
    %c0_122 = arith.constant 0 : index
    %379 = vector.load %arg6[%c0_121, %c0_122] : memref<128x512xbf16, #tpu.memory_space<vmem>>, vector<128x512xbf16>
    %cst_123 = arith.constant dense<0.000000e+00> : vector<8x512xf32>
    %380 = tpu.matmul %378, %379, %cst_123 {dimension_numbers = #tpu.dot_dimension_numbers<[1], [0], [0], [1], [0, 0, 1, 1], [], []>} : vector<8x128xbf16>, vector<128x512xbf16>, vector<8x512xf32> -> vector<8x512xf32>
    %381 = arith.truncf %311 : vector<8x128xf32> to vector<8x128xbf16>
    %c0_124 = arith.constant 0 : index
    %c0_125 = arith.constant 0 : index
    %382 = vector.load %arg7[%c0_124, %c0_125] : memref<128x512xbf16, #tpu.memory_space<vmem>>, vector<128x512xbf16>
    %cst_126 = arith.constant dense<0.000000e+00> : vector<8x512xf32>
    %383 = tpu.matmul %381, %382, %cst_126 {dimension_numbers = #tpu.dot_dimension_numbers<[1], [0], [0], [1], [0, 0, 1, 1], [], []>} : vector<8x128xbf16>, vector<128x512xbf16>, vector<8x512xf32> -> vector<8x512xf32>
    %384 = arith.addf %380, %383 : vector<8x512xf32>
    %c0_127 = arith.constant 0 : index
    %c0_128 = arith.constant 0 : index
    %385 = vector.load %arg8[%c0_127, %c0_128] : memref<1x512xf32, #tpu.memory_space<vmem>>, vector<1x512xf32>
    %386 = vector.broadcast %385 : vector<1x512xf32> to vector<8x512xf32>
    %387 = arith.addf %384, %386 : vector<8x512xf32>
    %388 = vector.extract_strided_slice %387 {offsets = [0, 0], sizes = [8, 128], strides = [1, 1]} : vector<8x512xf32> to vector<8x128xf32>
    %389 = arith.negf %388 : vector<8x128xf32>
    %390 = math.exp %389 : vector<8x128xf32>
    %cst_129 = arith.constant 1.000000e+00 : f32
    %391 = vector.broadcast %cst_129 : f32 to vector<8x128xf32>
    %392 = arith.addf %391, %390 : vector<8x128xf32>
    %393 = arith.divf %391, %392 : vector<8x128xf32>
    %394 = vector.extract_strided_slice %387 {offsets = [0, 128], sizes = [8, 128], strides = [1, 1]} : vector<8x512xf32> to vector<8x128xf32>
    %395 = arith.negf %394 : vector<8x128xf32>
    %396 = math.exp %395 : vector<8x128xf32>
    %cst_130 = arith.constant 1.000000e+00 : f32
    %397 = vector.broadcast %cst_130 : f32 to vector<8x128xf32>
    %398 = arith.addf %397, %396 : vector<8x128xf32>
    %399 = arith.divf %397, %398 : vector<8x128xf32>
    %400 = vector.extract_strided_slice %387 {offsets = [0, 256], sizes = [8, 128], strides = [1, 1]} : vector<8x512xf32> to vector<8x128xf32>
    %401 = math.tanh %400 : vector<8x128xf32>
    %402 = vector.extract_strided_slice %387 {offsets = [0, 384], sizes = [8, 128], strides = [1, 1]} : vector<8x512xf32> to vector<8x128xf32>
    %403 = arith.negf %402 : vector<8x128xf32>
    %404 = math.exp %403 : vector<8x128xf32>
    %cst_131 = arith.constant 1.000000e+00 : f32
    %405 = vector.broadcast %cst_131 : f32 to vector<8x128xf32>
    %406 = arith.addf %405, %404 : vector<8x128xf32>
    %407 = arith.divf %405, %406 : vector<8x128xf32>
    %408 = arith.mulf %399, %309 : vector<8x128xf32>
    %409 = arith.mulf %393, %401 : vector<8x128xf32>
    %410 = arith.addf %408, %409 : vector<8x128xf32>
    %411 = math.tanh %410 : vector<8x128xf32>
    %412 = arith.mulf %407, %411 : vector<8x128xf32>
    %c4 = arith.constant 4 : index
    %c0_132 = arith.constant 0 : index
    %c0_133 = arith.constant 0 : index
    %413 = vector.load %arg1[%c4, %c0_132, %c0_133] : memref<8x8x512xf32, #tpu.memory_space<vmem>>, vector<1x8x512xf32>
    %414 = vector.shape_cast %413 : vector<1x8x512xf32> to vector<8x512xf32>
    %415 = arith.truncf %342 : vector<8x128xf32> to vector<8x128xbf16>
    %c0_134 = arith.constant 0 : index
    %c0_135 = arith.constant 0 : index
    %416 = vector.load %arg2[%c0_134, %c0_135] : memref<128x512xbf16, #tpu.memory_space<vmem>>, vector<128x512xbf16>
    %cst_136 = arith.constant dense<0.000000e+00> : vector<8x512xf32>
    %417 = tpu.matmul %415, %416, %cst_136 {dimension_numbers = #tpu.dot_dimension_numbers<[1], [0], [0], [1], [0, 0, 1, 1], [], []>} : vector<8x128xbf16>, vector<128x512xbf16>, vector<8x512xf32> -> vector<8x512xf32>
    %418 = arith.addf %414, %417 : vector<8x512xf32>
    %419 = vector.extract_strided_slice %418 {offsets = [0, 0], sizes = [8, 128], strides = [1, 1]} : vector<8x512xf32> to vector<8x128xf32>
    %420 = arith.negf %419 : vector<8x128xf32>
    %421 = math.exp %420 : vector<8x128xf32>
    %cst_137 = arith.constant 1.000000e+00 : f32
    %422 = vector.broadcast %cst_137 : f32 to vector<8x128xf32>
    %423 = arith.addf %422, %421 : vector<8x128xf32>
    %424 = arith.divf %422, %423 : vector<8x128xf32>
    %425 = vector.extract_strided_slice %418 {offsets = [0, 128], sizes = [8, 128], strides = [1, 1]} : vector<8x512xf32> to vector<8x128xf32>
    %426 = arith.negf %425 : vector<8x128xf32>
    %427 = math.exp %426 : vector<8x128xf32>
    %cst_138 = arith.constant 1.000000e+00 : f32
    %428 = vector.broadcast %cst_138 : f32 to vector<8x128xf32>
    %429 = arith.addf %428, %427 : vector<8x128xf32>
    %430 = arith.divf %428, %429 : vector<8x128xf32>
    %431 = vector.extract_strided_slice %418 {offsets = [0, 256], sizes = [8, 128], strides = [1, 1]} : vector<8x512xf32> to vector<8x128xf32>
    %432 = math.tanh %431 : vector<8x128xf32>
    %433 = vector.extract_strided_slice %418 {offsets = [0, 384], sizes = [8, 128], strides = [1, 1]} : vector<8x512xf32> to vector<8x128xf32>
    %434 = arith.negf %433 : vector<8x128xf32>
    %435 = math.exp %434 : vector<8x128xf32>
    %cst_139 = arith.constant 1.000000e+00 : f32
    %436 = vector.broadcast %cst_139 : f32 to vector<8x128xf32>
    %437 = arith.addf %436, %435 : vector<8x128xf32>
    %438 = arith.divf %436, %437 : vector<8x128xf32>
    %439 = arith.mulf %430, %340 : vector<8x128xf32>
    %440 = arith.mulf %424, %432 : vector<8x128xf32>
    %441 = arith.addf %439, %440 : vector<8x128xf32>
    %442 = math.tanh %441 : vector<8x128xf32>
    %443 = arith.mulf %438, %442 : vector<8x128xf32>
    %444 = arith.truncf %443 : vector<8x128xf32> to vector<8x128xbf16>
    %c0_140 = arith.constant 0 : index
    %c0_141 = arith.constant 0 : index
    %445 = vector.load %arg3[%c0_140, %c0_141] : memref<128x512xbf16, #tpu.memory_space<vmem>>, vector<128x512xbf16>
    %cst_142 = arith.constant dense<0.000000e+00> : vector<8x512xf32>
    %446 = tpu.matmul %444, %445, %cst_142 {dimension_numbers = #tpu.dot_dimension_numbers<[1], [0], [0], [1], [0, 0, 1, 1], [], []>} : vector<8x128xbf16>, vector<128x512xbf16>, vector<8x512xf32> -> vector<8x512xf32>
    %447 = arith.truncf %377 : vector<8x128xf32> to vector<8x128xbf16>
    %c0_143 = arith.constant 0 : index
    %c0_144 = arith.constant 0 : index
    %448 = vector.load %arg4[%c0_143, %c0_144] : memref<128x512xbf16, #tpu.memory_space<vmem>>, vector<128x512xbf16>
    %cst_145 = arith.constant dense<0.000000e+00> : vector<8x512xf32>
    %449 = tpu.matmul %447, %448, %cst_145 {dimension_numbers = #tpu.dot_dimension_numbers<[1], [0], [0], [1], [0, 0, 1, 1], [], []>} : vector<8x128xbf16>, vector<128x512xbf16>, vector<8x512xf32> -> vector<8x512xf32>
    %450 = arith.addf %446, %449 : vector<8x512xf32>
    %c0_146 = arith.constant 0 : index
    %c0_147 = arith.constant 0 : index
    %451 = vector.load %arg5[%c0_146, %c0_147] : memref<1x512xf32, #tpu.memory_space<vmem>>, vector<1x512xf32>
    %452 = vector.broadcast %451 : vector<1x512xf32> to vector<8x512xf32>
    %453 = arith.addf %450, %452 : vector<8x512xf32>
    %454 = vector.extract_strided_slice %453 {offsets = [0, 0], sizes = [8, 128], strides = [1, 1]} : vector<8x512xf32> to vector<8x128xf32>
    %455 = arith.negf %454 : vector<8x128xf32>
    %456 = math.exp %455 : vector<8x128xf32>
    %cst_148 = arith.constant 1.000000e+00 : f32
    %457 = vector.broadcast %cst_148 : f32 to vector<8x128xf32>
    %458 = arith.addf %457, %456 : vector<8x128xf32>
    %459 = arith.divf %457, %458 : vector<8x128xf32>
    %460 = vector.extract_strided_slice %453 {offsets = [0, 128], sizes = [8, 128], strides = [1, 1]} : vector<8x512xf32> to vector<8x128xf32>
    %461 = arith.negf %460 : vector<8x128xf32>
    %462 = math.exp %461 : vector<8x128xf32>
    %cst_149 = arith.constant 1.000000e+00 : f32
    %463 = vector.broadcast %cst_149 : f32 to vector<8x128xf32>
    %464 = arith.addf %463, %462 : vector<8x128xf32>
    %465 = arith.divf %463, %464 : vector<8x128xf32>
    %466 = vector.extract_strided_slice %453 {offsets = [0, 256], sizes = [8, 128], strides = [1, 1]} : vector<8x512xf32> to vector<8x128xf32>
    %467 = math.tanh %466 : vector<8x128xf32>
    %468 = vector.extract_strided_slice %453 {offsets = [0, 384], sizes = [8, 128], strides = [1, 1]} : vector<8x512xf32> to vector<8x128xf32>
    %469 = arith.negf %468 : vector<8x128xf32>
    %470 = math.exp %469 : vector<8x128xf32>
    %cst_150 = arith.constant 1.000000e+00 : f32
    %471 = vector.broadcast %cst_150 : f32 to vector<8x128xf32>
    %472 = arith.addf %471, %470 : vector<8x128xf32>
    %473 = arith.divf %471, %472 : vector<8x128xf32>
    %474 = arith.mulf %465, %375 : vector<8x128xf32>
    %475 = arith.mulf %459, %467 : vector<8x128xf32>
    %476 = arith.addf %474, %475 : vector<8x128xf32>
    %477 = math.tanh %476 : vector<8x128xf32>
    %478 = arith.mulf %473, %477 : vector<8x128xf32>
    %479 = arith.truncf %478 : vector<8x128xf32> to vector<8x128xbf16>
    %c0_151 = arith.constant 0 : index
    %c0_152 = arith.constant 0 : index
    %480 = vector.load %arg6[%c0_151, %c0_152] : memref<128x512xbf16, #tpu.memory_space<vmem>>, vector<128x512xbf16>
    %cst_153 = arith.constant dense<0.000000e+00> : vector<8x512xf32>
    %481 = tpu.matmul %479, %480, %cst_153 {dimension_numbers = #tpu.dot_dimension_numbers<[1], [0], [0], [1], [0, 0, 1, 1], [], []>} : vector<8x128xbf16>, vector<128x512xbf16>, vector<8x512xf32> -> vector<8x512xf32>
    %482 = arith.truncf %412 : vector<8x128xf32> to vector<8x128xbf16>
    %c0_154 = arith.constant 0 : index
    %c0_155 = arith.constant 0 : index
    %483 = vector.load %arg7[%c0_154, %c0_155] : memref<128x512xbf16, #tpu.memory_space<vmem>>, vector<128x512xbf16>
    %cst_156 = arith.constant dense<0.000000e+00> : vector<8x512xf32>
    %484 = tpu.matmul %482, %483, %cst_156 {dimension_numbers = #tpu.dot_dimension_numbers<[1], [0], [0], [1], [0, 0, 1, 1], [], []>} : vector<8x128xbf16>, vector<128x512xbf16>, vector<8x512xf32> -> vector<8x512xf32>
    %485 = arith.addf %481, %484 : vector<8x512xf32>
    %c0_157 = arith.constant 0 : index
    %c0_158 = arith.constant 0 : index
    %486 = vector.load %arg8[%c0_157, %c0_158] : memref<1x512xf32, #tpu.memory_space<vmem>>, vector<1x512xf32>
    %487 = vector.broadcast %486 : vector<1x512xf32> to vector<8x512xf32>
    %488 = arith.addf %485, %487 : vector<8x512xf32>
    %489 = vector.extract_strided_slice %488 {offsets = [0, 0], sizes = [8, 128], strides = [1, 1]} : vector<8x512xf32> to vector<8x128xf32>
    %490 = arith.negf %489 : vector<8x128xf32>
    %491 = math.exp %490 : vector<8x128xf32>
    %cst_159 = arith.constant 1.000000e+00 : f32
    %492 = vector.broadcast %cst_159 : f32 to vector<8x128xf32>
    %493 = arith.addf %492, %491 : vector<8x128xf32>
    %494 = arith.divf %492, %493 : vector<8x128xf32>
    %495 = vector.extract_strided_slice %488 {offsets = [0, 128], sizes = [8, 128], strides = [1, 1]} : vector<8x512xf32> to vector<8x128xf32>
    %496 = arith.negf %495 : vector<8x128xf32>
    %497 = math.exp %496 : vector<8x128xf32>
    %cst_160 = arith.constant 1.000000e+00 : f32
    %498 = vector.broadcast %cst_160 : f32 to vector<8x128xf32>
    %499 = arith.addf %498, %497 : vector<8x128xf32>
    %500 = arith.divf %498, %499 : vector<8x128xf32>
    %501 = vector.extract_strided_slice %488 {offsets = [0, 256], sizes = [8, 128], strides = [1, 1]} : vector<8x512xf32> to vector<8x128xf32>
    %502 = math.tanh %501 : vector<8x128xf32>
    %503 = vector.extract_strided_slice %488 {offsets = [0, 384], sizes = [8, 128], strides = [1, 1]} : vector<8x512xf32> to vector<8x128xf32>
    %504 = arith.negf %503 : vector<8x128xf32>
    %505 = math.exp %504 : vector<8x128xf32>
    %cst_161 = arith.constant 1.000000e+00 : f32
    %506 = vector.broadcast %cst_161 : f32 to vector<8x128xf32>
    %507 = arith.addf %506, %505 : vector<8x128xf32>
    %508 = arith.divf %506, %507 : vector<8x128xf32>
    %509 = arith.mulf %500, %410 : vector<8x128xf32>
    %510 = arith.mulf %494, %502 : vector<8x128xf32>
    %511 = arith.addf %509, %510 : vector<8x128xf32>
    %512 = math.tanh %511 : vector<8x128xf32>
    %513 = arith.mulf %508, %512 : vector<8x128xf32>
    %c5 = arith.constant 5 : index
    %c0_162 = arith.constant 0 : index
    %c0_163 = arith.constant 0 : index
    %514 = vector.load %arg1[%c5, %c0_162, %c0_163] : memref<8x8x512xf32, #tpu.memory_space<vmem>>, vector<1x8x512xf32>
    %515 = vector.shape_cast %514 : vector<1x8x512xf32> to vector<8x512xf32>
    %516 = arith.truncf %443 : vector<8x128xf32> to vector<8x128xbf16>
    %c0_164 = arith.constant 0 : index
    %c0_165 = arith.constant 0 : index
    %517 = vector.load %arg2[%c0_164, %c0_165] : memref<128x512xbf16, #tpu.memory_space<vmem>>, vector<128x512xbf16>
    %cst_166 = arith.constant dense<0.000000e+00> : vector<8x512xf32>
    %518 = tpu.matmul %516, %517, %cst_166 {dimension_numbers = #tpu.dot_dimension_numbers<[1], [0], [0], [1], [0, 0, 1, 1], [], []>} : vector<8x128xbf16>, vector<128x512xbf16>, vector<8x512xf32> -> vector<8x512xf32>
    %519 = arith.addf %515, %518 : vector<8x512xf32>
    %520 = vector.extract_strided_slice %519 {offsets = [0, 0], sizes = [8, 128], strides = [1, 1]} : vector<8x512xf32> to vector<8x128xf32>
    %521 = arith.negf %520 : vector<8x128xf32>
    %522 = math.exp %521 : vector<8x128xf32>
    %cst_167 = arith.constant 1.000000e+00 : f32
    %523 = vector.broadcast %cst_167 : f32 to vector<8x128xf32>
    %524 = arith.addf %523, %522 : vector<8x128xf32>
    %525 = arith.divf %523, %524 : vector<8x128xf32>
    %526 = vector.extract_strided_slice %519 {offsets = [0, 128], sizes = [8, 128], strides = [1, 1]} : vector<8x512xf32> to vector<8x128xf32>
    %527 = arith.negf %526 : vector<8x128xf32>
    %528 = math.exp %527 : vector<8x128xf32>
    %cst_168 = arith.constant 1.000000e+00 : f32
    %529 = vector.broadcast %cst_168 : f32 to vector<8x128xf32>
    %530 = arith.addf %529, %528 : vector<8x128xf32>
    %531 = arith.divf %529, %530 : vector<8x128xf32>
    %532 = vector.extract_strided_slice %519 {offsets = [0, 256], sizes = [8, 128], strides = [1, 1]} : vector<8x512xf32> to vector<8x128xf32>
    %533 = math.tanh %532 : vector<8x128xf32>
    %534 = vector.extract_strided_slice %519 {offsets = [0, 384], sizes = [8, 128], strides = [1, 1]} : vector<8x512xf32> to vector<8x128xf32>
    %535 = arith.negf %534 : vector<8x128xf32>
    %536 = math.exp %535 : vector<8x128xf32>
    %cst_169 = arith.constant 1.000000e+00 : f32
    %537 = vector.broadcast %cst_169 : f32 to vector<8x128xf32>
    %538 = arith.addf %537, %536 : vector<8x128xf32>
    %539 = arith.divf %537, %538 : vector<8x128xf32>
    %540 = arith.mulf %531, %441 : vector<8x128xf32>
    %541 = arith.mulf %525, %533 : vector<8x128xf32>
    %542 = arith.addf %540, %541 : vector<8x128xf32>
    %543 = math.tanh %542 : vector<8x128xf32>
    %544 = arith.mulf %539, %543 : vector<8x128xf32>
    %545 = arith.truncf %544 : vector<8x128xf32> to vector<8x128xbf16>
    %c0_170 = arith.constant 0 : index
    %c0_171 = arith.constant 0 : index
    %546 = vector.load %arg3[%c0_170, %c0_171] : memref<128x512xbf16, #tpu.memory_space<vmem>>, vector<128x512xbf16>
    %cst_172 = arith.constant dense<0.000000e+00> : vector<8x512xf32>
    %547 = tpu.matmul %545, %546, %cst_172 {dimension_numbers = #tpu.dot_dimension_numbers<[1], [0], [0], [1], [0, 0, 1, 1], [], []>} : vector<8x128xbf16>, vector<128x512xbf16>, vector<8x512xf32> -> vector<8x512xf32>
    %548 = arith.truncf %478 : vector<8x128xf32> to vector<8x128xbf16>
    %c0_173 = arith.constant 0 : index
    %c0_174 = arith.constant 0 : index
    %549 = vector.load %arg4[%c0_173, %c0_174] : memref<128x512xbf16, #tpu.memory_space<vmem>>, vector<128x512xbf16>
    %cst_175 = arith.constant dense<0.000000e+00> : vector<8x512xf32>
    %550 = tpu.matmul %548, %549, %cst_175 {dimension_numbers = #tpu.dot_dimension_numbers<[1], [0], [0], [1], [0, 0, 1, 1], [], []>} : vector<8x128xbf16>, vector<128x512xbf16>, vector<8x512xf32> -> vector<8x512xf32>
    %551 = arith.addf %547, %550 : vector<8x512xf32>
    %c0_176 = arith.constant 0 : index
    %c0_177 = arith.constant 0 : index
    %552 = vector.load %arg5[%c0_176, %c0_177] : memref<1x512xf32, #tpu.memory_space<vmem>>, vector<1x512xf32>
    %553 = vector.broadcast %552 : vector<1x512xf32> to vector<8x512xf32>
    %554 = arith.addf %551, %553 : vector<8x512xf32>
    %555 = vector.extract_strided_slice %554 {offsets = [0, 0], sizes = [8, 128], strides = [1, 1]} : vector<8x512xf32> to vector<8x128xf32>
    %556 = arith.negf %555 : vector<8x128xf32>
    %557 = math.exp %556 : vector<8x128xf32>
    %cst_178 = arith.constant 1.000000e+00 : f32
    %558 = vector.broadcast %cst_178 : f32 to vector<8x128xf32>
    %559 = arith.addf %558, %557 : vector<8x128xf32>
    %560 = arith.divf %558, %559 : vector<8x128xf32>
    %561 = vector.extract_strided_slice %554 {offsets = [0, 128], sizes = [8, 128], strides = [1, 1]} : vector<8x512xf32> to vector<8x128xf32>
    %562 = arith.negf %561 : vector<8x128xf32>
    %563 = math.exp %562 : vector<8x128xf32>
    %cst_179 = arith.constant 1.000000e+00 : f32
    %564 = vector.broadcast %cst_179 : f32 to vector<8x128xf32>
    %565 = arith.addf %564, %563 : vector<8x128xf32>
    %566 = arith.divf %564, %565 : vector<8x128xf32>
    %567 = vector.extract_strided_slice %554 {offsets = [0, 256], sizes = [8, 128], strides = [1, 1]} : vector<8x512xf32> to vector<8x128xf32>
    %568 = math.tanh %567 : vector<8x128xf32>
    %569 = vector.extract_strided_slice %554 {offsets = [0, 384], sizes = [8, 128], strides = [1, 1]} : vector<8x512xf32> to vector<8x128xf32>
    %570 = arith.negf %569 : vector<8x128xf32>
    %571 = math.exp %570 : vector<8x128xf32>
    %cst_180 = arith.constant 1.000000e+00 : f32
    %572 = vector.broadcast %cst_180 : f32 to vector<8x128xf32>
    %573 = arith.addf %572, %571 : vector<8x128xf32>
    %574 = arith.divf %572, %573 : vector<8x128xf32>
    %575 = arith.mulf %566, %476 : vector<8x128xf32>
    %576 = arith.mulf %560, %568 : vector<8x128xf32>
    %577 = arith.addf %575, %576 : vector<8x128xf32>
    %578 = math.tanh %577 : vector<8x128xf32>
    %579 = arith.mulf %574, %578 : vector<8x128xf32>
    %580 = arith.truncf %579 : vector<8x128xf32> to vector<8x128xbf16>
    %c0_181 = arith.constant 0 : index
    %c0_182 = arith.constant 0 : index
    %581 = vector.load %arg6[%c0_181, %c0_182] : memref<128x512xbf16, #tpu.memory_space<vmem>>, vector<128x512xbf16>
    %cst_183 = arith.constant dense<0.000000e+00> : vector<8x512xf32>
    %582 = tpu.matmul %580, %581, %cst_183 {dimension_numbers = #tpu.dot_dimension_numbers<[1], [0], [0], [1], [0, 0, 1, 1], [], []>} : vector<8x128xbf16>, vector<128x512xbf16>, vector<8x512xf32> -> vector<8x512xf32>
    %583 = arith.truncf %513 : vector<8x128xf32> to vector<8x128xbf16>
    %c0_184 = arith.constant 0 : index
    %c0_185 = arith.constant 0 : index
    %584 = vector.load %arg7[%c0_184, %c0_185] : memref<128x512xbf16, #tpu.memory_space<vmem>>, vector<128x512xbf16>
    %cst_186 = arith.constant dense<0.000000e+00> : vector<8x512xf32>
    %585 = tpu.matmul %583, %584, %cst_186 {dimension_numbers = #tpu.dot_dimension_numbers<[1], [0], [0], [1], [0, 0, 1, 1], [], []>} : vector<8x128xbf16>, vector<128x512xbf16>, vector<8x512xf32> -> vector<8x512xf32>
    %586 = arith.addf %582, %585 : vector<8x512xf32>
    %c0_187 = arith.constant 0 : index
    %c0_188 = arith.constant 0 : index
    %587 = vector.load %arg8[%c0_187, %c0_188] : memref<1x512xf32, #tpu.memory_space<vmem>>, vector<1x512xf32>
    %588 = vector.broadcast %587 : vector<1x512xf32> to vector<8x512xf32>
    %589 = arith.addf %586, %588 : vector<8x512xf32>
    %590 = vector.extract_strided_slice %589 {offsets = [0, 0], sizes = [8, 128], strides = [1, 1]} : vector<8x512xf32> to vector<8x128xf32>
    %591 = arith.negf %590 : vector<8x128xf32>
    %592 = math.exp %591 : vector<8x128xf32>
    %cst_189 = arith.constant 1.000000e+00 : f32
    %593 = vector.broadcast %cst_189 : f32 to vector<8x128xf32>
    %594 = arith.addf %593, %592 : vector<8x128xf32>
    %595 = arith.divf %593, %594 : vector<8x128xf32>
    %596 = vector.extract_strided_slice %589 {offsets = [0, 128], sizes = [8, 128], strides = [1, 1]} : vector<8x512xf32> to vector<8x128xf32>
    %597 = arith.negf %596 : vector<8x128xf32>
    %598 = math.exp %597 : vector<8x128xf32>
    %cst_190 = arith.constant 1.000000e+00 : f32
    %599 = vector.broadcast %cst_190 : f32 to vector<8x128xf32>
    %600 = arith.addf %599, %598 : vector<8x128xf32>
    %601 = arith.divf %599, %600 : vector<8x128xf32>
    %602 = vector.extract_strided_slice %589 {offsets = [0, 256], sizes = [8, 128], strides = [1, 1]} : vector<8x512xf32> to vector<8x128xf32>
    %603 = math.tanh %602 : vector<8x128xf32>
    %604 = vector.extract_strided_slice %589 {offsets = [0, 384], sizes = [8, 128], strides = [1, 1]} : vector<8x512xf32> to vector<8x128xf32>
    %605 = arith.negf %604 : vector<8x128xf32>
    %606 = math.exp %605 : vector<8x128xf32>
    %cst_191 = arith.constant 1.000000e+00 : f32
    %607 = vector.broadcast %cst_191 : f32 to vector<8x128xf32>
    %608 = arith.addf %607, %606 : vector<8x128xf32>
    %609 = arith.divf %607, %608 : vector<8x128xf32>
    %610 = arith.mulf %601, %511 : vector<8x128xf32>
    %611 = arith.mulf %595, %603 : vector<8x128xf32>
    %612 = arith.addf %610, %611 : vector<8x128xf32>
    %613 = math.tanh %612 : vector<8x128xf32>
    %614 = arith.mulf %609, %613 : vector<8x128xf32>
    %c6 = arith.constant 6 : index
    %c0_192 = arith.constant 0 : index
    %c0_193 = arith.constant 0 : index
    %615 = vector.load %arg1[%c6, %c0_192, %c0_193] : memref<8x8x512xf32, #tpu.memory_space<vmem>>, vector<1x8x512xf32>
    %616 = vector.shape_cast %615 : vector<1x8x512xf32> to vector<8x512xf32>
    %617 = arith.truncf %544 : vector<8x128xf32> to vector<8x128xbf16>
    %c0_194 = arith.constant 0 : index
    %c0_195 = arith.constant 0 : index
    %618 = vector.load %arg2[%c0_194, %c0_195] : memref<128x512xbf16, #tpu.memory_space<vmem>>, vector<128x512xbf16>
    %cst_196 = arith.constant dense<0.000000e+00> : vector<8x512xf32>
    %619 = tpu.matmul %617, %618, %cst_196 {dimension_numbers = #tpu.dot_dimension_numbers<[1], [0], [0], [1], [0, 0, 1, 1], [], []>} : vector<8x128xbf16>, vector<128x512xbf16>, vector<8x512xf32> -> vector<8x512xf32>
    %620 = arith.addf %616, %619 : vector<8x512xf32>
    %621 = vector.extract_strided_slice %620 {offsets = [0, 0], sizes = [8, 128], strides = [1, 1]} : vector<8x512xf32> to vector<8x128xf32>
    %622 = arith.negf %621 : vector<8x128xf32>
    %623 = math.exp %622 : vector<8x128xf32>
    %cst_197 = arith.constant 1.000000e+00 : f32
    %624 = vector.broadcast %cst_197 : f32 to vector<8x128xf32>
    %625 = arith.addf %624, %623 : vector<8x128xf32>
    %626 = arith.divf %624, %625 : vector<8x128xf32>
    %627 = vector.extract_strided_slice %620 {offsets = [0, 128], sizes = [8, 128], strides = [1, 1]} : vector<8x512xf32> to vector<8x128xf32>
    %628 = arith.negf %627 : vector<8x128xf32>
    %629 = math.exp %628 : vector<8x128xf32>
    %cst_198 = arith.constant 1.000000e+00 : f32
    %630 = vector.broadcast %cst_198 : f32 to vector<8x128xf32>
    %631 = arith.addf %630, %629 : vector<8x128xf32>
    %632 = arith.divf %630, %631 : vector<8x128xf32>
    %633 = vector.extract_strided_slice %620 {offsets = [0, 256], sizes = [8, 128], strides = [1, 1]} : vector<8x512xf32> to vector<8x128xf32>
    %634 = math.tanh %633 : vector<8x128xf32>
    %635 = vector.extract_strided_slice %620 {offsets = [0, 384], sizes = [8, 128], strides = [1, 1]} : vector<8x512xf32> to vector<8x128xf32>
    %636 = arith.negf %635 : vector<8x128xf32>
    %637 = math.exp %636 : vector<8x128xf32>
    %cst_199 = arith.constant 1.000000e+00 : f32
    %638 = vector.broadcast %cst_199 : f32 to vector<8x128xf32>
    %639 = arith.addf %638, %637 : vector<8x128xf32>
    %640 = arith.divf %638, %639 : vector<8x128xf32>
    %641 = arith.mulf %632, %542 : vector<8x128xf32>
    %642 = arith.mulf %626, %634 : vector<8x128xf32>
    %643 = arith.addf %641, %642 : vector<8x128xf32>
    %644 = math.tanh %643 : vector<8x128xf32>
    %645 = arith.mulf %640, %644 : vector<8x128xf32>
    %646 = arith.truncf %645 : vector<8x128xf32> to vector<8x128xbf16>
    %c0_200 = arith.constant 0 : index
    %c0_201 = arith.constant 0 : index
    %647 = vector.load %arg3[%c0_200, %c0_201] : memref<128x512xbf16, #tpu.memory_space<vmem>>, vector<128x512xbf16>
    %cst_202 = arith.constant dense<0.000000e+00> : vector<8x512xf32>
    %648 = tpu.matmul %646, %647, %cst_202 {dimension_numbers = #tpu.dot_dimension_numbers<[1], [0], [0], [1], [0, 0, 1, 1], [], []>} : vector<8x128xbf16>, vector<128x512xbf16>, vector<8x512xf32> -> vector<8x512xf32>
    %649 = arith.truncf %579 : vector<8x128xf32> to vector<8x128xbf16>
    %c0_203 = arith.constant 0 : index
    %c0_204 = arith.constant 0 : index
    %650 = vector.load %arg4[%c0_203, %c0_204] : memref<128x512xbf16, #tpu.memory_space<vmem>>, vector<128x512xbf16>
    %cst_205 = arith.constant dense<0.000000e+00> : vector<8x512xf32>
    %651 = tpu.matmul %649, %650, %cst_205 {dimension_numbers = #tpu.dot_dimension_numbers<[1], [0], [0], [1], [0, 0, 1, 1], [], []>} : vector<8x128xbf16>, vector<128x512xbf16>, vector<8x512xf32> -> vector<8x512xf32>
    %652 = arith.addf %648, %651 : vector<8x512xf32>
    %c0_206 = arith.constant 0 : index
    %c0_207 = arith.constant 0 : index
    %653 = vector.load %arg5[%c0_206, %c0_207] : memref<1x512xf32, #tpu.memory_space<vmem>>, vector<1x512xf32>
    %654 = vector.broadcast %653 : vector<1x512xf32> to vector<8x512xf32>
    %655 = arith.addf %652, %654 : vector<8x512xf32>
    %656 = vector.extract_strided_slice %655 {offsets = [0, 0], sizes = [8, 128], strides = [1, 1]} : vector<8x512xf32> to vector<8x128xf32>
    %657 = arith.negf %656 : vector<8x128xf32>
    %658 = math.exp %657 : vector<8x128xf32>
    %cst_208 = arith.constant 1.000000e+00 : f32
    %659 = vector.broadcast %cst_208 : f32 to vector<8x128xf32>
    %660 = arith.addf %659, %658 : vector<8x128xf32>
    %661 = arith.divf %659, %660 : vector<8x128xf32>
    %662 = vector.extract_strided_slice %655 {offsets = [0, 128], sizes = [8, 128], strides = [1, 1]} : vector<8x512xf32> to vector<8x128xf32>
    %663 = arith.negf %662 : vector<8x128xf32>
    %664 = math.exp %663 : vector<8x128xf32>
    %cst_209 = arith.constant 1.000000e+00 : f32
    %665 = vector.broadcast %cst_209 : f32 to vector<8x128xf32>
    %666 = arith.addf %665, %664 : vector<8x128xf32>
    %667 = arith.divf %665, %666 : vector<8x128xf32>
    %668 = vector.extract_strided_slice %655 {offsets = [0, 256], sizes = [8, 128], strides = [1, 1]} : vector<8x512xf32> to vector<8x128xf32>
    %669 = math.tanh %668 : vector<8x128xf32>
    %670 = vector.extract_strided_slice %655 {offsets = [0, 384], sizes = [8, 128], strides = [1, 1]} : vector<8x512xf32> to vector<8x128xf32>
    %671 = arith.negf %670 : vector<8x128xf32>
    %672 = math.exp %671 : vector<8x128xf32>
    %cst_210 = arith.constant 1.000000e+00 : f32
    %673 = vector.broadcast %cst_210 : f32 to vector<8x128xf32>
    %674 = arith.addf %673, %672 : vector<8x128xf32>
    %675 = arith.divf %673, %674 : vector<8x128xf32>
    %676 = arith.mulf %667, %577 : vector<8x128xf32>
    %677 = arith.mulf %661, %669 : vector<8x128xf32>
    %678 = arith.addf %676, %677 : vector<8x128xf32>
    %679 = math.tanh %678 : vector<8x128xf32>
    %680 = arith.mulf %675, %679 : vector<8x128xf32>
    %681 = arith.truncf %680 : vector<8x128xf32> to vector<8x128xbf16>
    %c0_211 = arith.constant 0 : index
    %c0_212 = arith.constant 0 : index
    %682 = vector.load %arg6[%c0_211, %c0_212] : memref<128x512xbf16, #tpu.memory_space<vmem>>, vector<128x512xbf16>
    %cst_213 = arith.constant dense<0.000000e+00> : vector<8x512xf32>
    %683 = tpu.matmul %681, %682, %cst_213 {dimension_numbers = #tpu.dot_dimension_numbers<[1], [0], [0], [1], [0, 0, 1, 1], [], []>} : vector<8x128xbf16>, vector<128x512xbf16>, vector<8x512xf32> -> vector<8x512xf32>
    %684 = arith.truncf %614 : vector<8x128xf32> to vector<8x128xbf16>
    %c0_214 = arith.constant 0 : index
    %c0_215 = arith.constant 0 : index
    %685 = vector.load %arg7[%c0_214, %c0_215] : memref<128x512xbf16, #tpu.memory_space<vmem>>, vector<128x512xbf16>
    %cst_216 = arith.constant dense<0.000000e+00> : vector<8x512xf32>
    %686 = tpu.matmul %684, %685, %cst_216 {dimension_numbers = #tpu.dot_dimension_numbers<[1], [0], [0], [1], [0, 0, 1, 1], [], []>} : vector<8x128xbf16>, vector<128x512xbf16>, vector<8x512xf32> -> vector<8x512xf32>
    %687 = arith.addf %683, %686 : vector<8x512xf32>
    %c0_217 = arith.constant 0 : index
    %c0_218 = arith.constant 0 : index
    %688 = vector.load %arg8[%c0_217, %c0_218] : memref<1x512xf32, #tpu.memory_space<vmem>>, vector<1x512xf32>
    %689 = vector.broadcast %688 : vector<1x512xf32> to vector<8x512xf32>
    %690 = arith.addf %687, %689 : vector<8x512xf32>
    %691 = vector.extract_strided_slice %690 {offsets = [0, 0], sizes = [8, 128], strides = [1, 1]} : vector<8x512xf32> to vector<8x128xf32>
    %692 = arith.negf %691 : vector<8x128xf32>
    %693 = math.exp %692 : vector<8x128xf32>
    %cst_219 = arith.constant 1.000000e+00 : f32
    %694 = vector.broadcast %cst_219 : f32 to vector<8x128xf32>
    %695 = arith.addf %694, %693 : vector<8x128xf32>
    %696 = arith.divf %694, %695 : vector<8x128xf32>
    %697 = vector.extract_strided_slice %690 {offsets = [0, 128], sizes = [8, 128], strides = [1, 1]} : vector<8x512xf32> to vector<8x128xf32>
    %698 = arith.negf %697 : vector<8x128xf32>
    %699 = math.exp %698 : vector<8x128xf32>
    %cst_220 = arith.constant 1.000000e+00 : f32
    %700 = vector.broadcast %cst_220 : f32 to vector<8x128xf32>
    %701 = arith.addf %700, %699 : vector<8x128xf32>
    %702 = arith.divf %700, %701 : vector<8x128xf32>
    %703 = vector.extract_strided_slice %690 {offsets = [0, 256], sizes = [8, 128], strides = [1, 1]} : vector<8x512xf32> to vector<8x128xf32>
    %704 = math.tanh %703 : vector<8x128xf32>
    %705 = vector.extract_strided_slice %690 {offsets = [0, 384], sizes = [8, 128], strides = [1, 1]} : vector<8x512xf32> to vector<8x128xf32>
    %706 = arith.negf %705 : vector<8x128xf32>
    %707 = math.exp %706 : vector<8x128xf32>
    %cst_221 = arith.constant 1.000000e+00 : f32
    %708 = vector.broadcast %cst_221 : f32 to vector<8x128xf32>
    %709 = arith.addf %708, %707 : vector<8x128xf32>
    %710 = arith.divf %708, %709 : vector<8x128xf32>
    %711 = arith.mulf %702, %612 : vector<8x128xf32>
    %712 = arith.mulf %696, %704 : vector<8x128xf32>
    %713 = arith.addf %711, %712 : vector<8x128xf32>
    %714 = math.tanh %713 : vector<8x128xf32>
    %715 = arith.mulf %710, %714 : vector<8x128xf32>
    %c7 = arith.constant 7 : index
    %c0_222 = arith.constant 0 : index
    %c0_223 = arith.constant 0 : index
    %716 = vector.load %arg1[%c7, %c0_222, %c0_223] : memref<8x8x512xf32, #tpu.memory_space<vmem>>, vector<1x8x512xf32>
    %717 = vector.shape_cast %716 : vector<1x8x512xf32> to vector<8x512xf32>
    %718 = arith.truncf %645 : vector<8x128xf32> to vector<8x128xbf16>
    %c0_224 = arith.constant 0 : index
    %c0_225 = arith.constant 0 : index
    %719 = vector.load %arg2[%c0_224, %c0_225] : memref<128x512xbf16, #tpu.memory_space<vmem>>, vector<128x512xbf16>
    %cst_226 = arith.constant dense<0.000000e+00> : vector<8x512xf32>
    %720 = tpu.matmul %718, %719, %cst_226 {dimension_numbers = #tpu.dot_dimension_numbers<[1], [0], [0], [1], [0, 0, 1, 1], [], []>} : vector<8x128xbf16>, vector<128x512xbf16>, vector<8x512xf32> -> vector<8x512xf32>
    %721 = arith.addf %717, %720 : vector<8x512xf32>
    %722 = vector.extract_strided_slice %721 {offsets = [0, 0], sizes = [8, 128], strides = [1, 1]} : vector<8x512xf32> to vector<8x128xf32>
    %723 = arith.negf %722 : vector<8x128xf32>
    %724 = math.exp %723 : vector<8x128xf32>
    %cst_227 = arith.constant 1.000000e+00 : f32
    %725 = vector.broadcast %cst_227 : f32 to vector<8x128xf32>
    %726 = arith.addf %725, %724 : vector<8x128xf32>
    %727 = arith.divf %725, %726 : vector<8x128xf32>
    %728 = vector.extract_strided_slice %721 {offsets = [0, 128], sizes = [8, 128], strides = [1, 1]} : vector<8x512xf32> to vector<8x128xf32>
    %729 = arith.negf %728 : vector<8x128xf32>
    %730 = math.exp %729 : vector<8x128xf32>
    %cst_228 = arith.constant 1.000000e+00 : f32
    %731 = vector.broadcast %cst_228 : f32 to vector<8x128xf32>
    %732 = arith.addf %731, %730 : vector<8x128xf32>
    %733 = arith.divf %731, %732 : vector<8x128xf32>
    %734 = vector.extract_strided_slice %721 {offsets = [0, 256], sizes = [8, 128], strides = [1, 1]} : vector<8x512xf32> to vector<8x128xf32>
    %735 = math.tanh %734 : vector<8x128xf32>
    %736 = vector.extract_strided_slice %721 {offsets = [0, 384], sizes = [8, 128], strides = [1, 1]} : vector<8x512xf32> to vector<8x128xf32>
    %737 = arith.negf %736 : vector<8x128xf32>
    %738 = math.exp %737 : vector<8x128xf32>
    %cst_229 = arith.constant 1.000000e+00 : f32
    %739 = vector.broadcast %cst_229 : f32 to vector<8x128xf32>
    %740 = arith.addf %739, %738 : vector<8x128xf32>
    %741 = arith.divf %739, %740 : vector<8x128xf32>
    %742 = arith.mulf %733, %643 : vector<8x128xf32>
    %743 = arith.mulf %727, %735 : vector<8x128xf32>
    %744 = arith.addf %742, %743 : vector<8x128xf32>
    %745 = math.tanh %744 : vector<8x128xf32>
    %746 = arith.mulf %741, %745 : vector<8x128xf32>
    %747 = arith.truncf %746 : vector<8x128xf32> to vector<8x128xbf16>
    %c0_230 = arith.constant 0 : index
    %c0_231 = arith.constant 0 : index
    %748 = vector.load %arg3[%c0_230, %c0_231] : memref<128x512xbf16, #tpu.memory_space<vmem>>, vector<128x512xbf16>
    %cst_232 = arith.constant dense<0.000000e+00> : vector<8x512xf32>
    %749 = tpu.matmul %747, %748, %cst_232 {dimension_numbers = #tpu.dot_dimension_numbers<[1], [0], [0], [1], [0, 0, 1, 1], [], []>} : vector<8x128xbf16>, vector<128x512xbf16>, vector<8x512xf32> -> vector<8x512xf32>
    %750 = arith.truncf %680 : vector<8x128xf32> to vector<8x128xbf16>
    %c0_233 = arith.constant 0 : index
    %c0_234 = arith.constant 0 : index
    %751 = vector.load %arg4[%c0_233, %c0_234] : memref<128x512xbf16, #tpu.memory_space<vmem>>, vector<128x512xbf16>
    %cst_235 = arith.constant dense<0.000000e+00> : vector<8x512xf32>
    %752 = tpu.matmul %750, %751, %cst_235 {dimension_numbers = #tpu.dot_dimension_numbers<[1], [0], [0], [1], [0, 0, 1, 1], [], []>} : vector<8x128xbf16>, vector<128x512xbf16>, vector<8x512xf32> -> vector<8x512xf32>
    %753 = arith.addf %749, %752 : vector<8x512xf32>
    %c0_236 = arith.constant 0 : index
    %c0_237 = arith.constant 0 : index
    %754 = vector.load %arg5[%c0_236, %c0_237] : memref<1x512xf32, #tpu.memory_space<vmem>>, vector<1x512xf32>
    %755 = vector.broadcast %754 : vector<1x512xf32> to vector<8x512xf32>
    %756 = arith.addf %753, %755 : vector<8x512xf32>
    %757 = vector.extract_strided_slice %756 {offsets = [0, 0], sizes = [8, 128], strides = [1, 1]} : vector<8x512xf32> to vector<8x128xf32>
    %758 = arith.negf %757 : vector<8x128xf32>
    %759 = math.exp %758 : vector<8x128xf32>
    %cst_238 = arith.constant 1.000000e+00 : f32
    %760 = vector.broadcast %cst_238 : f32 to vector<8x128xf32>
    %761 = arith.addf %760, %759 : vector<8x128xf32>
    %762 = arith.divf %760, %761 : vector<8x128xf32>
    %763 = vector.extract_strided_slice %756 {offsets = [0, 128], sizes = [8, 128], strides = [1, 1]} : vector<8x512xf32> to vector<8x128xf32>
    %764 = arith.negf %763 : vector<8x128xf32>
    %765 = math.exp %764 : vector<8x128xf32>
    %cst_239 = arith.constant 1.000000e+00 : f32
    %766 = vector.broadcast %cst_239 : f32 to vector<8x128xf32>
    %767 = arith.addf %766, %765 : vector<8x128xf32>
    %768 = arith.divf %766, %767 : vector<8x128xf32>
    %769 = vector.extract_strided_slice %756 {offsets = [0, 256], sizes = [8, 128], strides = [1, 1]} : vector<8x512xf32> to vector<8x128xf32>
    %770 = math.tanh %769 : vector<8x128xf32>
    %771 = vector.extract_strided_slice %756 {offsets = [0, 384], sizes = [8, 128], strides = [1, 1]} : vector<8x512xf32> to vector<8x128xf32>
    %772 = arith.negf %771 : vector<8x128xf32>
    %773 = math.exp %772 : vector<8x128xf32>
    %cst_240 = arith.constant 1.000000e+00 : f32
    %774 = vector.broadcast %cst_240 : f32 to vector<8x128xf32>
    %775 = arith.addf %774, %773 : vector<8x128xf32>
    %776 = arith.divf %774, %775 : vector<8x128xf32>
    %777 = arith.mulf %768, %678 : vector<8x128xf32>
    %778 = arith.mulf %762, %770 : vector<8x128xf32>
    %779 = arith.addf %777, %778 : vector<8x128xf32>
    %780 = math.tanh %779 : vector<8x128xf32>
    %781 = arith.mulf %776, %780 : vector<8x128xf32>
    %782 = arith.truncf %781 : vector<8x128xf32> to vector<8x128xbf16>
    %c0_241 = arith.constant 0 : index
    %c0_242 = arith.constant 0 : index
    %783 = vector.load %arg6[%c0_241, %c0_242] : memref<128x512xbf16, #tpu.memory_space<vmem>>, vector<128x512xbf16>
    %cst_243 = arith.constant dense<0.000000e+00> : vector<8x512xf32>
    %784 = tpu.matmul %782, %783, %cst_243 {dimension_numbers = #tpu.dot_dimension_numbers<[1], [0], [0], [1], [0, 0, 1, 1], [], []>} : vector<8x128xbf16>, vector<128x512xbf16>, vector<8x512xf32> -> vector<8x512xf32>
    %785 = arith.truncf %715 : vector<8x128xf32> to vector<8x128xbf16>
    %c0_244 = arith.constant 0 : index
    %c0_245 = arith.constant 0 : index
    %786 = vector.load %arg7[%c0_244, %c0_245] : memref<128x512xbf16, #tpu.memory_space<vmem>>, vector<128x512xbf16>
    %cst_246 = arith.constant dense<0.000000e+00> : vector<8x512xf32>
    %787 = tpu.matmul %785, %786, %cst_246 {dimension_numbers = #tpu.dot_dimension_numbers<[1], [0], [0], [1], [0, 0, 1, 1], [], []>} : vector<8x128xbf16>, vector<128x512xbf16>, vector<8x512xf32> -> vector<8x512xf32>
    %788 = arith.addf %784, %787 : vector<8x512xf32>
    %c0_247 = arith.constant 0 : index
    %c0_248 = arith.constant 0 : index
    %789 = vector.load %arg8[%c0_247, %c0_248] : memref<1x512xf32, #tpu.memory_space<vmem>>, vector<1x512xf32>
    %790 = vector.broadcast %789 : vector<1x512xf32> to vector<8x512xf32>
    %791 = arith.addf %788, %790 : vector<8x512xf32>
    %792 = vector.extract_strided_slice %791 {offsets = [0, 0], sizes = [8, 128], strides = [1, 1]} : vector<8x512xf32> to vector<8x128xf32>
    %793 = arith.negf %792 : vector<8x128xf32>
    %794 = math.exp %793 : vector<8x128xf32>
    %cst_249 = arith.constant 1.000000e+00 : f32
    %795 = vector.broadcast %cst_249 : f32 to vector<8x128xf32>
    %796 = arith.addf %795, %794 : vector<8x128xf32>
    %797 = arith.divf %795, %796 : vector<8x128xf32>
    %798 = vector.extract_strided_slice %791 {offsets = [0, 128], sizes = [8, 128], strides = [1, 1]} : vector<8x512xf32> to vector<8x128xf32>
    %799 = arith.negf %798 : vector<8x128xf32>
    %800 = math.exp %799 : vector<8x128xf32>
    %cst_250 = arith.constant 1.000000e+00 : f32
    %801 = vector.broadcast %cst_250 : f32 to vector<8x128xf32>
    %802 = arith.addf %801, %800 : vector<8x128xf32>
    %803 = arith.divf %801, %802 : vector<8x128xf32>
    %804 = vector.extract_strided_slice %791 {offsets = [0, 256], sizes = [8, 128], strides = [1, 1]} : vector<8x512xf32> to vector<8x128xf32>
    %805 = math.tanh %804 : vector<8x128xf32>
    %806 = vector.extract_strided_slice %791 {offsets = [0, 384], sizes = [8, 128], strides = [1, 1]} : vector<8x512xf32> to vector<8x128xf32>
    %807 = arith.negf %806 : vector<8x128xf32>
    %808 = math.exp %807 : vector<8x128xf32>
    %cst_251 = arith.constant 1.000000e+00 : f32
    %809 = vector.broadcast %cst_251 : f32 to vector<8x128xf32>
    %810 = arith.addf %809, %808 : vector<8x128xf32>
    %811 = arith.divf %809, %810 : vector<8x128xf32>
    %812 = arith.mulf %803, %713 : vector<8x128xf32>
    %813 = arith.mulf %797, %805 : vector<8x128xf32>
    %814 = arith.addf %812, %813 : vector<8x128xf32>
    %815 = math.tanh %814 : vector<8x128xf32>
    %816 = arith.mulf %811, %815 : vector<8x128xf32>
    %c0_252 = arith.constant 0 : index
    %c0_253 = arith.constant 0 : index
    %817 = vector.load %arg12[%c0_252, %c0_253] : memref<8x128xf32, #tpu.memory_space<vmem>>, vector<8x128xf32>
    tpu.vector_store %arg12[%c0_252, %c0_253], %746 {strides = array<i32>} : memref<8x128xf32, #tpu.memory_space<vmem>>, vector<8x128xf32>,
    %c0_254 = arith.constant 0 : index
    %c0_255 = arith.constant 0 : index
    %818 = vector.load %arg15[%c0_254, %c0_255] : memref<8x128xf32, #tpu.memory_space<vmem>>, vector<8x128xf32>
    tpu.vector_store %arg15[%c0_254, %c0_255], %744 {strides = array<i32>} : memref<8x128xf32, #tpu.memory_space<vmem>>, vector<8x128xf32>,
    %c0_256 = arith.constant 0 : index
    %c0_257 = arith.constant 0 : index
    %819 = vector.load %arg13[%c0_256, %c0_257] : memref<8x128xf32, #tpu.memory_space<vmem>>, vector<8x128xf32>
    tpu.vector_store %arg13[%c0_256, %c0_257], %781 {strides = array<i32>} : memref<8x128xf32, #tpu.memory_space<vmem>>, vector<8x128xf32>,
    %c0_258 = arith.constant 0 : index
    %c0_259 = arith.constant 0 : index
    %820 = vector.load %arg16[%c0_258, %c0_259] : memref<8x128xf32, #tpu.memory_space<vmem>>, vector<8x128xf32>
    tpu.vector_store %arg16[%c0_258, %c0_259], %779 {strides = array<i32>} : memref<8x128xf32, #tpu.memory_space<vmem>>, vector<8x128xf32>,
    %c0_260 = arith.constant 0 : index
    %c0_261 = arith.constant 0 : index
    %821 = vector.load %arg14[%c0_260, %c0_261] : memref<8x128xf32, #tpu.memory_space<vmem>>, vector<8x128xf32>
    tpu.vector_store %arg14[%c0_260, %c0_261], %816 {strides = array<i32>} : memref<8x128xf32, #tpu.memory_space<vmem>>, vector<8x128xf32>,
    %c0_262 = arith.constant 0 : index
    %c0_263 = arith.constant 0 : index
    %822 = vector.load %arg17[%c0_262, %c0_263] : memref<8x128xf32, #tpu.memory_space<vmem>>, vector<8x128xf32>
    tpu.vector_store %arg17[%c0_262, %c0_263], %814 {strides = array<i32>} : memref<8x128xf32, #tpu.memory_space<vmem>>, vector<8x128xf32>,
    %c1_i32 = arith.constant 1 : i32
    %823 = arith.cmpi eq, %arg0, %c1_i32 : i32
    %824 = arith.extui %823 : i1 to i32
    %c0_i32_264 = arith.constant 0 : i32
    %825 = arith.cmpi ne, %824, %c0_i32_264 : i32
    scf.if %825 {
      %826 = arith.truncf %816 : vector<8x128xf32> to vector<8x128xbf16>
      %c0_265 = arith.constant 0 : index
      %c0_266 = arith.constant 0 : index
      %827 = vector.load %arg9[%c0_265, %c0_266] : memref<128x128xbf16, #tpu.memory_space<vmem>>, vector<128x128xbf16>
      %cst_267 = arith.constant dense<0.000000e+00> : vector<8x128xf32>
      %828 = tpu.matmul %826, %827, %cst_267 {dimension_numbers = #tpu.dot_dimension_numbers<[1], [0], [0], [1], [0, 0, 1, 1], [], []>} : vector<8x128xbf16>, vector<128x128xbf16>, vector<8x128xf32> -> vector<8x128xf32>
      %c0_268 = arith.constant 0 : index
      %c0_269 = arith.constant 0 : index
      %829 = vector.load %arg10[%c0_268, %c0_269] : memref<1x128xf32, #tpu.memory_space<vmem>>, vector<1x128xf32>
      %830 = vector.broadcast %829 : vector<1x128xf32> to vector<8x128xf32>
      %831 = arith.addf %828, %830 : vector<8x128xf32>
      %cst_270 = arith.constant 0.000000e+00 : f32
      %832 = vector.broadcast %cst_270 : f32 to vector<8x128xf32>
      %833 = arith.maximumf %831, %832 : vector<8x128xf32>
      %834 = arith.mulf %833, %833 : vector<8x128xf32>
      %cst_271 = arith.constant dense<0.000000e+00> : vector<8xf32>
      %835 = vector.multi_reduction <add>, %834, %cst_271 [1] : vector<8x128xf32> to vector<8xf32>
      %836 = vector.shape_cast %835 : vector<8xf32> to vector<8x1xf32>
      %cst_272 = arith.constant 9.99999996E-13 : f32
      %837 = vector.broadcast %cst_272 : f32 to vector<8x1xf32>
      %838 = arith.addf %836, %837 : vector<8x1xf32>
      %839 = math.rsqrt %838 : vector<8x1xf32>
      %840 = vector.broadcast %839 : vector<8x1xf32> to vector<8x128xf32>
      %841 = arith.mulf %833, %840 : vector<8x128xf32>
      %c0_273 = arith.constant 0 : index
      %c0_274 = arith.constant 0 : index
      %842 = vector.load %arg11[%c0_273, %c0_274] : memref<8x128xf32, #tpu.memory_space<vmem>>, vector<8x128xf32>
      tpu.vector_store %arg11[%c0_273, %c0_274], %841 {strides = array<i32>} : memref<8x128xf32, #tpu.memory_space<vmem>>, vector<8x128xf32>,
    } else {
    }
    return
  }
  func.func @transform_0(%arg0: i32) -> (i32, i32, i32) {
    %c0_i32 = arith.constant 0 : i32
    %c0_i32_0 = arith.constant 0 : i32
    %c0_i32_1 = arith.constant 0 : i32
    return %arg0, %c0_i32, %c0_i32_0 : i32, i32, i32
  }
  func.func @transform_1(%arg0: i32) -> (i32, i32) {
    %c0_i32 = arith.constant 0 : i32
    %c0_i32_0 = arith.constant 0 : i32
    %c0_i32_1 = arith.constant 0 : i32
    return %c0_i32, %c0_i32_0 : i32, i32
  }
  func.func @transform_2(%arg0: i32) -> (i32, i32) {
    %c0_i32 = arith.constant 0 : i32
    %c0_i32_0 = arith.constant 0 : i32
    %c0_i32_1 = arith.constant 0 : i32
    return %c0_i32, %c0_i32_0 : i32, i32
  }
  func.func @transform_3(%arg0: i32) -> (i32, i32) {
    %c0_i32 = arith.constant 0 : i32
    %c0_i32_0 = arith.constant 0 : i32
    %c0_i32_1 = arith.constant 0 : i32
    return %c0_i32, %c0_i32_0 : i32, i32
  }
  func.func @transform_4(%arg0: i32) -> (i32, i32) {
    %c0_i32 = arith.constant 0 : i32
    %c0_i32_0 = arith.constant 0 : i32
    %c0_i32_1 = arith.constant 0 : i32
    return %c0_i32, %c0_i32_0 : i32, i32
  }
  func.func @transform_5(%arg0: i32) -> (i32, i32) {
    %c0_i32 = arith.constant 0 : i32
    %c0_i32_0 = arith.constant 0 : i32
    %c0_i32_1 = arith.constant 0 : i32
    return %c0_i32, %c0_i32_0 : i32, i32
  }
  func.func @transform_6(%arg0: i32) -> (i32, i32) {
    %c0_i32 = arith.constant 0 : i32
    %c0_i32_0 = arith.constant 0 : i32
    %c0_i32_1 = arith.constant 0 : i32
    return %c0_i32, %c0_i32_0 : i32, i32
  }
  func.func @transform_7(%arg0: i32) -> (i32, i32) {
    %c0_i32 = arith.constant 0 : i32
    %c0_i32_0 = arith.constant 0 : i32
    %c0_i32_1 = arith.constant 0 : i32
    return %c0_i32, %c0_i32_0 : i32, i32
  }
  func.func @transform_8(%arg0: i32) -> (i32, i32) {
    %c0_i32 = arith.constant 0 : i32
    %c0_i32_0 = arith.constant 0 : i32
    %c0_i32_1 = arith.constant 0 : i32
    return %c0_i32, %c0_i32_0 : i32, i32
  }
  func.func @transform_9(%arg0: i32) -> (i32, i32) {
    %c0_i32 = arith.constant 0 : i32
    %c0_i32_0 = arith.constant 0 : i32
    %c0_i32_1 = arith.constant 0 : i32
    return %c0_i32, %c0_i32_0 : i32, i32
  }
  func.func @transform_10(%arg0: i32) -> (i32, i32) {
    %c0_i32 = arith.constant 0 : i32
    %c0_i32_0 = arith.constant 0 : i32
    %c0_i32_1 = arith.constant 0 : i32
    return %c0_i32, %c0_i32_0 : i32, i32
  }
}

</mosaic_0001>

<llo_original>
// kernel: speaker_encoder_forward.1
$region0: #{speaker_encoder_forward.1}
  #allocation0 [shape = 'u32[]', space=smem, size = 0x4, offset = 0x4, fixed_abs, tag = 'smem constant byte address 0x4 - core index']
  #allocation1 [shape = 'u32[144,128]{1,0:T(1,128)}', space=vmem, size = 0x12000, scoped, tag = 'internal scratch']
  #allocation2 [shape = 'f32[8,128]{1,0:T(8,128)}', space=vmem, size = 0x1000, scoped, tag = 'scratch operand']
  #allocation3 [shape = 'f32[8,128]{1,0:T(8,128)}', space=vmem, size = 0x1000, scoped, tag = 'scratch operand']
  #allocation4 [shape = 'f32[8,128]{1,0:T(8,128)}', space=vmem, size = 0x1000, scoped, tag = 'scratch operand']
  #allocation5 [shape = 'f32[8,128]{1,0:T(8,128)}', space=vmem, size = 0x1000, scoped, tag = 'scratch operand']
  #allocation6 [shape = 'f32[8,128]{1,0:T(8,128)}', space=vmem, size = 0x1000, scoped, tag = 'scratch operand']
  #allocation7 [shape = 'f32[8,128]{1,0:T(8,128)}', space=vmem, size = 0x1000, scoped, tag = 'scratch operand']
  %s0 = inlined_call_operand.vmem [shape: f32[16,8,512], index: 0, kind: input, shape index: {}]
  %s1 = inlined_call_operand.vmem [shape: bf16[128,512], index: 1, kind: input, shape index: {}]
  %s2 = inlined_call_operand.vmem [shape: bf16[128,512], index: 2, kind: input, shape index: {}]
  %s3 = inlined_call_operand.vmem [shape: bf16[128,512], index: 3, kind: input, shape index: {}]
  %s4 = inlined_call_operand.vmem [shape: f32[1,512], index: 4, kind: input, shape index: {}]
  %s5 = inlined_call_operand.vmem [shape: bf16[128,512], index: 5, kind: input, shape index: {}]
  %s6 = inlined_call_operand.hbm [shape: bf16[128,512], index: 6, kind: input, shape index: {}]
  %s7 = inlined_call_operand.vmem [shape: f32[1,512], index: 7, kind: input, shape index: {}]
  %s8 = inlined_call_operand.vmem [shape: bf16[128,128], index: 8, kind: input, shape index: {}]
  %s9 = inlined_call_operand.vmem [shape: f32[1,128], index: 9, kind: input, shape index: {}]
  %s10 = inlined_call_operand.hbm [shape: f32[8,128], index: 10, kind: output, shape index: {}]
  %s11 = sld [smem:[#allocation0]]
  $region85: #{speaker_encoder_forward.1} parent=0
    _
  %s13 = ssub.s32 1, %s11
  %s14 = scalar_select 0, %s13, %s11
  $region1: #{speaker_encoder_forward.1} parent=0
    #allocation8 [shape = 'u8[131072]{0}', space=vmem, size = 0x20000, scoped, tag = 'input window, operand 6, single buffered']
    #allocation9 [shape = 's32[2]{0}', space=sflag, size = 0x8, scoped, tag = 'scoped memory for speaker_encoder_forward.1']
    #allocation10 [shape = 's32[2]{0}', space=sflag, size = 0x8, scoped, tag = 'scoped memory for speaker_encoder_forward.1']
    #allocation11 [shape = 'u8[4096]{0}', space=vmem, size = 0x1000, scoped, tag = 'output window, operand 0, single buffered']
    %15 = vsyncpa [#allocation9], 0
    %16 = vsyncpa [#allocation10], 0
    loop: start=0, step=1, limit=4
    $region2: #{speaker_encoder_forward.1} parent=1 // loop_pre_header
      _
    $region3: #{speaker_encoder_forward.1} parent=1 // loop_header
      %s18 = sphi 0, %s22
      %p19 = scmp.ge.s32.totalorder %s18, 4
      %s28 = sphi 0, %s30
      %s31 = sphi 0, %s28
      %s32 = sphi 0, %s31
      %s48 = sphi 0, %s32
      %s52 = sphi 0, %s52
      %s54 = sphi 0, %s52
      %s55 = sphi 0, %s54
      %s69 = sphi 0, %s55
      %s73 = sphi 0, %s73
      %s75 = sphi 0, %s73
      %s76 = sphi 0, %s75
      %s90 = sphi 0, %s76
      %s94 = sphi 0, %s94
      %s96 = sphi 0, %s94
      %s97 = sphi 0, %s96
      %s111 = sphi 0, %s97
      %s115 = sphi 0, %s115
      %s117 = sphi 0, %s115
      %s118 = sphi 0, %s117
      %s132 = sphi 0, %s118
      %s136 = sphi 0, %s136
      %s138 = sphi 0, %s136
      %s139 = sphi 0, %s138
      %s153 = sphi 0, %s139
      %s157 = sphi 0, %s157
      %s159 = sphi 0, %s157
      %s160 = sphi 0, %s159
      %s174 = sphi 0, %s160
      %s178 = sphi 0, %s178
      %s180 = sphi 0, %s178
      %s181 = sphi 0, %s180
      %s195 = sphi 0, %s181
      %s199 = sphi 0, %s199
      %s201 = sphi 0, %s199
      %s202 = sphi 0, %s201
      %s216 = sphi 0, %s202
      %s220 = sphi 0, %s220
      %s222 = sphi 0, %s220
      %s223 = sphi 0, %s222
      %s237 = sphi 0, %s223
      %s241 = sphi 0, %s241
      %s243 = sphi 0, %s241
      %s244 = sphi 0, %s243
      %s258 = sphi 0, %s244
    $region4: #{speaker_encoder_forward.1} parent=1 // loop_header_branch
      %21 = sbr.rel (%p19) target = $region8
    $region5: #{speaker_encoder_forward.1} parent=1 // loop_body
      %s23 = ssub.s32 %s18, 1
      %s24 = ssub.s32 %s18, 2
      %s25 = sadd.s32 %s18, 1
      %s26 = ssub.s32 %s18, %s25
      %p27 = scmp.eq.s32.totalorder %s26, 0
      %s29 = sadd.s32 %s28, 1
      %s30 = scalar_select %p27, %s28, %s29
      %p33 = pneg %p27
      %p34 = scmp.eq.s32.totalorder %s18, 1
      %p35 = por %p33, %p34
      %p36 = scmp.ne.s32.totalorder %s28, %s31
      %p37 = scmp.eq.s32.totalorder %s18, 0
      %p38 = por %p36, %p37
      %p39 = scmp.ne.s32.totalorder %s28, %s31
      %p40 = scmp.eq.s32.totalorder %s23, 1
      %p41 = por %p39, %p40
      %p42 = scmp.ne.s32.totalorder %s31, %s32
      %p43 = scmp.eq.s32.totalorder %s23, 0
      %p44 = por %p42, %p43
      %p45 = scmp.ne.s32.totalorder %s31, %s32
      %p46 = scmp.eq.s32.totalorder %s24, 1
      %p47 = por %p45, %p46
      %p49 = scmp.ne.s32.totalorder %s32, %s48
      %p50 = scmp.eq.s32.totalorder %s24, 0
      %p51 = por %p49, %p50
      %s53 = sadd.s32 %s52, 1
      %p56 = scmp.eq.s32.totalorder %s18, 1
      %p57 = scmp.ne.s32.totalorder %s52, %s54
      %p58 = scmp.eq.s32.totalorder %s18, 0
      %p59 = por %p57, %p58
      %p60 = scmp.ne.s32.totalorder %s52, %s54
      %p61 = scmp.eq.s32.totalorder %s23, 1
      %p62 = por %p60, %p61
      %p63 = scmp.ne.s32.totalorder %s54, %s55
      %p64 = scmp.eq.s32.totalorder %s23, 0
      %p65 = por %p63, %p64
      %p66 = scmp.ne.s32.totalorder %s54, %s55
      %p67 = scmp.eq.s32.totalorder %s24, 1
      %p68 = por %p66, %p67
      %p70 = scmp.ne.s32.totalorder %s55, %s69
      %p71 = scmp.eq.s32.totalorder %s24, 0
      %p72 = por %p70, %p71
      %s74 = sadd.s32 %s73, 1
      %p77 = scmp.eq.s32.totalorder %s18, 1
      %p78 = scmp.ne.s32.totalorder %s73, %s75
      %p79 = scmp.eq.s32.totalorder %s18, 0
      %p80 = por %p78, %p79
      %p81 = scmp.ne.s32.totalorder %s73, %s75
      %p82 = scmp.eq.s32.totalorder %s23, 1
      %p83 = por %p81, %p82
      %p84 = scmp.ne.s32.totalorder %s75, %s76
      %p85 = scmp.eq.s32.totalorder %s23, 0
      %p86 = por %p84, %p85
      %p87 = scmp.ne.s32.totalorder %s75, %s76
      %p88 = scmp.eq.s32.totalorder %s24, 1
      %p89 = por %p87, %p88
      %p91 = scmp.ne.s32.totalorder %s76, %s90
      %p92 = scmp.eq.s32.totalorder %s24, 0
      %p93 = por %p91, %p92
      %s95 = sadd.s32 %s94, 1
      %p98 = scmp.eq.s32.totalorder %s18, 1
      %p99 = scmp.ne.s32.totalorder %s94, %s96
      %p100 = scmp.eq.s32.totalorder %s18, 0
      %p101 = por %p99, %p100
      %p102 = scmp.ne.s32.totalorder %s94, %s96
      %p103 = scmp.eq.s32.totalorder %s23, 1
      %p104 = por %p102, %p103
      %p105 = scmp.ne.s32.totalorder %s96, %s97
      %p106 = scmp.eq.s32.totalorder %s23, 0
      %p107 = por %p105, %p106
      %p108 = scmp.ne.s32.totalorder %s96, %s97
      %p109 = scmp.eq.s32.totalorder %s24, 1
      %p110 = por %p108, %p109
      %p112 = scmp.ne.s32.totalorder %s97, %s111
      %p113 = scmp.eq.s32.totalorder %s24, 0
      %p114 = por %p112, %p113
      %s116 = sadd.s32 %s115, 1
      %p119 = scmp.eq.s32.totalorder %s18, 1
      %p120 = scmp.ne.s32.totalorder %s115, %s117
      %p121 = scmp.eq.s32.totalorder %s18, 0
      %p122 = por %p120, %p121
      %p123 = scmp.ne.s32.totalorder %s115, %s117
      %p124 = scmp.eq.s32.totalorder %s23, 1
      %p125 = por %p123, %p124
      %p126 = scmp.ne.s32.totalorder %s117, %s118
      %p127 = scmp.eq.s32.totalorder %s23, 0
      %p128 = por %p126, %p127
      %p129 = scmp.ne.s32.totalorder %s117, %s118
      %p130 = scmp.eq.s32.totalorder %s24, 1
      %p131 = por %p129, %p130
      %p133 = scmp.ne.s32.totalorder %s118, %s132
      %p134 = scmp.eq.s32.totalorder %s24, 0
      %p135 = por %p133, %p134
      %s137 = sadd.s32 %s136, 1
      %p140 = scmp.eq.s32.totalorder %s18, 1
      %p141 = scmp.ne.s32.totalorder %s136, %s138
      %p142 = scmp.eq.s32.totalorder %s18, 0
      %p143 = por %p141, %p142
      %p144 = scmp.ne.s32.totalorder %s136, %s138
      %p145 = scmp.eq.s32.totalorder %s23, 1
      %p146 = por %p144, %p145
      %p147 = scmp.ne.s32.totalorder %s138, %s139
      %p148 = scmp.eq.s32.totalorder %s23, 0
      %p149 = por %p147, %p148
      %p150 = scmp.ne.s32.totalorder %s138, %s139
      %p151 = scmp.eq.s32.totalorder %s24, 1
      %p152 = por %p150, %p151
      %p154 = scmp.ne.s32.totalorder %s139, %s153
      %p155 = scmp.eq.s32.totalorder %s24, 0
      %p156 = por %p154, %p155
      %s158 = sadd.s32 %s157, 1
      %p161 = scmp.eq.s32.totalorder %s18, 1
      %p162 = scmp.ne.s32.totalorder %s157, %s159
      %p163 = scmp.eq.s32.totalorder %s18, 0
      %p164 = por %p162, %p163
      %p165 = scmp.ne.s32.totalorder %s157, %s159
      %p166 = scmp.eq.s32.totalorder %s23, 1
      %p167 = por %p165, %p166
      %p168 = scmp.ne.s32.totalorder %s159, %s160
      %p169 = scmp.eq.s32.totalorder %s23, 0
      %p170 = por %p168, %p169
      %p171 = scmp.ne.s32.totalorder %s159, %s160
      %p172 = scmp.eq.s32.totalorder %s24, 1
      %p173 = por %p171, %p172
      %p175 = scmp.ne.s32.totalorder %s160, %s174
      %p176 = scmp.eq.s32.totalorder %s24, 0
      %p177 = por %p175, %p176
      %s179 = sadd.s32 %s178, 1
      %p182 = scmp.eq.s32.totalorder %s18, 1
      %p183 = scmp.ne.s32.totalorder %s178, %s180
      %p184 = scmp.eq.s32.totalorder %s18, 0
      %p185 = por %p183, %p184
      %p186 = scmp.ne.s32.totalorder %s178, %s180
      %p187 = scmp.eq.s32.totalorder %s23, 1
      %p188 = por %p186, %p187
      %p189 = scmp.ne.s32.totalorder %s180, %s181
      %p190 = scmp.eq.s32.totalorder %s23, 0
      %p191 = por %p189, %p190
      %p192 = scmp.ne.s32.totalorder %s180, %s181
      %p193 = scmp.eq.s32.totalorder %s24, 1
      %p194 = por %p192, %p193
      %p196 = scmp.ne.s32.totalorder %s181, %s195
      %p197 = scmp.eq.s32.totalorder %s24, 0
      %p198 = por %p196, %p197
      %s200 = sadd.s32 %s199, 1
      %p203 = scmp.eq.s32.totalorder %s18, 1
      %p204 = scmp.ne.s32.totalorder %s199, %s201
      %p205 = scmp.eq.s32.totalorder %s18, 0
      %p206 = por %p204, %p205
      %p207 = scmp.ne.s32.totalorder %s199, %s201
      %p208 = scmp.eq.s32.totalorder %s23, 1
      %p209 = por %p207, %p208
      %p210 = scmp.ne.s32.totalorder %s201, %s202
      %p211 = scmp.eq.s32.totalorder %s23, 0
      %p212 = por %p210, %p211
      %p213 = scmp.ne.s32.totalorder %s201, %s202
      %p214 = scmp.eq.s32.totalorder %s24, 1
      %p215 = por %p213, %p214
      %p217 = scmp.ne.s32.totalorder %s202, %s216
      %p218 = scmp.eq.s32.totalorder %s24, 0
      %p219 = por %p217, %p218
      %s221 = sadd.s32 %s220, 1
      %p224 = scmp.eq.s32.totalorder %s18, 1
      %p225 = scmp.ne.s32.totalorder %s220, %s222
      %p226 = scmp.eq.s32.totalorder %s18, 0
      %p227 = por %p225, %p226
      %p228 = scmp.ne.s32.totalorder %s220, %s222
      %p229 = scmp.eq.s32.totalorder %s23, 1
      %p230 = por %p228, %p229
      %p231 = scmp.ne.s32.totalorder %s222, %s223
      %p232 = scmp.eq.s32.totalorder %s23, 0
      %p233 = por %p231, %p232
      %p234 = scmp.ne.s32.totalorder %s222, %s223
      %p235 = scmp.eq.s32.totalorder %s24, 1
      %p236 = por %p234, %p235
      %p238 = scmp.ne.s32.totalorder %s223, %s237
      %p239 = scmp.eq.s32.totalorder %s24, 0
      %p240 = por %p238, %p239
      %s242 = sadd.s32 %s241, 1
      %p245 = scmp.eq.s32.totalorder %s18, 1
      %p246 = scmp.ne.s32.totalorder %s241, %s243
      %p247 = scmp.eq.s32.totalorder %s18, 0
      %p248 = por %p246, %p247
      %p249 = scmp.ne.s32.totalorder %s241, %s243
      %p250 = scmp.eq.s32.totalorder %s23, 1
      %p251 = por %p249, %p250
      %p252 = scmp.ne.s32.totalorder %s243, %s244
      %p253 = scmp.eq.s32.totalorder %s23, 0
      %p254 = por %p252, %p253
      %p255 = scmp.ne.s32.totalorder %s243, %s244
      %p256 = scmp.eq.s32.totalorder %s24, 1
      %p257 = por %p255, %p256
      %p259 = scmp.ne.s32.totalorder %s244, %s258
      %p260 = scmp.eq.s32.totalorder %s24, 0
      %p261 = por %p259, %p260
      %p262 = scmp.le.s32.totalorder 1, %s18
      %p263 = scmp.lt.s32.totalorder %s18, 3
      %p264 = pnand %p262, %p263
      %p265 = pneg %p264
      // Predicated region
      $region9: #{speaker_encoder_forward.1} parent=5 // pred_check
        _
      $region10: #{speaker_encoder_forward.1} parent=5 // pred_check_branch
        %267 = sbr.rel (%p264) target = $region12
      $region11: #{speaker_encoder_forward.1} parent=5 // pred_region
        %s268 = ssub.s32 %s18, 1
        // Predicated region
        $region13: #{speaker_encoder_forward.1} parent=11 // pred_check
          %p269 = pneg %p65
        $region14: #{speaker_encoder_forward.1} parent=11 // pred_check_branch
          %271 = sbr.rel (%p269) target = $region16
        $region15: #{speaker_encoder_forward.1} parent=11 // pred_region
          _
        $region16: #{speaker_encoder_forward.1} parent=11 // pred_fallthru
          _
        // Predicated region
        $region17: #{speaker_encoder_forward.1} parent=11 // pred_check
          %p272 = pneg %p86
        $region18: #{speaker_encoder_forward.1} parent=11 // pred_check_branch
          %274 = sbr.rel (%p272) target = $region20
        $region19: #{speaker_encoder_forward.1} parent=11 // pred_region
          _
        $region20: #{speaker_encoder_forward.1} parent=11 // pred_fallthru
          _
        // Predicated region
        $region21: #{speaker_encoder_forward.1} parent=11 // pred_check
          %p275 = pneg %p107
        $region22: #{speaker_encoder_forward.1} parent=11 // pred_check_branch
          %277 = sbr.rel (%p275) target = $region24
        $region23: #{speaker_encoder_forward.1} parent=11 // pred_region
          _
        $region24: #{speaker_encoder_forward.1} parent=11 // pred_fallthru
          _
        // Predicated region
        $region25: #{speaker_encoder_forward.1} parent=11 // pred_check
          %p278 = pneg %p128
        $region26: #{speaker_encoder_forward.1} parent=11 // pred_check_branch
          %280 = sbr.rel (%p278) target = $region28
        $region27: #{speaker_encoder_forward.1} parent=11 // pred_region
          _
        $region28: #{speaker_encoder_forward.1} parent=11 // pred_fallthru
          _
        // Predicated region
        $region29: #{speaker_encoder_forward.1} parent=11 // pred_check
          %p281 = pneg %p149
        $region30: #{speaker_encoder_forward.1} parent=11 // pred_check_branch
          %283 = sbr.rel (%p281) target = $region32
        $region31: #{speaker_encoder_forward.1} parent=11 // pred_region
          _
        $region32: #{speaker_encoder_forward.1} parent=11 // pred_fallthru
          _
        // Predicated region
        $region33: #{speaker_encoder_forward.1} parent=11 // pred_check
          %p284 = pneg %p170
        $region34: #{speaker_encoder_forward.1} parent=11 // pred_check_branch
          %286 = sbr.rel (%p284) target = $region36
        $region35: #{speaker_encoder_forward.1} parent=11 // pred_region
          %s288 = ssub.s32 4096, 4096
          %289 = vsyncadd [#allocation9], %s288
          %s290 = sshll.u32 [#allocation8], 4
          %s291 = int_to_ptr.vmem [resolvable:$true] %s290
          %296 = dma.hbm_to_vmem [thread:$0]  %s6, 4096, %s291, [#allocation9], 256, 256, 16
        $region36: #{speaker_encoder_forward.1} parent=11 // pred_fallthru
          _
        // Predicated region
        $region37: #{speaker_encoder_forward.1} parent=11 // pred_check
          %p297 = pneg %p191
        $region38: #{speaker_encoder_forward.1} parent=11 // pred_check_branch
          %299 = sbr.rel (%p297) target = $region40
        $region39: #{speaker_encoder_forward.1} parent=11 // pred_region
          _
        $region40: #{speaker_encoder_forward.1} parent=11 // pred_fallthru
          _
        // Predicated region
        $region41: #{speaker_encoder_forward.1} parent=11 // pred_check
          %p300 = pneg %p212
        $region42: #{speaker_encoder_forward.1} parent=11 // pred_check_branch
          %302 = sbr.rel (%p300) target = $region44
        $region43: #{speaker_encoder_forward.1} parent=11 // pred_region
          _
        $region44: #{speaker_encoder_forward.1} parent=11 // pred_fallthru
          _
        // Predicated region
        $region45: #{speaker_encoder_forward.1} parent=11 // pred_check
          %p303 = pneg %p233
        $region46: #{speaker_encoder_forward.1} parent=11 // pred_check_branch
          %305 = sbr.rel (%p303) target = $region48
        $region47: #{speaker_encoder_forward.1} parent=11 // pred_region
          _
        $region48: #{speaker_encoder_forward.1} parent=11 // pred_fallthru
          _
      $region12: #{speaker_encoder_forward.1} parent=5 // pred_fallthru
        _
      %p306 = scmp.lt.s32.totalorder %s18, 2
      // Predicated region
      $region49: #{speaker_encoder_forward.1} parent=5 // pred_check
        %p307 = pneg %p306
      $region50: #{speaker_encoder_forward.1} parent=5 // pred_check_branch
        %309 = sbr.rel (%p307) target = $region52
      $region51: #{speaker_encoder_forward.1} parent=5 // pred_region
        // Predicated region
        $region53: #{speaker_encoder_forward.1} parent=51 // pred_check
          %p310 = pneg %p38
        $region54: #{speaker_encoder_forward.1} parent=51 // pred_check_branch
          %312 = sbr.rel (%p310) target = $region56
        $region55: #{speaker_encoder_forward.1} parent=51 // pred_region
          %s313 = smul.u32 8, %s18
          %p314 = scmp.lt.s32.totalorder %s313, 15
          %s315 = scalar_select %p314, %s313, 15
          %s316 = smul.addr %s315, 4
          %s317 = smul.addr %s316, 8
          %s318 = scalar_lea.vmem %s0, %s317
          %s319 = smul.u32 8, %s18
        $region56: #{speaker_encoder_forward.1} parent=51 // pred_fallthru
          _
      $region52: #{speaker_encoder_forward.1} parent=5 // pred_fallthru
        _
      %p320 = scmp.le.s32.totalorder 1, %s18
      %p321 = scmp.lt.s32.totalorder %s18, 3
      %p322 = pnand %p320, %p321
      %p323 = pneg %p322
      // Predicated region
      $region57: #{speaker_encoder_forward.1} parent=5 // pred_check
        _
      $region58: #{speaker_encoder_forward.1} parent=5 // pred_check_branch
        %325 = sbr.rel (%p322) target = $region60
      $region59: #{speaker_encoder_forward.1} parent=5 // pred_region
        %s326 = ssub.s32 %s18, 1
        // Predicated region
        $region61: #{speaker_encoder_forward.1} parent=59 // pred_check
          %p327 = pneg %p170
        $region62: #{speaker_encoder_forward.1} parent=59 // pred_check_branch
          %329 = sbr.rel (%p327) target = $region64
        $region63: #{speaker_encoder_forward.1} parent=59 // pred_region
          %330 = dma.done [#allocation9], 4096
        $region64: #{speaker_encoder_forward.1} parent=59 // pred_fallthru
          _
        %s331 = smul.u32 8, %s23
        %p332 = scmp.lt.s32.totalorder %s331, 15
        %s333 = scalar_select %p332, %s331, 15
        %s334 = smul.addr %s333, 4
        %s335 = smul.addr %s334, 8
        %s336 = scalar_lea.vmem %s0, %s335
        %p337 = pneg %p44
        %p338 = pneg %p41
        %p339 = pneg %p65
        %p340 = pneg %p62
        %p341 = pneg %p86
        %p342 = pneg %p83
        %p343 = pneg %p107
        %p344 = pneg %p104
        %p345 = pneg %p128
        %p346 = pneg %p125
        %p347 = pneg %p149
        %p348 = pneg %p146
        %p349 = pneg %p170
        %p350 = pneg %p167
        %p351 = pneg %p191
        %p352 = pneg %p188
        %p353 = pneg %p212
        %p354 = pneg %p209
        %p355 = pneg %p233
        %p356 = pneg %p230
        %p357 = pneg %p254
        %p358 = pneg %p251
        %s359 = smul.u32 8, %s23
        %p360 = scmp.lt.s32.totalorder %s359, 15
        %s361 = scalar_select %p360, %s359, 15
        %s362 = smul.addr %s361, 4
        %s363 = smul.addr %s362, 8
        %s364 = scalar_lea.vmem %s0, %s363
        %s365 = smul.u32 8, %s23
        %p367 = scmp.eq.s32.totalorder %s23, 0
        // Predicated region
        $region65: #{speaker_encoder_forward.1} parent=59 // pred_check
          %p368 = pneg %p367
        $region66: #{speaker_encoder_forward.1} parent=59 // pred_check_branch
          %370 = sbr.rel (%p368) target = $region68
        $region67: #{speaker_encoder_forward.1} parent=59 // pred_region
          %371 = vst [vmem:[#allocation2] sm:$0xff] 0.0
          %372 = vst [vmem:[#allocation3] sm:$0xff] 0.0
          %373 = vst [vmem:[#allocation4] sm:$0xff] 0.0
          %374 = vst [vmem:[#allocation5] sm:$0xff] 0.0
          %375 = vst [vmem:[#allocation6] sm:$0xff] 0.0
          %376 = vst [vmem:[#allocation7] sm:$0xff] 0.0
        $region68: #{speaker_encoder_forward.1} parent=59 // pred_fallthru
          _
        %v377 = vld [vmem:[#allocation2] sm:$0xff]
        %v378 = vld [vmem:[#allocation3] sm:$0xff]
        %v379 = vld [vmem:[#allocation4] sm:$0xff]
        %v380 = vld [vmem:[#allocation5] sm:$0xff]
        %v381 = vld [vmem:[#allocation6] sm:$0xff]
        %v382 = vld [vmem:[#allocation7] sm:$0xff]
        %v383 = vld [vmem:[%s364] sm:$0xff]
        %v384 = vld [vmem:[%s364 + $0x8] sm:$0xff]
        %v385 = vld [vmem:[%s364 + $0x10] sm:$0xff]
        %v386 = vld [vmem:[%s364 + $0x18] sm:$0xff]
        %v387 = vpack.c.bf16 %v377, %v377
        %v388 = vld [vmem:[%s1] sm:$0xff]
        %v389 = vld [vmem:[%s1 + $0x8] sm:$0xff]
        %v390 = vld [vmem:[%s1 + $0x10] sm:$0xff]
        %v391 = vld [vmem:[%s1 + $0x18] sm:$0xff]
        %v392 = vld [vmem:[%s1 + $0x20] sm:$0xff]
        %v393 = vld [vmem:[%s1 + $0x28] sm:$0xff]
        %v394 = vld [vmem:[%s1 + $0x30] sm:$0xff]
        %v395 = vld [vmem:[%s1 + $0x38] sm:$0xff]
        %v396 = vld [vmem:[%s1 + $0x40] sm:$0xff]
        %v397 = vld [vmem:[%s1 + $0x48] sm:$0xff]
        %v398 = vld [vmem:[%s1 + $0x50] sm:$0xff]
        %v399 = vld [vmem:[%s1 + $0x58] sm:$0xff]
        %v400 = vld [vmem:[%s1 + $0x60] sm:$0xff]
        %v401 = vld [vmem:[%s1 + $0x68] sm:$0xff]
        %v402 = vld [vmem:[%s1 + $0x70] sm:$0xff]
        %v403 = vld [vmem:[%s1 + $0x78] sm:$0xff]
        %v404 = vld [vmem:[%s1 + $0x80] sm:$0xff]
        %v405 = vld [vmem:[%s1 + $0x88] sm:$0xff]
        %v406 = vld [vmem:[%s1 + $0x90] sm:$0xff]
        %v407 = vld [vmem:[%s1 + $0x98] sm:$0xff]
        %v408 = vld [vmem:[%s1 + $0xa0] sm:$0xff]
        %v409 = vld [vmem:[%s1 + $0xa8] sm:$0xff]
        %v410 = vld [vmem:[%s1 + $0xb0] sm:$0xff]
        %v411 = vld [vmem:[%s1 + $0xb8] sm:$0xff]
        %v412 = vld [vmem:[%s1 + $0xc0] sm:$0xff]
        %v413 = vld [vmem:[%s1 + $0xc8] sm:$0xff]
        %v414 = vld [vmem:[%s1 + $0xd0] sm:$0xff]
        %v415 = vld [vmem:[%s1 + $0xd8] sm:$0xff]
        %v416 = vld [vmem:[%s1 + $0xe0] sm:$0xff]
        %v417 = vld [vmem:[%s1 + $0xe8] sm:$0xff]
        %v418 = vld [vmem:[%s1 + $0xf0] sm:$0xff]
        %v419 = vld [vmem:[%s1 + $0xf8] sm:$0xff]
        %v452 = vunpack.c.l.b16 %v388
        %v453 = vunpack.c.h.b16 %v388
        %v454 = vunpack.c.l.b16 %v389
        %v455 = vunpack.c.h.b16 %v389
        %v456 = vunpack.c.l.b16 %v390
        %v457 = vunpack.c.h.b16 %v390
        %v458 = vunpack.c.l.b16 %v391
        %v459 = vunpack.c.h.b16 %v391
        %v460 = vunpack.c.l.b16 %v392
        %v461 = vunpack.c.h.b16 %v392
        %v462 = vunpack.c.l.b16 %v393
        %v463 = vunpack.c.h.b16 %v393
        %v464 = vunpack.c.l.b16 %v394
        %v465 = vunpack.c.h.b16 %v394
        %v466 = vunpack.c.l.b16 %v395
        %v467 = vunpack.c.h.b16 %v395
        %v468 = vunpack.c.l.b16 %v396
        %v469 = vunpack.c.h.b16 %v396
        %v470 = vunpack.c.l.b16 %v397
        %v471 = vunpack.c.h.b16 %v397
        %v472 = vunpack.c.l.b16 %v398
        %v473 = vunpack.c.h.b16 %v398
        %v474 = vunpack.c.l.b16 %v399
        %v475 = vunpack.c.h.b16 %v399
        %v476 = vunpack.c.l.b16 %v400
        %v477 = vunpack.c.h.b16 %v400
        %v478 = vunpack.c.l.b16 %v401
        %v479 = vunpack.c.h.b16 %v401
        %v480 = vunpack.c.l.b16 %v402
        %v481 = vunpack.c.h.b16 %v402
        %v482 = vunpack.c.l.b16 %v403
        %v483 = vunpack.c.h.b16 %v403
        %v484 = vunpack.c.l.b16 %v404
        %v485 = vunpack.c.h.b16 %v404
        %v486 = vunpack.c.l.b16 %v405
        %v487 = vunpack.c.h.b16 %v405
        %v488 = vunpack.c.l.b16 %v406
        %v489 = vunpack.c.h.b16 %v406
        %v490 = vunpack.c.l.b16 %v407
        %v491 = vunpack.c.h.b16 %v407
        %v492 = vunpack.c.l.b16 %v408
        %v493 = vunpack.c.h.b16 %v408
        %v494 = vunpack.c.l.b16 %v409
        %v495 = vunpack.c.h.b16 %v409
        %v496 = vunpack.c.l.b16 %v410
        %v497 = vunpack.c.h.b16 %v410
        %v498 = vunpack.c.l.b16 %v411
        %v499 = vunpack.c.h.b16 %v411
        %v500 = vunpack.c.l.b16 %v412
        %v501 = vunpack.c.h.b16 %v412
        %v502 = vunpack.c.l.b16 %v413
        %v503 = vunpack.c.h.b16 %v413
        %v504 = vunpack.c.l.b16 %v414
        %v505 = vunpack.c.h.b16 %v414
        %v506 = vunpack.c.l.b16 %v415
        %v507 = vunpack.c.h.b16 %v415
        %v508 = vunpack.c.l.b16 %v416
        %v509 = vunpack.c.h.b16 %v416
        %v510 = vunpack.c.l.b16 %v417
        %v511 = vunpack.c.h.b16 %v417
        %v512 = vunpack.c.l.b16 %v418
        %v513 = vunpack.c.h.b16 %v418
        %v514 = vunpack.c.l.b16 %v419
        %v515 = vunpack.c.h.b16 %v419
        %v516 = vpack.c.b16 %v456, %v452
        %v517 = vpack.c.b16 %v457, %v453
        %v518 = vpack.c.b16 %v458, %v454
        %v519 = vpack.c.b16 %v459, %v455
        %v520 = vpack.c.b16 %v464, %v460
        %v521 = vpack.c.b16 %v465, %v461
        %v522 = vpack.c.b16 %v466, %v462
        %v523 = vpack.c.b16 %v467, %v463
        %v524 = vpack.c.b16 %v472, %v468
        %v525 = vpack.c.b16 %v473, %v469
        %v526 = vpack.c.b16 %v474, %v470
        %v527 = vpack.c.b16 %v475, %v471
        %v528 = vpack.c.b16 %v480, %v476
        %v529 = vpack.c.b16 %v481, %v477
        %v530 = vpack.c.b16 %v482, %v478
        %v531 = vpack.c.b16 %v483, %v479
        %v532 = vpack.c.b16 %v488, %v484
        %v533 = vpack.c.b16 %v489, %v485
        %v534 = vpack.c.b16 %v490, %v486
        %v535 = vpack.c.b16 %v491, %v487
        %v536 = vpack.c.b16 %v496, %v492
        %v537 = vpack.c.b16 %v497, %v493
        %v538 = vpack.c.b16 %v498, %v494
        %v539 = vpack.c.b16 %v499, %v495
        %v540 = vpack.c.b16 %v504, %v500
        %v541 = vpack.c.b16 %v505, %v501
        %v542 = vpack.c.b16 %v506, %v502
        %v543 = vpack.c.b16 %v507, %v503
        %v544 = vpack.c.b16 %v512, %v508
        %v545 = vpack.c.b16 %v513, %v509
        %v546 = vpack.c.b16 %v514, %v510
        %v547 = vpack.c.b16 %v515, %v511
        %580 = vmatprep.subr.bf16.mxu0 %v517
        %581 = vmatpush1.bf16.msra.mxu0 %v516
        %582 = vmatprep.subr.bf16.mxu0 %v521
        %583 = vmatpush1.bf16.msra.mxu0 %v520
        %584 = vmatprep.subr.bf16.mxu0 %v525
        %585 = vmatpush1.bf16.msra.mxu0 %v524
        %586 = vmatprep.subr.bf16.mxu0 %v529
        %587 = vmatpush1.bf16.msra.mxu0 %v528
        %588 = vmatprep.subr.bf16.mxu0 %v533
        %589 = vmatpush1.bf16.msra.mxu0 %v532
        %590 = vmatprep.subr.bf16.mxu0 %v537
        %591 = vmatpush1.bf16.msra.mxu0 %v536
        %592 = vmatprep.subr.bf16.mxu0 %v541
        %593 = vmatpush1.bf16.msra.mxu0 %v540
        %594 = vmatprep.subr.bf16.mxu0 %v545
        %595 = vmatpush1.bf16.msra.mxu0 %v544
        %596 = vmatprep.subr.bf16.mxu0 0
        %597 = vmatpush1.bf16.msra.mxu0 0
        %598 = vmatprep.subr.bf16.mxu0 0
        %599 = vmatpush1.bf16.msra.mxu0 0
        %600 = vmatprep.subr.bf16.mxu0 0
        %601 = vmatpush1.bf16.msra.mxu0 0
        %602 = vmatprep.subr.bf16.mxu0 0
        %603 = vmatpush1.bf16.msra.mxu0 0
        %604 = vmatprep.subr.bf16.mxu0 0
        %605 = vmatpush1.bf16.msra.mxu0 0
        %606 = vmatprep.subr.bf16.mxu0 0
        %607 = vmatpush1.bf16.msra.mxu0 0
        %608 = vmatprep.subr.bf16.mxu0 0
        %609 = vmatpush1.bf16.msra.mxu0 0
        %610 = vmatprep.subr.bf16.mxu0 0
        %611 = vmatpush1.bf16.msra.mxu0 0
        %612 = vmatprep.mubr.bf16.mxu0 0
        %613 = vmatmul.mubr.bf16.gmra.mrb[0].mxu0 %v387
        %v614 = vpop.f32.mrb[0].mxu0
        %v615 = vadd.f32 0.0, %v614
        %v616 = vpop.f32.mrb[0].mxu0
        %v617 = vadd.f32 0.0, %v616
        %v618 = vpop.f32.mrb[0].mxu0
        %v619 = vpop.f32.mrb[0].mxu0
        %620 = vdwg.mxu0
        %621 = vmatprep.subr.bf16.mxu0 %v519
        %622 = vmatpush1.bf16.msra.mxu0 %v518
        %623 = vmatprep.subr.bf16.mxu0 %v523
        %624 = vmatpush1.bf16.msra.mxu0 %v522
        %625 = vmatprep.subr.bf16.mxu0 %v527
        %626 = vmatpush1.bf16.msra.mxu0 %v526
        %627 = vmatprep.subr.bf16.mxu0 %v531
        %628 = vmatpush1.bf16.msra.mxu0 %v530
        %629 = vmatprep.subr.bf16.mxu0 %v535
        %630 = vmatpush1.bf16.msra.mxu0 %v534
        %631 = vmatprep.subr.bf16.mxu0 %v539
        %632 = vmatpush1.bf16.msra.mxu0 %v538
        %633 = vmatprep.subr.bf16.mxu0 %v543
        %634 = vmatpush1.bf16.msra.mxu0 %v542
        %635 = vmatprep.subr.bf16.mxu0 %v547
        %636 = vmatpush1.bf16.msra.mxu0 %v546
        %637 = vmatprep.subr.bf16.mxu0 0
        %638 = vmatpush1.bf16.msra.mxu0 0
        %639 = vmatprep.subr.bf16.mxu0 0
        %640 = vmatpush1.bf16.msra.mxu0 0
        %641 = vmatprep.subr.bf16.mxu0 0
        %642 = vmatpush1.bf16.msra.mxu0 0
        %643 = vmatprep.subr.bf16.mxu0 0
        %644 = vmatpush1.bf16.msra.mxu0 0
        %645 = vmatprep.subr.bf16.mxu0 0
        %646 = vmatpush1.bf16.msra.mxu0 0
        %647 = vmatprep.subr.bf16.mxu0 0
        %648 = vmatpush1.bf16.msra.mxu0 0
        %649 = vmatprep.subr.bf16.mxu0 0
        %650 = vmatpush1.bf16.msra.mxu0 0
        %651 = vmatprep.subr.bf16.mxu0 0
        %652 = vmatpush1.bf16.msra.mxu0 0
        %653 = vmatprep.mubr.bf16.mxu0 0
        %654 = vmatmul.mubr.bf16.gmra.mrb[0].mxu0 %v387
        %v655 = vpop.f32.mrb[0].mxu0
        %v656 = vadd.f32 0.0, %v655
        %v657 = vpop.f32.mrb[0].mxu0
        %v658 = vadd.f32 0.0, %v657
        %v659 = vpop.f32.mrb[0].mxu0
        %v660 = vpop.f32.mrb[0].mxu0
        %661 = vdwg.mxu0
        %v662 = vadd.f32 %v383, %v615
        %v663 = vadd.f32 %v384, %v617
        %v664 = vadd.f32 %v385, %v656
        %v665 = vadd.f32 %v386, %v658
        %v666 = vxor.u32 %v662, 2147483648
        %v667 = vmul.f32 %v666, 1.442695
        %v668 = vpow.pop %v667
        %v669 = vadd.f32 %v668, 1.0
        %v670 = vrcp.pop %v669
        %v671 = vmul.f32 1.0, %v670
        %v672 = vxor.u32 %v663, 2147483648
        %v673 = vmul.f32 %v672, 1.442695
        %v674 = vpow.pop %v673
        %v675 = vadd.f32 %v674, 1.0
        %v676 = vrcp.pop %v675
        %v677 = vmul.f32 1.0, %v676
        %v678 = vtanh.pop %v664
        %v679 = vxor.u32 %v665, 2147483648
        %v680 = vmul.f32 %v679, 1.442695
        %v681 = vpow.pop %v680
        %v682 = vadd.f32 %v681, 1.0
        %v683 = vrcp.pop %v682
        %v684 = vmul.f32 1.0, %v683
        %v685 = vmul.f32 %v677, %v380
        %v686 = vmul.f32 %v671, %v678
        %v687 = vadd.f32 %v685, %v686
        %v688 = vtanh.pop %v687
        %v689 = vmul.f32 %v684, %v688
        %v690 = vpack.c.bf16 %v689, %v689
        %v691 = vld [vmem:[%s2] sm:$0xff]
        %v692 = vld [vmem:[%s2 + $0x8] sm:$0xff]
        %v693 = vld [vmem:[%s2 + $0x10] sm:$0xff]
        %v694 = vld [vmem:[%s2 + $0x18] sm:$0xff]
        %v695 = vld [vmem:[%s2 + $0x20] sm:$0xff]
        %v696 = vld [vmem:[%s2 + $0x28] sm:$0xff]
        %v697 = vld [vmem:[%s2 + $0x30] sm:$0xff]
        %v698 = vld [vmem:[%s2 + $0x38] sm:$0xff]
        %v699 = vld [vmem:[%s2 + $0x40] sm:$0xff]
        %v700 = vld [vmem:[%s2 + $0x48] sm:$0xff]
        %v701 = vld [vmem:[%s2 + $0x50] sm:$0xff]
        %v702 = vld [vmem:[%s2 + $0x58] sm:$0xff]
        %v703 = vld [vmem:[%s2 + $0x60] sm:$0xff]
        %v704 = vld [vmem:[%s2 + $0x68] sm:$0xff]
        %v705 = vld [vmem:[%s2 + $0x70] sm:$0xff]
        %v706 = vld [vmem:[%s2 + $0x78] sm:$0xff]
        %v707 = vld [vmem:[%s2 + $0x80] sm:$0xff]
        %v708 = vld [vmem:[%s2 + $0x88] sm:$0xff]
        %v709 = vld [vmem:[%s2 + $0x90] sm:$0xff]
        %v710 = vld [vmem:[%s2 + $0x98] sm:$0xff]
        %v711 = vld [vmem:[%s2 + $0xa0] sm:$0xff]
        %v712 = vld [vmem:[%s2 + $0xa8] sm:$0xff]
        %v713 = vld [vmem:[%s2 + $0xb0] sm:$0xff]
        %v714 = vld [vmem:[%s2 + $0xb8] sm:$0xff]
        %v715 = vld [vmem:[%s2 + $0xc0] sm:$0xff]
        %v716 = vld [vmem:[%s2 + $0xc8] sm:$0xff]
        %v717 = vld [vmem:[%s2 + $0xd0] sm:$0xff]
        %v718 = vld [vmem:[%s2 + $0xd8] sm:$0xff]
        %v719 = vld [vmem:[%s2 + $0xe0] sm:$0xff]
        %v720 = vld [vmem:[%s2 + $0xe8] sm:$0xff]
        %v721 = vld [vmem:[%s2 + $0xf0] sm:$0xff]
        %v722 = vld [vmem:[%s2 + $0xf8] sm:$0xff]
        %v723 = vpack.c.bf16 %v378, %v378
        %v724 = vld [vmem:[%s3] sm:$0xff]
        %v725 = vld [vmem:[%s3 + $0x8] sm:$0xff]
        %v726 = vld [vmem:[%s3 + $0x10] sm:$0xff]
        %v727 = vld [vmem:[%s3 + $0x18] sm:$0xff]
        %v728 = vld [vmem:[%s3 + $0x20] sm:$0xff]
        %v729 = vld [vmem:[%s3 + $0x28] sm:$0xff]
        %v730 = vld [vmem:[%s3 + $0x30] sm:$0xff]
        %v731 = vld [vmem:[%s3 + $0x38] sm:$0xff]
        %v732 = vld [vmem:[%s3 + $0x40] sm:$0xff]
        %v733 = vld [vmem:[%s3 + $0x48] sm:$0xff]
        %v734 = vld [vmem:[%s3 + $0x50] sm:$0xff]
        %v735 = vld [vmem:[%s3 + $0x58] sm:$0xff]
        %v736 = vld [vmem:[%s3 + $0x60] sm:$0xff]
        %v737 = vld [vmem:[%s3 + $0x68] sm:$0xff]
        %v738 = vld [vmem:[%s3 + $0x70] sm:$0xff]
        %v739 = vld [vmem:[%s3 + $0x78] sm:$0xff]
        %v740 = vld [vmem:[%s3 + $0x80] sm:$0xff]
        %v741 = vld [vmem:[%s3 + $0x88] sm:$0xff]
        %v742 = vld [vmem:[%s3 + $0x90] sm:$0xff]
        %v743 = vld [vmem:[%s3 + $0x98] sm:$0xff]
        %v744 = vld [vmem:[%s3 + $0xa0] sm:$0xff]
        %v745 = vld [vmem:[%s3 + $0xa8] sm:$0xff]
        %v746 = vld [vmem:[%s3 + $0xb0] sm:$0xff]
        %v747 = vld [vmem:[%s3 + $0xb8] sm:$0xff]
        %v748 = vld [vmem:[%s3 + $0xc0] sm:$0xff]
        %v749 = vld [vmem:[%s3 + $0xc8] sm:$0xff]
        %v750 = vld [vmem:[%s3 + $0xd0] sm:$0xff]
        %v751 = vld [vmem:[%s3 + $0xd8] sm:$0xff]
        %v752 = vld [vmem:[%s3 + $0xe0] sm:$0xff]
        %v753 = vld [vmem:[%s3 + $0xe8] sm:$0xff]
        %v754 = vld [vmem:[%s3 + $0xf0] sm:$0xff]
        %v755 = vld [vmem:[%s3 + $0xf8] sm:$0xff]
        %v788 = vunpack.c.l.b16 %v724
        %v789 = vunpack.c.h.b16 %v724
        %v790 = vunpack.c.l.b16 %v725
        %v791 = vunpack.c.h.b16 %v725
        %v792 = vunpack.c.l.b16 %v726
        %v793 = vunpack.c.h.b16 %v726
        %v794 = vunpack.c.l.b16 %v727
        %v795 = vunpack.c.h.b16 %v727
        %v796 = vunpack.c.l.b16 %v728
        %v797 = vunpack.c.h.b16 %v728
        %v798 = vunpack.c.l.b16 %v729
        %v799 = vunpack.c.h.b16 %v729
        %v800 = vunpack.c.l.b16 %v730
        %v801 = vunpack.c.h.b16 %v730
        %v802 = vunpack.c.l.b16 %v731
        %v803 = vunpack.c.h.b16 %v731
        %v804 = vunpack.c.l.b16 %v732
        %v805 = vunpack.c.h.b16 %v732
        %v806 = vunpack.c.l.b16 %v733
        %v807 = vunpack.c.h.b16 %v733
        %v808 = vunpack.c.l.b16 %v734
        %v809 = vunpack.c.h.b16 %v734
        %v810 = vunpack.c.l.b16 %v735
        %v811 = vunpack.c.h.b16 %v735
        %v812 = vunpack.c.l.b16 %v736
        %v813 = vunpack.c.h.b16 %v736
        %v814 = vunpack.c.l.b16 %v737
        %v815 = vunpack.c.h.b16 %v737
        %v816 = vunpack.c.l.b16 %v738
        %v817 = vunpack.c.h.b16 %v738
        %v818 = vunpack.c.l.b16 %v739
        %v819 = vunpack.c.h.b16 %v739
        %v820 = vunpack.c.l.b16 %v740
        %v821 = vunpack.c.h.b16 %v740
        %v822 = vunpack.c.l.b16 %v741
        %v823 = vunpack.c.h.b16 %v741
        %v824 = vunpack.c.l.b16 %v742
        %v825 = vunpack.c.h.b16 %v742
        %v826 = vunpack.c.l.b16 %v743
        %v827 = vunpack.c.h.b16 %v743
        %v828 = vunpack.c.l.b16 %v744
        %v829 = vunpack.c.h.b16 %v744
        %v830 = vunpack.c.l.b16 %v745
        %v831 = vunpack.c.h.b16 %v745
        %v832 = vunpack.c.l.b16 %v746
        %v833 = vunpack.c.h.b16 %v746
        %v834 = vunpack.c.l.b16 %v747
        %v835 = vunpack.c.h.b16 %v747
        %v836 = vunpack.c.l.b16 %v748
        %v837 = vunpack.c.h.b16 %v748
        %v838 = vunpack.c.l.b16 %v749
        %v839 = vunpack.c.h.b16 %v749
        %v840 = vunpack.c.l.b16 %v750
        %v841 = vunpack.c.h.b16 %v750
        %v842 = vunpack.c.l.b16 %v751
        %v843 = vunpack.c.h.b16 %v751
        %v844 = vunpack.c.l.b16 %v752
        %v845 = vunpack.c.h.b16 %v752
        %v846 = vunpack.c.l.b16 %v753
        %v847 = vunpack.c.h.b16 %v753
        %v848 = vunpack.c.l.b16 %v754
        %v849 = vunpack.c.h.b16 %v754
        %v850 = vunpack.c.l.b16 %v755
        %v851 = vunpack.c.h.b16 %v755
        %v852 = vpack.c.b16 %v792, %v788
        %v853 = vpack.c.b16 %v793, %v789
        %v854 = vpack.c.b16 %v794, %v790
        %v855 = vpack.c.b16 %v795, %v791
        %v856 = vpack.c.b16 %v800, %v796
        %v857 = vpack.c.b16 %v801, %v797
        %v858 = vpack.c.b16 %v802, %v798
        %v859 = vpack.c.b16 %v803, %v799
        %v860 = vpack.c.b16 %v808, %v804
        %v861 = vpack.c.b16 %v809, %v805
        %v862 = vpack.c.b16 %v810, %v806
        %v863 = vpack.c.b16 %v811, %v807
        %v864 = vpack.c.b16 %v816, %v812
        %v865 = vpack.c.b16 %v817, %v813
        %v866 = vpack.c.b16 %v818, %v814
        %v867 = vpack.c.b16 %v819, %v815
        %v868 = vpack.c.b16 %v824, %v820
        %v869 = vpack.c.b16 %v825, %v821
        %v870 = vpack.c.b16 %v826, %v822
        %v871 = vpack.c.b16 %v827, %v823
        %v872 = vpack.c.b16 %v832, %v828
        %v873 = vpack.c.b16 %v833, %v829
        %v874 = vpack.c.b16 %v834, %v830
        %v875 = vpack.c.b16 %v835, %v831
        %v876 = vpack.c.b16 %v840, %v836
        %v877 = vpack.c.b16 %v841, %v837
        %v878 = vpack.c.b16 %v842, %v838
        %v879 = vpack.c.b16 %v843, %v839
        %v880 = vpack.c.b16 %v848, %v844
        %v881 = vpack.c.b16 %v849, %v845
        %v882 = vpack.c.b16 %v850, %v846
        %v883 = vpack.c.b16 %v851, %v847
        %916 = vmatprep.subr.bf16.mxu0 %v853
        %917 = vmatpush1.bf16.msra.mxu0 %v852
        %918 = vmatprep.subr.bf16.mxu0 %v857
        %919 = vmatpush1.bf16.msra.mxu0 %v856
        %920 = vmatprep.subr.bf16.mxu0 %v861
        %921 = vmatpush1.bf16.msra.mxu0 %v860
        %922 = vmatprep.subr.bf16.mxu0 %v865
        %923 = vmatpush1.bf16.msra.mxu0 %v864
        %924 = vmatprep.subr.bf16.mxu0 %v869
        %925 = vmatpush1.bf16.msra.mxu0 %v868
        %926 = vmatprep.subr.bf16.mxu0 %v873
        %927 = vmatpush1.bf16.msra.mxu0 %v872
        %928 = vmatprep.subr.bf16.mxu0 %v877
        %929 = vmatpush1.bf16.msra.mxu0 %v876
        %930 = vmatprep.subr.bf16.mxu0 %v881
        %931 = vmatpush1.bf16.msra.mxu0 %v880
        %932 = vmatprep.subr.bf16.mxu0 0
        %933 = vmatpush1.bf16.msra.mxu0 0
        %934 = vmatprep.subr.bf16.mxu0 0
        %935 = vmatpush1.bf16.msra.mxu0 0
        %936 = vmatprep.subr.bf16.mxu0 0
        %937 = vmatpush1.bf16.msra.mxu0 0
        %938 = vmatprep.subr.bf16.mxu0 0
        %939 = vmatpush1.bf16.msra.mxu0 0
        %940 = vmatprep.subr.bf16.mxu0 0
        %941 = vmatpush1.bf16.msra.mxu0 0
        %942 = vmatprep.subr.bf16.mxu0 0
        %943 = vmatpush1.bf16.msra.mxu0 0
        %944 = vmatprep.subr.bf16.mxu0 0
        %945 = vmatpush1.bf16.msra.mxu0 0
        %946 = vmatprep.subr.bf16.mxu0 0
        %947 = vmatpush1.bf16.msra.mxu0 0
        %948 = vmatprep.mubr.bf16.mxu0 0
        %949 = vmatmul.mubr.bf16.gmra.mrb[0].mxu0 %v723
        %v950 = vpop.f32.mrb[0].mxu0
        %v951 = vadd.f32 0.0, %v950
        %v952 = vpop.f32.mrb[0].mxu0
        %v953 = vadd.f32 0.0, %v952
        %v954 = vpop.f32.mrb[0].mxu0
        %v955 = vpop.f32.mrb[0].mxu0
        %956 = vdwg.mxu0
        %957 = vmatprep.subr.bf16.mxu0 %v855
        %958 = vmatpush1.bf16.msra.mxu0 %v854
        %959 = vmatprep.subr.bf16.mxu0 %v859
        %960 = vmatpush1.bf16.msra.mxu0 %v858
        %961 = vmatprep.subr.bf16.mxu0 %v863
        %962 = vmatpush1.bf16.msra.mxu0 %v862
        %963 = vmatprep.subr.bf16.mxu0 %v867
        %964 = vmatpush1.bf16.msra.mxu0 %v866
        %965 = vmatprep.subr.bf16.mxu0 %v871
        %966 = vmatpush1.bf16.msra.mxu0 %v870
        %967 = vmatprep.subr.bf16.mxu0 %v875
        %968 = vmatpush1.bf16.msra.mxu0 %v874
        %969 = vmatprep.subr.bf16.mxu0 %v879
        %970 = vmatpush1.bf16.msra.mxu0 %v878
        %971 = vmatprep.subr.bf16.mxu0 %v883
        %972 = vmatpush1.bf16.msra.mxu0 %v882
        %973 = vmatprep.subr.bf16.mxu0 0
        %974 = vmatpush1.bf16.msra.mxu0 0
        %975 = vmatprep.subr.bf16.mxu0 0
        %976 = vmatpush1.bf16.msra.mxu0 0
        %977 = vmatprep.subr.bf16.mxu0 0
        %978 = vmatpush1.bf16.msra.mxu0 0
        %979 = vmatprep.subr.bf16.mxu0 0
        %980 = vmatpush1.bf16.msra.mxu0 0
        %981 = vmatprep.subr.bf16.mxu0 0
        %982 = vmatpush1.bf16.msra.mxu0 0
        %983 = vmatprep.subr.bf16.mxu0 0
        %984 = vmatpush1.bf16.msra.mxu0 0
        %985 = vmatprep.subr.bf16.mxu0 0
        %986 = vmatpush1.bf16.msra.mxu0 0
        %987 = vmatprep.subr.bf16.mxu0 0
        %988 = vmatpush1.bf16.msra.mxu0 0
        %989 = vmatprep.mubr.bf16.mxu0 0
        %990 = vmatmul.mubr.bf16.gmra.mrb[0].mxu0 %v723
        %v991 = vpop.f32.mrb[0].mxu0
        %v992 = vadd.f32 0.0, %v991
        %v993 = vpop.f32.mrb[0].mxu0
        %v994 = vadd.f32 0.0, %v993
        %v995 = vpop.f32.mrb[0].mxu0
        %v996 = vpop.f32.mrb[0].mxu0
        %997 = vdwg.mxu0
        %v1030 = vunpack.c.l.b16 %v691
        %v1031 = vunpack.c.h.b16 %v691
        %v1032 = vunpack.c.l.b16 %v692
        %v1033 = vunpack.c.h.b16 %v692
        %v1034 = vunpack.c.l.b16 %v693
        %v1035 = vunpack.c.h.b16 %v693
        %v1036 = vunpack.c.l.b16 %v694
        %v1037 = vunpack.c.h.b16 %v694
        %v1038 = vunpack.c.l.b16 %v695
        %v1039 = vunpack.c.h.b16 %v695
        %v1040 = vunpack.c.l.b16 %v696
        %v1041 = vunpack.c.h.b16 %v696
        %v1042 = vunpack.c.l.b16 %v697
        %v1043 = vunpack.c.h.b16 %v697
        %v1044 = vunpack.c.l.b16 %v698
        %v1045 = vunpack.c.h.b16 %v698
        %v1046 = vunpack.c.l.b16 %v699
        %v1047 = vunpack.c.h.b16 %v699
        %v1048 = vunpack.c.l.b16 %v700
        %v1049 = vunpack.c.h.b16 %v700
        %v1050 = vunpack.c.l.b16 %v701
        %v1051 = vunpack.c.h.b16 %v701
        %v1052 = vunpack.c.l.b16 %v702
        %v1053 = vunpack.c.h.b16 %v702
        %v1054 = vunpack.c.l.b16 %v703
        %v1055 = vunpack.c.h.b16 %v703
        %v1056 = vunpack.c.l.b16 %v704
        %v1057 = vunpack.c.h.b16 %v704
        %v1058 = vunpack.c.l.b16 %v705
        %v1059 = vunpack.c.h.b16 %v705
        %v1060 = vunpack.c.l.b16 %v706
        %v1061 = vunpack.c.h.b16 %v706
        %v1062 = vunpack.c.l.b16 %v707
        %v1063 = vunpack.c.h.b16 %v707
        %v1064 = vunpack.c.l.b16 %v708
        %v1065 = vunpack.c.h.b16 %v708
        %v1066 = vunpack.c.l.b16 %v709
        %v1067 = vunpack.c.h.b16 %v709
        %v1068 = vunpack.c.l.b16 %v710
        %v1069 = vunpack.c.h.b16 %v710
        %v1070 = vunpack.c.l.b16 %v711
        %v1071 = vunpack.c.h.b16 %v711
        %v1072 = vunpack.c.l.b16 %v712
        %v1073 = vunpack.c.h.b16 %v712
        %v1074 = vunpack.c.l.b16 %v713
        %v1075 = vunpack.c.h.b16 %v713
        %v1076 = vunpack.c.l.b16 %v714
        %v1077 = vunpack.c.h.b16 %v714
        %v1078 = vunpack.c.l.b16 %v715
        %v1079 = vunpack.c.h.b16 %v715
        %v1080 = vunpack.c.l.b16 %v716
        %v1081 = vunpack.c.h.b16 %v716
        %v1082 = vunpack.c.l.b16 %v717
        %v1083 = vunpack.c.h.b16 %v717
        %v1084 = vunpack.c.l.b16 %v718
        %v1085 = vunpack.c.h.b16 %v718
        %v1086 = vunpack.c.l.b16 %v719
        %v1087 = vunpack.c.h.b16 %v719
        %v1088 = vunpack.c.l.b16 %v720
        %v1089 = vunpack.c.h.b16 %v720
        %v1090 = vunpack.c.l.b16 %v721
        %v1091 = vunpack.c.h.b16 %v721
        %v1092 = vunpack.c.l.b16 %v722
        %v1093 = vunpack.c.h.b16 %v722
        %v1094 = vpack.c.b16 %v1034, %v1030
        %v1095 = vpack.c.b16 %v1035, %v1031
        %v1096 = vpack.c.b16 %v1036, %v1032
        %v1097 = vpack.c.b16 %v1037, %v1033
        %v1098 = vpack.c.b16 %v1042, %v1038
        %v1099 = vpack.c.b16 %v1043, %v1039
        %v1100 = vpack.c.b16 %v1044, %v1040
        %v1101 = vpack.c.b16 %v1045, %v1041
        %v1102 = vpack.c.b16 %v1050, %v1046
        %v1103 = vpack.c.b16 %v1051, %v1047
        %v1104 = vpack.c.b16 %v1052, %v1048
        %v1105 = vpack.c.b16 %v1053, %v1049
        %v1106 = vpack.c.b16 %v1058, %v1054
        %v1107 = vpack.c.b16 %v1059, %v1055
        %v1108 = vpack.c.b16 %v1060, %v1056
        %v1109 = vpack.c.b16 %v1061, %v1057
        %v1110 = vpack.c.b16 %v1066, %v1062
        %v1111 = vpack.c.b16 %v1067, %v1063
        %v1112 = vpack.c.b16 %v1068, %v1064
        %v1113 = vpack.c.b16 %v1069, %v1065
        %v1114 = vpack.c.b16 %v1074, %v1070
        %v1115 = vpack.c.b16 %v1075, %v1071
        %v1116 = vpack.c.b16 %v1076, %v1072
        %v1117 = vpack.c.b16 %v1077, %v1073
        %v1118 = vpack.c.b16 %v1082, %v1078
        %v1119 = vpack.c.b16 %v1083, %v1079
        %v1120 = vpack.c.b16 %v1084, %v1080
        %v1121 = vpack.c.b16 %v1085, %v1081
        %v1122 = vpack.c.b16 %v1090, %v1086
        %v1123 = vpack.c.b16 %v1091, %v1087
        %v1124 = vpack.c.b16 %v1092, %v1088
        %v1125 = vpack.c.b16 %v1093, %v1089
        %1158 = vmatprep.subr.bf16.mxu0 %v1095
        %1159 = vmatpush1.bf16.msra.mxu0 %v1094
        %1160 = vmatprep.subr.bf16.mxu0 %v1099
        %1161 = vmatpush1.bf16.msra.mxu0 %v1098
        %1162 = vmatprep.subr.bf16.mxu0 %v1103
        %1163 = vmatpush1.bf16.msra.mxu0 %v1102
        %1164 = vmatprep.subr.bf16.mxu0 %v1107
        %1165 = vmatpush1.bf16.msra.mxu0 %v1106
        %1166 = vmatprep.subr.bf16.mxu0 %v1111
        %1167 = vmatpush1.bf16.msra.mxu0 %v1110
        %1168 = vmatprep.subr.bf16.mxu0 %v1115
        %1169 = vmatpush1.bf16.msra.mxu0 %v1114
        %1170 = vmatprep.subr.bf16.mxu0 %v1119
        %1171 = vmatpush1.bf16.msra.mxu0 %v1118
        %1172 = vmatprep.subr.bf16.mxu0 %v1123
        %1173 = vmatpush1.bf16.msra.mxu0 %v1122
        %1174 = vmatprep.subr.bf16.mxu0 0
        %1175 = vmatpush1.bf16.msra.mxu0 0
        %1176 = vmatprep.subr.bf16.mxu0 0
        %1177 = vmatpush1.bf16.msra.mxu0 0
        %1178 = vmatprep.subr.bf16.mxu0 0
        %1179 = vmatpush1.bf16.msra.mxu0 0
        %1180 = vmatprep.subr.bf16.mxu0 0
        %1181 = vmatpush1.bf16.msra.mxu0 0
        %1182 = vmatprep.subr.bf16.mxu0 0
        %1183 = vmatpush1.bf16.msra.mxu0 0
        %1184 = vmatprep.subr.bf16.mxu0 0
        %1185 = vmatpush1.bf16.msra.mxu0 0
        %1186 = vmatprep.subr.bf16.mxu0 0
        %1187 = vmatpush1.bf16.msra.mxu0 0
        %1188 = vmatprep.subr.bf16.mxu0 0
        %1189 = vmatpush1.bf16.msra.mxu0 0
        %1190 = vmatprep.mubr.bf16.mxu0 0
        %1191 = vmatmul.mubr.bf16.gmra.mrb[0].mxu0 %v690
        %v1192 = vpop.f32.mrb[0].mxu0
        %v1193 = vadd.f32 %v951, %v1192
        %v1194 = vpop.f32.mrb[0].mxu0
        %v1195 = vadd.f32 %v953, %v1194
        %v1196 = vpop.f32.mrb[0].mxu0
        %v1197 = vpop.f32.mrb[0].mxu0
        %1198 = vdwg.mxu0
        %1199 = vmatprep.subr.bf16.mxu0 %v1097
        %1200 = vmatpush1.bf16.msra.mxu0 %v1096
        %1201 = vmatprep.subr.bf16.mxu0 %v1101
        %1202 = vmatpush1.bf16.msra.mxu0 %v1100
        %1203 = vmatprep.subr.bf16.mxu0 %v1105
        %1204 = vmatpush1.bf16.msra.mxu0 %v1104
        %1205 = vmatprep.subr.bf16.mxu0 %v1109
        %1206 = vmatpush1.bf16.msra.mxu0 %v1108
        %1207 = vmatprep.subr.bf16.mxu0 %v1113
        %1208 = vmatpush1.bf16.msra.mxu0 %v1112
        %1209 = vmatprep.subr.bf16.mxu0 %v1117
        %1210 = vmatpush1.bf16.msra.mxu0 %v1116
        %1211 = vmatprep.subr.bf16.mxu0 %v1121
        %1212 = vmatpush1.bf16.msra.mxu0 %v1120
        %1213 = vmatprep.subr.bf16.mxu0 %v1125
        %1214 = vmatpush1.bf16.msra.mxu0 %v1124
        %1215 = vmatprep.subr.bf16.mxu0 0
        %1216 = vmatpush1.bf16.msra.mxu0 0
        %1217 = vmatprep.subr.bf16.mxu0 0
        %1218 = vmatpush1.bf16.msra.mxu0 0
        %1219 = vmatprep.subr.bf16.mxu0 0
        %1220 = vmatpush1.bf16.msra.mxu0 0
        %1221 = vmatprep.subr.bf16.mxu0 0
        %1222 = vmatpush1.bf16.msra.mxu0 0
        %1223 = vmatprep.subr.bf16.mxu0 0
        %1224 = vmatpush1.bf16.msra.mxu0 0
        %1225 = vmatprep.subr.bf16.mxu0 0
        %1226 = vmatpush1.bf16.msra.mxu0 0
        %1227 = vmatprep.subr.bf16.mxu0 0
        %1228 = vmatpush1.bf16.msra.mxu0 0
        %1229 = vmatprep.subr.bf16.mxu0 0
        %1230 = vmatpush1.bf16.msra.mxu0 0
        %1231 = vmatprep.mubr.bf16.mxu0 0
        %1232 = vmatmul.mubr.bf16.gmra.mrb[0].mxu0 %v690
        %v1233 = vpop.f32.mrb[0].mxu0
        %v1234 = vadd.f32 %v992, %v1233
        %v1235 = vpop.f32.mrb[0].mxu0
        %v1236 = vadd.f32 %v994, %v1235
        %v1237 = vpop.f32.mrb[0].mxu0
        %v1238 = vpop.f32.mrb[0].mxu0
        %1239 = vdwg.mxu0
        %v1240 = vld [vmem:[%s4] sm:$0xf]
        %v1242 = vlaneseq
        %v1243 = vshrl.u32 %v1242, 7
        %v1244 = vsub.s32 0, %v1243
        %v1245 = vrot.slane %v1240, %v1244
        %v1246 = vlaneseq
        %v1247 = vshrl.u32 %v1246, 7
        %v1248 = vsub.s32 1, %v1247
        %v1249 = vrot.slane %v1240, %v1248
        %v1250 = vlaneseq
        %v1251 = vshrl.u32 %v1250, 7
        %v1252 = vsub.s32 2, %v1251
        %v1253 = vrot.slane %v1240, %v1252
        %v1254 = vlaneseq
        %v1255 = vshrl.u32 %v1254, 7
        %v1256 = vsub.s32 3, %v1255
        %v1257 = vrot.slane %v1240, %v1256
        %v1262 = vadd.f32 %v1193, %v1245
        %v1263 = vadd.f32 %v1195, %v1249
        %v1264 = vadd.f32 %v1234, %v1253
        %v1265 = vadd.f32 %v1236, %v1257
        %v1266 = vxor.u32 %v1262, 2147483648
        %v1267 = vmul.f32 %v1266, 1.442695
        %v1268 = vpow.pop %v1267
        %v1269 = vadd.f32 %v1268, 1.0
        %v1270 = vrcp.pop %v1269
        %v1271 = vmul.f32 1.0, %v1270
        %v1272 = vxor.u32 %v1263, 2147483648
        %v1273 = vmul.f32 %v1272, 1.442695
        %v1274 = vpow.pop %v1273
        %v1275 = vadd.f32 %v1274, 1.0
        %v1276 = vrcp.pop %v1275
        %v1277 = vmul.f32 1.0, %v1276
        %v1278 = vtanh.pop %v1264
        %v1279 = vxor.u32 %v1265, 2147483648
        %v1280 = vmul.f32 %v1279, 1.442695
        %v1281 = vpow.pop %v1280
        %v1282 = vadd.f32 %v1281, 1.0
        %v1283 = vrcp.pop %v1282
        %v1284 = vmul.f32 1.0, %v1283
        %v1285 = vmul.f32 %v1277, %v381
        %v1286 = vmul.f32 %v1271, %v1278
        %v1287 = vadd.f32 %v1285, %v1286
        %v1288 = vtanh.pop %v1287
        %v1289 = vmul.f32 %v1284, %v1288
        %v1290 = vpack.c.bf16 %v1289, %v1289
        %v1291 = vld [vmem:[%s5] sm:$0xff]
        %v1292 = vld [vmem:[%s5 + $0x8] sm:$0xff]
        %v1293 = vld [vmem:[%s5 + $0x10] sm:$0xff]
        %v1294 = vld [vmem:[%s5 + $0x18] sm:$0xff]
        %v1295 = vld [vmem:[%s5 + $0x20] sm:$0xff]
        %v1296 = vld [vmem:[%s5 + $0x28] sm:$0xff]
        %v1297 = vld [vmem:[%s5 + $0x30] sm:$0xff]
        %v1298 = vld [vmem:[%s5 + $0x38] sm:$0xff]
        %v1299 = vld [vmem:[%s5 + $0x40] sm:$0xff]
        %v1300 = vld [vmem:[%s5 + $0x48] sm:$0xff]
        %v1301 = vld [vmem:[%s5 + $0x50] sm:$0xff]
        %v1302 = vld [vmem:[%s5 + $0x58] sm:$0xff]
        %v1303 = vld [vmem:[%s5 + $0x60] sm:$0xff]
        %v1304 = vld [vmem:[%s5 + $0x68] sm:$0xff]
        %v1305 = vld [vmem:[%s5 + $0x70] sm:$0xff]
        %v1306 = vld [vmem:[%s5 + $0x78] sm:$0xff]
        %v1307 = vld [vmem:[%s5 + $0x80] sm:$0xff]
        %v1308 = vld [vmem:[%s5 + $0x88] sm:$0xff]
        %v1309 = vld [vmem:[%s5 + $0x90] sm:$0xff]
        %v1310 = vld [vmem:[%s5 + $0x98] sm:$0xff]
        %v1311 = vld [vmem:[%s5 + $0xa0] sm:$0xff]
        %v1312 = vld [vmem:[%s5 + $0xa8] sm:$0xff]
        %v1313 = vld [vmem:[%s5 + $0xb0] sm:$0xff]
        %v1314 = vld [vmem:[%s5 + $0xb8] sm:$0xff]
        %v1315 = vld [vmem:[%s5 + $0xc0] sm:$0xff]
        %v1316 = vld [vmem:[%s5 + $0xc8] sm:$0xff]
        %v1317 = vld [vmem:[%s5 + $0xd0] sm:$0xff]
        %v1318 = vld [vmem:[%s5 + $0xd8] sm:$0xff]
        %v1319 = vld [vmem:[%s5 + $0xe0] sm:$0xff]
        %v1320 = vld [vmem:[%s5 + $0xe8] sm:$0xff]
        %v1321 = vld [vmem:[%s5 + $0xf0] sm:$0xff]
        %v1322 = vld [vmem:[%s5 + $0xf8] sm:$0xff]
        %v1323 = vpack.c.bf16 %v379, %v379
        %v1324 = vld [vmem:[#allocation8] sm:$0xff]
        %v1325 = vld [vmem:[#allocation8 + $0x8] sm:$0xff]
        %v1326 = vld [vmem:[#allocation8 + $0x10] sm:$0xff]
        %v1327 = vld [vmem:[#allocation8 + $0x18] sm:$0xff]
        %v1328 = vld [vmem:[#allocation8 + $0x20] sm:$0xff]
        %v1329 = vld [vmem:[#allocation8 + $0x28] sm:$0xff]
        %v1330 = vld [vmem:[#allocation8 + $0x30] sm:$0xff]
        %v1331 = vld [vmem:[#allocation8 + $0x38] sm:$0xff]
        %v1332 = vld [vmem:[#allocation8 + $0x40] sm:$0xff]
        %v1333 = vld [vmem:[#allocation8 + $0x48] sm:$0xff]
        %v1334 = vld [vmem:[#allocation8 + $0x50] sm:$0xff]
        %v1335 = vld [vmem:[#allocation8 + $0x58] sm:$0xff]
        %v1336 = vld [vmem:[#allocation8 + $0x60] sm:$0xff]
        %v1337 = vld [vmem:[#allocation8 + $0x68] sm:$0xff]
        %v1338 = vld [vmem:[#allocation8 + $0x70] sm:$0xff]
        %v1339 = vld [vmem:[#allocation8 + $0x78] sm:$0xff]
        %v1340 = vld [vmem:[#allocation8 + $0x80] sm:$0xff]
        %v1341 = vld [vmem:[#allocation8 + $0x88] sm:$0xff]
        %v1342 = vld [vmem:[#allocation8 + $0x90] sm:$0xff]
        %v1343 = vld [vmem:[#allocation8 + $0x98] sm:$0xff]
        %v1344 = vld [vmem:[#allocation8 + $0xa0] sm:$0xff]
        %v1345 = vld [vmem:[#allocation8 + $0xa8] sm:$0xff]
        %v1346 = vld [vmem:[#allocation8 + $0xb0] sm:$0xff]
        %v1347 = vld [vmem:[#allocation8 + $0xb8] sm:$0xff]
        %v1348 = vld [vmem:[#allocation8 + $0xc0] sm:$0xff]
        %v1349 = vld [vmem:[#allocation8 + $0xc8] sm:$0xff]
        %v1350 = vld [vmem:[#allocation8 + $0xd0] sm:$0xff]
        %v1351 = vld [vmem:[#allocation8 + $0xd8] sm:$0xff]
        %v1352 = vld [vmem:[#allocation8 + $0xe0] sm:$0xff]
        %v1353 = vld [vmem:[#allocation8 + $0xe8] sm:$0xff]
        %v1354 = vld [vmem:[#allocation8 + $0xf0] sm:$0xff]
        %v1355 = vld [vmem:[#allocation8 + $0xf8] sm:$0xff]
        %v1388 = vunpack.c.l.b16 %v1324
        %v1389 = vunpack.c.h.b16 %v1324
        %v1390 = vunpack.c.l.b16 %v1325
        %v1391 = vunpack.c.h.b16 %v1325
        %v1392 = vunpack.c.l.b16 %v1326
        %v1393 = vunpack.c.h.b16 %v1326
        %v1394 = vunpack.c.l.b16 %v1327
        %v1395 = vunpack.c.h.b16 %v1327
        %v1396 = vunpack.c.l.b16 %v1328
        %v1397 = vunpack.c.h.b16 %v1328
        %v1398 = vunpack.c.l.b16 %v1329
        %v1399 = vunpack.c.h.b16 %v1329
        %v1400 = vunpack.c.l.b16 %v1330
        %v1401 = vunpack.c.h.b16 %v1330
        %v1402 = vunpack.c.l.b16 %v1331
        %v1403 = vunpack.c.h.b16 %v1331
        %v1404 = vunpack.c.l.b16 %v1332
        %v1405 = vunpack.c.h.b16 %v1332
        %v1406 = vunpack.c.l.b16 %v1333
        %v1407 = vunpack.c.h.b16 %v1333
        %v1408 = vunpack.c.l.b16 %v1334
        %v1409 = vunpack.c.h.b16 %v1334
        %v1410 = vunpack.c.l.b16 %v1335
        %v1411 = vunpack.c.h.b16 %v1335
        %v1412 = vunpack.c.l.b16 %v1336
        %v1413 = vunpack.c.h.b16 %v1336
        %v1414 = vunpack.c.l.b16 %v1337
        %v1415 = vunpack.c.h.b16 %v1337
        %v1416 = vunpack.c.l.b16 %v1338
        %v1417 = vunpack.c.h.b16 %v1338
        %v1418 = vunpack.c.l.b16 %v1339
        %v1419 = vunpack.c.h.b16 %v1339
        %v1420 = vunpack.c.l.b16 %v1340
        %v1421 = vunpack.c.h.b16 %v1340
        %v1422 = vunpack.c.l.b16 %v1341
        %v1423 = vunpack.c.h.b16 %v1341
        %v1424 = vunpack.c.l.b16 %v1342
        %v1425 = vunpack.c.h.b16 %v1342
        %v1426 = vunpack.c.l.b16 %v1343
        %v1427 = vunpack.c.h.b16 %v1343
        %v1428 = vunpack.c.l.b16 %v1344
        %v1429 = vunpack.c.h.b16 %v1344
        %v1430 = vunpack.c.l.b16 %v1345
        %v1431 = vunpack.c.h.b16 %v1345
        %v1432 = vunpack.c.l.b16 %v1346
        %v1433 = vunpack.c.h.b16 %v1346
        %v1434 = vunpack.c.l.b16 %v1347
        %v1435 = vunpack.c.h.b16 %v1347
        %v1436 = vunpack.c.l.b16 %v1348
        %v1437 = vunpack.c.h.b16 %v1348
        %v1438 = vunpack.c.l.b16 %v1349
        %v1439 = vunpack.c.h.b16 %v1349
        %v1440 = vunpack.c.l.b16 %v1350
        %v1441 = vunpack.c.h.b16 %v1350
        %v1442 = vunpack.c.l.b16 %v1351
        %v1443 = vunpack.c.h.b16 %v1351
        %v1444 = vunpack.c.l.b16 %v1352
        %v1445 = vunpack.c.h.b16 %v1352
        %v1446 = vunpack.c.l.b16 %v1353
        %v1447 = vunpack.c.h.b16 %v1353
        %v1448 = vunpack.c.l.b16 %v1354
        %v1449 = vunpack.c.h.b16 %v1354
        %v1450 = vunpack.c.l.b16 %v1355
        %v1451 = vunpack.c.h.b16 %v1355
        %v1452 = vpack.c.b16 %v1392, %v1388
        %v1453 = vpack.c.b16 %v1393, %v1389
        %v1454 = vpack.c.b16 %v1394, %v1390
        %v1455 = vpack.c.b16 %v1395, %v1391
        %v1456 = vpack.c.b16 %v1400, %v1396
        %v1457 = vpack.c.b16 %v1401, %v1397
        %v1458 = vpack.c.b16 %v1402, %v1398
        %v1459 = vpack.c.b16 %v1403, %v1399
        %v1460 = vpack.c.b16 %v1408, %v1404
        %v1461 = vpack.c.b16 %v1409, %v1405
        %v1462 = vpack.c.b16 %v1410, %v1406
        %v1463 = vpack.c.b16 %v1411, %v1407
        %v1464 = vpack.c.b16 %v1416, %v1412
        %v1465 = vpack.c.b16 %v1417, %v1413
        %v1466 = vpack.c.b16 %v1418, %v1414
        %v1467 = vpack.c.b16 %v1419, %v1415
        %v1468 = vpack.c.b16 %v1424, %v1420
        %v1469 = vpack.c.b16 %v1425, %v1421
        %v1470 = vpack.c.b16 %v1426, %v1422
        %v1471 = vpack.c.b16 %v1427, %v1423
        %v1472 = vpack.c.b16 %v1432, %v1428
        %v1473 = vpack.c.b16 %v1433, %v1429
        %v1474 = vpack.c.b16 %v1434, %v1430
        %v1475 = vpack.c.b16 %v1435, %v1431
        %v1476 = vpack.c.b16 %v1440, %v1436
        %v1477 = vpack.c.b16 %v1441, %v1437
        %v1478 = vpack.c.b16 %v1442, %v1438
        %v1479 = vpack.c.b16 %v1443, %v1439
        %v1480 = vpack.c.b16 %v1448, %v1444
        %v1481 = vpack.c.b16 %v1449, %v1445
        %v1482 = vpack.c.b16 %v1450, %v1446
        %v1483 = vpack.c.b16 %v1451, %v1447
        %1516 = vmatprep.subr.bf16.mxu0 %v1453
        %1517 = vmatpush1.bf16.msra.mxu0 %v1452
        %1518 = vmatprep.subr.bf16.mxu0 %v1457
        %1519 = vmatpush1.bf16.msra.mxu0 %v1456
        %1520 = vmatprep.subr.bf16.mxu0 %v1461
        %1521 = vmatpush1.bf16.msra.mxu0 %v1460
        %1522 = vmatprep.subr.bf16.mxu0 %v1465
        %1523 = vmatpush1.bf16.msra.mxu0 %v1464
        %1524 = vmatprep.subr.bf16.mxu0 %v1469
        %1525 = vmatpush1.bf16.msra.mxu0 %v1468
        %1526 = vmatprep.subr.bf16.mxu0 %v1473
        %1527 = vmatpush1.bf16.msra.mxu0 %v1472
        %1528 = vmatprep.subr.bf16.mxu0 %v1477
        %1529 = vmatpush1.bf16.msra.mxu0 %v1476
        %1530 = vmatprep.subr.bf16.mxu0 %v1481
        %1531 = vmatpush1.bf16.msra.mxu0 %v1480
        %1532 = vmatprep.subr.bf16.mxu0 0
        %1533 = vmatpush1.bf16.msra.mxu0 0
        %1534 = vmatprep.subr.bf16.mxu0 0
        %1535 = vmatpush1.bf16.msra.mxu0 0
        %1536 = vmatprep.subr.bf16.mxu0 0
        %1537 = vmatpush1.bf16.msra.mxu0 0
        %1538 = vmatprep.subr.bf16.mxu0 0
        %1539 = vmatpush1.bf16.msra.mxu0 0
        %1540 = vmatprep.subr.bf16.mxu0 0
        %1541 = vmatpush1.bf16.msra.mxu0 0
        %1542 = vmatprep.subr.bf16.mxu0 0
        %1543 = vmatpush1.bf16.msra.mxu0 0
        %1544 = vmatprep.subr.bf16.mxu0 0
        %1545 = vmatpush1.bf16.msra.mxu0 0
        %1546 = vmatprep.subr.bf16.mxu0 0
        %1547 = vmatpush1.bf16.msra.mxu0 0
        %1548 = vmatprep.mubr.bf16.mxu0 0
        %1549 = vmatmul.mubr.bf16.gmra.mrb[0].mxu0 %v1323
        %v1550 = vpop.f32.mrb[0].mxu0
        %v1551 = vadd.f32 0.0, %v1550
        %v1552 = vpop.f32.mrb[0].mxu0
        %v1553 = vadd.f32 0.0, %v1552
        %v1554 = vpop.f32.mrb[0].mxu0
        %v1555 = vpop.f32.mrb[0].mxu0
        %1556 = vdwg.mxu0
        %1557 = vmatprep.subr.bf16.mxu0 %v1455
        %1558 = vmatpush1.bf16.msra.mxu0 %v1454
        %1559 = vmatprep.subr.bf16.mxu0 %v1459
        %1560 = vmatpush1.bf16.msra.mxu0 %v1458
        %1561 = vmatprep.subr.bf16.mxu0 %v1463
        %1562 = vmatpush1.bf16.msra.mxu0 %v1462
        %1563 = vmatprep.subr.bf16.mxu0 %v1467
        %1564 = vmatpush1.bf16.msra.mxu0 %v1466
        %1565 = vmatprep.subr.bf16.mxu0 %v1471
        %1566 = vmatpush1.bf16.msra.mxu0 %v1470
        %1567 = vmatprep.subr.bf16.mxu0 %v1475
        %1568 = vmatpush1.bf16.msra.mxu0 %v1474
        %1569 = vmatprep.subr.bf16.mxu0 %v1479
        %1570 = vmatpush1.bf16.msra.mxu0 %v1478
        %1571 = vmatprep.subr.bf16.mxu0 %v1483
        %1572 = vmatpush1.bf16.msra.mxu0 %v1482
        %1573 = vmatprep.subr.bf16.mxu0 0
        %1574 = vmatpush1.bf16.msra.mxu0 0
        %1575 = vmatprep.subr.bf16.mxu0 0
        %1576 = vmatpush1.bf16.msra.mxu0 0
        %1577 = vmatprep.subr.bf16.mxu0 0
        %1578 = vmatpush1.bf16.msra.mxu0 0
        %1579 = vmatprep.subr.bf16.mxu0 0
        %1580 = vmatpush1.bf16.msra.mxu0 0
        %1581 = vmatprep.subr.bf16.mxu0 0
        %1582 = vmatpush1.bf16.msra.mxu0 0
        %1583 = vmatprep.subr.bf16.mxu0 0
        %1584 = vmatpush1.bf16.msra.mxu0 0
        %1585 = vmatprep.subr.bf16.mxu0 0
        %1586 = vmatpush1.bf16.msra.mxu0 0
        %1587 = vmatprep.subr.bf16.mxu0 0
        %1588 = vmatpush1.bf16.msra.mxu0 0
        %1589 = vmatprep.mubr.bf16.mxu0 0
        %1590 = vmatmul.mubr.bf16.gmra.mrb[0].mxu0 %v1323
        %v1591 = vpop.f32.mrb[0].mxu0
        %v1592 = vadd.f32 0.0, %v1591
        %v1593 = vpop.f32.mrb[0].mxu0
        %v1594 = vadd.f32 0.0, %v1593
        %v1595 = vpop.f32.mrb[0].mxu0
        %v1596 = vpop.f32.mrb[0].mxu0
        %1597 = vdwg.mxu0
        %v1630 = vunpack.c.l.b16 %v1291
        %v1631 = vunpack.c.h.b16 %v1291
        %v1632 = vunpack.c.l.b16 %v1292
        %v1633 = vunpack.c.h.b16 %v1292
        %v1634 = vunpack.c.l.b16 %v1293
        %v1635 = vunpack.c.h.b16 %v1293
        %v1636 = vunpack.c.l.b16 %v1294
        %v1637 = vunpack.c.h.b16 %v1294
        %v1638 = vunpack.c.l.b16 %v1295
        %v1639 = vunpack.c.h.b16 %v1295
        %v1640 = vunpack.c.l.b16 %v1296
        %v1641 = vunpack.c.h.b16 %v1296
        %v1642 = vunpack.c.l.b16 %v1297
        %v1643 = vunpack.c.h.b16 %v1297
        %v1644 = vunpack.c.l.b16 %v1298
        %v1645 = vunpack.c.h.b16 %v1298
        %v1646 = vunpack.c.l.b16 %v1299
        %v1647 = vunpack.c.h.b16 %v1299
        %v1648 = vunpack.c.l.b16 %v1300
        %v1649 = vunpack.c.h.b16 %v1300
        %v1650 = vunpack.c.l.b16 %v1301
        %v1651 = vunpack.c.h.b16 %v1301
        %v1652 = vunpack.c.l.b16 %v1302
        %v1653 = vunpack.c.h.b16 %v1302
        %v1654 = vunpack.c.l.b16 %v1303
        %v1655 = vunpack.c.h.b16 %v1303
        %v1656 = vunpack.c.l.b16 %v1304
        %v1657 = vunpack.c.h.b16 %v1304
        %v1658 = vunpack.c.l.b16 %v1305
        %v1659 = vunpack.c.h.b16 %v1305
        %v1660 = vunpack.c.l.b16 %v1306
        %v1661 = vunpack.c.h.b16 %v1306
        %v1662 = vunpack.c.l.b16 %v1307
        %v1663 = vunpack.c.h.b16 %v1307
        %v1664 = vunpack.c.l.b16 %v1308
        %v1665 = vunpack.c.h.b16 %v1308
        %v1666 = vunpack.c.l.b16 %v1309
        %v1667 = vunpack.c.h.b16 %v1309
        %v1668 = vunpack.c.l.b16 %v1310
        %v1669 = vunpack.c.h.b16 %v1310
        %v1670 = vunpack.c.l.b16 %v1311
        %v1671 = vunpack.c.h.b16 %v1311
        %v1672 = vunpack.c.l.b16 %v1312
        %v1673 = vunpack.c.h.b16 %v1312
        %v1674 = vunpack.c.l.b16 %v1313
        %v1675 = vunpack.c.h.b16 %v1313
        %v1676 = vunpack.c.l.b16 %v1314
        %v1677 = vunpack.c.h.b16 %v1314
        %v1678 = vunpack.c.l.b16 %v1315
        %v1679 = vunpack.c.h.b16 %v1315
        %v1680 = vunpack.c.l.b16 %v1316
        %v1681 = vunpack.c.h.b16 %v1316
        %v1682 = vunpack.c.l.b16 %v1317
        %v1683 = vunpack.c.h.b16 %v1317
        %v1684 = vunpack.c.l.b16 %v1318
        %v1685 = vunpack.c.h.b16 %v1318
        %v1686 = vunpack.c.l.b16 %v1319
        %v1687 = vunpack.c.h.b16 %v1319
        %v1688 = vunpack.c.l.b16 %v1320
        %v1689 = vunpack.c.h.b16 %v1320
        %v1690 = vunpack.c.l.b16 %v1321
        %v1691 = vunpack.c.h.b16 %v1321
        %v1692 = vunpack.c.l.b16 %v1322
        %v1693 = vunpack.c.h.b16 %v1322
        %v1694 = vpack.c.b16 %v1634, %v1630
        %v1695 = vpack.c.b16 %v1635, %v1631
        %v1696 = vpack.c.b16 %v1636, %v1632
        %v1697 = vpack.c.b16 %v1637, %v1633
        %v1698 = vpack.c.b16 %v1642, %v1638
        %v1699 = vpack.c.b16 %v1643, %v1639
        %v1700 = vpack.c.b16 %v1644, %v1640
        %v1701 = vpack.c.b16 %v1645, %v1641
        %v1702 = vpack.c.b16 %v1650, %v1646
        %v1703 = vpack.c.b16 %v1651, %v1647
        %v1704 = vpack.c.b16 %v1652, %v1648
        %v1705 = vpack.c.b16 %v1653, %v1649
        %v1706 = vpack.c.b16 %v1658, %v1654
        %v1707 = vpack.c.b16 %v1659, %v1655
        %v1708 = vpack.c.b16 %v1660, %v1656
        %v1709 = vpack.c.b16 %v1661, %v1657
        %v1710 = vpack.c.b16 %v1666, %v1662
        %v1711 = vpack.c.b16 %v1667, %v1663
        %v1712 = vpack.c.b16 %v1668, %v1664
        %v1713 = vpack.c.b16 %v1669, %v1665
        %v1714 = vpack.c.b16 %v1674, %v1670
        %v1715 = vpack.c.b16 %v1675, %v1671
        %v1716 = vpack.c.b16 %v1676, %v1672
        %v1717 = vpack.c.b16 %v1677, %v1673
        %v1718 = vpack.c.b16 %v1682, %v1678
        %v1719 = vpack.c.b16 %v1683, %v1679
        %v1720 = vpack.c.b16 %v1684, %v1680
        %v1721 = vpack.c.b16 %v1685, %v1681
        %v1722 = vpack.c.b16 %v1690, %v1686
        %v1723 = vpack.c.b16 %v1691, %v1687
        %v1724 = vpack.c.b16 %v1692, %v1688
        %v1725 = vpack.c.b16 %v1693, %v1689
        %1758 = vmatprep.subr.bf16.mxu0 %v1695
        %1759 = vmatpush1.bf16.msra.mxu0 %v1694
        %1760 = vmatprep.subr.bf16.mxu0 %v1699
        %1761 = vmatpush1.bf16.msra.mxu0 %v1698
        %1762 = vmatprep.subr.bf16.mxu0 %v1703
        %1763 = vmatpush1.bf16.msra.mxu0 %v1702
        %1764 = vmatprep.subr.bf16.mxu0 %v1707
        %1765 = vmatpush1.bf16.msra.mxu0 %v1706
        %1766 = vmatprep.subr.bf16.mxu0 %v1711
        %1767 = vmatpush1.bf16.msra.mxu0 %v1710
        %1768 = vmatprep.subr.bf16.mxu0 %v1715
        %1769 = vmatpush1.bf16.msra.mxu0 %v1714
        %1770 = vmatprep.subr.bf16.mxu0 %v1719
        %1771 = vmatpush1.bf16.msra.mxu0 %v1718
        %1772 = vmatprep.subr.bf16.mxu0 %v1723
        %1773 = vmatpush1.bf16.msra.mxu0 %v1722
        %1774 = vmatprep.subr.bf16.mxu0 0
        %1775 = vmatpush1.bf16.msra.mxu0 0
        %1776 = vmatprep.subr.bf16.mxu0 0
        %1777 = vmatpush1.bf16.msra.mxu0 0
        %1778 = vmatprep.subr.bf16.mxu0 0
        %1779 = vmatpush1.bf16.msra.mxu0 0
        %1780 = vmatprep.subr.bf16.mxu0 0
        %1781 = vmatpush1.bf16.msra.mxu0 0
        %1782 = vmatprep.subr.bf16.mxu0 0
        %1783 = vmatpush1.bf16.msra.mxu0 0
        %1784 = vmatprep.subr.bf16.mxu0 0
        %1785 = vmatpush1.bf16.msra.mxu0 0
        %1786 = vmatprep.subr.bf16.mxu0 0
        %1787 = vmatpush1.bf16.msra.mxu0 0
        %1788 = vmatprep.subr.bf16.mxu0 0
        %1789 = vmatpush1.bf16.msra.mxu0 0
        %1790 = vmatprep.mubr.bf16.mxu0 0
        %1791 = vmatmul.mubr.bf16.gmra.mrb[0].mxu0 %v1290
        %v1792 = vpop.f32.mrb[0].mxu0
        %v1793 = vadd.f32 %v1551, %v1792
        %v1794 = vpop.f32.mrb[0].mxu0
        %v1795 = vadd.f32 %v1553, %v1794
        %v1796 = vpop.f32.mrb[0].mxu0
        %v1797 = vpop.f32.mrb[0].mxu0
        %1798 = vdwg.mxu0
        %1799 = vmatprep.subr.bf16.mxu0 %v1697
        %1800 = vmatpush1.bf16.msra.mxu0 %v1696
        %1801 = vmatprep.subr.bf16.mxu0 %v1701
        %1802 = vmatpush1.bf16.msra.mxu0 %v1700
        %1803 = vmatprep.subr.bf16.mxu0 %v1705
        %1804 = vmatpush1.bf16.msra.mxu0 %v1704
        %1805 = vmatprep.subr.bf16.mxu0 %v1709
        %1806 = vmatpush1.bf16.msra.mxu0 %v1708
        %1807 = vmatprep.subr.bf16.mxu0 %v1713
        %1808 = vmatpush1.bf16.msra.mxu0 %v1712
        %1809 = vmatprep.subr.bf16.mxu0 %v1717
        %1810 = vmatpush1.bf16.msra.mxu0 %v1716
        %1811 = vmatprep.subr.bf16.mxu0 %v1721
        %1812 = vmatpush1.bf16.msra.mxu0 %v1720
        %1813 = vmatprep.subr.bf16.mxu0 %v1725
        %1814 = vmatpush1.bf16.msra.mxu0 %v1724
        %1815 = vmatprep.subr.bf16.mxu0 0
        %1816 = vmatpush1.bf16.msra.mxu0 0
        %1817 = vmatprep.subr.bf16.mxu0 0
        %1818 = vmatpush1.bf16.msra.mxu0 0
        %1819 = vmatprep.subr.bf16.mxu0 0
        %1820 = vmatpush1.bf16.msra.mxu0 0
        %1821 = vmatprep.subr.bf16.mxu0 0
        %1822 = vmatpush1.bf16.msra.mxu0 0
        %1823 = vmatprep.subr.bf16.mxu0 0
        %1824 = vmatpush1.bf16.msra.mxu0 0
        %1825 = vmatprep.subr.bf16.mxu0 0
        %1826 = vmatpush1.bf16.msra.mxu0 0
        %1827 = vmatprep.subr.bf16.mxu0 0
        %1828 = vmatpush1.bf16.msra.mxu0 0
        %1829 = vmatprep.subr.bf16.mxu0 0
        %1830 = vmatpush1.bf16.msra.mxu0 0
        %1831 = vmatprep.mubr.bf16.mxu0 0
        %1832 = vmatmul.mubr.bf16.gmra.mrb[0].mxu0 %v1290
        %v1833 = vpop.f32.mrb[0].mxu0
        %v1834 = vadd.f32 %v1592, %v1833
        %v1835 = vpop.f32.mrb[0].mxu0
        %v1836 = vadd.f32 %v1594, %v1835
        %v1837 = vpop.f32.mrb[0].mxu0
        %v1838 = vpop.f32.mrb[0].mxu0
        %1839 = vdwg.mxu0
        %v1840 = vld [vmem:[%s7] sm:$0xf]
        %v1842 = vlaneseq
        %v1843 = vshrl.u32 %v1842, 7
        %v1844 = vsub.s32 0, %v1843
        %v1845 = vrot.slane %v1840, %v1844
        %v1846 = vlaneseq
        %v1847 = vshrl.u32 %v1846, 7
        %v1848 = vsub.s32 1, %v1847
        %v1849 = vrot.slane %v1840, %v1848
        %v1850 = vlaneseq
        %v1851 = vshrl.u32 %v1850, 7
        %v1852 = vsub.s32 2, %v1851
        %v1853 = vrot.slane %v1840, %v1852
        %v1854 = vlaneseq
        %v1855 = vshrl.u32 %v1854, 7
        %v1856 = vsub.s32 3, %v1855
        %v1857 = vrot.slane %v1840, %v1856
        %v1862 = vadd.f32 %v1793, %v1845
        %v1863 = vadd.f32 %v1795, %v1849
        %v1864 = vadd.f32 %v1834, %v1853
        %v1865 = vadd.f32 %v1836, %v1857
        %v1866 = vxor.u32 %v1862, 2147483648
        %v1867 = vmul.f32 %v1866, 1.442695
        %v1868 = vpow.pop %v1867
        %v1869 = vadd.f32 %v1868, 1.0
        %v1870 = vrcp.pop %v1869
        %v1871 = vmul.f32 1.0, %v1870
        %v1872 = vxor.u32 %v1863, 2147483648
        %v1873 = vmul.f32 %v1872, 1.442695
        %v1874 = vpow.pop %v1873
        %v1875 = vadd.f32 %v1874, 1.0
        %v1876 = vrcp.pop %v1875
        %v1877 = vmul.f32 1.0, %v1876
        %v1878 = vtanh.pop %v1864
        %v1879 = vxor.u32 %v1865, 2147483648
        %v1880 = vmul.f32 %v1879, 1.442695
        %v1881 = vpow.pop %v1880
        %v1882 = vadd.f32 %v1881, 1.0
        %v1883 = vrcp.pop %v1882
        %v1884 = vmul.f32 1.0, %v1883
        %v1885 = vmul.f32 %v1877, %v382
        %v1886 = vmul.f32 %v1871, %v1878
        %v1887 = vadd.f32 %v1885, %v1886
        %v1888 = vtanh.pop %v1887
        %v1889 = vmul.f32 %v1884, %v1888
        %s1890 = scalar_lea.vmem %s364, 32
        %v1891 = vld [vmem:[%s1890] sm:$0xff]
        %v1892 = vld [vmem:[%s1890 + $0x8] sm:$0xff]
        %v1893 = vld [vmem:[%s1890 + $0x10] sm:$0xff]
        %v1894 = vld [vmem:[%s1890 + $0x18] sm:$0xff]
        %1895 = vmatprep.subr.bf16.mxu0 %v517
        %1896 = vmatpush1.bf16.msra.mxu0 %v516
        %1897 = vmatprep.subr.bf16.mxu0 %v521
        %1898 = vmatpush1.bf16.msra.mxu0 %v520
        %1899 = vmatprep.subr.bf16.mxu0 %v525
        %1900 = vmatpush1.bf16.msra.mxu0 %v524
        %1901 = vmatprep.subr.bf16.mxu0 %v529
        %1902 = vmatpush1.bf16.msra.mxu0 %v528
        %1903 = vmatprep.subr.bf16.mxu0 %v533
        %1904 = vmatpush1.bf16.msra.mxu0 %v532
        %1905 = vmatprep.subr.bf16.mxu0 %v537
        %1906 = vmatpush1.bf16.msra.mxu0 %v536
        %1907 = vmatprep.subr.bf16.mxu0 %v541
        %1908 = vmatpush1.bf16.msra.mxu0 %v540
        %1909 = vmatprep.subr.bf16.mxu0 %v545
        %1910 = vmatpush1.bf16.msra.mxu0 %v544
        %1911 = vmatprep.subr.bf16.mxu0 0
        %1912 = vmatpush1.bf16.msra.mxu0 0
        %1913 = vmatprep.subr.bf16.mxu0 0
        %1914 = vmatpush1.bf16.msra.mxu0 0
        %1915 = vmatprep.subr.bf16.mxu0 0
        %1916 = vmatpush1.bf16.msra.mxu0 0
        %1917 = vmatprep.subr.bf16.mxu0 0
        %1918 = vmatpush1.bf16.msra.mxu0 0
        %1919 = vmatprep.subr.bf16.mxu0 0
        %1920 = vmatpush1.bf16.msra.mxu0 0
        %1921 = vmatprep.subr.bf16.mxu0 0
        %1922 = vmatpush1.bf16.msra.mxu0 0
        %1923 = vmatprep.subr.bf16.mxu0 0
        %1924 = vmatpush1.bf16.msra.mxu0 0
        %1925 = vmatprep.subr.bf16.mxu0 0
        %1926 = vmatpush1.bf16.msra.mxu0 0
        %1927 = vmatprep.mubr.bf16.mxu0 0
        %1928 = vmatmul.mubr.bf16.gmra.mrb[0].mxu0 %v690
        %v1929 = vpop.f32.mrb[0].mxu0
        %v1930 = vadd.f32 0.0, %v1929
        %v1931 = vpop.f32.mrb[0].mxu0
        %v1932 = vadd.f32 0.0, %v1931
        %v1933 = vpop.f32.mrb[0].mxu0
        %v1934 = vpop.f32.mrb[0].mxu0
        %1935 = vdwg.mxu0
        %1936 = vmatprep.subr.bf16.mxu0 %v519
        %1937 = vmatpush1.bf16.msra.mxu0 %v518
        %1938 = vmatprep.subr.bf16.mxu0 %v523
        %1939 = vmatpush1.bf16.msra.mxu0 %v522
        %1940 = vmatprep.subr.bf16.mxu0 %v527
        %1941 = vmatpush1.bf16.msra.mxu0 %v526
        %1942 = vmatprep.subr.bf16.mxu0 %v531
        %1943 = vmatpush1.bf16.msra.mxu0 %v530
        %1944 = vmatprep.subr.bf16.mxu0 %v535
        %1945 = vmatpush1.bf16.msra.mxu0 %v534
        %1946 = vmatprep.subr.bf16.mxu0 %v539
        %1947 = vmatpush1.bf16.msra.mxu0 %v538
        %1948 = vmatprep.subr.bf16.mxu0 %v543
        %1949 = vmatpush1.bf16.msra.mxu0 %v542
        %1950 = vmatprep.subr.bf16.mxu0 %v547
        %1951 = vmatpush1.bf16.msra.mxu0 %v546
        %1952 = vmatprep.subr.bf16.mxu0 0
        %1953 = vmatpush1.bf16.msra.mxu0 0
        %1954 = vmatprep.subr.bf16.mxu0 0
        %1955 = vmatpush1.bf16.msra.mxu0 0
        %1956 = vmatprep.subr.bf16.mxu0 0
        %1957 = vmatpush1.bf16.msra.mxu0 0
        %1958 = vmatprep.subr.bf16.mxu0 0
        %1959 = vmatpush1.bf16.msra.mxu0 0
        %1960 = vmatprep.subr.bf16.mxu0 0
        %1961 = vmatpush1.bf16.msra.mxu0 0
        %1962 = vmatprep.subr.bf16.mxu0 0
        %1963 = vmatpush1.bf16.msra.mxu0 0
        %1964 = vmatprep.subr.bf16.mxu0 0
        %1965 = vmatpush1.bf16.msra.mxu0 0
        %1966 = vmatprep.subr.bf16.mxu0 0
        %1967 = vmatpush1.bf16.msra.mxu0 0
        %1968 = vmatprep.mubr.bf16.mxu0 0
        %1969 = vmatmul.mubr.bf16.gmra.mrb[0].mxu0 %v690
        %v1970 = vpop.f32.mrb[0].mxu0
        %v1971 = vadd.f32 0.0, %v1970
        %v1972 = vpop.f32.mrb[0].mxu0
        %v1973 = vadd.f32 0.0, %v1972
        %v1974 = vpop.f32.mrb[0].mxu0
        %v1975 = vpop.f32.mrb[0].mxu0
        %1976 = vdwg.mxu0
        %v1977 = vadd.f32 %v1891, %v1930
        %v1978 = vadd.f32 %v1892, %v1932
        %v1979 = vadd.f32 %v1893, %v1971
        %v1980 = vadd.f32 %v1894, %v1973
        %v1981 = vxor.u32 %v1977, 2147483648
        %v1982 = vmul.f32 %v1981, 1.442695
        %v1983 = vpow.pop %v1982
        %v1984 = vadd.f32 %v1983, 1.0
        %v1985 = vrcp.pop %v1984
        %v1986 = vmul.f32 1.0, %v1985
        %v1987 = vxor.u32 %v1978, 2147483648
        %v1988 = vmul.f32 %v1987, 1.442695
        %v1989 = vpow.pop %v1988
        %v1990 = vadd.f32 %v1989, 1.0
        %v1991 = vrcp.pop %v1990
        %v1992 = vmul.f32 1.0, %v1991
        %v1993 = vtanh.pop %v1979
        %v1994 = vxor.u32 %v1980, 2147483648
        %v1995 = vmul.f32 %v1994, 1.442695
        %v1996 = vpow.pop %v1995
        %v1997 = vadd.f32 %v1996, 1.0
        %v1998 = vrcp.pop %v1997
        %v1999 = vmul.f32 1.0, %v1998
        %v2000 = vmul.f32 %v1992, %v687
        %v2001 = vmul.f32 %v1986, %v1993
        %v2002 = vadd.f32 %v2000, %v2001
        %v2003 = vtanh.pop %v2002
        %v2004 = vmul.f32 %v1999, %v2003
        %v2005 = vpack.c.bf16 %v2004, %v2004
        %2006 = vmatprep.subr.bf16.mxu0 %v853
        %2007 = vmatpush1.bf16.msra.mxu0 %v852
        %2008 = vmatprep.subr.bf16.mxu0 %v857
        %2009 = vmatpush1.bf16.msra.mxu0 %v856
        %2010 = vmatprep.subr.bf16.mxu0 %v861
        %2011 = vmatpush1.bf16.msra.mxu0 %v860
        %2012 = vmatprep.subr.bf16.mxu0 %v865
        %2013 = vmatpush1.bf16.msra.mxu0 %v864
        %2014 = vmatprep.subr.bf16.mxu0 %v869
        %2015 = vmatpush1.bf16.msra.mxu0 %v868
        %2016 = vmatprep.subr.bf16.mxu0 %v873
        %2017 = vmatpush1.bf16.msra.mxu0 %v872
        %2018 = vmatprep.subr.bf16.mxu0 %v877
        %2019 = vmatpush1.bf16.msra.mxu0 %v876
        %2020 = vmatprep.subr.bf16.mxu0 %v881
        %2021 = vmatpush1.bf16.msra.mxu0 %v880
        %2022 = vmatprep.subr.bf16.mxu0 0
        %2023 = vmatpush1.bf16.msra.mxu0 0
        %2024 = vmatprep.subr.bf16.mxu0 0
        %2025 = vmatpush1.bf16.msra.mxu0 0
        %2026 = vmatprep.subr.bf16.mxu0 0
        %2027 = vmatpush1.bf16.msra.mxu0 0
        %2028 = vmatprep.subr.bf16.mxu0 0
        %2029 = vmatpush1.bf16.msra.mxu0 0
        %2030 = vmatprep.subr.bf16.mxu0 0
        %2031 = vmatpush1.bf16.msra.mxu0 0
        %2032 = vmatprep.subr.bf16.mxu0 0
        %2033 = vmatpush1.bf16.msra.mxu0 0
        %2034 = vmatprep.subr.bf16.mxu0 0
        %2035 = vmatpush1.bf16.msra.mxu0 0
        %2036 = vmatprep.subr.bf16.mxu0 0
        %2037 = vmatpush1.bf16.msra.mxu0 0
        %2038 = vmatprep.mubr.bf16.mxu0 0
        %2039 = vmatmul.mubr.bf16.gmra.mrb[0].mxu0 %v1290
        %v2040 = vpop.f32.mrb[0].mxu0
        %v2041 = vadd.f32 0.0, %v2040
        %v2042 = vpop.f32.mrb[0].mxu0
        %v2043 = vadd.f32 0.0, %v2042
        %v2044 = vpop.f32.mrb[0].mxu0
        %v2045 = vpop.f32.mrb[0].mxu0
        %2046 = vdwg.mxu0
        %2047 = vmatprep.subr.bf16.mxu0 %v855
        %2048 = vmatpush1.bf16.msra.mxu0 %v854
        %2049 = vmatprep.subr.bf16.mxu0 %v859
        %2050 = vmatpush1.bf16.msra.mxu0 %v858
        %2051 = vmatprep.subr.bf16.mxu0 %v863
        %2052 = vmatpush1.bf16.msra.mxu0 %v862
        %2053 = vmatprep.subr.bf16.mxu0 %v867
        %2054 = vmatpush1.bf16.msra.mxu0 %v866
        %2055 = vmatprep.subr.bf16.mxu0 %v871
        %2056 = vmatpush1.bf16.msra.mxu0 %v870
        %2057 = vmatprep.subr.bf16.mxu0 %v875
        %2058 = vmatpush1.bf16.msra.mxu0 %v874
        %2059 = vmatprep.subr.bf16.mxu0 %v879
        %2060 = vmatpush1.bf16.msra.mxu0 %v878
        %2061 = vmatprep.subr.bf16.mxu0 %v883
        %2062 = vmatpush1.bf16.msra.mxu0 %v882
        %2063 = vmatprep.subr.bf16.mxu0 0
        %2064 = vmatpush1.bf16.msra.mxu0 0
        %2065 = vmatprep.subr.bf16.mxu0 0
        %2066 = vmatpush1.bf16.msra.mxu0 0
        %2067 = vmatprep.subr.bf16.mxu0 0
        %2068 = vmatpush1.bf16.msra.mxu0 0
        %2069 = vmatprep.subr.bf16.mxu0 0
        %2070 = vmatpush1.bf16.msra.mxu0 0
        %2071 = vmatprep.subr.bf16.mxu0 0
        %2072 = vmatpush1.bf16.msra.mxu0 0
        %2073 = vmatprep.subr.bf16.mxu0 0
        %2074 = vmatpush1.bf16.msra.mxu0 0
        %2075 = vmatprep.subr.bf16.mxu0 0
        %2076 = vmatpush1.bf16.msra.mxu0 0
        %2077 = vmatprep.subr.bf16.mxu0 0
        %2078 = vmatpush1.bf16.msra.mxu0 0
        %2079 = vmatprep.mubr.bf16.mxu0 0
        %2080 = vmatmul.mubr.bf16.gmra.mrb[0].mxu0 %v1290
        %v2081 = vpop.f32.mrb[0].mxu0
        %v2082 = vadd.f32 0.0, %v2081
        %v2083 = vpop.f32.mrb[0].mxu0
        %v2084 = vadd.f32 0.0, %v2083
        %v2085 = vpop.f32.mrb[0].mxu0
        %v2086 = vpop.f32.mrb[0].mxu0
        %2087 = vdwg.mxu0
        %2088 = vmatprep.subr.bf16.mxu0 %v1095
        %2089 = vmatpush1.bf16.msra.mxu0 %v1094
        %2090 = vmatprep.subr.bf16.mxu0 %v1099
        %2091 = vmatpush1.bf16.msra.mxu0 %v1098
        %2092 = vmatprep.subr.bf16.mxu0 %v1103
        %2093 = vmatpush1.bf16.msra.mxu0 %v1102
        %2094 = vmatprep.subr.bf16.mxu0 %v1107
        %2095 = vmatpush1.bf16.msra.mxu0 %v1106
        %2096 = vmatprep.subr.bf16.mxu0 %v1111
        %2097 = vmatpush1.bf16.msra.mxu0 %v1110
        %2098 = vmatprep.subr.bf16.mxu0 %v1115
        %2099 = vmatpush1.bf16.msra.mxu0 %v1114
        %2100 = vmatprep.subr.bf16.mxu0 %v1119
        %2101 = vmatpush1.bf16.msra.mxu0 %v1118
        %2102 = vmatprep.subr.bf16.mxu0 %v1123
        %2103 = vmatpush1.bf16.msra.mxu0 %v1122
        %2104 = vmatprep.subr.bf16.mxu0 0
        %2105 = vmatpush1.bf16.msra.mxu0 0
        %2106 = vmatprep.subr.bf16.mxu0 0
        %2107 = vmatpush1.bf16.msra.mxu0 0
        %2108 = vmatprep.subr.bf16.mxu0 0
        %2109 = vmatpush1.bf16.msra.mxu0 0
        %2110 = vmatprep.subr.bf16.mxu0 0
        %2111 = vmatpush1.bf16.msra.mxu0 0
        %2112 = vmatprep.subr.bf16.mxu0 0
        %2113 = vmatpush1.bf16.msra.mxu0 0
        %2114 = vmatprep.subr.bf16.mxu0 0
        %2115 = vmatpush1.bf16.msra.mxu0 0
        %2116 = vmatprep.subr.bf16.mxu0 0
        %2117 = vmatpush1.bf16.msra.mxu0 0
        %2118 = vmatprep.subr.bf16.mxu0 0
        %2119 = vmatpush1.bf16.msra.mxu0 0
        %2120 = vmatprep.mubr.bf16.mxu0 0
        %2121 = vmatmul.mubr.bf16.gmra.mrb[0].mxu0 %v2005
        %v2122 = vpop.f32.mrb[0].mxu0
        %v2123 = vadd.f32 %v2041, %v2122
        %v2124 = vpop.f32.mrb[0].mxu0
        %v2125 = vadd.f32 %v2043, %v2124
        %v2126 = vpop.f32.mrb[0].mxu0
        %v2127 = vpop.f32.mrb[0].mxu0
        %2128 = vdwg.mxu0
        %2129 = vmatprep.subr.bf16.mxu0 %v1097
        %2130 = vmatpush1.bf16.msra.mxu0 %v1096
        %2131 = vmatprep.subr.bf16.mxu0 %v1101
        %2132 = vmatpush1.bf16.msra.mxu0 %v1100
        %2133 = vmatprep.subr.bf16.mxu0 %v1105
        %2134 = vmatpush1.bf16.msra.mxu0 %v1104
        %2135 = vmatprep.subr.bf16.mxu0 %v1109
        %2136 = vmatpush1.bf16.msra.mxu0 %v1108
        %2137 = vmatprep.subr.bf16.mxu0 %v1113
        %2138 = vmatpush1.bf16.msra.mxu0 %v1112
        %2139 = vmatprep.subr.bf16.mxu0 %v1117
        %2140 = vmatpush1.bf16.msra.mxu0 %v1116
        %2141 = vmatprep.subr.bf16.mxu0 %v1121
        %2142 = vmatpush1.bf16.msra.mxu0 %v1120
        %2143 = vmatprep.subr.bf16.mxu0 %v1125
        %2144 = vmatpush1.bf16.msra.mxu0 %v1124
        %2145 = vmatprep.subr.bf16.mxu0 0
        %2146 = vmatpush1.bf16.msra.mxu0 0
        %2147 = vmatprep.subr.bf16.mxu0 0
        %2148 = vmatpush1.bf16.msra.mxu0 0
        %2149 = vmatprep.subr.bf16.mxu0 0
        %2150 = vmatpush1.bf16.msra.mxu0 0
        %2151 = vmatprep.subr.bf16.mxu0 0
        %2152 = vmatpush1.bf16.msra.mxu0 0
        %2153 = vmatprep.subr.bf16.mxu0 0
        %2154 = vmatpush1.bf16.msra.mxu0 0
        %2155 = vmatprep.subr.bf16.mxu0 0
        %2156 = vmatpush1.bf16.msra.mxu0 0
        %2157 = vmatprep.subr.bf16.mxu0 0
        %2158 = vmatpush1.bf16.msra.mxu0 0
        %2159 = vmatprep.subr.bf16.mxu0 0
        %2160 = vmatpush1.bf16.msra.mxu0 0
        %2161 = vmatprep.mubr.bf16.mxu0 0
        %2162 = vmatmul.mubr.bf16.gmra.mrb[0].mxu0 %v2005
        %v2163 = vpop.f32.mrb[0].mxu0
        %v2164 = vadd.f32 %v2082, %v2163
        %v2165 = vpop.f32.mrb[0].mxu0
        %v2166 = vadd.f32 %v2084, %v2165
        %v2167 = vpop.f32.mrb[0].mxu0
        %v2168 = vpop.f32.mrb[0].mxu0
        %2169 = vdwg.mxu0
        %v2170 = vadd.f32 %v2123, %v1245
        %v2171 = vadd.f32 %v2125, %v1249
        %v2172 = vadd.f32 %v2164, %v1253
        %v2173 = vadd.f32 %v2166, %v1257
        %v2174 = vxor.u32 %v2170, 2147483648
        %v2175 = vmul.f32 %v2174, 1.442695
        %v2176 = vpow.pop %v2175
        %v2177 = vadd.f32 %v2176, 1.0
        %v2178 = vrcp.pop %v2177
        %v2179 = vmul.f32 1.0, %v2178
        %v2180 = vxor.u32 %v2171, 2147483648
        %v2181 = vmul.f32 %v2180, 1.442695
        %v2182 = vpow.pop %v2181
        %v2183 = vadd.f32 %v2182, 1.0
        %v2184 = vrcp.pop %v2183
        %v2185 = vmul.f32 1.0, %v2184
        %v2186 = vtanh.pop %v2172
        %v2187 = vxor.u32 %v2173, 2147483648
        %v2188 = vmul.f32 %v2187, 1.442695
        %v2189 = vpow.pop %v2188
        %v2190 = vadd.f32 %v2189, 1.0
        %v2191 = vrcp.pop %v2190
        %v2192 = vmul.f32 1.0, %v2191
        %v2193 = vmul.f32 %v2185, %v1287
        %v2194 = vmul.f32 %v2179, %v2186
        %v2195 = vadd.f32 %v2193, %v2194
        %v2196 = vtanh.pop %v2195
        %v2197 = vmul.f32 %v2192, %v2196
        %v2198 = vpack.c.bf16 %v2197, %v2197
        %v2199 = vpack.c.bf16 %v1889, %v1889
        %2200 = vmatprep.subr.bf16.mxu0 %v1453
        %2201 = vmatpush1.bf16.msra.mxu0 %v1452
        %2202 = vmatprep.subr.bf16.mxu0 %v1457
        %2203 = vmatpush1.bf16.msra.mxu0 %v1456
        %2204 = vmatprep.subr.bf16.mxu0 %v1461
        %2205 = vmatpush1.bf16.msra.mxu0 %v1460
        %2206 = vmatprep.subr.bf16.mxu0 %v1465
        %2207 = vmatpush1.bf16.msra.mxu0 %v1464
        %2208 = vmatprep.subr.bf16.mxu0 %v1469
        %2209 = vmatpush1.bf16.msra.mxu0 %v1468
        %2210 = vmatprep.subr.bf16.mxu0 %v1473
        %2211 = vmatpush1.bf16.msra.mxu0 %v1472
        %2212 = vmatprep.subr.bf16.mxu0 %v1477
        %2213 = vmatpush1.bf16.msra.mxu0 %v1476
        %2214 = vmatprep.subr.bf16.mxu0 %v1481
        %2215 = vmatpush1.bf16.msra.mxu0 %v1480
        %2216 = vmatprep.subr.bf16.mxu0 0
        %2217 = vmatpush1.bf16.msra.mxu0 0
        %2218 = vmatprep.subr.bf16.mxu0 0
        %2219 = vmatpush1.bf16.msra.mxu0 0
        %2220 = vmatprep.subr.bf16.mxu0 0
        %2221 = vmatpush1.bf16.msra.mxu0 0
        %2222 = vmatprep.subr.bf16.mxu0 0
        %2223 = vmatpush1.bf16.msra.mxu0 0
        %2224 = vmatprep.subr.bf16.mxu0 0
        %2225 = vmatpush1.bf16.msra.mxu0 0
        %2226 = vmatprep.subr.bf16.mxu0 0
        %2227 = vmatpush1.bf16.msra.mxu0 0
        %2228 = vmatprep.subr.bf16.mxu0 0
        %2229 = vmatpush1.bf16.msra.mxu0 0
        %2230 = vmatprep.subr.bf16.mxu0 0
        %2231 = vmatpush1.bf16.msra.mxu0 0
        %2232 = vmatprep.mubr.bf16.mxu0 0
        %2233 = vmatmul.mubr.bf16.gmra.mrb[0].mxu0 %v2199
        %v2234 = vpop.f32.mrb[0].mxu0
        %v2235 = vadd.f32 0.0, %v2234
        %v2236 = vpop.f32.mrb[0].mxu0
        %v2237 = vadd.f32 0.0, %v2236
        %v2238 = vpop.f32.mrb[0].mxu0
        %v2239 = vpop.f32.mrb[0].mxu0
        %2240 = vdwg.mxu0
        %2241 = vmatprep.subr.bf16.mxu0 %v1455
        %2242 = vmatpush1.bf16.msra.mxu0 %v1454
        %2243 = vmatprep.subr.bf16.mxu0 %v1459
        %2244 = vmatpush1.bf16.msra.mxu0 %v1458
        %2245 = vmatprep.subr.bf16.mxu0 %v1463
        %2246 = vmatpush1.bf16.msra.mxu0 %v1462
        %2247 = vmatprep.subr.bf16.mxu0 %v1467
        %2248 = vmatpush1.bf16.msra.mxu0 %v1466
        %2249 = vmatprep.subr.bf16.mxu0 %v1471
        %2250 = vmatpush1.bf16.msra.mxu0 %v1470
        %2251 = vmatprep.subr.bf16.mxu0 %v1475
        %2252 = vmatpush1.bf16.msra.mxu0 %v1474
        %2253 = vmatprep.subr.bf16.mxu0 %v1479
        %2254 = vmatpush1.bf16.msra.mxu0 %v1478
        %2255 = vmatprep.subr.bf16.mxu0 %v1483
        %2256 = vmatpush1.bf16.msra.mxu0 %v1482
        %2257 = vmatprep.subr.bf16.mxu0 0
        %2258 = vmatpush1.bf16.msra.mxu0 0
        %2259 = vmatprep.subr.bf16.mxu0 0
        %2260 = vmatpush1.bf16.msra.mxu0 0
        %2261 = vmatprep.subr.bf16.mxu0 0
        %2262 = vmatpush1.bf16.msra.mxu0 0
        %2263 = vmatprep.subr.bf16.mxu0 0
        %2264 = vmatpush1.bf16.msra.mxu0 0
        %2265 = vmatprep.subr.bf16.mxu0 0
        %2266 = vmatpush1.bf16.msra.mxu0 0
        %2267 = vmatprep.subr.bf16.mxu0 0
        %2268 = vmatpush1.bf16.msra.mxu0 0
        %2269 = vmatprep.subr.bf16.mxu0 0
        %2270 = vmatpush1.bf16.msra.mxu0 0
        %2271 = vmatprep.subr.bf16.mxu0 0
        %2272 = vmatpush1.bf16.msra.mxu0 0
        %2273 = vmatprep.mubr.bf16.mxu0 0
        %2274 = vmatmul.mubr.bf16.gmra.mrb[0].mxu0 %v2199
        %v2275 = vpop.f32.mrb[0].mxu0
        %v2276 = vadd.f32 0.0, %v2275
        %v2277 = vpop.f32.mrb[0].mxu0
        %v2278 = vadd.f32 0.0, %v2277
        %v2279 = vpop.f32.mrb[0].mxu0
        %v2280 = vpop.f32.mrb[0].mxu0
        %2281 = vdwg.mxu0
        %2282 = vmatprep.subr.bf16.mxu0 %v1695
        %2283 = vmatpush1.bf16.msra.mxu0 %v1694
        %2284 = vmatprep.subr.bf16.mxu0 %v1699
        %2285 = vmatpush1.bf16.msra.mxu0 %v1698
        %2286 = vmatprep.subr.bf16.mxu0 %v1703
        %2287 = vmatpush1.bf16.msra.mxu0 %v1702
        %2288 = vmatprep.subr.bf16.mxu0 %v1707
        %2289 = vmatpush1.bf16.msra.mxu0 %v1706
        %2290 = vmatprep.subr.bf16.mxu0 %v1711
        %2291 = vmatpush1.bf16.msra.mxu0 %v1710
        %2292 = vmatprep.subr.bf16.mxu0 %v1715
        %2293 = vmatpush1.bf16.msra.mxu0 %v1714
        %2294 = vmatprep.subr.bf16.mxu0 %v1719
        %2295 = vmatpush1.bf16.msra.mxu0 %v1718
        %2296 = vmatprep.subr.bf16.mxu0 %v1723
        %2297 = vmatpush1.bf16.msra.mxu0 %v1722
        %2298 = vmatprep.subr.bf16.mxu0 0
        %2299 = vmatpush1.bf16.msra.mxu0 0
        %2300 = vmatprep.subr.bf16.mxu0 0
        %2301 = vmatpush1.bf16.msra.mxu0 0
        %2302 = vmatprep.subr.bf16.mxu0 0
        %2303 = vmatpush1.bf16.msra.mxu0 0
        %2304 = vmatprep.subr.bf16.mxu0 0
        %2305 = vmatpush1.bf16.msra.mxu0 0
        %2306 = vmatprep.subr.bf16.mxu0 0
        %2307 = vmatpush1.bf16.msra.mxu0 0
        %2308 = vmatprep.subr.bf16.mxu0 0
        %2309 = vmatpush1.bf16.msra.mxu0 0
        %2310 = vmatprep.subr.bf16.mxu0 0
        %2311 = vmatpush1.bf16.msra.mxu0 0
        %2312 = vmatprep.subr.bf16.mxu0 0
        %2313 = vmatpush1.bf16.msra.mxu0 0
        %2314 = vmatprep.mubr.bf16.mxu0 0
        %2315 = vmatmul.mubr.bf16.gmra.mrb[0].mxu0 %v2198
        %v2316 = vpop.f32.mrb[0].mxu0
        %v2317 = vadd.f32 %v2235, %v2316
        %v2318 = vpop.f32.mrb[0].mxu0
        %v2319 = vadd.f32 %v2237, %v2318
        %v2320 = vpop.f32.mrb[0].mxu0
        %v2321 = vpop.f32.mrb[0].mxu0
        %2322 = vdwg.mxu0
        %2323 = vmatprep.subr.bf16.mxu0 %v1697
        %2324 = vmatpush1.bf16.msra.mxu0 %v1696
        %2325 = vmatprep.subr.bf16.mxu0 %v1701
        %2326 = vmatpush1.bf16.msra.mxu0 %v1700
        %2327 = vmatprep.subr.bf16.mxu0 %v1705
        %2328 = vmatpush1.bf16.msra.mxu0 %v1704
        %2329 = vmatprep.subr.bf16.mxu0 %v1709
        %2330 = vmatpush1.bf16.msra.mxu0 %v1708
        %2331 = vmatprep.subr.bf16.mxu0 %v1713
        %2332 = vmatpush1.bf16.msra.mxu0 %v1712
        %2333 = vmatprep.subr.bf16.mxu0 %v1717
        %2334 = vmatpush1.bf16.msra.mxu0 %v1716
        %2335 = vmatprep.subr.bf16.mxu0 %v1721
        %2336 = vmatpush1.bf16.msra.mxu0 %v1720
        %2337 = vmatprep.subr.bf16.mxu0 %v1725
        %2338 = vmatpush1.bf16.msra.mxu0 %v1724
        %2339 = vmatprep.subr.bf16.mxu0 0
        %2340 = vmatpush1.bf16.msra.mxu0 0
        %2341 = vmatprep.subr.bf16.mxu0 0
        %2342 = vmatpush1.bf16.msra.mxu0 0
        %2343 = vmatprep.subr.bf16.mxu0 0
        %2344 = vmatpush1.bf16.msra.mxu0 0
        %2345 = vmatprep.subr.bf16.mxu0 0
        %2346 = vmatpush1.bf16.msra.mxu0 0
        %2347 = vmatprep.subr.bf16.mxu0 0
        %2348 = vmatpush1.bf16.msra.mxu0 0
        %2349 = vmatprep.subr.bf16.mxu0 0
        %2350 = vmatpush1.bf16.msra.mxu0 0
        %2351 = vmatprep.subr.bf16.mxu0 0
        %2352 = vmatpush1.bf16.msra.mxu0 0
        %2353 = vmatprep.subr.bf16.mxu0 0
        %2354 = vmatpush1.bf16.msra.mxu0 0
        %2355 = vmatprep.mubr.bf16.mxu0 0
        %2356 = vmatmul.mubr.bf16.gmra.mrb[0].mxu0 %v2198
        %v2357 = vpop.f32.mrb[0].mxu0
        %v2358 = vadd.f32 %v2276, %v2357
        %v2359 = vpop.f32.mrb[0].mxu0
        %v2360 = vadd.f32 %v2278, %v2359
        %v2361 = vpop.f32.mrb[0].mxu0
        %v2362 = vpop.f32.mrb[0].mxu0
        %2363 = vdwg.mxu0
        %v2364 = vadd.f32 %v2317, %v1845
        %v2365 = vadd.f32 %v2319, %v1849
        %v2366 = vadd.f32 %v2358, %v1853
        %v2367 = vadd.f32 %v2360, %v1857
        %v2368 = vxor.u32 %v2364, 2147483648
        %v2369 = vmul.f32 %v2368, 1.442695
        %v2370 = vpow.pop %v2369
        %v2371 = vadd.f32 %v2370, 1.0
        %v2372 = vrcp.pop %v2371
        %v2373 = vmul.f32 1.0, %v2372
        %v2374 = vxor.u32 %v2365, 2147483648
        %v2375 = vmul.f32 %v2374, 1.442695
        %v2376 = vpow.pop %v2375
        %v2377 = vadd.f32 %v2376, 1.0
        %v2378 = vrcp.pop %v2377
        %v2379 = vmul.f32 1.0, %v2378
        %v2380 = vtanh.pop %v2366
        %v2381 = vxor.u32 %v2367, 2147483648
        %v2382 = vmul.f32 %v2381, 1.442695
        %v2383 = vpow.pop %v2382
        %v2384 = vadd.f32 %v2383, 1.0
        %v2385 = vrcp.pop %v2384
        %v2386 = vmul.f32 1.0, %v2385
        %v2387 = vmul.f32 %v2379, %v1887
        %v2388 = vmul.f32 %v2373, %v2380
        %v2389 = vadd.f32 %v2387, %v2388
        %v2390 = vtanh.pop %v2389
        %v2391 = vmul.f32 %v2386, %v2390
        %s2392 = scalar_lea.vmem %s364, 64
        %v2393 = vld [vmem:[%s2392] sm:$0xff]
        %v2394 = vld [vmem:[%s2392 + $0x8] sm:$0xff]
        %v2395 = vld [vmem:[%s2392 + $0x10] sm:$0xff]
        %v2396 = vld [vmem:[%s2392 + $0x18] sm:$0xff]
        %2397 = vmatprep.subr.bf16.mxu0 %v517
        %2398 = vmatpush1.bf16.msra.mxu0 %v516
        %2399 = vmatprep.subr.bf16.mxu0 %v521
        %2400 = vmatpush1.bf16.msra.mxu0 %v520
        %2401 = vmatprep.subr.bf16.mxu0 %v525
        %2402 = vmatpush1.bf16.msra.mxu0 %v524
        %2403 = vmatprep.subr.bf16.mxu0 %v529
        %2404 = vmatpush1.bf16.msra.mxu0 %v528
        %2405 = vmatprep.subr.bf16.mxu0 %v533
        %2406 = vmatpush1.bf16.msra.mxu0 %v532
        %2407 = vmatprep.subr.bf16.mxu0 %v537
        %2408 = vmatpush1.bf16.msra.mxu0 %v536
        %2409 = vmatprep.subr.bf16.mxu0 %v541
        %2410 = vmatpush1.bf16.msra.mxu0 %v540
        %2411 = vmatprep.subr.bf16.mxu0 %v545
        %2412 = vmatpush1.bf16.msra.mxu0 %v544
        %2413 = vmatprep.subr.bf16.mxu0 0
        %2414 = vmatpush1.bf16.msra.mxu0 0
        %2415 = vmatprep.subr.bf16.mxu0 0
        %2416 = vmatpush1.bf16.msra.mxu0 0
        %2417 = vmatprep.subr.bf16.mxu0 0
        %2418 = vmatpush1.bf16.msra.mxu0 0
        %2419 = vmatprep.subr.bf16.mxu0 0
        %2420 = vmatpush1.bf16.msra.mxu0 0
        %2421 = vmatprep.subr.bf16.mxu0 0
        %2422 = vmatpush1.bf16.msra.mxu0 0
        %2423 = vmatprep.subr.bf16.mxu0 0
        %2424 = vmatpush1.bf16.msra.mxu0 0
        %2425 = vmatprep.subr.bf16.mxu0 0
        %2426 = vmatpush1.bf16.msra.mxu0 0
        %2427 = vmatprep.subr.bf16.mxu0 0
        %2428 = vmatpush1.bf16.msra.mxu0 0
        %2429 = vmatprep.mubr.bf16.mxu0 0
        %2430 = vmatmul.mubr.bf16.gmra.mrb[0].mxu0 %v2005
        %v2431 = vpop.f32.mrb[0].mxu0
        %v2432 = vadd.f32 0.0, %v2431
        %v2433 = vpop.f32.mrb[0].mxu0
        %v2434 = vadd.f32 0.0, %v2433
        %v2435 = vpop.f32.mrb[0].mxu0
        %v2436 = vpop.f32.mrb[0].mxu0
        %2437 = vdwg.mxu0
        %2438 = vmatprep.subr.bf16.mxu0 %v519
        %2439 = vmatpush1.bf16.msra.mxu0 %v518
        %2440 = vmatprep.subr.bf16.mxu0 %v523
        %2441 = vmatpush1.bf16.msra.mxu0 %v522
        %2442 = vmatprep.subr.bf16.mxu0 %v527
        %2443 = vmatpush1.bf16.msra.mxu0 %v526
        %2444 = vmatprep.subr.bf16.mxu0 %v531
        %2445 = vmatpush1.bf16.msra.mxu0 %v530
        %2446 = vmatprep.subr.bf16.mxu0 %v535
        %2447 = vmatpush1.bf16.msra.mxu0 %v534
        %2448 = vmatprep.subr.bf16.mxu0 %v539
        %2449 = vmatpush1.bf16.msra.mxu0 %v538
        %2450 = vmatprep.subr.bf16.mxu0 %v543
        %2451 = vmatpush1.bf16.msra.mxu0 %v542
        %2452 = vmatprep.subr.bf16.mxu0 %v547
        %2453 = vmatpush1.bf16.msra.mxu0 %v546
        %2454 = vmatprep.subr.bf16.mxu0 0
        %2455 = vmatpush1.bf16.msra.mxu0 0
        %2456 = vmatprep.subr.bf16.mxu0 0
        %2457 = vmatpush1.bf16.msra.mxu0 0
        %2458 = vmatprep.subr.bf16.mxu0 0
        %2459 = vmatpush1.bf16.msra.mxu0 0
        %2460 = vmatprep.subr.bf16.mxu0 0
        %2461 = vmatpush1.bf16.msra.mxu0 0
        %2462 = vmatprep.subr.bf16.mxu0 0
        %2463 = vmatpush1.bf16.msra.mxu0 0
        %2464 = vmatprep.subr.bf16.mxu0 0
        %2465 = vmatpush1.bf16.msra.mxu0 0
        %2466 = vmatprep.subr.bf16.mxu0 0
        %2467 = vmatpush1.bf16.msra.mxu0 0
        %2468 = vmatprep.subr.bf16.mxu0 0
        %2469 = vmatpush1.bf16.msra.mxu0 0
        %2470 = vmatprep.mubr.bf16.mxu0 0
        %2471 = vmatmul.mubr.bf16.gmra.mrb[0].mxu0 %v2005
        %v2472 = vpop.f32.mrb[0].mxu0
        %v2473 = vadd.f32 0.0, %v2472
        %v2474 = vpop.f32.mrb[0].mxu0
        %v2475 = vadd.f32 0.0, %v2474
        %v2476 = vpop.f32.mrb[0].mxu0
        %v2477 = vpop.f32.mrb[0].mxu0
        %2478 = vdwg.mxu0
        %v2479 = vadd.f32 %v2393, %v2432
        %v2480 = vadd.f32 %v2394, %v2434
        %v2481 = vadd.f32 %v2395, %v2473
        %v2482 = vadd.f32 %v2396, %v2475
        %v2483 = vxor.u32 %v2479, 2147483648
        %v2484 = vmul.f32 %v2483, 1.442695
        %v2485 = vpow.pop %v2484
        %v2486 = vadd.f32 %v2485, 1.0
        %v2487 = vrcp.pop %v2486
        %v2488 = vmul.f32 1.0, %v2487
        %v2489 = vxor.u32 %v2480, 2147483648
        %v2490 = vmul.f32 %v2489, 1.442695
        %v2491 = vpow.pop %v2490
        %v2492 = vadd.f32 %v2491, 1.0
        %v2493 = vrcp.pop %v2492
        %v2494 = vmul.f32 1.0, %v2493
        %v2495 = vtanh.pop %v2481
        %v2496 = vxor.u32 %v2482, 2147483648
        %v2497 = vmul.f32 %v2496, 1.442695
        %v2498 = vpow.pop %v2497
        %v2499 = vadd.f32 %v2498, 1.0
        %v2500 = vrcp.pop %v2499
        %v2501 = vmul.f32 1.0, %v2500
        %v2502 = vmul.f32 %v2494, %v2002
        %v2503 = vmul.f32 %v2488, %v2495
        %v2504 = vadd.f32 %v2502, %v2503
        %v2505 = vtanh.pop %v2504
        %v2506 = vmul.f32 %v2501, %v2505
        %v2507 = vpack.c.bf16 %v2506, %v2506
        %2508 = vmatprep.subr.bf16.mxu0 %v853
        %2509 = vmatpush1.bf16.msra.mxu0 %v852
        %2510 = vmatprep.subr.bf16.mxu0 %v857
        %2511 = vmatpush1.bf16.msra.mxu0 %v856
        %2512 = vmatprep.subr.bf16.mxu0 %v861
        %2513 = vmatpush1.bf16.msra.mxu0 %v860
        %2514 = vmatprep.subr.bf16.mxu0 %v865
        %2515 = vmatpush1.bf16.msra.mxu0 %v864
        %2516 = vmatprep.subr.bf16.mxu0 %v869
        %2517 = vmatpush1.bf16.msra.mxu0 %v868
        %2518 = vmatprep.subr.bf16.mxu0 %v873
        %2519 = vmatpush1.bf16.msra.mxu0 %v872
        %2520 = vmatprep.subr.bf16.mxu0 %v877
        %2521 = vmatpush1.bf16.msra.mxu0 %v876
        %2522 = vmatprep.subr.bf16.mxu0 %v881
        %2523 = vmatpush1.bf16.msra.mxu0 %v880
        %2524 = vmatprep.subr.bf16.mxu0 0
        %2525 = vmatpush1.bf16.msra.mxu0 0
        %2526 = vmatprep.subr.bf16.mxu0 0
        %2527 = vmatpush1.bf16.msra.mxu0 0
        %2528 = vmatprep.subr.bf16.mxu0 0
        %2529 = vmatpush1.bf16.msra.mxu0 0
        %2530 = vmatprep.subr.bf16.mxu0 0
        %2531 = vmatpush1.bf16.msra.mxu0 0
        %2532 = vmatprep.subr.bf16.mxu0 0
        %2533 = vmatpush1.bf16.msra.mxu0 0
        %2534 = vmatprep.subr.bf16.mxu0 0
        %2535 = vmatpush1.bf16.msra.mxu0 0
        %2536 = vmatprep.subr.bf16.mxu0 0
        %2537 = vmatpush1.bf16.msra.mxu0 0
        %2538 = vmatprep.subr.bf16.mxu0 0
        %2539 = vmatpush1.bf16.msra.mxu0 0
        %2540 = vmatprep.mubr.bf16.mxu0 0
        %2541 = vmatmul.mubr.bf16.gmra.mrb[0].mxu0 %v2198
        %v2542 = vpop.f32.mrb[0].mxu0
        %v2543 = vadd.f32 0.0, %v2542
        %v2544 = vpop.f32.mrb[0].mxu0
        %v2545 = vadd.f32 0.0, %v2544
        %v2546 = vpop.f32.mrb[0].mxu0
        %v2547 = vpop.f32.mrb[0].mxu0
        %2548 = vdwg.mxu0
        %2549 = vmatprep.subr.bf16.mxu0 %v855
        %2550 = vmatpush1.bf16.msra.mxu0 %v854
        %2551 = vmatprep.subr.bf16.mxu0 %v859
        %2552 = vmatpush1.bf16.msra.mxu0 %v858
        %2553 = vmatprep.subr.bf16.mxu0 %v863
        %2554 = vmatpush1.bf16.msra.mxu0 %v862
        %2555 = vmatprep.subr.bf16.mxu0 %v867
        %2556 = vmatpush1.bf16.msra.mxu0 %v866
        %2557 = vmatprep.subr.bf16.mxu0 %v871
        %2558 = vmatpush1.bf16.msra.mxu0 %v870
        %2559 = vmatprep.subr.bf16.mxu0 %v875
        %2560 = vmatpush1.bf16.msra.mxu0 %v874
        %2561 = vmatprep.subr.bf16.mxu0 %v879
        %2562 = vmatpush1.bf16.msra.mxu0 %v878
        %2563 = vmatprep.subr.bf16.mxu0 %v883
        %2564 = vmatpush1.bf16.msra.mxu0 %v882
        %2565 = vmatprep.subr.bf16.mxu0 0
        %2566 = vmatpush1.bf16.msra.mxu0 0
        %2567 = vmatprep.subr.bf16.mxu0 0
        %2568 = vmatpush1.bf16.msra.mxu0 0
        %2569 = vmatprep.subr.bf16.mxu0 0
        %2570 = vmatpush1.bf16.msra.mxu0 0
        %2571 = vmatprep.subr.bf16.mxu0 0
        %2572 = vmatpush1.bf16.msra.mxu0 0
        %2573 = vmatprep.subr.bf16.mxu0 0
        %2574 = vmatpush1.bf16.msra.mxu0 0
        %2575 = vmatprep.subr.bf16.mxu0 0
        %2576 = vmatpush1.bf16.msra.mxu0 0
        %2577 = vmatprep.subr.bf16.mxu0 0
        %2578 = vmatpush1.bf16.msra.mxu0 0
        %2579 = vmatprep.subr.bf16.mxu0 0
        %2580 = vmatpush1.bf16.msra.mxu0 0
        %2581 = vmatprep.mubr.bf16.mxu0 0
        %2582 = vmatmul.mubr.bf16.gmra.mrb[0].mxu0 %v2198
        %v2583 = vpop.f32.mrb[0].mxu0
        %v2584 = vadd.f32 0.0, %v2583
        %v2585 = vpop.f32.mrb[0].mxu0
        %v2586 = vadd.f32 0.0, %v2585
        %v2587 = vpop.f32.mrb[0].mxu0
        %v2588 = vpop.f32.mrb[0].mxu0
        %2589 = vdwg.mxu0
        %2590 = vmatprep.subr.bf16.mxu0 %v1095
        %2591 = vmatpush1.bf16.msra.mxu0 %v1094
        %2592 = vmatprep.subr.bf16.mxu0 %v1099
        %2593 = vmatpush1.bf16.msra.mxu0 %v1098
        %2594 = vmatprep.subr.bf16.mxu0 %v1103
        %2595 = vmatpush1.bf16.msra.mxu0 %v1102
        %2596 = vmatprep.subr.bf16.mxu0 %v1107
        %2597 = vmatpush1.bf16.msra.mxu0 %v1106
        %2598 = vmatprep.subr.bf16.mxu0 %v1111
        %2599 = vmatpush1.bf16.msra.mxu0 %v1110
        %2600 = vmatprep.subr.bf16.mxu0 %v1115
        %2601 = vmatpush1.bf16.msra.mxu0 %v1114
        %2602 = vmatprep.subr.bf16.mxu0 %v1119
        %2603 = vmatpush1.bf16.msra.mxu0 %v1118
        %2604 = vmatprep.subr.bf16.mxu0 %v1123
        %2605 = vmatpush1.bf16.msra.mxu0 %v1122
        %2606 = vmatprep.subr.bf16.mxu0 0
        %2607 = vmatpush1.bf16.msra.mxu0 0
        %2608 = vmatprep.subr.bf16.mxu0 0
        %2609 = vmatpush1.bf16.msra.mxu0 0
        %2610 = vmatprep.subr.bf16.mxu0 0
        %2611 = vmatpush1.bf16.msra.mxu0 0
        %2612 = vmatprep.subr.bf16.mxu0 0
        %2613 = vmatpush1.bf16.msra.mxu0 0
        %2614 = vmatprep.subr.bf16.mxu0 0
        %2615 = vmatpush1.bf16.msra.mxu0 0
        %2616 = vmatprep.subr.bf16.mxu0 0
        %2617 = vmatpush1.bf16.msra.mxu0 0
        %2618 = vmatprep.subr.bf16.mxu0 0
        %2619 = vmatpush1.bf16.msra.mxu0 0
        %2620 = vmatprep.subr.bf16.mxu0 0
        %2621 = vmatpush1.bf16.msra.mxu0 0
        %2622 = vmatprep.mubr.bf16.mxu0 0
        %2623 = vmatmul.mubr.bf16.gmra.mrb[0].mxu0 %v2507
        %v2624 = vpop.f32.mrb[0].mxu0
        %v2625 = vadd.f32 %v2543, %v2624
        %v2626 = vpop.f32.mrb[0].mxu0
        %v2627 = vadd.f32 %v2545, %v2626
        %v2628 = vpop.f32.mrb[0].mxu0
        %v2629 = vpop.f32.mrb[0].mxu0
        %2630 = vdwg.mxu0
        %2631 = vmatprep.subr.bf16.mxu0 %v1097
        %2632 = vmatpush1.bf16.msra.mxu0 %v1096
        %2633 = vmatprep.subr.bf16.mxu0 %v1101
        %2634 = vmatpush1.bf16.msra.mxu0 %v1100
        %2635 = vmatprep.subr.bf16.mxu0 %v1105
        %2636 = vmatpush1.bf16.msra.mxu0 %v1104
        %2637 = vmatprep.subr.bf16.mxu0 %v1109
        %2638 = vmatpush1.bf16.msra.mxu0 %v1108
        %2639 = vmatprep.subr.bf16.mxu0 %v1113
        %2640 = vmatpush1.bf16.msra.mxu0 %v1112
        %2641 = vmatprep.subr.bf16.mxu0 %v1117
        %2642 = vmatpush1.bf16.msra.mxu0 %v1116
        %2643 = vmatprep.subr.bf16.mxu0 %v1121
        %2644 = vmatpush1.bf16.msra.mxu0 %v1120
        %2645 = vmatprep.subr.bf16.mxu0 %v1125
        %2646 = vmatpush1.bf16.msra.mxu0 %v1124
        %2647 = vmatprep.subr.bf16.mxu0 0
        %2648 = vmatpush1.bf16.msra.mxu0 0
        %2649 = vmatprep.subr.bf16.mxu0 0
        %2650 = vmatpush1.bf16.msra.mxu0 0
        %2651 = vmatprep.subr.bf16.mxu0 0
        %2652 = vmatpush1.bf16.msra.mxu0 0
        %2653 = vmatprep.subr.bf16.mxu0 0
        %2654 = vmatpush1.bf16.msra.mxu0 0
        %2655 = vmatprep.subr.bf16.mxu0 0
        %2656 = vmatpush1.bf16.msra.mxu0 0
        %2657 = vmatprep.subr.bf16.mxu0 0
        %2658 = vmatpush1.bf16.msra.mxu0 0
        %2659 = vmatprep.subr.bf16.mxu0 0
        %2660 = vmatpush1.bf16.msra.mxu0 0
        %2661 = vmatprep.subr.bf16.mxu0 0
        %2662 = vmatpush1.bf16.msra.mxu0 0
        %2663 = vmatprep.mubr.bf16.mxu0 0
        %2664 = vmatmul.mubr.bf16.gmra.mrb[0].mxu0 %v2507
        %v2665 = vpop.f32.mrb[0].mxu0
        %v2666 = vadd.f32 %v2584, %v2665
        %v2667 = vpop.f32.mrb[0].mxu0
        %v2668 = vadd.f32 %v2586, %v2667
        %v2669 = vpop.f32.mrb[0].mxu0
        %v2670 = vpop.f32.mrb[0].mxu0
        %2671 = vdwg.mxu0
        %v2672 = vadd.f32 %v2625, %v1245
        %v2673 = vadd.f32 %v2627, %v1249
        %v2674 = vadd.f32 %v2666, %v1253
        %v2675 = vadd.f32 %v2668, %v1257
        %v2676 = vxor.u32 %v2672, 2147483648
        %v2677 = vmul.f32 %v2676, 1.442695
        %v2678 = vpow.pop %v2677
        %v2679 = vadd.f32 %v2678, 1.0
        %v2680 = vrcp.pop %v2679
        %v2681 = vmul.f32 1.0, %v2680
        %v2682 = vxor.u32 %v2673, 2147483648
        %v2683 = vmul.f32 %v2682, 1.442695
        %v2684 = vpow.pop %v2683
        %v2685 = vadd.f32 %v2684, 1.0
        %v2686 = vrcp.pop %v2685
        %v2687 = vmul.f32 1.0, %v2686
        %v2688 = vtanh.pop %v2674
        %v2689 = vxor.u32 %v2675, 2147483648
        %v2690 = vmul.f32 %v2689, 1.442695
        %v2691 = vpow.pop %v2690
        %v2692 = vadd.f32 %v2691, 1.0
        %v2693 = vrcp.pop %v2692
        %v2694 = vmul.f32 1.0, %v2693
        %v2695 = vmul.f32 %v2687, %v2195
        %v2696 = vmul.f32 %v2681, %v2688
        %v2697 = vadd.f32 %v2695, %v2696
        %v2698 = vtanh.pop %v2697
        %v2699 = vmul.f32 %v2694, %v2698
        %v2700 = vpack.c.bf16 %v2699, %v2699
        %v2701 = vpack.c.bf16 %v2391, %v2391
        %2702 = vmatprep.subr.bf16.mxu0 %v1453
        %2703 = vmatpush1.bf16.msra.mxu0 %v1452
        %2704 = vmatprep.subr.bf16.mxu0 %v1457
        %2705 = vmatpush1.bf16.msra.mxu0 %v1456
        %2706 = vmatprep.subr.bf16.mxu0 %v1461
        %2707 = vmatpush1.bf16.msra.mxu0 %v1460
        %2708 = vmatprep.subr.bf16.mxu0 %v1465
        %2709 = vmatpush1.bf16.msra.mxu0 %v1464
        %2710 = vmatprep.subr.bf16.mxu0 %v1469
        %2711 = vmatpush1.bf16.msra.mxu0 %v1468
        %2712 = vmatprep.subr.bf16.mxu0 %v1473
        %2713 = vmatpush1.bf16.msra.mxu0 %v1472
        %2714 = vmatprep.subr.bf16.mxu0 %v1477
        %2715 = vmatpush1.bf16.msra.mxu0 %v1476
        %2716 = vmatprep.subr.bf16.mxu0 %v1481
        %2717 = vmatpush1.bf16.msra.mxu0 %v1480
        %2718 = vmatprep.subr.bf16.mxu0 0
        %2719 = vmatpush1.bf16.msra.mxu0 0
        %2720 = vmatprep.subr.bf16.mxu0 0
        %2721 = vmatpush1.bf16.msra.mxu0 0
        %2722 = vmatprep.subr.bf16.mxu0 0
        %2723 = vmatpush1.bf16.msra.mxu0 0
        %2724 = vmatprep.subr.bf16.mxu0 0
        %2725 = vmatpush1.bf16.msra.mxu0 0
        %2726 = vmatprep.subr.bf16.mxu0 0
        %2727 = vmatpush1.bf16.msra.mxu0 0
        %2728 = vmatprep.subr.bf16.mxu0 0
        %2729 = vmatpush1.bf16.msra.mxu0 0
        %2730 = vmatprep.subr.bf16.mxu0 0
        %2731 = vmatpush1.bf16.msra.mxu0 0
        %2732 = vmatprep.subr.bf16.mxu0 0
        %2733 = vmatpush1.bf16.msra.mxu0 0
        %2734 = vmatprep.mubr.bf16.mxu0 0
        %2735 = vmatmul.mubr.bf16.gmra.mrb[0].mxu0 %v2701
        %v2736 = vpop.f32.mrb[0].mxu0
        %v2737 = vadd.f32 0.0, %v2736
        %v2738 = vpop.f32.mrb[0].mxu0
        %v2739 = vadd.f32 0.0, %v2738
        %v2740 = vpop.f32.mrb[0].mxu0
        %v2741 = vpop.f32.mrb[0].mxu0
        %2742 = vdwg.mxu0
        %2743 = vmatprep.subr.bf16.mxu0 %v1455
        %2744 = vmatpush1.bf16.msra.mxu0 %v1454
        %2745 = vmatprep.subr.bf16.mxu0 %v1459
        %2746 = vmatpush1.bf16.msra.mxu0 %v1458
        %2747 = vmatprep.subr.bf16.mxu0 %v1463
        %2748 = vmatpush1.bf16.msra.mxu0 %v1462
        %2749 = vmatprep.subr.bf16.mxu0 %v1467
        %2750 = vmatpush1.bf16.msra.mxu0 %v1466
        %2751 = vmatprep.subr.bf16.mxu0 %v1471
        %2752 = vmatpush1.bf16.msra.mxu0 %v1470
        %2753 = vmatprep.subr.bf16.mxu0 %v1475
        %2754 = vmatpush1.bf16.msra.mxu0 %v1474
        %2755 = vmatprep.subr.bf16.mxu0 %v1479
        %2756 = vmatpush1.bf16.msra.mxu0 %v1478
        %2757 = vmatprep.subr.bf16.mxu0 %v1483
        %2758 = vmatpush1.bf16.msra.mxu0 %v1482
        %2759 = vmatprep.subr.bf16.mxu0 0
        %2760 = vmatpush1.bf16.msra.mxu0 0
        %2761 = vmatprep.subr.bf16.mxu0 0
        %2762 = vmatpush1.bf16.msra.mxu0 0
        %2763 = vmatprep.subr.bf16.mxu0 0
        %2764 = vmatpush1.bf16.msra.mxu0 0
        %2765 = vmatprep.subr.bf16.mxu0 0
        %2766 = vmatpush1.bf16.msra.mxu0 0
        %2767 = vmatprep.subr.bf16.mxu0 0
        %2768 = vmatpush1.bf16.msra.mxu0 0
        %2769 = vmatprep.subr.bf16.mxu0 0
        %2770 = vmatpush1.bf16.msra.mxu0 0
        %2771 = vmatprep.subr.bf16.mxu0 0
        %2772 = vmatpush1.bf16.msra.mxu0 0
        %2773 = vmatprep.subr.bf16.mxu0 0
        %2774 = vmatpush1.bf16.msra.mxu0 0
        %2775 = vmatprep.mubr.bf16.mxu0 0
        %2776 = vmatmul.mubr.bf16.gmra.mrb[0].mxu0 %v2701
        %v2777 = vpop.f32.mrb[0].mxu0
        %v2778 = vadd.f32 0.0, %v2777
        %v2779 = vpop.f32.mrb[0].mxu0
        %v2780 = vadd.f32 0.0, %v2779
        %v2781 = vpop.f32.mrb[0].mxu0
        %v2782 = vpop.f32.mrb[0].mxu0
        %2783 = vdwg.mxu0
        %2784 = vmatprep.subr.bf16.mxu0 %v1695
        %2785 = vmatpush1.bf16.msra.mxu0 %v1694
        %2786 = vmatprep.subr.bf16.mxu0 %v1699
        %2787 = vmatpush1.bf16.msra.mxu0 %v1698
        %2788 = vmatprep.subr.bf16.mxu0 %v1703
        %2789 = vmatpush1.bf16.msra.mxu0 %v1702
        %2790 = vmatprep.subr.bf16.mxu0 %v1707
        %2791 = vmatpush1.bf16.msra.mxu0 %v1706
        %2792 = vmatprep.subr.bf16.mxu0 %v1711
        %2793 = vmatpush1.bf16.msra.mxu0 %v1710
        %2794 = vmatprep.subr.bf16.mxu0 %v1715
        %2795 = vmatpush1.bf16.msra.mxu0 %v1714
        %2796 = vmatprep.subr.bf16.mxu0 %v1719
        %2797 = vmatpush1.bf16.msra.mxu0 %v1718
        %2798 = vmatprep.subr.bf16.mxu0 %v1723
        %2799 = vmatpush1.bf16.msra.mxu0 %v1722
        %2800 = vmatprep.subr.bf16.mxu0 0
        %2801 = vmatpush1.bf16.msra.mxu0 0
        %2802 = vmatprep.subr.bf16.mxu0 0
        %2803 = vmatpush1.bf16.msra.mxu0 0
        %2804 = vmatprep.subr.bf16.mxu0 0
        %2805 = vmatpush1.bf16.msra.mxu0 0
        %2806 = vmatprep.subr.bf16.mxu0 0
        %2807 = vmatpush1.bf16.msra.mxu0 0
        %2808 = vmatprep.subr.bf16.mxu0 0
        %2809 = vmatpush1.bf16.msra.mxu0 0
        %2810 = vmatprep.subr.bf16.mxu0 0
        %2811 = vmatpush1.bf16.msra.mxu0 0
        %2812 = vmatprep.subr.bf16.mxu0 0
        %2813 = vmatpush1.bf16.msra.mxu0 0
        %2814 = vmatprep.subr.bf16.mxu0 0
        %2815 = vmatpush1.bf16.msra.mxu0 0
        %2816 = vmatprep.mubr.bf16.mxu0 0
        %2817 = vmatmul.mubr.bf16.gmra.mrb[0].mxu0 %v2700
        %v2818 = vpop.f32.mrb[0].mxu0
        %v2819 = vadd.f32 %v2737, %v2818
        %v2820 = vpop.f32.mrb[0].mxu0
        %v2821 = vadd.f32 %v2739, %v2820
        %v2822 = vpop.f32.mrb[0].mxu0
        %v2823 = vpop.f32.mrb[0].mxu0
        %2824 = vdwg.mxu0
        %2825 = vmatprep.subr.bf16.mxu0 %v1697
        %2826 = vmatpush1.bf16.msra.mxu0 %v1696
        %2827 = vmatprep.subr.bf16.mxu0 %v1701
        %2828 = vmatpush1.bf16.msra.mxu0 %v1700
        %2829 = vmatprep.subr.bf16.mxu0 %v1705
        %2830 = vmatpush1.bf16.msra.mxu0 %v1704
        %2831 = vmatprep.subr.bf16.mxu0 %v1709
        %2832 = vmatpush1.bf16.msra.mxu0 %v1708
        %2833 = vmatprep.subr.bf16.mxu0 %v1713
        %2834 = vmatpush1.bf16.msra.mxu0 %v1712
        %2835 = vmatprep.subr.bf16.mxu0 %v1717
        %2836 = vmatpush1.bf16.msra.mxu0 %v1716
        %2837 = vmatprep.subr.bf16.mxu0 %v1721
        %2838 = vmatpush1.bf16.msra.mxu0 %v1720
        %2839 = vmatprep.subr.bf16.mxu0 %v1725
        %2840 = vmatpush1.bf16.msra.mxu0 %v1724
        %2841 = vmatprep.subr.bf16.mxu0 0
        %2842 = vmatpush1.bf16.msra.mxu0 0
        %2843 = vmatprep.subr.bf16.mxu0 0
        %2844 = vmatpush1.bf16.msra.mxu0 0
        %2845 = vmatprep.subr.bf16.mxu0 0
        %2846 = vmatpush1.bf16.msra.mxu0 0
        %2847 = vmatprep.subr.bf16.mxu0 0
        %2848 = vmatpush1.bf16.msra.mxu0 0
        %2849 = vmatprep.subr.bf16.mxu0 0
        %2850 = vmatpush1.bf16.msra.mxu0 0
        %2851 = vmatprep.subr.bf16.mxu0 0
        %2852 = vmatpush1.bf16.msra.mxu0 0
        %2853 = vmatprep.subr.bf16.mxu0 0
        %2854 = vmatpush1.bf16.msra.mxu0 0
        %2855 = vmatprep.subr.bf16.mxu0 0
        %2856 = vmatpush1.bf16.msra.mxu0 0
        %2857 = vmatprep.mubr.bf16.mxu0 0
        %2858 = vmatmul.mubr.bf16.gmra.mrb[0].mxu0 %v2700
        %v2859 = vpop.f32.mrb[0].mxu0
        %v2860 = vadd.f32 %v2778, %v2859
        %v2861 = vpop.f32.mrb[0].mxu0
        %v2862 = vadd.f32 %v2780, %v2861
        %v2863 = vpop.f32.mrb[0].mxu0
        %v2864 = vpop.f32.mrb[0].mxu0
        %2865 = vdwg.mxu0
        %v2866 = vadd.f32 %v2819, %v1845
        %v2867 = vadd.f32 %v2821, %v1849
        %v2868 = vadd.f32 %v2860, %v1853
        %v2869 = vadd.f32 %v2862, %v1857
        %v2870 = vxor.u32 %v2866, 2147483648
        %v2871 = vmul.f32 %v2870, 1.442695
        %v2872 = vpow.pop %v2871
        %v2873 = vadd.f32 %v2872, 1.0
        %v2874 = vrcp.pop %v2873
        %v2875 = vmul.f32 1.0, %v2874
        %v2876 = vxor.u32 %v2867, 2147483648
        %v2877 = vmul.f32 %v2876, 1.442695
        %v2878 = vpow.pop %v2877
        %v2879 = vadd.f32 %v2878, 1.0
        %v2880 = vrcp.pop %v2879
        %v2881 = vmul.f32 1.0, %v2880
        %v2882 = vtanh.pop %v2868
        %v2883 = vxor.u32 %v2869, 2147483648
        %v2884 = vmul.f32 %v2883, 1.442695
        %v2885 = vpow.pop %v2884
        %v2886 = vadd.f32 %v2885, 1.0
        %v2887 = vrcp.pop %v2886
        %v2888 = vmul.f32 1.0, %v2887
        %v2889 = vmul.f32 %v2881, %v2389
        %v2890 = vmul.f32 %v2875, %v2882
        %v2891 = vadd.f32 %v2889, %v2890
        %v2892 = vtanh.pop %v2891
        %v2893 = vmul.f32 %v2888, %v2892
        %s2894 = scalar_lea.vmem %s364, 96
        %v2895 = vld [vmem:[%s2894] sm:$0xff]
        %v2896 = vld [vmem:[%s2894 + $0x8] sm:$0xff]
        %v2897 = vld [vmem:[%s2894 + $0x10] sm:$0xff]
        %v2898 = vld [vmem:[%s2894 + $0x18] sm:$0xff]
        %2899 = vmatprep.subr.bf16.mxu0 %v517
        %2900 = vmatpush1.bf16.msra.mxu0 %v516
        %2901 = vmatprep.subr.bf16.mxu0 %v521
        %2902 = vmatpush1.bf16.msra.mxu0 %v520
        %2903 = vmatprep.subr.bf16.mxu0 %v525
        %2904 = vmatpush1.bf16.msra.mxu0 %v524
        %2905 = vmatprep.subr.bf16.mxu0 %v529
        %2906 = vmatpush1.bf16.msra.mxu0 %v528
        %2907 = vmatprep.subr.bf16.mxu0 %v533
        %2908 = vmatpush1.bf16.msra.mxu0 %v532
        %2909 = vmatprep.subr.bf16.mxu0 %v537
        %2910 = vmatpush1.bf16.msra.mxu0 %v536
        %2911 = vmatprep.subr.bf16.mxu0 %v541
        %2912 = vmatpush1.bf16.msra.mxu0 %v540
        %2913 = vmatprep.subr.bf16.mxu0 %v545
        %2914 = vmatpush1.bf16.msra.mxu0 %v544
        %2915 = vmatprep.subr.bf16.mxu0 0
        %2916 = vmatpush1.bf16.msra.mxu0 0
        %2917 = vmatprep.subr.bf16.mxu0 0
        %2918 = vmatpush1.bf16.msra.mxu0 0
        %2919 = vmatprep.subr.bf16.mxu0 0
        %2920 = vmatpush1.bf16.msra.mxu0 0
        %2921 = vmatprep.subr.bf16.mxu0 0
        %2922 = vmatpush1.bf16.msra.mxu0 0
        %2923 = vmatprep.subr.bf16.mxu0 0
        %2924 = vmatpush1.bf16.msra.mxu0 0
        %2925 = vmatprep.subr.bf16.mxu0 0
        %2926 = vmatpush1.bf16.msra.mxu0 0
        %2927 = vmatprep.subr.bf16.mxu0 0
        %2928 = vmatpush1.bf16.msra.mxu0 0
        %2929 = vmatprep.subr.bf16.mxu0 0
        %2930 = vmatpush1.bf16.msra.mxu0 0
        %2931 = vmatprep.mubr.bf16.mxu0 0
        %2932 = vmatmul.mubr.bf16.gmra.mrb[0].mxu0 %v2507
        %v2933 = vpop.f32.mrb[0].mxu0
        %v2934 = vadd.f32 0.0, %v2933
        %v2935 = vpop.f32.mrb[0].mxu0
        %v2936 = vadd.f32 0.0, %v2935
        %v2937 = vpop.f32.mrb[0].mxu0
        %v2938 = vpop.f32.mrb[0].mxu0
        %2939 = vdwg.mxu0
        %2940 = vmatprep.subr.bf16.mxu0 %v519
        %2941 = vmatpush1.bf16.msra.mxu0 %v518
        %2942 = vmatprep.subr.bf16.mxu0 %v523
        %2943 = vmatpush1.bf16.msra.mxu0 %v522
        %2944 = vmatprep.subr.bf16.mxu0 %v527
        %2945 = vmatpush1.bf16.msra.mxu0 %v526
        %2946 = vmatprep.subr.bf16.mxu0 %v531
        %2947 = vmatpush1.bf16.msra.mxu0 %v530
        %2948 = vmatprep.subr.bf16.mxu0 %v535
        %2949 = vmatpush1.bf16.msra.mxu0 %v534
        %2950 = vmatprep.subr.bf16.mxu0 %v539
        %2951 = vmatpush1.bf16.msra.mxu0 %v538
        %2952 = vmatprep.subr.bf16.mxu0 %v543
        %2953 = vmatpush1.bf16.msra.mxu0 %v542
        %2954 = vmatprep.subr.bf16.mxu0 %v547
        %2955 = vmatpush1.bf16.msra.mxu0 %v546
        %2956 = vmatprep.subr.bf16.mxu0 0
        %2957 = vmatpush1.bf16.msra.mxu0 0
        %2958 = vmatprep.subr.bf16.mxu0 0
        %2959 = vmatpush1.bf16.msra.mxu0 0
        %2960 = vmatprep.subr.bf16.mxu0 0
        %2961 = vmatpush1.bf16.msra.mxu0 0
        %2962 = vmatprep.subr.bf16.mxu0 0
        %2963 = vmatpush1.bf16.msra.mxu0 0
        %2964 = vmatprep.subr.bf16.mxu0 0
        %2965 = vmatpush1.bf16.msra.mxu0 0
        %2966 = vmatprep.subr.bf16.mxu0 0
        %2967 = vmatpush1.bf16.msra.mxu0 0
        %2968 = vmatprep.subr.bf16.mxu0 0
        %2969 = vmatpush1.bf16.msra.mxu0 0
        %2970 = vmatprep.subr.bf16.mxu0 0
        %2971 = vmatpush1.bf16.msra.mxu0 0
        %2972 = vmatprep.mubr.bf16.mxu0 0
        %2973 = vmatmul.mubr.bf16.gmra.mrb[0].mxu0 %v2507
        %v2974 = vpop.f32.mrb[0].mxu0
        %v2975 = vadd.f32 0.0, %v2974
        %v2976 = vpop.f32.mrb[0].mxu0
        %v2977 = vadd.f32 0.0, %v2976
        %v2978 = vpop.f32.mrb[0].mxu0
        %v2979 = vpop.f32.mrb[0].mxu0
        %2980 = vdwg.mxu0
        %v2981 = vadd.f32 %v2895, %v2934
        %v2982 = vadd.f32 %v2896, %v2936
        %v2983 = vadd.f32 %v2897, %v2975
        %v2984 = vadd.f32 %v2898, %v2977
        %v2985 = vxor.u32 %v2981, 2147483648
        %v2986 = vmul.f32 %v2985, 1.442695
        %v2987 = vpow.pop %v2986
        %v2988 = vadd.f32 %v2987, 1.0
        %v2989 = vrcp.pop %v2988
        %v2990 = vmul.f32 1.0, %v2989
        %v2991 = vxor.u32 %v2982, 2147483648
        %v2992 = vmul.f32 %v2991, 1.442695
        %v2993 = vpow.pop %v2992
        %v2994 = vadd.f32 %v2993, 1.0
        %v2995 = vrcp.pop %v2994
        %v2996 = vmul.f32 1.0, %v2995
        %v2997 = vtanh.pop %v2983
        %v2998 = vxor.u32 %v2984, 2147483648
        %v2999 = vmul.f32 %v2998, 1.442695
        %v3000 = vpow.pop %v2999
        %v3001 = vadd.f32 %v3000, 1.0
        %v3002 = vrcp.pop %v3001
        %v3003 = vmul.f32 1.0, %v3002
        %v3004 = vmul.f32 %v2996, %v2504
        %v3005 = vmul.f32 %v2990, %v2997
        %v3006 = vadd.f32 %v3004, %v3005
        %v3007 = vtanh.pop %v3006
        %v3008 = vmul.f32 %v3003, %v3007
        %v3009 = vpack.c.bf16 %v3008, %v3008
        %3010 = vmatprep.subr.bf16.mxu0 %v853
        %3011 = vmatpush1.bf16.msra.mxu0 %v852
        %3012 = vmatprep.subr.bf16.mxu0 %v857
        %3013 = vmatpush1.bf16.msra.mxu0 %v856
        %3014 = vmatprep.subr.bf16.mxu0 %v861
        %3015 = vmatpush1.bf16.msra.mxu0 %v860
        %3016 = vmatprep.subr.bf16.mxu0 %v865
        %3017 = vmatpush1.bf16.msra.mxu0 %v864
        %3018 = vmatprep.subr.bf16.mxu0 %v869
        %3019 = vmatpush1.bf16.msra.mxu0 %v868
        %3020 = vmatprep.subr.bf16.mxu0 %v873
        %3021 = vmatpush1.bf16.msra.mxu0 %v872
        %3022 = vmatprep.subr.bf16.mxu0 %v877
        %3023 = vmatpush1.bf16.msra.mxu0 %v876
        %3024 = vmatprep.subr.bf16.mxu0 %v881
        %3025 = vmatpush1.bf16.msra.mxu0 %v880
        %3026 = vmatprep.subr.bf16.mxu0 0
        %3027 = vmatpush1.bf16.msra.mxu0 0
        %3028 = vmatprep.subr.bf16.mxu0 0
        %3029 = vmatpush1.bf16.msra.mxu0 0
        %3030 = vmatprep.subr.bf16.mxu0 0
        %3031 = vmatpush1.bf16.msra.mxu0 0
        %3032 = vmatprep.subr.bf16.mxu0 0
        %3033 = vmatpush1.bf16.msra.mxu0 0
        %3034 = vmatprep.subr.bf16.mxu0 0
        %3035 = vmatpush1.bf16.msra.mxu0 0
        %3036 = vmatprep.subr.bf16.mxu0 0
        %3037 = vmatpush1.bf16.msra.mxu0 0
        %3038 = vmatprep.subr.bf16.mxu0 0
        %3039 = vmatpush1.bf16.msra.mxu0 0
        %3040 = vmatprep.subr.bf16.mxu0 0
        %3041 = vmatpush1.bf16.msra.mxu0 0
        %3042 = vmatprep.mubr.bf16.mxu0 0
        %3043 = vmatmul.mubr.bf16.gmra.mrb[0].mxu0 %v2700
        %v3044 = vpop.f32.mrb[0].mxu0
        %v3045 = vadd.f32 0.0, %v3044
        %v3046 = vpop.f32.mrb[0].mxu0
        %v3047 = vadd.f32 0.0, %v3046
        %v3048 = vpop.f32.mrb[0].mxu0
        %v3049 = vpop.f32.mrb[0].mxu0
        %3050 = vdwg.mxu0
        %3051 = vmatprep.subr.bf16.mxu0 %v855
        %3052 = vmatpush1.bf16.msra.mxu0 %v854
        %3053 = vmatprep.subr.bf16.mxu0 %v859
        %3054 = vmatpush1.bf16.msra.mxu0 %v858
        %3055 = vmatprep.subr.bf16.mxu0 %v863
        %3056 = vmatpush1.bf16.msra.mxu0 %v862
        %3057 = vmatprep.subr.bf16.mxu0 %v867
        %3058 = vmatpush1.bf16.msra.mxu0 %v866
        %3059 = vmatprep.subr.bf16.mxu0 %v871
        %3060 = vmatpush1.bf16.msra.mxu0 %v870
        %3061 = vmatprep.subr.bf16.mxu0 %v875
        %3062 = vmatpush1.bf16.msra.mxu0 %v874
        %3063 = vmatprep.subr.bf16.mxu0 %v879
        %3064 = vmatpush1.bf16.msra.mxu0 %v878
        %3065 = vmatprep.subr.bf16.mxu0 %v883
        %3066 = vmatpush1.bf16.msra.mxu0 %v882
        %3067 = vmatprep.subr.bf16.mxu0 0
        %3068 = vmatpush1.bf16.msra.mxu0 0
        %3069 = vmatprep.subr.bf16.mxu0 0
        %3070 = vmatpush1.bf16.msra.mxu0 0
        %3071 = vmatprep.subr.bf16.mxu0 0
        %3072 = vmatpush1.bf16.msra.mxu0 0
        %3073 = vmatprep.subr.bf16.mxu0 0
        %3074 = vmatpush1.bf16.msra.mxu0 0
        %3075 = vmatprep.subr.bf16.mxu0 0
        %3076 = vmatpush1.bf16.msra.mxu0 0
        %3077 = vmatprep.subr.bf16.mxu0 0
        %3078 = vmatpush1.bf16.msra.mxu0 0
        %3079 = vmatprep.subr.bf16.mxu0 0
        %3080 = vmatpush1.bf16.msra.mxu0 0
        %3081 = vmatprep.subr.bf16.mxu0 0
        %3082 = vmatpush1.bf16.msra.mxu0 0
        %3083 = vmatprep.mubr.bf16.mxu0 0
        %3084 = vmatmul.mubr.bf16.gmra.mrb[0].mxu0 %v2700
        %v3085 = vpop.f32.mrb[0].mxu0
        %v3086 = vadd.f32 0.0, %v3085
        %v3087 = vpop.f32.mrb[0].mxu0
        %v3088 = vadd.f32 0.0, %v3087
        %v3089 = vpop.f32.mrb[0].mxu0
        %v3090 = vpop.f32.mrb[0].mxu0
        %3091 = vdwg.mxu0
        %3092 = vmatprep.subr.bf16.mxu0 %v1095
        %3093 = vmatpush1.bf16.msra.mxu0 %v1094
        %3094 = vmatprep.subr.bf16.mxu0 %v1099
        %3095 = vmatpush1.bf16.msra.mxu0 %v1098
        %3096 = vmatprep.subr.bf16.mxu0 %v1103
        %3097 = vmatpush1.bf16.msra.mxu0 %v1102
        %3098 = vmatprep.subr.bf16.mxu0 %v1107
        %3099 = vmatpush1.bf16.msra.mxu0 %v1106
        %3100 = vmatprep.subr.bf16.mxu0 %v1111
        %3101 = vmatpush1.bf16.msra.mxu0 %v1110
        %3102 = vmatprep.subr.bf16.mxu0 %v1115
        %3103 = vmatpush1.bf16.msra.mxu0 %v1114
        %3104 = vmatprep.subr.bf16.mxu0 %v1119
        %3105 = vmatpush1.bf16.msra.mxu0 %v1118
        %3106 = vmatprep.subr.bf16.mxu0 %v1123
        %3107 = vmatpush1.bf16.msra.mxu0 %v1122
        %3108 = vmatprep.subr.bf16.mxu0 0
        %3109 = vmatpush1.bf16.msra.mxu0 0
        %3110 = vmatprep.subr.bf16.mxu0 0
        %3111 = vmatpush1.bf16.msra.mxu0 0
        %3112 = vmatprep.subr.bf16.mxu0 0
        %3113 = vmatpush1.bf16.msra.mxu0 0
        %3114 = vmatprep.subr.bf16.mxu0 0
        %3115 = vmatpush1.bf16.msra.mxu0 0
        %3116 = vmatprep.subr.bf16.mxu0 0
        %3117 = vmatpush1.bf16.msra.mxu0 0
        %3118 = vmatprep.subr.bf16.mxu0 0
        %3119 = vmatpush1.bf16.msra.mxu0 0
        %3120 = vmatprep.subr.bf16.mxu0 0
        %3121 = vmatpush1.bf16.msra.mxu0 0
        %3122 = vmatprep.subr.bf16.mxu0 0
        %3123 = vmatpush1.bf16.msra.mxu0 0
        %3124 = vmatprep.mubr.bf16.mxu0 0
        %3125 = vmatmul.mubr.bf16.gmra.mrb[0].mxu0 %v3009
        %v3126 = vpop.f32.mrb[0].mxu0
        %v3127 = vadd.f32 %v3045, %v3126
        %v3128 = vpop.f32.mrb[0].mxu0
        %v3129 = vadd.f32 %v3047, %v3128
        %v3130 = vpop.f32.mrb[0].mxu0
        %v3131 = vpop.f32.mrb[0].mxu0
        %3132 = vdwg.mxu0
        %3133 = vmatprep.subr.bf16.mxu0 %v1097
        %3134 = vmatpush1.bf16.msra.mxu0 %v1096
        %3135 = vmatprep.subr.bf16.mxu0 %v1101
        %3136 = vmatpush1.bf16.msra.mxu0 %v1100
        %3137 = vmatprep.subr.bf16.mxu0 %v1105
        %3138 = vmatpush1.bf16.msra.mxu0 %v1104
        %3139 = vmatprep.subr.bf16.mxu0 %v1109
        %3140 = vmatpush1.bf16.msra.mxu0 %v1108
        %3141 = vmatprep.subr.bf16.mxu0 %v1113
        %3142 = vmatpush1.bf16.msra.mxu0 %v1112
        %3143 = vmatprep.subr.bf16.mxu0 %v1117
        %3144 = vmatpush1.bf16.msra.mxu0 %v1116
        %3145 = vmatprep.subr.bf16.mxu0 %v1121
        %3146 = vmatpush1.bf16.msra.mxu0 %v1120
        %3147 = vmatprep.subr.bf16.mxu0 %v1125
        %3148 = vmatpush1.bf16.msra.mxu0 %v1124
        %3149 = vmatprep.subr.bf16.mxu0 0
        %3150 = vmatpush1.bf16.msra.mxu0 0
        %3151 = vmatprep.subr.bf16.mxu0 0
        %3152 = vmatpush1.bf16.msra.mxu0 0
        %3153 = vmatprep.subr.bf16.mxu0 0
        %3154 = vmatpush1.bf16.msra.mxu0 0
        %3155 = vmatprep.subr.bf16.mxu0 0
        %3156 = vmatpush1.bf16.msra.mxu0 0
        %3157 = vmatprep.subr.bf16.mxu0 0
        %3158 = vmatpush1.bf16.msra.mxu0 0
        %3159 = vmatprep.subr.bf16.mxu0 0
        %3160 = vmatpush1.bf16.msra.mxu0 0
        %3161 = vmatprep.subr.bf16.mxu0 0
        %3162 = vmatpush1.bf16.msra.mxu0 0
        %3163 = vmatprep.subr.bf16.mxu0 0
        %3164 = vmatpush1.bf16.msra.mxu0 0
        %3165 = vmatprep.mubr.bf16.mxu0 0
        %3166 = vmatmul.mubr.bf16.gmra.mrb[0].mxu0 %v3009
        %v3167 = vpop.f32.mrb[0].mxu0
        %v3168 = vadd.f32 %v3086, %v3167
        %v3169 = vpop.f32.mrb[0].mxu0
        %v3170 = vadd.f32 %v3088, %v3169
        %v3171 = vpop.f32.mrb[0].mxu0
        %v3172 = vpop.f32.mrb[0].mxu0
        %3173 = vdwg.mxu0
        %v3174 = vadd.f32 %v3127, %v1245
        %v3175 = vadd.f32 %v3129, %v1249
        %v3176 = vadd.f32 %v3168, %v1253
        %v3177 = vadd.f32 %v3170, %v1257
        %v3178 = vxor.u32 %v3174, 2147483648
        %v3179 = vmul.f32 %v3178, 1.442695
        %v3180 = vpow.pop %v3179
        %v3181 = vadd.f32 %v3180, 1.0
        %v3182 = vrcp.pop %v3181
        %v3183 = vmul.f32 1.0, %v3182
        %v3184 = vxor.u32 %v3175, 2147483648
        %v3185 = vmul.f32 %v3184, 1.442695
        %v3186 = vpow.pop %v3185
        %v3187 = vadd.f32 %v3186, 1.0
        %v3188 = vrcp.pop %v3187
        %v3189 = vmul.f32 1.0, %v3188
        %v3190 = vtanh.pop %v3176
        %v3191 = vxor.u32 %v3177, 2147483648
        %v3192 = vmul.f32 %v3191, 1.442695
        %v3193 = vpow.pop %v3192
        %v3194 = vadd.f32 %v3193, 1.0
        %v3195 = vrcp.pop %v3194
        %v3196 = vmul.f32 1.0, %v3195
        %v3197 = vmul.f32 %v3189, %v2697
        %v3198 = vmul.f32 %v3183, %v3190
        %v3199 = vadd.f32 %v3197, %v3198
        %v3200 = vtanh.pop %v3199
        %v3201 = vmul.f32 %v3196, %v3200
        %v3202 = vpack.c.bf16 %v3201, %v3201
        %v3203 = vpack.c.bf16 %v2893, %v2893
        %3204 = vmatprep.subr.bf16.mxu0 %v1453
        %3205 = vmatpush1.bf16.msra.mxu0 %v1452
        %3206 = vmatprep.subr.bf16.mxu0 %v1457
        %3207 = vmatpush1.bf16.msra.mxu0 %v1456
        %3208 = vmatprep.subr.bf16.mxu0 %v1461
        %3209 = vmatpush1.bf16.msra.mxu0 %v1460
        %3210 = vmatprep.subr.bf16.mxu0 %v1465
        %3211 = vmatpush1.bf16.msra.mxu0 %v1464
        %3212 = vmatprep.subr.bf16.mxu0 %v1469
        %3213 = vmatpush1.bf16.msra.mxu0 %v1468
        %3214 = vmatprep.subr.bf16.mxu0 %v1473
        %3215 = vmatpush1.bf16.msra.mxu0 %v1472
        %3216 = vmatprep.subr.bf16.mxu0 %v1477
        %3217 = vmatpush1.bf16.msra.mxu0 %v1476
        %3218 = vmatprep.subr.bf16.mxu0 %v1481
        %3219 = vmatpush1.bf16.msra.mxu0 %v1480
        %3220 = vmatprep.subr.bf16.mxu0 0
        %3221 = vmatpush1.bf16.msra.mxu0 0
        %3222 = vmatprep.subr.bf16.mxu0 0
        %3223 = vmatpush1.bf16.msra.mxu0 0
        %3224 = vmatprep.subr.bf16.mxu0 0
        %3225 = vmatpush1.bf16.msra.mxu0 0
        %3226 = vmatprep.subr.bf16.mxu0 0
        %3227 = vmatpush1.bf16.msra.mxu0 0
        %3228 = vmatprep.subr.bf16.mxu0 0
        %3229 = vmatpush1.bf16.msra.mxu0 0
        %3230 = vmatprep.subr.bf16.mxu0 0
        %3231 = vmatpush1.bf16.msra.mxu0 0
        %3232 = vmatprep.subr.bf16.mxu0 0
        %3233 = vmatpush1.bf16.msra.mxu0 0
        %3234 = vmatprep.subr.bf16.mxu0 0
        %3235 = vmatpush1.bf16.msra.mxu0 0
        %3236 = vmatprep.mubr.bf16.mxu0 0
        %3237 = vmatmul.mubr.bf16.gmra.mrb[0].mxu0 %v3203
        %v3238 = vpop.f32.mrb[0].mxu0
        %v3239 = vadd.f32 0.0, %v3238
        %v3240 = vpop.f32.mrb[0].mxu0
        %v3241 = vadd.f32 0.0, %v3240
        %v3242 = vpop.f32.mrb[0].mxu0
        %v3243 = vpop.f32.mrb[0].mxu0
        %3244 = vdwg.mxu0
        %3245 = vmatprep.subr.bf16.mxu0 %v1455
        %3246 = vmatpush1.bf16.msra.mxu0 %v1454
        %3247 = vmatprep.subr.bf16.mxu0 %v1459
        %3248 = vmatpush1.bf16.msra.mxu0 %v1458
        %3249 = vmatprep.subr.bf16.mxu0 %v1463
        %3250 = vmatpush1.bf16.msra.mxu0 %v1462
        %3251 = vmatprep.subr.bf16.mxu0 %v1467
        %3252 = vmatpush1.bf16.msra.mxu0 %v1466
        %3253 = vmatprep.subr.bf16.mxu0 %v1471
        %3254 = vmatpush1.bf16.msra.mxu0 %v1470
        %3255 = vmatprep.subr.bf16.mxu0 %v1475
        %3256 = vmatpush1.bf16.msra.mxu0 %v1474
        %3257 = vmatprep.subr.bf16.mxu0 %v1479
        %3258 = vmatpush1.bf16.msra.mxu0 %v1478
        %3259 = vmatprep.subr.bf16.mxu0 %v1483
        %3260 = vmatpush1.bf16.msra.mxu0 %v1482
        %3261 = vmatprep.subr.bf16.mxu0 0
        %3262 = vmatpush1.bf16.msra.mxu0 0
        %3263 = vmatprep.subr.bf16.mxu0 0
        %3264 = vmatpush1.bf16.msra.mxu0 0
        %3265 = vmatprep.subr.bf16.mxu0 0
        %3266 = vmatpush1.bf16.msra.mxu0 0
        %3267 = vmatprep.subr.bf16.mxu0 0
        %3268 = vmatpush1.bf16.msra.mxu0 0
        %3269 = vmatprep.subr.bf16.mxu0 0
        %3270 = vmatpush1.bf16.msra.mxu0 0
        %3271 = vmatprep.subr.bf16.mxu0 0
        %3272 = vmatpush1.bf16.msra.mxu0 0
        %3273 = vmatprep.subr.bf16.mxu0 0
        %3274 = vmatpush1.bf16.msra.mxu0 0
        %3275 = vmatprep.subr.bf16.mxu0 0
        %3276 = vmatpush1.bf16.msra.mxu0 0
        %3277 = vmatprep.mubr.bf16.mxu0 0
        %3278 = vmatmul.mubr.bf16.gmra.mrb[0].mxu0 %v3203
        %v3279 = vpop.f32.mrb[0].mxu0
        %v3280 = vadd.f32 0.0, %v3279
        %v3281 = vpop.f32.mrb[0].mxu0
        %v3282 = vadd.f32 0.0, %v3281
        %v3283 = vpop.f32.mrb[0].mxu0
        %v3284 = vpop.f32.mrb[0].mxu0
        %3285 = vdwg.mxu0
        %3286 = vmatprep.subr.bf16.mxu0 %v1695
        %3287 = vmatpush1.bf16.msra.mxu0 %v1694
        %3288 = vmatprep.subr.bf16.mxu0 %v1699
        %3289 = vmatpush1.bf16.msra.mxu0 %v1698
        %3290 = vmatprep.subr.bf16.mxu0 %v1703
        %3291 = vmatpush1.bf16.msra.mxu0 %v1702
        %3292 = vmatprep.subr.bf16.mxu0 %v1707
        %3293 = vmatpush1.bf16.msra.mxu0 %v1706
        %3294 = vmatprep.subr.bf16.mxu0 %v1711
        %3295 = vmatpush1.bf16.msra.mxu0 %v1710
        %3296 = vmatprep.subr.bf16.mxu0 %v1715
        %3297 = vmatpush1.bf16.msra.mxu0 %v1714
        %3298 = vmatprep.subr.bf16.mxu0 %v1719
        %3299 = vmatpush1.bf16.msra.mxu0 %v1718
        %3300 = vmatprep.subr.bf16.mxu0 %v1723
        %3301 = vmatpush1.bf16.msra.mxu0 %v1722
        %3302 = vmatprep.subr.bf16.mxu0 0
        %3303 = vmatpush1.bf16.msra.mxu0 0
        %3304 = vmatprep.subr.bf16.mxu0 0
        %3305 = vmatpush1.bf16.msra.mxu0 0
        %3306 = vmatprep.subr.bf16.mxu0 0
        %3307 = vmatpush1.bf16.msra.mxu0 0
        %3308 = vmatprep.subr.bf16.mxu0 0
        %3309 = vmatpush1.bf16.msra.mxu0 0
        %3310 = vmatprep.subr.bf16.mxu0 0
        %3311 = vmatpush1.bf16.msra.mxu0 0
        %3312 = vmatprep.subr.bf16.mxu0 0
        %3313 = vmatpush1.bf16.msra.mxu0 0
        %3314 = vmatprep.subr.bf16.mxu0 0
        %3315 = vmatpush1.bf16.msra.mxu0 0
        %3316 = vmatprep.subr.bf16.mxu0 0
        %3317 = vmatpush1.bf16.msra.mxu0 0
        %3318 = vmatprep.mubr.bf16.mxu0 0
        %3319 = vmatmul.mubr.bf16.gmra.mrb[0].mxu0 %v3202
        %v3320 = vpop.f32.mrb[0].mxu0
        %v3321 = vadd.f32 %v3239, %v3320
        %v3322 = vpop.f32.mrb[0].mxu0
        %v3323 = vadd.f32 %v3241, %v3322
        %v3324 = vpop.f32.mrb[0].mxu0
        %v3325 = vpop.f32.mrb[0].mxu0
        %3326 = vdwg.mxu0
        %3327 = vmatprep.subr.bf16.mxu0 %v1697
        %3328 = vmatpush1.bf16.msra.mxu0 %v1696
        %3329 = vmatprep.subr.bf16.mxu0 %v1701
        %3330 = vmatpush1.bf16.msra.mxu0 %v1700
        %3331 = vmatprep.subr.bf16.mxu0 %v1705
        %3332 = vmatpush1.bf16.msra.mxu0 %v1704
        %3333 = vmatprep.subr.bf16.mxu0 %v1709
        %3334 = vmatpush1.bf16.msra.mxu0 %v1708
        %3335 = vmatprep.subr.bf16.mxu0 %v1713
        %3336 = vmatpush1.bf16.msra.mxu0 %v1712
        %3337 = vmatprep.subr.bf16.mxu0 %v1717
        %3338 = vmatpush1.bf16.msra.mxu0 %v1716
        %3339 = vmatprep.subr.bf16.mxu0 %v1721
        %3340 = vmatpush1.bf16.msra.mxu0 %v1720
        %3341 = vmatprep.subr.bf16.mxu0 %v1725
        %3342 = vmatpush1.bf16.msra.mxu0 %v1724
        %3343 = vmatprep.subr.bf16.mxu0 0
        %3344 = vmatpush1.bf16.msra.mxu0 0
        %3345 = vmatprep.subr.bf16.mxu0 0
        %3346 = vmatpush1.bf16.msra.mxu0 0
        %3347 = vmatprep.subr.bf16.mxu0 0
        %3348 = vmatpush1.bf16.msra.mxu0 0
        %3349 = vmatprep.subr.bf16.mxu0 0
        %3350 = vmatpush1.bf16.msra.mxu0 0
        %3351 = vmatprep.subr.bf16.mxu0 0
        %3352 = vmatpush1.bf16.msra.mxu0 0
        %3353 = vmatprep.subr.bf16.mxu0 0
        %3354 = vmatpush1.bf16.msra.mxu0 0
        %3355 = vmatprep.subr.bf16.mxu0 0
        %3356 = vmatpush1.bf16.msra.mxu0 0
        %3357 = vmatprep.subr.bf16.mxu0 0
        %3358 = vmatpush1.bf16.msra.mxu0 0
        %3359 = vmatprep.mubr.bf16.mxu0 0
        %3360 = vmatmul.mubr.bf16.gmra.mrb[0].mxu0 %v3202
        %v3361 = vpop.f32.mrb[0].mxu0
        %v3362 = vadd.f32 %v3280, %v3361
        %v3363 = vpop.f32.mrb[0].mxu0
        %v3364 = vadd.f32 %v3282, %v3363
        %v3365 = vpop.f32.mrb[0].mxu0
        %v3366 = vpop.f32.mrb[0].mxu0
        %3367 = vdwg.mxu0
        %v3368 = vadd.f32 %v3321, %v1845
        %v3369 = vadd.f32 %v3323, %v1849
        %v3370 = vadd.f32 %v3362, %v1853
        %v3371 = vadd.f32 %v3364, %v1857
        %v3372 = vxor.u32 %v3368, 2147483648
        %v3373 = vmul.f32 %v3372, 1.442695
        %v3374 = vpow.pop %v3373
        %v3375 = vadd.f32 %v3374, 1.0
        %v3376 = vrcp.pop %v3375
        %v3377 = vmul.f32 1.0, %v3376
        %v3378 = vxor.u32 %v3369, 2147483648
        %v3379 = vmul.f32 %v3378, 1.442695
        %v3380 = vpow.pop %v3379
        %v3381 = vadd.f32 %v3380, 1.0
        %v3382 = vrcp.pop %v3381
        %v3383 = vmul.f32 1.0, %v3382
        %v3384 = vtanh.pop %v3370
        %v3385 = vxor.u32 %v3371, 2147483648
        %v3386 = vmul.f32 %v3385, 1.442695
        %v3387 = vpow.pop %v3386
        %v3388 = vadd.f32 %v3387, 1.0
        %v3389 = vrcp.pop %v3388
        %v3390 = vmul.f32 1.0, %v3389
        %v3391 = vmul.f32 %v3383, %v2891
        %v3392 = vmul.f32 %v3377, %v3384
        %v3393 = vadd.f32 %v3391, %v3392
        %v3394 = vtanh.pop %v3393
        %v3395 = vmul.f32 %v3390, %v3394
        %s3396 = scalar_lea.vmem %s364, 128
        %v3397 = vld [vmem:[%s3396] sm:$0xff]
        %v3398 = vld [vmem:[%s3396 + $0x8] sm:$0xff]
        %v3399 = vld [vmem:[%s3396 + $0x10] sm:$0xff]
        %v3400 = vld [vmem:[%s3396 + $0x18] sm:$0xff]
        %3401 = vmatprep.subr.bf16.mxu0 %v517
        %3402 = vmatpush1.bf16.msra.mxu0 %v516
        %3403 = vmatprep.subr.bf16.mxu0 %v521
        %3404 = vmatpush1.bf16.msra.mxu0 %v520
        %3405 = vmatprep.subr.bf16.mxu0 %v525
        %3406 = vmatpush1.bf16.msra.mxu0 %v524
        %3407 = vmatprep.subr.bf16.mxu0 %v529
        %3408 = vmatpush1.bf16.msra.mxu0 %v528
        %3409 = vmatprep.subr.bf16.mxu0 %v533
        %3410 = vmatpush1.bf16.msra.mxu0 %v532
        %3411 = vmatprep.subr.bf16.mxu0 %v537
        %3412 = vmatpush1.bf16.msra.mxu0 %v536
        %3413 = vmatprep.subr.bf16.mxu0 %v541
        %3414 = vmatpush1.bf16.msra.mxu0 %v540
        %3415 = vmatprep.subr.bf16.mxu0 %v545
        %3416 = vmatpush1.bf16.msra.mxu0 %v544
        %3417 = vmatprep.subr.bf16.mxu0 0
        %3418 = vmatpush1.bf16.msra.mxu0 0
        %3419 = vmatprep.subr.bf16.mxu0 0
        %3420 = vmatpush1.bf16.msra.mxu0 0
        %3421 = vmatprep.subr.bf16.mxu0 0
        %3422 = vmatpush1.bf16.msra.mxu0 0
        %3423 = vmatprep.subr.bf16.mxu0 0
        %3424 = vmatpush1.bf16.msra.mxu0 0
        %3425 = vmatprep.subr.bf16.mxu0 0
        %3426 = vmatpush1.bf16.msra.mxu0 0
        %3427 = vmatprep.subr.bf16.mxu0 0
        %3428 = vmatpush1.bf16.msra.mxu0 0
        %3429 = vmatprep.subr.bf16.mxu0 0
        %3430 = vmatpush1.bf16.msra.mxu0 0
        %3431 = vmatprep.subr.bf16.mxu0 0
        %3432 = vmatpush1.bf16.msra.mxu0 0
        %3433 = vmatprep.mubr.bf16.mxu0 0
        %3434 = vmatmul.mubr.bf16.gmra.mrb[0].mxu0 %v3009
        %v3435 = vpop.f32.mrb[0].mxu0
        %v3436 = vadd.f32 0.0, %v3435
        %v3437 = vpop.f32.mrb[0].mxu0
        %v3438 = vadd.f32 0.0, %v3437
        %v3439 = vpop.f32.mrb[0].mxu0
        %v3440 = vpop.f32.mrb[0].mxu0
        %3441 = vdwg.mxu0
        %3442 = vmatprep.subr.bf16.mxu0 %v519
        %3443 = vmatpush1.bf16.msra.mxu0 %v518
        %3444 = vmatprep.subr.bf16.mxu0 %v523
        %3445 = vmatpush1.bf16.msra.mxu0 %v522
        %3446 = vmatprep.subr.bf16.mxu0 %v527
        %3447 = vmatpush1.bf16.msra.mxu0 %v526
        %3448 = vmatprep.subr.bf16.mxu0 %v531
        %3449 = vmatpush1.bf16.msra.mxu0 %v530
        %3450 = vmatprep.subr.bf16.mxu0 %v535
        %3451 = vmatpush1.bf16.msra.mxu0 %v534
        %3452 = vmatprep.subr.bf16.mxu0 %v539
        %3453 = vmatpush1.bf16.msra.mxu0 %v538
        %3454 = vmatprep.subr.bf16.mxu0 %v543
        %3455 = vmatpush1.bf16.msra.mxu0 %v542
        %3456 = vmatprep.subr.bf16.mxu0 %v547
        %3457 = vmatpush1.bf16.msra.mxu0 %v546
        %3458 = vmatprep.subr.bf16.mxu0 0
        %3459 = vmatpush1.bf16.msra.mxu0 0
        %3460 = vmatprep.subr.bf16.mxu0 0
        %3461 = vmatpush1.bf16.msra.mxu0 0
        %3462 = vmatprep.subr.bf16.mxu0 0
        %3463 = vmatpush1.bf16.msra.mxu0 0
        %3464 = vmatprep.subr.bf16.mxu0 0
        %3465 = vmatpush1.bf16.msra.mxu0 0
        %3466 = vmatprep.subr.bf16.mxu0 0
        %3467 = vmatpush1.bf16.msra.mxu0 0
        %3468 = vmatprep.subr.bf16.mxu0 0
        %3469 = vmatpush1.bf16.msra.mxu0 0
        %3470 = vmatprep.subr.bf16.mxu0 0
        %3471 = vmatpush1.bf16.msra.mxu0 0
        %3472 = vmatprep.subr.bf16.mxu0 0
        %3473 = vmatpush1.bf16.msra.mxu0 0
        %3474 = vmatprep.mubr.bf16.mxu0 0
        %3475 = vmatmul.mubr.bf16.gmra.mrb[0].mxu0 %v3009
        %v3476 = vpop.f32.mrb[0].mxu0
        %v3477 = vadd.f32 0.0, %v3476
        %v3478 = vpop.f32.mrb[0].mxu0
        %v3479 = vadd.f32 0.0, %v3478
        %v3480 = vpop.f32.mrb[0].mxu0
        %v3481 = vpop.f32.mrb[0].mxu0
        %3482 = vdwg.mxu0
        %v3483 = vadd.f32 %v3397, %v3436
        %v3484 = vadd.f32 %v3398, %v3438
        %v3485 = vadd.f32 %v3399, %v3477
        %v3486 = vadd.f32 %v3400, %v3479
        %v3487 = vxor.u32 %v3483, 2147483648
        %v3488 = vmul.f32 %v3487, 1.442695
        %v3489 = vpow.pop %v3488
        %v3490 = vadd.f32 %v3489, 1.0
        %v3491 = vrcp.pop %v3490
        %v3492 = vmul.f32 1.0, %v3491
        %v3493 = vxor.u32 %v3484, 2147483648
        %v3494 = vmul.f32 %v3493, 1.442695
        %v3495 = vpow.pop %v3494
        %v3496 = vadd.f32 %v3495, 1.0
        %v3497 = vrcp.pop %v3496
        %v3498 = vmul.f32 1.0, %v3497
        %v3499 = vtanh.pop %v3485
        %v3500 = vxor.u32 %v3486, 2147483648
        %v3501 = vmul.f32 %v3500, 1.442695
        %v3502 = vpow.pop %v3501
        %v3503 = vadd.f32 %v3502, 1.0
        %v3504 = vrcp.pop %v3503
        %v3505 = vmul.f32 1.0, %v3504
        %v3506 = vmul.f32 %v3498, %v3006
        %v3507 = vmul.f32 %v3492, %v3499
        %v3508 = vadd.f32 %v3506, %v3507
        %v3509 = vtanh.pop %v3508
        %v3510 = vmul.f32 %v3505, %v3509
        %v3511 = vpack.c.bf16 %v3510, %v3510
        %3512 = vmatprep.subr.bf16.mxu0 %v853
        %3513 = vmatpush1.bf16.msra.mxu0 %v852
        %3514 = vmatprep.subr.bf16.mxu0 %v857
        %3515 = vmatpush1.bf16.msra.mxu0 %v856
        %3516 = vmatprep.subr.bf16.mxu0 %v861
        %3517 = vmatpush1.bf16.msra.mxu0 %v860
        %3518 = vmatprep.subr.bf16.mxu0 %v865
        %3519 = vmatpush1.bf16.msra.mxu0 %v864
        %3520 = vmatprep.subr.bf16.mxu0 %v869
        %3521 = vmatpush1.bf16.msra.mxu0 %v868
        %3522 = vmatprep.subr.bf16.mxu0 %v873
        %3523 = vmatpush1.bf16.msra.mxu0 %v872
        %3524 = vmatprep.subr.bf16.mxu0 %v877
        %3525 = vmatpush1.bf16.msra.mxu0 %v876
        %3526 = vmatprep.subr.bf16.mxu0 %v881
        %3527 = vmatpush1.bf16.msra.mxu0 %v880
        %3528 = vmatprep.subr.bf16.mxu0 0
        %3529 = vmatpush1.bf16.msra.mxu0 0
        %3530 = vmatprep.subr.bf16.mxu0 0
        %3531 = vmatpush1.bf16.msra.mxu0 0
        %3532 = vmatprep.subr.bf16.mxu0 0
        %3533 = vmatpush1.bf16.msra.mxu0 0
        %3534 = vmatprep.subr.bf16.mxu0 0
        %3535 = vmatpush1.bf16.msra.mxu0 0
        %3536 = vmatprep.subr.bf16.mxu0 0
        %3537 = vmatpush1.bf16.msra.mxu0 0
        %3538 = vmatprep.subr.bf16.mxu0 0
        %3539 = vmatpush1.bf16.msra.mxu0 0
        %3540 = vmatprep.subr.bf16.mxu0 0
        %3541 = vmatpush1.bf16.msra.mxu0 0
        %3542 = vmatprep.subr.bf16.mxu0 0
        %3543 = vmatpush1.bf16.msra.mxu0 0
        %3544 = vmatprep.mubr.bf16.mxu0 0
        %3545 = vmatmul.mubr.bf16.gmra.mrb[0].mxu0 %v3202
        %v3546 = vpop.f32.mrb[0].mxu0
        %v3547 = vadd.f32 0.0, %v3546
        %v3548 = vpop.f32.mrb[0].mxu0
        %v3549 = vadd.f32 0.0, %v3548
        %v3550 = vpop.f32.mrb[0].mxu0
        %v3551 = vpop.f32.mrb[0].mxu0
        %3552 = vdwg.mxu0
        %3553 = vmatprep.subr.bf16.mxu0 %v855
        %3554 = vmatpush1.bf16.msra.mxu0 %v854
        %3555 = vmatprep.subr.bf16.mxu0 %v859
        %3556 = vmatpush1.bf16.msra.mxu0 %v858
        %3557 = vmatprep.subr.bf16.mxu0 %v863
        %3558 = vmatpush1.bf16.msra.mxu0 %v862
        %3559 = vmatprep.subr.bf16.mxu0 %v867
        %3560 = vmatpush1.bf16.msra.mxu0 %v866
        %3561 = vmatprep.subr.bf16.mxu0 %v871
        %3562 = vmatpush1.bf16.msra.mxu0 %v870
        %3563 = vmatprep.subr.bf16.mxu0 %v875
        %3564 = vmatpush1.bf16.msra.mxu0 %v874
        %3565 = vmatprep.subr.bf16.mxu0 %v879
        %3566 = vmatpush1.bf16.msra.mxu0 %v878
        %3567 = vmatprep.subr.bf16.mxu0 %v883
        %3568 = vmatpush1.bf16.msra.mxu0 %v882
        %3569 = vmatprep.subr.bf16.mxu0 0
        %3570 = vmatpush1.bf16.msra.mxu0 0
        %3571 = vmatprep.subr.bf16.mxu0 0
        %3572 = vmatpush1.bf16.msra.mxu0 0
        %3573 = vmatprep.subr.bf16.mxu0 0
        %3574 = vmatpush1.bf16.msra.mxu0 0
        %3575 = vmatprep.subr.bf16.mxu0 0
        %3576 = vmatpush1.bf16.msra.mxu0 0
        %3577 = vmatprep.subr.bf16.mxu0 0
        %3578 = vmatpush1.bf16.msra.mxu0 0
        %3579 = vmatprep.subr.bf16.mxu0 0
        %3580 = vmatpush1.bf16.msra.mxu0 0
        %3581 = vmatprep.subr.bf16.mxu0 0
        %3582 = vmatpush1.bf16.msra.mxu0 0
        %3583 = vmatprep.subr.bf16.mxu0 0
        %3584 = vmatpush1.bf16.msra.mxu0 0
        %3585 = vmatprep.mubr.bf16.mxu0 0
        %3586 = vmatmul.mubr.bf16.gmra.mrb[0].mxu0 %v3202
        %v3587 = vpop.f32.mrb[0].mxu0
        %v3588 = vadd.f32 0.0, %v3587
        %v3589 = vpop.f32.mrb[0].mxu0
        %v3590 = vadd.f32 0.0, %v3589
        %v3591 = vpop.f32.mrb[0].mxu0
        %v3592 = vpop.f32.mrb[0].mxu0
        %3593 = vdwg.mxu0
        %3594 = vmatprep.subr.bf16.mxu0 %v1095
        %3595 = vmatpush1.bf16.msra.mxu0 %v1094
        %3596 = vmatprep.subr.bf16.mxu0 %v1099
        %3597 = vmatpush1.bf16.msra.mxu0 %v1098
        %3598 = vmatprep.subr.bf16.mxu0 %v1103
        %3599 = vmatpush1.bf16.msra.mxu0 %v1102
        %3600 = vmatprep.subr.bf16.mxu0 %v1107
        %3601 = vmatpush1.bf16.msra.mxu0 %v1106
        %3602 = vmatprep.subr.bf16.mxu0 %v1111
        %3603 = vmatpush1.bf16.msra.mxu0 %v1110
        %3604 = vmatprep.subr.bf16.mxu0 %v1115
        %3605 = vmatpush1.bf16.msra.mxu0 %v1114
        %3606 = vmatprep.subr.bf16.mxu0 %v1119
        %3607 = vmatpush1.bf16.msra.mxu0 %v1118
        %3608 = vmatprep.subr.bf16.mxu0 %v1123
        %3609 = vmatpush1.bf16.msra.mxu0 %v1122
        %3610 = vmatprep.subr.bf16.mxu0 0
        %3611 = vmatpush1.bf16.msra.mxu0 0
        %3612 = vmatprep.subr.bf16.mxu0 0
        %3613 = vmatpush1.bf16.msra.mxu0 0
        %3614 = vmatprep.subr.bf16.mxu0 0
        %3615 = vmatpush1.bf16.msra.mxu0 0
        %3616 = vmatprep.subr.bf16.mxu0 0
        %3617 = vmatpush1.bf16.msra.mxu0 0
        %3618 = vmatprep.subr.bf16.mxu0 0
        %3619 = vmatpush1.bf16.msra.mxu0 0
        %3620 = vmatprep.subr.bf16.mxu0 0
        %3621 = vmatpush1.bf16.msra.mxu0 0
        %3622 = vmatprep.subr.bf16.mxu0 0
        %3623 = vmatpush1.bf16.msra.mxu0 0
        %3624 = vmatprep.subr.bf16.mxu0 0
        %3625 = vmatpush1.bf16.msra.mxu0 0
        %3626 = vmatprep.mubr.bf16.mxu0 0
        %3627 = vmatmul.mubr.bf16.gmra.mrb[0].mxu0 %v3511
        %v3628 = vpop.f32.mrb[0].mxu0
        %v3629 = vadd.f32 %v3547, %v3628
        %v3630 = vpop.f32.mrb[0].mxu0
        %v3631 = vadd.f32 %v3549, %v3630
        %v3632 = vpop.f32.mrb[0].mxu0
        %v3633 = vpop.f32.mrb[0].mxu0
        %3634 = vdwg.mxu0
        %3635 = vmatprep.subr.bf16.mxu0 %v1097
        %3636 = vmatpush1.bf16.msra.mxu0 %v1096
        %3637 = vmatprep.subr.bf16.mxu0 %v1101
        %3638 = vmatpush1.bf16.msra.mxu0 %v1100
        %3639 = vmatprep.subr.bf16.mxu0 %v1105
        %3640 = vmatpush1.bf16.msra.mxu0 %v1104
        %3641 = vmatprep.subr.bf16.mxu0 %v1109
        %3642 = vmatpush1.bf16.msra.mxu0 %v1108
        %3643 = vmatprep.subr.bf16.mxu0 %v1113
        %3644 = vmatpush1.bf16.msra.mxu0 %v1112
        %3645 = vmatprep.subr.bf16.mxu0 %v1117
        %3646 = vmatpush1.bf16.msra.mxu0 %v1116
        %3647 = vmatprep.subr.bf16.mxu0 %v1121
        %3648 = vmatpush1.bf16.msra.mxu0 %v1120
        %3649 = vmatprep.subr.bf16.mxu0 %v1125
        %3650 = vmatpush1.bf16.msra.mxu0 %v1124
        %3651 = vmatprep.subr.bf16.mxu0 0
        %3652 = vmatpush1.bf16.msra.mxu0 0
        %3653 = vmatprep.subr.bf16.mxu0 0
        %3654 = vmatpush1.bf16.msra.mxu0 0
        %3655 = vmatprep.subr.bf16.mxu0 0
        %3656 = vmatpush1.bf16.msra.mxu0 0
        %3657 = vmatprep.subr.bf16.mxu0 0
        %3658 = vmatpush1.bf16.msra.mxu0 0
        %3659 = vmatprep.subr.bf16.mxu0 0
        %3660 = vmatpush1.bf16.msra.mxu0 0
        %3661 = vmatprep.subr.bf16.mxu0 0
        %3662 = vmatpush1.bf16.msra.mxu0 0
        %3663 = vmatprep.subr.bf16.mxu0 0
        %3664 = vmatpush1.bf16.msra.mxu0 0
        %3665 = vmatprep.subr.bf16.mxu0 0
        %3666 = vmatpush1.bf16.msra.mxu0 0
        %3667 = vmatprep.mubr.bf16.mxu0 0
        %3668 = vmatmul.mubr.bf16.gmra.mrb[0].mxu0 %v3511
        %v3669 = vpop.f32.mrb[0].mxu0
        %v3670 = vadd.f32 %v3588, %v3669
        %v3671 = vpop.f32.mrb[0].mxu0
        %v3672 = vadd.f32 %v3590, %v3671
        %v3673 = vpop.f32.mrb[0].mxu0
        %v3674 = vpop.f32.mrb[0].mxu0
        %3675 = vdwg.mxu0
        %v3676 = vadd.f32 %v3629, %v1245
        %v3677 = vadd.f32 %v3631, %v1249
        %v3678 = vadd.f32 %v3670, %v1253
        %v3679 = vadd.f32 %v3672, %v1257
        %v3680 = vxor.u32 %v3676, 2147483648
        %v3681 = vmul.f32 %v3680, 1.442695
        %v3682 = vpow.pop %v3681
        %v3683 = vadd.f32 %v3682, 1.0
        %v3684 = vrcp.pop %v3683
        %v3685 = vmul.f32 1.0, %v3684
        %v3686 = vxor.u32 %v3677, 2147483648
        %v3687 = vmul.f32 %v3686, 1.442695
        %v3688 = vpow.pop %v3687
        %v3689 = vadd.f32 %v3688, 1.0
        %v3690 = vrcp.pop %v3689
        %v3691 = vmul.f32 1.0, %v3690
        %v3692 = vtanh.pop %v3678
        %v3693 = vxor.u32 %v3679, 2147483648
        %v3694 = vmul.f32 %v3693, 1.442695
        %v3695 = vpow.pop %v3694
        %v3696 = vadd.f32 %v3695, 1.0
        %v3697 = vrcp.pop %v3696
        %v3698 = vmul.f32 1.0, %v3697
        %v3699 = vmul.f32 %v3691, %v3199
        %v3700 = vmul.f32 %v3685, %v3692
        %v3701 = vadd.f32 %v3699, %v3700
        %v3702 = vtanh.pop %v3701
        %v3703 = vmul.f32 %v3698, %v3702
        %v3704 = vpack.c.bf16 %v3703, %v3703
        %v3705 = vpack.c.bf16 %v3395, %v3395
        %3706 = vmatprep.subr.bf16.mxu0 %v1453
        %3707 = vmatpush1.bf16.msra.mxu0 %v1452
        %3708 = vmatprep.subr.bf16.mxu0 %v1457
        %3709 = vmatpush1.bf16.msra.mxu0 %v1456
        %3710 = vmatprep.subr.bf16.mxu0 %v1461
        %3711 = vmatpush1.bf16.msra.mxu0 %v1460
        %3712 = vmatprep.subr.bf16.mxu0 %v1465
        %3713 = vmatpush1.bf16.msra.mxu0 %v1464
        %3714 = vmatprep.subr.bf16.mxu0 %v1469
        %3715 = vmatpush1.bf16.msra.mxu0 %v1468
        %3716 = vmatprep.subr.bf16.mxu0 %v1473
        %3717 = vmatpush1.bf16.msra.mxu0 %v1472
        %3718 = vmatprep.subr.bf16.mxu0 %v1477
        %3719 = vmatpush1.bf16.msra.mxu0 %v1476
        %3720 = vmatprep.subr.bf16.mxu0 %v1481
        %3721 = vmatpush1.bf16.msra.mxu0 %v1480
        %3722 = vmatprep.subr.bf16.mxu0 0
        %3723 = vmatpush1.bf16.msra.mxu0 0
        %3724 = vmatprep.subr.bf16.mxu0 0
        %3725 = vmatpush1.bf16.msra.mxu0 0
        %3726 = vmatprep.subr.bf16.mxu0 0
        %3727 = vmatpush1.bf16.msra.mxu0 0
        %3728 = vmatprep.subr.bf16.mxu0 0
        %3729 = vmatpush1.bf16.msra.mxu0 0
        %3730 = vmatprep.subr.bf16.mxu0 0
        %3731 = vmatpush1.bf16.msra.mxu0 0
        %3732 = vmatprep.subr.bf16.mxu0 0
        %3733 = vmatpush1.bf16.msra.mxu0 0
        %3734 = vmatprep.subr.bf16.mxu0 0
        %3735 = vmatpush1.bf16.msra.mxu0 0
        %3736 = vmatprep.subr.bf16.mxu0 0
        %3737 = vmatpush1.bf16.msra.mxu0 0
        %3738 = vmatprep.mubr.bf16.mxu0 0
        %3739 = vmatmul.mubr.bf16.gmra.mrb[0].mxu0 %v3705
        %v3740 = vpop.f32.mrb[0].mxu0
        %v3741 = vadd.f32 0.0, %v3740
        %v3742 = vpop.f32.mrb[0].mxu0
        %v3743 = vadd.f32 0.0, %v3742
        %v3744 = vpop.f32.mrb[0].mxu0
        %v3745 = vpop.f32.mrb[0].mxu0
        %3746 = vdwg.mxu0
        %3747 = vmatprep.subr.bf16.mxu0 %v1455
        %3748 = vmatpush1.bf16.msra.mxu0 %v1454
        %3749 = vmatprep.subr.bf16.mxu0 %v1459
        %3750 = vmatpush1.bf16.msra.mxu0 %v1458
        %3751 = vmatprep.subr.bf16.mxu0 %v1463
        %3752 = vmatpush1.bf16.msra.mxu0 %v1462
        %3753 = vmatprep.subr.bf16.mxu0 %v1467
        %3754 = vmatpush1.bf16.msra.mxu0 %v1466
        %3755 = vmatprep.subr.bf16.mxu0 %v1471
        %3756 = vmatpush1.bf16.msra.mxu0 %v1470
        %3757 = vmatprep.subr.bf16.mxu0 %v1475
        %3758 = vmatpush1.bf16.msra.mxu0 %v1474
        %3759 = vmatprep.subr.bf16.mxu0 %v1479
        %3760 = vmatpush1.bf16.msra.mxu0 %v1478
        %3761 = vmatprep.subr.bf16.mxu0 %v1483
        %3762 = vmatpush1.bf16.msra.mxu0 %v1482
        %3763 = vmatprep.subr.bf16.mxu0 0
        %3764 = vmatpush1.bf16.msra.mxu0 0
        %3765 = vmatprep.subr.bf16.mxu0 0
        %3766 = vmatpush1.bf16.msra.mxu0 0
        %3767 = vmatprep.subr.bf16.mxu0 0
        %3768 = vmatpush1.bf16.msra.mxu0 0
        %3769 = vmatprep.subr.bf16.mxu0 0
        %3770 = vmatpush1.bf16.msra.mxu0 0
        %3771 = vmatprep.subr.bf16.mxu0 0
        %3772 = vmatpush1.bf16.msra.mxu0 0
        %3773 = vmatprep.subr.bf16.mxu0 0
        %3774 = vmatpush1.bf16.msra.mxu0 0
        %3775 = vmatprep.subr.bf16.mxu0 0
        %3776 = vmatpush1.bf16.msra.mxu0 0
        %3777 = vmatprep.subr.bf16.mxu0 0
        %3778 = vmatpush1.bf16.msra.mxu0 0
        %3779 = vmatprep.mubr.bf16.mxu0 0
        %3780 = vmatmul.mubr.bf16.gmra.mrb[0].mxu0 %v3705
        %v3781 = vpop.f32.mrb[0].mxu0
        %v3782 = vadd.f32 0.0, %v3781
        %v3783 = vpop.f32.mrb[0].mxu0
        %v3784 = vadd.f32 0.0, %v3783
        %v3785 = vpop.f32.mrb[0].mxu0
        %v3786 = vpop.f32.mrb[0].mxu0
        %3787 = vdwg.mxu0
        %3788 = vmatprep.subr.bf16.mxu0 %v1695
        %3789 = vmatpush1.bf16.msra.mxu0 %v1694
        %3790 = vmatprep.subr.bf16.mxu0 %v1699
        %3791 = vmatpush1.bf16.msra.mxu0 %v1698
        %3792 = vmatprep.subr.bf16.mxu0 %v1703
        %3793 = vmatpush1.bf16.msra.mxu0 %v1702
        %3794 = vmatprep.subr.bf16.mxu0 %v1707
        %3795 = vmatpush1.bf16.msra.mxu0 %v1706
        %3796 = vmatprep.subr.bf16.mxu0 %v1711
        %3797 = vmatpush1.bf16.msra.mxu0 %v1710
        %3798 = vmatprep.subr.bf16.mxu0 %v1715
        %3799 = vmatpush1.bf16.msra.mxu0 %v1714
        %3800 = vmatprep.subr.bf16.mxu0 %v1719
        %3801 = vmatpush1.bf16.msra.mxu0 %v1718
        %3802 = vmatprep.subr.bf16.mxu0 %v1723
        %3803 = vmatpush1.bf16.msra.mxu0 %v1722
        %3804 = vmatprep.subr.bf16.mxu0 0
        %3805 = vmatpush1.bf16.msra.mxu0 0
        %3806 = vmatprep.subr.bf16.mxu0 0
        %3807 = vmatpush1.bf16.msra.mxu0 0
        %3808 = vmatprep.subr.bf16.mxu0 0
        %3809 = vmatpush1.bf16.msra.mxu0 0
        %3810 = vmatprep.subr.bf16.mxu0 0
        %3811 = vmatpush1.bf16.msra.mxu0 0
        %3812 = vmatprep.subr.bf16.mxu0 0
        %3813 = vmatpush1.bf16.msra.mxu0 0
        %3814 = vmatprep.subr.bf16.mxu0 0
        %3815 = vmatpush1.bf16.msra.mxu0 0
        %3816 = vmatprep.subr.bf16.mxu0 0
        %3817 = vmatpush1.bf16.msra.mxu0 0
        %3818 = vmatprep.subr.bf16.mxu0 0
        %3819 = vmatpush1.bf16.msra.mxu0 0
        %3820 = vmatprep.mubr.bf16.mxu0 0
        %3821 = vmatmul.mubr.bf16.gmra.mrb[0].mxu0 %v3704
        %v3822 = vpop.f32.mrb[0].mxu0
        %v3823 = vadd.f32 %v3741, %v3822
        %v3824 = vpop.f32.mrb[0].mxu0
        %v3825 = vadd.f32 %v3743, %v3824
        %v3826 = vpop.f32.mrb[0].mxu0
        %v3827 = vpop.f32.mrb[0].mxu0
        %3828 = vdwg.mxu0
        %3829 = vmatprep.subr.bf16.mxu0 %v1697
        %3830 = vmatpush1.bf16.msra.mxu0 %v1696
        %3831 = vmatprep.subr.bf16.mxu0 %v1701
        %3832 = vmatpush1.bf16.msra.mxu0 %v1700
        %3833 = vmatprep.subr.bf16.mxu0 %v1705
        %3834 = vmatpush1.bf16.msra.mxu0 %v1704
        %3835 = vmatprep.subr.bf16.mxu0 %v1709
        %3836 = vmatpush1.bf16.msra.mxu0 %v1708
        %3837 = vmatprep.subr.bf16.mxu0 %v1713
        %3838 = vmatpush1.bf16.msra.mxu0 %v1712
        %3839 = vmatprep.subr.bf16.mxu0 %v1717
        %3840 = vmatpush1.bf16.msra.mxu0 %v1716
        %3841 = vmatprep.subr.bf16.mxu0 %v1721
        %3842 = vmatpush1.bf16.msra.mxu0 %v1720
        %3843 = vmatprep.subr.bf16.mxu0 %v1725
        %3844 = vmatpush1.bf16.msra.mxu0 %v1724
        %3845 = vmatprep.subr.bf16.mxu0 0
        %3846 = vmatpush1.bf16.msra.mxu0 0
        %3847 = vmatprep.subr.bf16.mxu0 0
        %3848 = vmatpush1.bf16.msra.mxu0 0
        %3849 = vmatprep.subr.bf16.mxu0 0
        %3850 = vmatpush1.bf16.msra.mxu0 0
        %3851 = vmatprep.subr.bf16.mxu0 0
        %3852 = vmatpush1.bf16.msra.mxu0 0
        %3853 = vmatprep.subr.bf16.mxu0 0
        %3854 = vmatpush1.bf16.msra.mxu0 0
        %3855 = vmatprep.subr.bf16.mxu0 0
        %3856 = vmatpush1.bf16.msra.mxu0 0
        %3857 = vmatprep.subr.bf16.mxu0 0
        %3858 = vmatpush1.bf16.msra.mxu0 0
        %3859 = vmatprep.subr.bf16.mxu0 0
        %3860 = vmatpush1.bf16.msra.mxu0 0
        %3861 = vmatprep.mubr.bf16.mxu0 0
        %3862 = vmatmul.mubr.bf16.gmra.mrb[0].mxu0 %v3704
        %v3863 = vpop.f32.mrb[0].mxu0
        %v3864 = vadd.f32 %v3782, %v3863
        %v3865 = vpop.f32.mrb[0].mxu0
        %v3866 = vadd.f32 %v3784, %v3865
        %v3867 = vpop.f32.mrb[0].mxu0
        %v3868 = vpop.f32.mrb[0].mxu0
        %3869 = vdwg.mxu0
        %v3870 = vadd.f32 %v3823, %v1845
        %v3871 = vadd.f32 %v3825, %v1849
        %v3872 = vadd.f32 %v3864, %v1853
        %v3873 = vadd.f32 %v3866, %v1857
        %v3874 = vxor.u32 %v3870, 2147483648
        %v3875 = vmul.f32 %v3874, 1.442695
        %v3876 = vpow.pop %v3875
        %v3877 = vadd.f32 %v3876, 1.0
        %v3878 = vrcp.pop %v3877
        %v3879 = vmul.f32 1.0, %v3878
        %v3880 = vxor.u32 %v3871, 2147483648
        %v3881 = vmul.f32 %v3880, 1.442695
        %v3882 = vpow.pop %v3881
        %v3883 = vadd.f32 %v3882, 1.0
        %v3884 = vrcp.pop %v3883
        %v3885 = vmul.f32 1.0, %v3884
        %v3886 = vtanh.pop %v3872
        %v3887 = vxor.u32 %v3873, 2147483648
        %v3888 = vmul.f32 %v3887, 1.442695
        %v3889 = vpow.pop %v3888
        %v3890 = vadd.f32 %v3889, 1.0
        %v3891 = vrcp.pop %v3890
        %v3892 = vmul.f32 1.0, %v3891
        %v3893 = vmul.f32 %v3885, %v3393
        %v3894 = vmul.f32 %v3879, %v3886
        %v3895 = vadd.f32 %v3893, %v3894
        %v3896 = vtanh.pop %v3895
        %v3897 = vmul.f32 %v3892, %v3896
        %s3898 = scalar_lea.vmem %s364, 160
        %v3899 = vld [vmem:[%s3898] sm:$0xff]
        %v3900 = vld [vmem:[%s3898 + $0x8] sm:$0xff]
        %v3901 = vld [vmem:[%s3898 + $0x10] sm:$0xff]
        %v3902 = vld [vmem:[%s3898 + $0x18] sm:$0xff]
        %3903 = vmatprep.subr.bf16.mxu0 %v517
        %3904 = vmatpush1.bf16.msra.mxu0 %v516
        %3905 = vmatprep.subr.bf16.mxu0 %v521
        %3906 = vmatpush1.bf16.msra.mxu0 %v520
        %3907 = vmatprep.subr.bf16.mxu0 %v525
        %3908 = vmatpush1.bf16.msra.mxu0 %v524
        %3909 = vmatprep.subr.bf16.mxu0 %v529
        %3910 = vmatpush1.bf16.msra.mxu0 %v528
        %3911 = vmatprep.subr.bf16.mxu0 %v533
        %3912 = vmatpush1.bf16.msra.mxu0 %v532
        %3913 = vmatprep.subr.bf16.mxu0 %v537
        %3914 = vmatpush1.bf16.msra.mxu0 %v536
        %3915 = vmatprep.subr.bf16.mxu0 %v541
        %3916 = vmatpush1.bf16.msra.mxu0 %v540
        %3917 = vmatprep.subr.bf16.mxu0 %v545
        %3918 = vmatpush1.bf16.msra.mxu0 %v544
        %3919 = vmatprep.subr.bf16.mxu0 0
        %3920 = vmatpush1.bf16.msra.mxu0 0
        %3921 = vmatprep.subr.bf16.mxu0 0
        %3922 = vmatpush1.bf16.msra.mxu0 0
        %3923 = vmatprep.subr.bf16.mxu0 0
        %3924 = vmatpush1.bf16.msra.mxu0 0
        %3925 = vmatprep.subr.bf16.mxu0 0
        %3926 = vmatpush1.bf16.msra.mxu0 0
        %3927 = vmatprep.subr.bf16.mxu0 0
        %3928 = vmatpush1.bf16.msra.mxu0 0
        %3929 = vmatprep.subr.bf16.mxu0 0
        %3930 = vmatpush1.bf16.msra.mxu0 0
        %3931 = vmatprep.subr.bf16.mxu0 0
        %3932 = vmatpush1.bf16.msra.mxu0 0
        %3933 = vmatprep.subr.bf16.mxu0 0
        %3934 = vmatpush1.bf16.msra.mxu0 0
        %3935 = vmatprep.mubr.bf16.mxu0 0
        %3936 = vmatmul.mubr.bf16.gmra.mrb[0].mxu0 %v3511
        %v3937 = vpop.f32.mrb[0].mxu0
        %v3938 = vadd.f32 0.0, %v3937
        %v3939 = vpop.f32.mrb[0].mxu0
        %v3940 = vadd.f32 0.0, %v3939
        %v3941 = vpop.f32.mrb[0].mxu0
        %v3942 = vpop.f32.mrb[0].mxu0
        %3943 = vdwg.mxu0
        %3944 = vmatprep.subr.bf16.mxu0 %v519
        %3945 = vmatpush1.bf16.msra.mxu0 %v518
        %3946 = vmatprep.subr.bf16.mxu0 %v523
        %3947 = vmatpush1.bf16.msra.mxu0 %v522
        %3948 = vmatprep.subr.bf16.mxu0 %v527
        %3949 = vmatpush1.bf16.msra.mxu0 %v526
        %3950 = vmatprep.subr.bf16.mxu0 %v531
        %3951 = vmatpush1.bf16.msra.mxu0 %v530
        %3952 = vmatprep.subr.bf16.mxu0 %v535
        %3953 = vmatpush1.bf16.msra.mxu0 %v534
        %3954 = vmatprep.subr.bf16.mxu0 %v539
        %3955 = vmatpush1.bf16.msra.mxu0 %v538
        %3956 = vmatprep.subr.bf16.mxu0 %v543
        %3957 = vmatpush1.bf16.msra.mxu0 %v542
        %3958 = vmatprep.subr.bf16.mxu0 %v547
        %3959 = vmatpush1.bf16.msra.mxu0 %v546
        %3960 = vmatprep.subr.bf16.mxu0 0
        %3961 = vmatpush1.bf16.msra.mxu0 0
        %3962 = vmatprep.subr.bf16.mxu0 0
        %3963 = vmatpush1.bf16.msra.mxu0 0
        %3964 = vmatprep.subr.bf16.mxu0 0
        %3965 = vmatpush1.bf16.msra.mxu0 0
        %3966 = vmatprep.subr.bf16.mxu0 0
        %3967 = vmatpush1.bf16.msra.mxu0 0
        %3968 = vmatprep.subr.bf16.mxu0 0
        %3969 = vmatpush1.bf16.msra.mxu0 0
        %3970 = vmatprep.subr.bf16.mxu0 0
        %3971 = vmatpush1.bf16.msra.mxu0 0
        %3972 = vmatprep.subr.bf16.mxu0 0
        %3973 = vmatpush1.bf16.msra.mxu0 0
        %3974 = vmatprep.subr.bf16.mxu0 0
        %3975 = vmatpush1.bf16.msra.mxu0 0
        %3976 = vmatprep.mubr.bf16.mxu0 0
        %3977 = vmatmul.mubr.bf16.gmra.mrb[0].mxu0 %v3511
        %v3978 = vpop.f32.mrb[0].mxu0
        %v3979 = vadd.f32 0.0, %v3978
        %v3980 = vpop.f32.mrb[0].mxu0
        %v3981 = vadd.f32 0.0, %v3980
        %v3982 = vpop.f32.mrb[0].mxu0
        %v3983 = vpop.f32.mrb[0].mxu0
        %3984 = vdwg.mxu0
        %v3985 = vadd.f32 %v3899, %v3938
        %v3986 = vadd.f32 %v3900, %v3940
        %v3987 = vadd.f32 %v3901, %v3979
        %v3988 = vadd.f32 %v3902, %v3981
        %v3989 = vxor.u32 %v3985, 2147483648
        %v3990 = vmul.f32 %v3989, 1.442695
        %v3991 = vpow.pop %v3990
        %v3992 = vadd.f32 %v3991, 1.0
        %v3993 = vrcp.pop %v3992
        %v3994 = vmul.f32 1.0, %v3993
        %v3995 = vxor.u32 %v3986, 2147483648
        %v3996 = vmul.f32 %v3995, 1.442695
        %v3997 = vpow.pop %v3996
        %v3998 = vadd.f32 %v3997, 1.0
        %v3999 = vrcp.pop %v3998
        %v4000 = vmul.f32 1.0, %v3999
        %v4001 = vtanh.pop %v3987
        %v4002 = vxor.u32 %v3988, 2147483648
        %v4003 = vmul.f32 %v4002, 1.442695
        %v4004 = vpow.pop %v4003
        %v4005 = vadd.f32 %v4004, 1.0
        %v4006 = vrcp.pop %v4005
        %v4007 = vmul.f32 1.0, %v4006
        %v4008 = vmul.f32 %v4000, %v3508
        %v4009 = vmul.f32 %v3994, %v4001
        %v4010 = vadd.f32 %v4008, %v4009
        %v4011 = vtanh.pop %v4010
        %v4012 = vmul.f32 %v4007, %v4011
        %v4013 = vpack.c.bf16 %v4012, %v4012
        %4014 = vmatprep.subr.bf16.mxu0 %v853
        %4015 = vmatpush1.bf16.msra.mxu0 %v852
        %4016 = vmatprep.subr.bf16.mxu0 %v857
        %4017 = vmatpush1.bf16.msra.mxu0 %v856
        %4018 = vmatprep.subr.bf16.mxu0 %v861
        %4019 = vmatpush1.bf16.msra.mxu0 %v860
        %4020 = vmatprep.subr.bf16.mxu0 %v865
        %4021 = vmatpush1.bf16.msra.mxu0 %v864
        %4022 = vmatprep.subr.bf16.mxu0 %v869
        %4023 = vmatpush1.bf16.msra.mxu0 %v868
        %4024 = vmatprep.subr.bf16.mxu0 %v873
        %4025 = vmatpush1.bf16.msra.mxu0 %v872
        %4026 = vmatprep.subr.bf16.mxu0 %v877
        %4027 = vmatpush1.bf16.msra.mxu0 %v876
        %4028 = vmatprep.subr.bf16.mxu0 %v881
        %4029 = vmatpush1.bf16.msra.mxu0 %v880
        %4030 = vmatprep.subr.bf16.mxu0 0
        %4031 = vmatpush1.bf16.msra.mxu0 0
        %4032 = vmatprep.subr.bf16.mxu0 0
        %4033 = vmatpush1.bf16.msra.mxu0 0
        %4034 = vmatprep.subr.bf16.mxu0 0
        %4035 = vmatpush1.bf16.msra.mxu0 0
        %4036 = vmatprep.subr.bf16.mxu0 0
        %4037 = vmatpush1.bf16.msra.mxu0 0
        %4038 = vmatprep.subr.bf16.mxu0 0
        %4039 = vmatpush1.bf16.msra.mxu0 0
        %4040 = vmatprep.subr.bf16.mxu0 0
        %4041 = vmatpush1.bf16.msra.mxu0 0
        %4042 = vmatprep.subr.bf16.mxu0 0
        %4043 = vmatpush1.bf16.msra.mxu0 0
        %4044 = vmatprep.subr.bf16.mxu0 0
        %4045 = vmatpush1.bf16.msra.mxu0 0
        %4046 = vmatprep.mubr.bf16.mxu0 0
        %4047 = vmatmul.mubr.bf16.gmra.mrb[0].mxu0 %v3704
        %v4048 = vpop.f32.mrb[0].mxu0
        %v4049 = vadd.f32 0.0, %v4048
        %v4050 = vpop.f32.mrb[0].mxu0
        %v4051 = vadd.f32 0.0, %v4050
        %v4052 = vpop.f32.mrb[0].mxu0
        %v4053 = vpop.f32.mrb[0].mxu0
        %4054 = vdwg.mxu0
        %4055 = vmatprep.subr.bf16.mxu0 %v855
        %4056 = vmatpush1.bf16.msra.mxu0 %v854
        %4057 = vmatprep.subr.bf16.mxu0 %v859
        %4058 = vmatpush1.bf16.msra.mxu0 %v858
        %4059 = vmatprep.subr.bf16.mxu0 %v863
        %4060 = vmatpush1.bf16.msra.mxu0 %v862
        %4061 = vmatprep.subr.bf16.mxu0 %v867
        %4062 = vmatpush1.bf16.msra.mxu0 %v866
        %4063 = vmatprep.subr.bf16.mxu0 %v871
        %4064 = vmatpush1.bf16.msra.mxu0 %v870
        %4065 = vmatprep.subr.bf16.mxu0 %v875
        %4066 = vmatpush1.bf16.msra.mxu0 %v874
        %4067 = vmatprep.subr.bf16.mxu0 %v879
        %4068 = vmatpush1.bf16.msra.mxu0 %v878
        %4069 = vmatprep.subr.bf16.mxu0 %v883
        %4070 = vmatpush1.bf16.msra.mxu0 %v882
        %4071 = vmatprep.subr.bf16.mxu0 0
        %4072 = vmatpush1.bf16.msra.mxu0 0
        %4073 = vmatprep.subr.bf16.mxu0 0
        %4074 = vmatpush1.bf16.msra.mxu0 0
        %4075 = vmatprep.subr.bf16.mxu0 0
        %4076 = vmatpush1.bf16.msra.mxu0 0
        %4077 = vmatprep.subr.bf16.mxu0 0
        %4078 = vmatpush1.bf16.msra.mxu0 0
        %4079 = vmatprep.subr.bf16.mxu0 0
        %4080 = vmatpush1.bf16.msra.mxu0 0
        %4081 = vmatprep.subr.bf16.mxu0 0
        %4082 = vmatpush1.bf16.msra.mxu0 0
        %4083 = vmatprep.subr.bf16.mxu0 0
        %4084 = vmatpush1.bf16.msra.mxu0 0
        %4085 = vmatprep.subr.bf16.mxu0 0
        %4086 = vmatpush1.bf16.msra.mxu0 0
        %4087 = vmatprep.mubr.bf16.mxu0 0
        %4088 = vmatmul.mubr.bf16.gmra.mrb[0].mxu0 %v3704
        %v4089 = vpop.f32.mrb[0].mxu0
        %v4090 = vadd.f32 0.0, %v4089
        %v4091 = vpop.f32.mrb[0].mxu0
        %v4092 = vadd.f32 0.0, %v4091
        %v4093 = vpop.f32.mrb[0].mxu0
        %v4094 = vpop.f32.mrb[0].mxu0
        %4095 = vdwg.mxu0
        %4096 = vmatprep.subr.bf16.mxu0 %v1095
        %4097 = vmatpush1.bf16.msra.mxu0 %v1094
        %4098 = vmatprep.subr.bf16.mxu0 %v1099
        %4099 = vmatpush1.bf16.msra.mxu0 %v1098
        %4100 = vmatprep.subr.bf16.mxu0 %v1103
        %4101 = vmatpush1.bf16.msra.mxu0 %v1102
        %4102 = vmatprep.subr.bf16.mxu0 %v1107
        %4103 = vmatpush1.bf16.msra.mxu0 %v1106
        %4104 = vmatprep.subr.bf16.mxu0 %v1111
        %4105 = vmatpush1.bf16.msra.mxu0 %v1110
        %4106 = vmatprep.subr.bf16.mxu0 %v1115
        %4107 = vmatpush1.bf16.msra.mxu0 %v1114
        %4108 = vmatprep.subr.bf16.mxu0 %v1119
        %4109 = vmatpush1.bf16.msra.mxu0 %v1118
        %4110 = vmatprep.subr.bf16.mxu0 %v1123
        %4111 = vmatpush1.bf16.msra.mxu0 %v1122
        %4112 = vmatprep.subr.bf16.mxu0 0
        %4113 = vmatpush1.bf16.msra.mxu0 0
        %4114 = vmatprep.subr.bf16.mxu0 0
        %4115 = vmatpush1.bf16.msra.mxu0 0
        %4116 = vmatprep.subr.bf16.mxu0 0
        %4117 = vmatpush1.bf16.msra.mxu0 0
        %4118 = vmatprep.subr.bf16.mxu0 0
        %4119 = vmatpush1.bf16.msra.mxu0 0
        %4120 = vmatprep.subr.bf16.mxu0 0
        %4121 = vmatpush1.bf16.msra.mxu0 0
        %4122 = vmatprep.subr.bf16.mxu0 0
        %4123 = vmatpush1.bf16.msra.mxu0 0
        %4124 = vmatprep.subr.bf16.mxu0 0
        %4125 = vmatpush1.bf16.msra.mxu0 0
        %4126 = vmatprep.subr.bf16.mxu0 0
        %4127 = vmatpush1.bf16.msra.mxu0 0
        %4128 = vmatprep.mubr.bf16.mxu0 0
        %4129 = vmatmul.mubr.bf16.gmra.mrb[0].mxu0 %v4013
        %v4130 = vpop.f32.mrb[0].mxu0
        %v4131 = vadd.f32 %v4049, %v4130
        %v4132 = vpop.f32.mrb[0].mxu0
        %v4133 = vadd.f32 %v4051, %v4132
        %v4134 = vpop.f32.mrb[0].mxu0
        %v4135 = vpop.f32.mrb[0].mxu0
        %4136 = vdwg.mxu0
        %4137 = vmatprep.subr.bf16.mxu0 %v1097
        %4138 = vmatpush1.bf16.msra.mxu0 %v1096
        %4139 = vmatprep.subr.bf16.mxu0 %v1101
        %4140 = vmatpush1.bf16.msra.mxu0 %v1100
        %4141 = vmatprep.subr.bf16.mxu0 %v1105
        %4142 = vmatpush1.bf16.msra.mxu0 %v1104
        %4143 = vmatprep.subr.bf16.mxu0 %v1109
        %4144 = vmatpush1.bf16.msra.mxu0 %v1108
        %4145 = vmatprep.subr.bf16.mxu0 %v1113
        %4146 = vmatpush1.bf16.msra.mxu0 %v1112
        %4147 = vmatprep.subr.bf16.mxu0 %v1117
        %4148 = vmatpush1.bf16.msra.mxu0 %v1116
        %4149 = vmatprep.subr.bf16.mxu0 %v1121
        %4150 = vmatpush1.bf16.msra.mxu0 %v1120
        %4151 = vmatprep.subr.bf16.mxu0 %v1125
        %4152 = vmatpush1.bf16.msra.mxu0 %v1124
        %4153 = vmatprep.subr.bf16.mxu0 0
        %4154 = vmatpush1.bf16.msra.mxu0 0
        %4155 = vmatprep.subr.bf16.mxu0 0
        %4156 = vmatpush1.bf16.msra.mxu0 0
        %4157 = vmatprep.subr.bf16.mxu0 0
        %4158 = vmatpush1.bf16.msra.mxu0 0
        %4159 = vmatprep.subr.bf16.mxu0 0
        %4160 = vmatpush1.bf16.msra.mxu0 0
        %4161 = vmatprep.subr.bf16.mxu0 0
        %4162 = vmatpush1.bf16.msra.mxu0 0
        %4163 = vmatprep.subr.bf16.mxu0 0
        %4164 = vmatpush1.bf16.msra.mxu0 0
        %4165 = vmatprep.subr.bf16.mxu0 0
        %4166 = vmatpush1.bf16.msra.mxu0 0
        %4167 = vmatprep.subr.bf16.mxu0 0
        %4168 = vmatpush1.bf16.msra.mxu0 0
        %4169 = vmatprep.mubr.bf16.mxu0 0
        %4170 = vmatmul.mubr.bf16.gmra.mrb[0].mxu0 %v4013
        %v4171 = vpop.f32.mrb[0].mxu0
        %v4172 = vadd.f32 %v4090, %v4171
        %v4173 = vpop.f32.mrb[0].mxu0
        %v4174 = vadd.f32 %v4092, %v4173
        %v4175 = vpop.f32.mrb[0].mxu0
        %v4176 = vpop.f32.mrb[0].mxu0
        %4177 = vdwg.mxu0
        %v4178 = vadd.f32 %v4131, %v1245
        %v4179 = vadd.f32 %v4133, %v1249
        %v4180 = vadd.f32 %v4172, %v1253
        %v4181 = vadd.f32 %v4174, %v1257
        %v4182 = vxor.u32 %v4178, 2147483648
        %v4183 = vmul.f32 %v4182, 1.442695
        %v4184 = vpow.pop %v4183
        %v4185 = vadd.f32 %v4184, 1.0
        %v4186 = vrcp.pop %v4185
        %v4187 = vmul.f32 1.0, %v4186
        %v4188 = vxor.u32 %v4179, 2147483648
        %v4189 = vmul.f32 %v4188, 1.442695
        %v4190 = vpow.pop %v4189
        %v4191 = vadd.f32 %v4190, 1.0
        %v4192 = vrcp.pop %v4191
        %v4193 = vmul.f32 1.0, %v4192
        %v4194 = vtanh.pop %v4180
        %v4195 = vxor.u32 %v4181, 2147483648
        %v4196 = vmul.f32 %v4195, 1.442695
        %v4197 = vpow.pop %v4196
        %v4198 = vadd.f32 %v4197, 1.0
        %v4199 = vrcp.pop %v4198
        %v4200 = vmul.f32 1.0, %v4199
        %v4201 = vmul.f32 %v4193, %v3701
        %v4202 = vmul.f32 %v4187, %v4194
        %v4203 = vadd.f32 %v4201, %v4202
        %v4204 = vtanh.pop %v4203
        %v4205 = vmul.f32 %v4200, %v4204
        %v4206 = vpack.c.bf16 %v4205, %v4205
        %v4207 = vpack.c.bf16 %v3897, %v3897
        %4208 = vmatprep.subr.bf16.mxu0 %v1453
        %4209 = vmatpush1.bf16.msra.mxu0 %v1452
        %4210 = vmatprep.subr.bf16.mxu0 %v1457
        %4211 = vmatpush1.bf16.msra.mxu0 %v1456
        %4212 = vmatprep.subr.bf16.mxu0 %v1461
        %4213 = vmatpush1.bf16.msra.mxu0 %v1460
        %4214 = vmatprep.subr.bf16.mxu0 %v1465
        %4215 = vmatpush1.bf16.msra.mxu0 %v1464
        %4216 = vmatprep.subr.bf16.mxu0 %v1469
        %4217 = vmatpush1.bf16.msra.mxu0 %v1468
        %4218 = vmatprep.subr.bf16.mxu0 %v1473
        %4219 = vmatpush1.bf16.msra.mxu0 %v1472
        %4220 = vmatprep.subr.bf16.mxu0 %v1477
        %4221 = vmatpush1.bf16.msra.mxu0 %v1476
        %4222 = vmatprep.subr.bf16.mxu0 %v1481
        %4223 = vmatpush1.bf16.msra.mxu0 %v1480
        %4224 = vmatprep.subr.bf16.mxu0 0
        %4225 = vmatpush1.bf16.msra.mxu0 0
        %4226 = vmatprep.subr.bf16.mxu0 0
        %4227 = vmatpush1.bf16.msra.mxu0 0
        %4228 = vmatprep.subr.bf16.mxu0 0
        %4229 = vmatpush1.bf16.msra.mxu0 0
        %4230 = vmatprep.subr.bf16.mxu0 0
        %4231 = vmatpush1.bf16.msra.mxu0 0
        %4232 = vmatprep.subr.bf16.mxu0 0
        %4233 = vmatpush1.bf16.msra.mxu0 0
        %4234 = vmatprep.subr.bf16.mxu0 0
        %4235 = vmatpush1.bf16.msra.mxu0 0
        %4236 = vmatprep.subr.bf16.mxu0 0
        %4237 = vmatpush1.bf16.msra.mxu0 0
        %4238 = vmatprep.subr.bf16.mxu0 0
        %4239 = vmatpush1.bf16.msra.mxu0 0
        %4240 = vmatprep.mubr.bf16.mxu0 0
        %4241 = vmatmul.mubr.bf16.gmra.mrb[0].mxu0 %v4207
        %v4242 = vpop.f32.mrb[0].mxu0
        %v4243 = vadd.f32 0.0, %v4242
        %v4244 = vpop.f32.mrb[0].mxu0
        %v4245 = vadd.f32 0.0, %v4244
        %v4246 = vpop.f32.mrb[0].mxu0
        %v4247 = vpop.f32.mrb[0].mxu0
        %4248 = vdwg.mxu0
        %4249 = vmatprep.subr.bf16.mxu0 %v1455
        %4250 = vmatpush1.bf16.msra.mxu0 %v1454
        %4251 = vmatprep.subr.bf16.mxu0 %v1459
        %4252 = vmatpush1.bf16.msra.mxu0 %v1458
        %4253 = vmatprep.subr.bf16.mxu0 %v1463
        %4254 = vmatpush1.bf16.msra.mxu0 %v1462
        %4255 = vmatprep.subr.bf16.mxu0 %v1467
        %4256 = vmatpush1.bf16.msra.mxu0 %v1466
        %4257 = vmatprep.subr.bf16.mxu0 %v1471
        %4258 = vmatpush1.bf16.msra.mxu0 %v1470
        %4259 = vmatprep.subr.bf16.mxu0 %v1475
        %4260 = vmatpush1.bf16.msra.mxu0 %v1474
        %4261 = vmatprep.subr.bf16.mxu0 %v1479
        %4262 = vmatpush1.bf16.msra.mxu0 %v1478
        %4263 = vmatprep.subr.bf16.mxu0 %v1483
        %4264 = vmatpush1.bf16.msra.mxu0 %v1482
        %4265 = vmatprep.subr.bf16.mxu0 0
        %4266 = vmatpush1.bf16.msra.mxu0 0
        %4267 = vmatprep.subr.bf16.mxu0 0
        %4268 = vmatpush1.bf16.msra.mxu0 0
        %4269 = vmatprep.subr.bf16.mxu0 0
        %4270 = vmatpush1.bf16.msra.mxu0 0
        %4271 = vmatprep.subr.bf16.mxu0 0
        %4272 = vmatpush1.bf16.msra.mxu0 0
        %4273 = vmatprep.subr.bf16.mxu0 0
        %4274 = vmatpush1.bf16.msra.mxu0 0
        %4275 = vmatprep.subr.bf16.mxu0 0
        %4276 = vmatpush1.bf16.msra.mxu0 0
        %4277 = vmatprep.subr.bf16.mxu0 0
        %4278 = vmatpush1.bf16.msra.mxu0 0
        %4279 = vmatprep.subr.bf16.mxu0 0
        %4280 = vmatpush1.bf16.msra.mxu0 0
        %4281 = vmatprep.mubr.bf16.mxu0 0
        %4282 = vmatmul.mubr.bf16.gmra.mrb[0].mxu0 %v4207
        %v4283 = vpop.f32.mrb[0].mxu0
        %v4284 = vadd.f32 0.0, %v4283
        %v4285 = vpop.f32.mrb[0].mxu0
        %v4286 = vadd.f32 0.0, %v4285
        %v4287 = vpop.f32.mrb[0].mxu0
        %v4288 = vpop.f32.mrb[0].mxu0
        %4289 = vdwg.mxu0
        %4290 = vmatprep.subr.bf16.mxu0 %v1695
        %4291 = vmatpush1.bf16.msra.mxu0 %v1694
        %4292 = vmatprep.subr.bf16.mxu0 %v1699
        %4293 = vmatpush1.bf16.msra.mxu0 %v1698
        %4294 = vmatprep.subr.bf16.mxu0 %v1703
        %4295 = vmatpush1.bf16.msra.mxu0 %v1702
        %4296 = vmatprep.subr.bf16.mxu0 %v1707
        %4297 = vmatpush1.bf16.msra.mxu0 %v1706
        %4298 = vmatprep.subr.bf16.mxu0 %v1711
        %4299 = vmatpush1.bf16.msra.mxu0 %v1710
        %4300 = vmatprep.subr.bf16.mxu0 %v1715
        %4301 = vmatpush1.bf16.msra.mxu0 %v1714
        %4302 = vmatprep.subr.bf16.mxu0 %v1719
        %4303 = vmatpush1.bf16.msra.mxu0 %v1718
        %4304 = vmatprep.subr.bf16.mxu0 %v1723
        %4305 = vmatpush1.bf16.msra.mxu0 %v1722
        %4306 = vmatprep.subr.bf16.mxu0 0
        %4307 = vmatpush1.bf16.msra.mxu0 0
        %4308 = vmatprep.subr.bf16.mxu0 0
        %4309 = vmatpush1.bf16.msra.mxu0 0
        %4310 = vmatprep.subr.bf16.mxu0 0
        %4311 = vmatpush1.bf16.msra.mxu0 0
        %4312 = vmatprep.subr.bf16.mxu0 0
        %4313 = vmatpush1.bf16.msra.mxu0 0
        %4314 = vmatprep.subr.bf16.mxu0 0
        %4315 = vmatpush1.bf16.msra.mxu0 0
        %4316 = vmatprep.subr.bf16.mxu0 0
        %4317 = vmatpush1.bf16.msra.mxu0 0
        %4318 = vmatprep.subr.bf16.mxu0 0
        %4319 = vmatpush1.bf16.msra.mxu0 0
        %4320 = vmatprep.subr.bf16.mxu0 0
        %4321 = vmatpush1.bf16.msra.mxu0 0
        %4322 = vmatprep.mubr.bf16.mxu0 0
        %4323 = vmatmul.mubr.bf16.gmra.mrb[0].mxu0 %v4206
        %v4324 = vpop.f32.mrb[0].mxu0
        %v4325 = vadd.f32 %v4243, %v4324
        %v4326 = vpop.f32.mrb[0].mxu0
        %v4327 = vadd.f32 %v4245, %v4326
        %v4328 = vpop.f32.mrb[0].mxu0
        %v4329 = vpop.f32.mrb[0].mxu0
        %4330 = vdwg.mxu0
        %4331 = vmatprep.subr.bf16.mxu0 %v1697
        %4332 = vmatpush1.bf16.msra.mxu0 %v1696
        %4333 = vmatprep.subr.bf16.mxu0 %v1701
        %4334 = vmatpush1.bf16.msra.mxu0 %v1700
        %4335 = vmatprep.subr.bf16.mxu0 %v1705
        %4336 = vmatpush1.bf16.msra.mxu0 %v1704
        %4337 = vmatprep.subr.bf16.mxu0 %v1709
        %4338 = vmatpush1.bf16.msra.mxu0 %v1708
        %4339 = vmatprep.subr.bf16.mxu0 %v1713
        %4340 = vmatpush1.bf16.msra.mxu0 %v1712
        %4341 = vmatprep.subr.bf16.mxu0 %v1717
        %4342 = vmatpush1.bf16.msra.mxu0 %v1716
        %4343 = vmatprep.subr.bf16.mxu0 %v1721
        %4344 = vmatpush1.bf16.msra.mxu0 %v1720
        %4345 = vmatprep.subr.bf16.mxu0 %v1725
        %4346 = vmatpush1.bf16.msra.mxu0 %v1724
        %4347 = vmatprep.subr.bf16.mxu0 0
        %4348 = vmatpush1.bf16.msra.mxu0 0
        %4349 = vmatprep.subr.bf16.mxu0 0
        %4350 = vmatpush1.bf16.msra.mxu0 0
        %4351 = vmatprep.subr.bf16.mxu0 0
        %4352 = vmatpush1.bf16.msra.mxu0 0
        %4353 = vmatprep.subr.bf16.mxu0 0
        %4354 = vmatpush1.bf16.msra.mxu0 0
        %4355 = vmatprep.subr.bf16.mxu0 0
        %4356 = vmatpush1.bf16.msra.mxu0 0
        %4357 = vmatprep.subr.bf16.mxu0 0
        %4358 = vmatpush1.bf16.msra.mxu0 0
        %4359 = vmatprep.subr.bf16.mxu0 0
        %4360 = vmatpush1.bf16.msra.mxu0 0
        %4361 = vmatprep.subr.bf16.mxu0 0
        %4362 = vmatpush1.bf16.msra.mxu0 0
        %4363 = vmatprep.mubr.bf16.mxu0 0
        %4364 = vmatmul.mubr.bf16.gmra.mrb[0].mxu0 %v4206
        %v4365 = vpop.f32.mrb[0].mxu0
        %v4366 = vadd.f32 %v4284, %v4365
        %v4367 = vpop.f32.mrb[0].mxu0
        %v4368 = vadd.f32 %v4286, %v4367
        %v4369 = vpop.f32.mrb[0].mxu0
        %v4370 = vpop.f32.mrb[0].mxu0
        %4371 = vdwg.mxu0
        %v4372 = vadd.f32 %v4325, %v1845
        %v4373 = vadd.f32 %v4327, %v1849
        %v4374 = vadd.f32 %v4366, %v1853
        %v4375 = vadd.f32 %v4368, %v1857
        %v4376 = vxor.u32 %v4372, 2147483648
        %v4377 = vmul.f32 %v4376, 1.442695
        %v4378 = vpow.pop %v4377
        %v4379 = vadd.f32 %v4378, 1.0
        %v4380 = vrcp.pop %v4379
        %v4381 = vmul.f32 1.0, %v4380
        %v4382 = vxor.u32 %v4373, 2147483648
        %v4383 = vmul.f32 %v4382, 1.442695
        %v4384 = vpow.pop %v4383
        %v4385 = vadd.f32 %v4384, 1.0
        %v4386 = vrcp.pop %v4385
        %v4387 = vmul.f32 1.0, %v4386
        %v4388 = vtanh.pop %v4374
        %v4389 = vxor.u32 %v4375, 2147483648
        %v4390 = vmul.f32 %v4389, 1.442695
        %v4391 = vpow.pop %v4390
        %v4392 = vadd.f32 %v4391, 1.0
        %v4393 = vrcp.pop %v4392
        %v4394 = vmul.f32 1.0, %v4393
        %v4395 = vmul.f32 %v4387, %v3895
        %v4396 = vmul.f32 %v4381, %v4388
        %v4397 = vadd.f32 %v4395, %v4396
        %v4398 = vtanh.pop %v4397
        %v4399 = vmul.f32 %v4394, %v4398
        %s4400 = scalar_lea.vmem %s364, 192
        %v4401 = vld [vmem:[%s4400] sm:$0xff]
        %v4402 = vld [vmem:[%s4400 + $0x8] sm:$0xff]
        %v4403 = vld [vmem:[%s4400 + $0x10] sm:$0xff]
        %v4404 = vld [vmem:[%s4400 + $0x18] sm:$0xff]
        %4405 = vmatprep.subr.bf16.mxu0 %v517
        %4406 = vmatpush1.bf16.msra.mxu0 %v516
        %4407 = vmatprep.subr.bf16.mxu0 %v521
        %4408 = vmatpush1.bf16.msra.mxu0 %v520
        %4409 = vmatprep.subr.bf16.mxu0 %v525
        %4410 = vmatpush1.bf16.msra.mxu0 %v524
        %4411 = vmatprep.subr.bf16.mxu0 %v529
        %4412 = vmatpush1.bf16.msra.mxu0 %v528
        %4413 = vmatprep.subr.bf16.mxu0 %v533
        %4414 = vmatpush1.bf16.msra.mxu0 %v532
        %4415 = vmatprep.subr.bf16.mxu0 %v537
        %4416 = vmatpush1.bf16.msra.mxu0 %v536
        %4417 = vmatprep.subr.bf16.mxu0 %v541
        %4418 = vmatpush1.bf16.msra.mxu0 %v540
        %4419 = vmatprep.subr.bf16.mxu0 %v545
        %4420 = vmatpush1.bf16.msra.mxu0 %v544
        %4421 = vmatprep.subr.bf16.mxu0 0
        %4422 = vmatpush1.bf16.msra.mxu0 0
        %4423 = vmatprep.subr.bf16.mxu0 0
        %4424 = vmatpush1.bf16.msra.mxu0 0
        %4425 = vmatprep.subr.bf16.mxu0 0
        %4426 = vmatpush1.bf16.msra.mxu0 0
        %4427 = vmatprep.subr.bf16.mxu0 0
        %4428 = vmatpush1.bf16.msra.mxu0 0
        %4429 = vmatprep.subr.bf16.mxu0 0
        %4430 = vmatpush1.bf16.msra.mxu0 0
        %4431 = vmatprep.subr.bf16.mxu0 0
        %4432 = vmatpush1.bf16.msra.mxu0 0
        %4433 = vmatprep.subr.bf16.mxu0 0
        %4434 = vmatpush1.bf16.msra.mxu0 0
        %4435 = vmatprep.subr.bf16.mxu0 0
        %4436 = vmatpush1.bf16.msra.mxu0 0
        %4437 = vmatprep.mubr.bf16.mxu0 0
        %4438 = vmatmul.mubr.bf16.gmra.mrb[0].mxu0 %v4013
        %v4439 = vpop.f32.mrb[0].mxu0
        %v4440 = vadd.f32 0.0, %v4439
        %v4441 = vpop.f32.mrb[0].mxu0
        %v4442 = vadd.f32 0.0, %v4441
        %v4443 = vpop.f32.mrb[0].mxu0
        %v4444 = vpop.f32.mrb[0].mxu0
        %4445 = vdwg.mxu0
        %4446 = vmatprep.subr.bf16.mxu0 %v519
        %4447 = vmatpush1.bf16.msra.mxu0 %v518
        %4448 = vmatprep.subr.bf16.mxu0 %v523
        %4449 = vmatpush1.bf16.msra.mxu0 %v522
        %4450 = vmatprep.subr.bf16.mxu0 %v527
        %4451 = vmatpush1.bf16.msra.mxu0 %v526
        %4452 = vmatprep.subr.bf16.mxu0 %v531
        %4453 = vmatpush1.bf16.msra.mxu0 %v530
        %4454 = vmatprep.subr.bf16.mxu0 %v535
        %4455 = vmatpush1.bf16.msra.mxu0 %v534
        %4456 = vmatprep.subr.bf16.mxu0 %v539
        %4457 = vmatpush1.bf16.msra.mxu0 %v538
        %4458 = vmatprep.subr.bf16.mxu0 %v543
        %4459 = vmatpush1.bf16.msra.mxu0 %v542
        %4460 = vmatprep.subr.bf16.mxu0 %v547
        %4461 = vmatpush1.bf16.msra.mxu0 %v546
        %4462 = vmatprep.subr.bf16.mxu0 0
        %4463 = vmatpush1.bf16.msra.mxu0 0
        %4464 = vmatprep.subr.bf16.mxu0 0
        %4465 = vmatpush1.bf16.msra.mxu0 0
        %4466 = vmatprep.subr.bf16.mxu0 0
        %4467 = vmatpush1.bf16.msra.mxu0 0
        %4468 = vmatprep.subr.bf16.mxu0 0
        %4469 = vmatpush1.bf16.msra.mxu0 0
        %4470 = vmatprep.subr.bf16.mxu0 0
        %4471 = vmatpush1.bf16.msra.mxu0 0
        %4472 = vmatprep.subr.bf16.mxu0 0
        %4473 = vmatpush1.bf16.msra.mxu0 0
        %4474 = vmatprep.subr.bf16.mxu0 0
        %4475 = vmatpush1.bf16.msra.mxu0 0
        %4476 = vmatprep.subr.bf16.mxu0 0
        %4477 = vmatpush1.bf16.msra.mxu0 0
        %4478 = vmatprep.mubr.bf16.mxu0 0
        %4479 = vmatmul.mubr.bf16.gmra.mrb[0].mxu0 %v4013
        %v4480 = vpop.f32.mrb[0].mxu0
        %v4481 = vadd.f32 0.0, %v4480
        %v4482 = vpop.f32.mrb[0].mxu0
        %v4483 = vadd.f32 0.0, %v4482
        %v4484 = vpop.f32.mrb[0].mxu0
        %v4485 = vpop.f32.mrb[0].mxu0
        %4486 = vdwg.mxu0
        %v4487 = vadd.f32 %v4401, %v4440
        %v4488 = vadd.f32 %v4402, %v4442
        %v4489 = vadd.f32 %v4403, %v4481
        %v4490 = vadd.f32 %v4404, %v4483
        %v4491 = vxor.u32 %v4487, 2147483648
        %v4492 = vmul.f32 %v4491, 1.442695
        %v4493 = vpow.pop %v4492
        %v4494 = vadd.f32 %v4493, 1.0
        %v4495 = vrcp.pop %v4494
        %v4496 = vmul.f32 1.0, %v4495
        %v4497 = vxor.u32 %v4488, 2147483648
        %v4498 = vmul.f32 %v4497, 1.442695
        %v4499 = vpow.pop %v4498
        %v4500 = vadd.f32 %v4499, 1.0
        %v4501 = vrcp.pop %v4500
        %v4502 = vmul.f32 1.0, %v4501
        %v4503 = vtanh.pop %v4489
        %v4504 = vxor.u32 %v4490, 2147483648
        %v4505 = vmul.f32 %v4504, 1.442695
        %v4506 = vpow.pop %v4505
        %v4507 = vadd.f32 %v4506, 1.0
        %v4508 = vrcp.pop %v4507
        %v4509 = vmul.f32 1.0, %v4508
        %v4510 = vmul.f32 %v4502, %v4010
        %v4511 = vmul.f32 %v4496, %v4503
        %v4512 = vadd.f32 %v4510, %v4511
        %v4513 = vtanh.pop %v4512
        %v4514 = vmul.f32 %v4509, %v4513
        %v4515 = vpack.c.bf16 %v4514, %v4514
        %4516 = vmatprep.subr.bf16.mxu0 %v853
        %4517 = vmatpush1.bf16.msra.mxu0 %v852
        %4518 = vmatprep.subr.bf16.mxu0 %v857
        %4519 = vmatpush1.bf16.msra.mxu0 %v856
        %4520 = vmatprep.subr.bf16.mxu0 %v861
        %4521 = vmatpush1.bf16.msra.mxu0 %v860
        %4522 = vmatprep.subr.bf16.mxu0 %v865
        %4523 = vmatpush1.bf16.msra.mxu0 %v864
        %4524 = vmatprep.subr.bf16.mxu0 %v869
        %4525 = vmatpush1.bf16.msra.mxu0 %v868
        %4526 = vmatprep.subr.bf16.mxu0 %v873
        %4527 = vmatpush1.bf16.msra.mxu0 %v872
        %4528 = vmatprep.subr.bf16.mxu0 %v877
        %4529 = vmatpush1.bf16.msra.mxu0 %v876
        %4530 = vmatprep.subr.bf16.mxu0 %v881
        %4531 = vmatpush1.bf16.msra.mxu0 %v880
        %4532 = vmatprep.subr.bf16.mxu0 0
        %4533 = vmatpush1.bf16.msra.mxu0 0
        %4534 = vmatprep.subr.bf16.mxu0 0
        %4535 = vmatpush1.bf16.msra.mxu0 0
        %4536 = vmatprep.subr.bf16.mxu0 0
        %4537 = vmatpush1.bf16.msra.mxu0 0
        %4538 = vmatprep.subr.bf16.mxu0 0
        %4539 = vmatpush1.bf16.msra.mxu0 0
        %4540 = vmatprep.subr.bf16.mxu0 0
        %4541 = vmatpush1.bf16.msra.mxu0 0
        %4542 = vmatprep.subr.bf16.mxu0 0
        %4543 = vmatpush1.bf16.msra.mxu0 0
        %4544 = vmatprep.subr.bf16.mxu0 0
        %4545 = vmatpush1.bf16.msra.mxu0 0
        %4546 = vmatprep.subr.bf16.mxu0 0
        %4547 = vmatpush1.bf16.msra.mxu0 0
        %4548 = vmatprep.mubr.bf16.mxu0 0
        %4549 = vmatmul.mubr.bf16.gmra.mrb[0].mxu0 %v4206
        %v4550 = vpop.f32.mrb[0].mxu0
        %v4551 = vadd.f32 0.0, %v4550
        %v4552 = vpop.f32.mrb[0].mxu0
        %v4553 = vadd.f32 0.0, %v4552
        %v4554 = vpop.f32.mrb[0].mxu0
        %v4555 = vpop.f32.mrb[0].mxu0
        %4556 = vdwg.mxu0
        %4557 = vmatprep.subr.bf16.mxu0 %v855
        %4558 = vmatpush1.bf16.msra.mxu0 %v854
        %4559 = vmatprep.subr.bf16.mxu0 %v859
        %4560 = vmatpush1.bf16.msra.mxu0 %v858
        %4561 = vmatprep.subr.bf16.mxu0 %v863
        %4562 = vmatpush1.bf16.msra.mxu0 %v862
        %4563 = vmatprep.subr.bf16.mxu0 %v867
        %4564 = vmatpush1.bf16.msra.mxu0 %v866
        %4565 = vmatprep.subr.bf16.mxu0 %v871
        %4566 = vmatpush1.bf16.msra.mxu0 %v870
        %4567 = vmatprep.subr.bf16.mxu0 %v875
        %4568 = vmatpush1.bf16.msra.mxu0 %v874
        %4569 = vmatprep.subr.bf16.mxu0 %v879
        %4570 = vmatpush1.bf16.msra.mxu0 %v878
        %4571 = vmatprep.subr.bf16.mxu0 %v883
        %4572 = vmatpush1.bf16.msra.mxu0 %v882
        %4573 = vmatprep.subr.bf16.mxu0 0
        %4574 = vmatpush1.bf16.msra.mxu0 0
        %4575 = vmatprep.subr.bf16.mxu0 0
        %4576 = vmatpush1.bf16.msra.mxu0 0
        %4577 = vmatprep.subr.bf16.mxu0 0
        %4578 = vmatpush1.bf16.msra.mxu0 0
        %4579 = vmatprep.subr.bf16.mxu0 0
        %4580 = vmatpush1.bf16.msra.mxu0 0
        %4581 = vmatprep.subr.bf16.mxu0 0
        %4582 = vmatpush1.bf16.msra.mxu0 0
        %4583 = vmatprep.subr.bf16.mxu0 0
        %4584 = vmatpush1.bf16.msra.mxu0 0
        %4585 = vmatprep.subr.bf16.mxu0 0
        %4586 = vmatpush1.bf16.msra.mxu0 0
        %4587 = vmatprep.subr.bf16.mxu0 0
        %4588 = vmatpush1.bf16.msra.mxu0 0
        %4589 = vmatprep.mubr.bf16.mxu0 0
        %4590 = vmatmul.mubr.bf16.gmra.mrb[0].mxu0 %v4206
        %v4591 = vpop.f32.mrb[0].mxu0
        %v4592 = vadd.f32 0.0, %v4591
        %v4593 = vpop.f32.mrb[0].mxu0
        %v4594 = vadd.f32 0.0, %v4593
        %v4595 = vpop.f32.mrb[0].mxu0
        %v4596 = vpop.f32.mrb[0].mxu0
        %4597 = vdwg.mxu0
        %4598 = vmatprep.subr.bf16.mxu0 %v1095
        %4599 = vmatpush1.bf16.msra.mxu0 %v1094
        %4600 = vmatprep.subr.bf16.mxu0 %v1099
        %4601 = vmatpush1.bf16.msra.mxu0 %v1098
        %4602 = vmatprep.subr.bf16.mxu0 %v1103
        %4603 = vmatpush1.bf16.msra.mxu0 %v1102
        %4604 = vmatprep.subr.bf16.mxu0 %v1107
        %4605 = vmatpush1.bf16.msra.mxu0 %v1106
        %4606 = vmatprep.subr.bf16.mxu0 %v1111
        %4607 = vmatpush1.bf16.msra.mxu0 %v1110
        %4608 = vmatprep.subr.bf16.mxu0 %v1115
        %4609 = vmatpush1.bf16.msra.mxu0 %v1114
        %4610 = vmatprep.subr.bf16.mxu0 %v1119
        %4611 = vmatpush1.bf16.msra.mxu0 %v1118
        %4612 = vmatprep.subr.bf16.mxu0 %v1123
        %4613 = vmatpush1.bf16.msra.mxu0 %v1122
        %4614 = vmatprep.subr.bf16.mxu0 0
        %4615 = vmatpush1.bf16.msra.mxu0 0
        %4616 = vmatprep.subr.bf16.mxu0 0
        %4617 = vmatpush1.bf16.msra.mxu0 0
        %4618 = vmatprep.subr.bf16.mxu0 0
        %4619 = vmatpush1.bf16.msra.mxu0 0
        %4620 = vmatprep.subr.bf16.mxu0 0
        %4621 = vmatpush1.bf16.msra.mxu0 0
        %4622 = vmatprep.subr.bf16.mxu0 0
        %4623 = vmatpush1.bf16.msra.mxu0 0
        %4624 = vmatprep.subr.bf16.mxu0 0
        %4625 = vmatpush1.bf16.msra.mxu0 0
        %4626 = vmatprep.subr.bf16.mxu0 0
        %4627 = vmatpush1.bf16.msra.mxu0 0
        %4628 = vmatprep.subr.bf16.mxu0 0
        %4629 = vmatpush1.bf16.msra.mxu0 0
        %4630 = vmatprep.mubr.bf16.mxu0 0
        %4631 = vmatmul.mubr.bf16.gmra.mrb[0].mxu0 %v4515
        %v4632 = vpop.f32.mrb[0].mxu0
        %v4633 = vadd.f32 %v4551, %v4632
        %v4634 = vpop.f32.mrb[0].mxu0
        %v4635 = vadd.f32 %v4553, %v4634
        %v4636 = vpop.f32.mrb[0].mxu0
        %v4637 = vpop.f32.mrb[0].mxu0
        %4638 = vdwg.mxu0
        %4639 = vmatprep.subr.bf16.mxu0 %v1097
        %4640 = vmatpush1.bf16.msra.mxu0 %v1096
        %4641 = vmatprep.subr.bf16.mxu0 %v1101
        %4642 = vmatpush1.bf16.msra.mxu0 %v1100
        %4643 = vmatprep.subr.bf16.mxu0 %v1105
        %4644 = vmatpush1.bf16.msra.mxu0 %v1104
        %4645 = vmatprep.subr.bf16.mxu0 %v1109
        %4646 = vmatpush1.bf16.msra.mxu0 %v1108
        %4647 = vmatprep.subr.bf16.mxu0 %v1113
        %4648 = vmatpush1.bf16.msra.mxu0 %v1112
        %4649 = vmatprep.subr.bf16.mxu0 %v1117
        %4650 = vmatpush1.bf16.msra.mxu0 %v1116
        %4651 = vmatprep.subr.bf16.mxu0 %v1121
        %4652 = vmatpush1.bf16.msra.mxu0 %v1120
        %4653 = vmatprep.subr.bf16.mxu0 %v1125
        %4654 = vmatpush1.bf16.msra.mxu0 %v1124
        %4655 = vmatprep.subr.bf16.mxu0 0
        %4656 = vmatpush1.bf16.msra.mxu0 0
        %4657 = vmatprep.subr.bf16.mxu0 0
        %4658 = vmatpush1.bf16.msra.mxu0 0
        %4659 = vmatprep.subr.bf16.mxu0 0
        %4660 = vmatpush1.bf16.msra.mxu0 0
        %4661 = vmatprep.subr.bf16.mxu0 0
        %4662 = vmatpush1.bf16.msra.mxu0 0
        %4663 = vmatprep.subr.bf16.mxu0 0
        %4664 = vmatpush1.bf16.msra.mxu0 0
        %4665 = vmatprep.subr.bf16.mxu0 0
        %4666 = vmatpush1.bf16.msra.mxu0 0
        %4667 = vmatprep.subr.bf16.mxu0 0
        %4668 = vmatpush1.bf16.msra.mxu0 0
        %4669 = vmatprep.subr.bf16.mxu0 0
        %4670 = vmatpush1.bf16.msra.mxu0 0
        %4671 = vmatprep.mubr.bf16.mxu0 0
        %4672 = vmatmul.mubr.bf16.gmra.mrb[0].mxu0 %v4515
        %v4673 = vpop.f32.mrb[0].mxu0
        %v4674 = vadd.f32 %v4592, %v4673
        %v4675 = vpop.f32.mrb[0].mxu0
        %v4676 = vadd.f32 %v4594, %v4675
        %v4677 = vpop.f32.mrb[0].mxu0
        %v4678 = vpop.f32.mrb[0].mxu0
        %4679 = vdwg.mxu0
        %v4680 = vadd.f32 %v4633, %v1245
        %v4681 = vadd.f32 %v4635, %v1249
        %v4682 = vadd.f32 %v4674, %v1253
        %v4683 = vadd.f32 %v4676, %v1257
        %v4684 = vxor.u32 %v4680, 2147483648
        %v4685 = vmul.f32 %v4684, 1.442695
        %v4686 = vpow.pop %v4685
        %v4687 = vadd.f32 %v4686, 1.0
        %v4688 = vrcp.pop %v4687
        %v4689 = vmul.f32 1.0, %v4688
        %v4690 = vxor.u32 %v4681, 2147483648
        %v4691 = vmul.f32 %v4690, 1.442695
        %v4692 = vpow.pop %v4691
        %v4693 = vadd.f32 %v4692, 1.0
        %v4694 = vrcp.pop %v4693
        %v4695 = vmul.f32 1.0, %v4694
        %v4696 = vtanh.pop %v4682
        %v4697 = vxor.u32 %v4683, 2147483648
        %v4698 = vmul.f32 %v4697, 1.442695
        %v4699 = vpow.pop %v4698
        %v4700 = vadd.f32 %v4699, 1.0
        %v4701 = vrcp.pop %v4700
        %v4702 = vmul.f32 1.0, %v4701
        %v4703 = vmul.f32 %v4695, %v4203
        %v4704 = vmul.f32 %v4689, %v4696
        %v4705 = vadd.f32 %v4703, %v4704
        %v4706 = vtanh.pop %v4705
        %v4707 = vmul.f32 %v4702, %v4706
        %v4708 = vpack.c.bf16 %v4707, %v4707
        %v4709 = vpack.c.bf16 %v4399, %v4399
        %4710 = vmatprep.subr.bf16.mxu0 %v1453
        %4711 = vmatpush1.bf16.msra.mxu0 %v1452
        %4712 = vmatprep.subr.bf16.mxu0 %v1457
        %4713 = vmatpush1.bf16.msra.mxu0 %v1456
        %4714 = vmatprep.subr.bf16.mxu0 %v1461
        %4715 = vmatpush1.bf16.msra.mxu0 %v1460
        %4716 = vmatprep.subr.bf16.mxu0 %v1465
        %4717 = vmatpush1.bf16.msra.mxu0 %v1464
        %4718 = vmatprep.subr.bf16.mxu0 %v1469
        %4719 = vmatpush1.bf16.msra.mxu0 %v1468
        %4720 = vmatprep.subr.bf16.mxu0 %v1473
        %4721 = vmatpush1.bf16.msra.mxu0 %v1472
        %4722 = vmatprep.subr.bf16.mxu0 %v1477
        %4723 = vmatpush1.bf16.msra.mxu0 %v1476
        %4724 = vmatprep.subr.bf16.mxu0 %v1481
        %4725 = vmatpush1.bf16.msra.mxu0 %v1480
        %4726 = vmatprep.subr.bf16.mxu0 0
        %4727 = vmatpush1.bf16.msra.mxu0 0
        %4728 = vmatprep.subr.bf16.mxu0 0
        %4729 = vmatpush1.bf16.msra.mxu0 0
        %4730 = vmatprep.subr.bf16.mxu0 0
        %4731 = vmatpush1.bf16.msra.mxu0 0
        %4732 = vmatprep.subr.bf16.mxu0 0
        %4733 = vmatpush1.bf16.msra.mxu0 0
        %4734 = vmatprep.subr.bf16.mxu0 0
        %4735 = vmatpush1.bf16.msra.mxu0 0
        %4736 = vmatprep.subr.bf16.mxu0 0
        %4737 = vmatpush1.bf16.msra.mxu0 0
        %4738 = vmatprep.subr.bf16.mxu0 0
        %4739 = vmatpush1.bf16.msra.mxu0 0
        %4740 = vmatprep.subr.bf16.mxu0 0
        %4741 = vmatpush1.bf16.msra.mxu0 0
        %4742 = vmatprep.mubr.bf16.mxu0 0
        %4743 = vmatmul.mubr.bf16.gmra.mrb[0].mxu0 %v4709
        %v4744 = vpop.f32.mrb[0].mxu0
        %v4745 = vadd.f32 0.0, %v4744
        %v4746 = vpop.f32.mrb[0].mxu0
        %v4747 = vadd.f32 0.0, %v4746
        %v4748 = vpop.f32.mrb[0].mxu0
        %v4749 = vpop.f32.mrb[0].mxu0
        %4750 = vdwg.mxu0
        %4751 = vmatprep.subr.bf16.mxu0 %v1455
        %4752 = vmatpush1.bf16.msra.mxu0 %v1454
        %4753 = vmatprep.subr.bf16.mxu0 %v1459
        %4754 = vmatpush1.bf16.msra.mxu0 %v1458
        %4755 = vmatprep.subr.bf16.mxu0 %v1463
        %4756 = vmatpush1.bf16.msra.mxu0 %v1462
        %4757 = vmatprep.subr.bf16.mxu0 %v1467
        %4758 = vmatpush1.bf16.msra.mxu0 %v1466
        %4759 = vmatprep.subr.bf16.mxu0 %v1471
        %4760 = vmatpush1.bf16.msra.mxu0 %v1470
        %4761 = vmatprep.subr.bf16.mxu0 %v1475
        %4762 = vmatpush1.bf16.msra.mxu0 %v1474
        %4763 = vmatprep.subr.bf16.mxu0 %v1479
        %4764 = vmatpush1.bf16.msra.mxu0 %v1478
        %4765 = vmatprep.subr.bf16.mxu0 %v1483
        %4766 = vmatpush1.bf16.msra.mxu0 %v1482
        %4767 = vmatprep.subr.bf16.mxu0 0
        %4768 = vmatpush1.bf16.msra.mxu0 0
        %4769 = vmatprep.subr.bf16.mxu0 0
        %4770 = vmatpush1.bf16.msra.mxu0 0
        %4771 = vmatprep.subr.bf16.mxu0 0
        %4772 = vmatpush1.bf16.msra.mxu0 0
        %4773 = vmatprep.subr.bf16.mxu0 0
        %4774 = vmatpush1.bf16.msra.mxu0 0
        %4775 = vmatprep.subr.bf16.mxu0 0
        %4776 = vmatpush1.bf16.msra.mxu0 0
        %4777 = vmatprep.subr.bf16.mxu0 0
        %4778 = vmatpush1.bf16.msra.mxu0 0
        %4779 = vmatprep.subr.bf16.mxu0 0
        %4780 = vmatpush1.bf16.msra.mxu0 0
        %4781 = vmatprep.subr.bf16.mxu0 0
        %4782 = vmatpush1.bf16.msra.mxu0 0
        %4783 = vmatprep.mubr.bf16.mxu0 0
        %4784 = vmatmul.mubr.bf16.gmra.mrb[0].mxu0 %v4709
        %v4785 = vpop.f32.mrb[0].mxu0
        %v4786 = vadd.f32 0.0, %v4785
        %v4787 = vpop.f32.mrb[0].mxu0
        %v4788 = vadd.f32 0.0, %v4787
        %v4789 = vpop.f32.mrb[0].mxu0
        %v4790 = vpop.f32.mrb[0].mxu0
        %4791 = vdwg.mxu0
        %4792 = vmatprep.subr.bf16.mxu0 %v1695
        %4793 = vmatpush1.bf16.msra.mxu0 %v1694
        %4794 = vmatprep.subr.bf16.mxu0 %v1699
        %4795 = vmatpush1.bf16.msra.mxu0 %v1698
        %4796 = vmatprep.subr.bf16.mxu0 %v1703
        %4797 = vmatpush1.bf16.msra.mxu0 %v1702
        %4798 = vmatprep.subr.bf16.mxu0 %v1707
        %4799 = vmatpush1.bf16.msra.mxu0 %v1706
        %4800 = vmatprep.subr.bf16.mxu0 %v1711
        %4801 = vmatpush1.bf16.msra.mxu0 %v1710
        %4802 = vmatprep.subr.bf16.mxu0 %v1715
        %4803 = vmatpush1.bf16.msra.mxu0 %v1714
        %4804 = vmatprep.subr.bf16.mxu0 %v1719
        %4805 = vmatpush1.bf16.msra.mxu0 %v1718
        %4806 = vmatprep.subr.bf16.mxu0 %v1723
        %4807 = vmatpush1.bf16.msra.mxu0 %v1722
        %4808 = vmatprep.subr.bf16.mxu0 0
        %4809 = vmatpush1.bf16.msra.mxu0 0
        %4810 = vmatprep.subr.bf16.mxu0 0
        %4811 = vmatpush1.bf16.msra.mxu0 0
        %4812 = vmatprep.subr.bf16.mxu0 0
        %4813 = vmatpush1.bf16.msra.mxu0 0
        %4814 = vmatprep.subr.bf16.mxu0 0
        %4815 = vmatpush1.bf16.msra.mxu0 0
        %4816 = vmatprep.subr.bf16.mxu0 0
        %4817 = vmatpush1.bf16.msra.mxu0 0
        %4818 = vmatprep.subr.bf16.mxu0 0
        %4819 = vmatpush1.bf16.msra.mxu0 0
        %4820 = vmatprep.subr.bf16.mxu0 0
        %4821 = vmatpush1.bf16.msra.mxu0 0
        %4822 = vmatprep.subr.bf16.mxu0 0
        %4823 = vmatpush1.bf16.msra.mxu0 0
        %4824 = vmatprep.mubr.bf16.mxu0 0
        %4825 = vmatmul.mubr.bf16.gmra.mrb[0].mxu0 %v4708
        %v4826 = vpop.f32.mrb[0].mxu0
        %v4827 = vadd.f32 %v4745, %v4826
        %v4828 = vpop.f32.mrb[0].mxu0
        %v4829 = vadd.f32 %v4747, %v4828
        %v4830 = vpop.f32.mrb[0].mxu0
        %v4831 = vpop.f32.mrb[0].mxu0
        %4832 = vdwg.mxu0
        %4833 = vmatprep.subr.bf16.mxu0 %v1697
        %4834 = vmatpush1.bf16.msra.mxu0 %v1696
        %4835 = vmatprep.subr.bf16.mxu0 %v1701
        %4836 = vmatpush1.bf16.msra.mxu0 %v1700
        %4837 = vmatprep.subr.bf16.mxu0 %v1705
        %4838 = vmatpush1.bf16.msra.mxu0 %v1704
        %4839 = vmatprep.subr.bf16.mxu0 %v1709
        %4840 = vmatpush1.bf16.msra.mxu0 %v1708
        %4841 = vmatprep.subr.bf16.mxu0 %v1713
        %4842 = vmatpush1.bf16.msra.mxu0 %v1712
        %4843 = vmatprep.subr.bf16.mxu0 %v1717
        %4844 = vmatpush1.bf16.msra.mxu0 %v1716
        %4845 = vmatprep.subr.bf16.mxu0 %v1721
        %4846 = vmatpush1.bf16.msra.mxu0 %v1720
        %4847 = vmatprep.subr.bf16.mxu0 %v1725
        %4848 = vmatpush1.bf16.msra.mxu0 %v1724
        %4849 = vmatprep.subr.bf16.mxu0 0
        %4850 = vmatpush1.bf16.msra.mxu0 0
        %4851 = vmatprep.subr.bf16.mxu0 0
        %4852 = vmatpush1.bf16.msra.mxu0 0
        %4853 = vmatprep.subr.bf16.mxu0 0
        %4854 = vmatpush1.bf16.msra.mxu0 0
        %4855 = vmatprep.subr.bf16.mxu0 0
        %4856 = vmatpush1.bf16.msra.mxu0 0
        %4857 = vmatprep.subr.bf16.mxu0 0
        %4858 = vmatpush1.bf16.msra.mxu0 0
        %4859 = vmatprep.subr.bf16.mxu0 0
        %4860 = vmatpush1.bf16.msra.mxu0 0
        %4861 = vmatprep.subr.bf16.mxu0 0
        %4862 = vmatpush1.bf16.msra.mxu0 0
        %4863 = vmatprep.subr.bf16.mxu0 0
        %4864 = vmatpush1.bf16.msra.mxu0 0
        %4865 = vmatprep.mubr.bf16.mxu0 0
        %4866 = vmatmul.mubr.bf16.gmra.mrb[0].mxu0 %v4708
        %v4867 = vpop.f32.mrb[0].mxu0
        %v4868 = vadd.f32 %v4786, %v4867
        %v4869 = vpop.f32.mrb[0].mxu0
        %v4870 = vadd.f32 %v4788, %v4869
        %v4871 = vpop.f32.mrb[0].mxu0
        %v4872 = vpop.f32.mrb[0].mxu0
        %4873 = vdwg.mxu0
        %v4874 = vadd.f32 %v4827, %v1845
        %v4875 = vadd.f32 %v4829, %v1849
        %v4876 = vadd.f32 %v4868, %v1853
        %v4877 = vadd.f32 %v4870, %v1857
        %v4878 = vxor.u32 %v4874, 2147483648
        %v4879 = vmul.f32 %v4878, 1.442695
        %v4880 = vpow.pop %v4879
        %v4881 = vadd.f32 %v4880, 1.0
        %v4882 = vrcp.pop %v4881
        %v4883 = vmul.f32 1.0, %v4882
        %v4884 = vxor.u32 %v4875, 2147483648
        %v4885 = vmul.f32 %v4884, 1.442695
        %v4886 = vpow.pop %v4885
        %v4887 = vadd.f32 %v4886, 1.0
        %v4888 = vrcp.pop %v4887
        %v4889 = vmul.f32 1.0, %v4888
        %v4890 = vtanh.pop %v4876
        %v4891 = vxor.u32 %v4877, 2147483648
        %v4892 = vmul.f32 %v4891, 1.442695
        %v4893 = vpow.pop %v4892
        %v4894 = vadd.f32 %v4893, 1.0
        %v4895 = vrcp.pop %v4894
        %v4896 = vmul.f32 1.0, %v4895
        %v4897 = vmul.f32 %v4889, %v4397
        %v4898 = vmul.f32 %v4883, %v4890
        %v4899 = vadd.f32 %v4897, %v4898
        %v4900 = vtanh.pop %v4899
        %v4901 = vmul.f32 %v4896, %v4900
        %s4902 = scalar_lea.vmem %s364, 224
        %v4903 = vld [vmem:[%s4902] sm:$0xff]
        %v4904 = vld [vmem:[%s4902 + $0x8] sm:$0xff]
        %v4905 = vld [vmem:[%s4902 + $0x10] sm:$0xff]
        %v4906 = vld [vmem:[%s4902 + $0x18] sm:$0xff]
        %4907 = vmatprep.subr.bf16.mxu0 %v517
        %4908 = vmatpush1.bf16.msra.mxu0 %v516
        %4909 = vmatprep.subr.bf16.mxu0 %v521
        %4910 = vmatpush1.bf16.msra.mxu0 %v520
        %4911 = vmatprep.subr.bf16.mxu0 %v525
        %4912 = vmatpush1.bf16.msra.mxu0 %v524
        %4913 = vmatprep.subr.bf16.mxu0 %v529
        %4914 = vmatpush1.bf16.msra.mxu0 %v528
        %4915 = vmatprep.subr.bf16.mxu0 %v533
        %4916 = vmatpush1.bf16.msra.mxu0 %v532
        %4917 = vmatprep.subr.bf16.mxu0 %v537
        %4918 = vmatpush1.bf16.msra.mxu0 %v536
        %4919 = vmatprep.subr.bf16.mxu0 %v541
        %4920 = vmatpush1.bf16.msra.mxu0 %v540
        %4921 = vmatprep.subr.bf16.mxu0 %v545
        %4922 = vmatpush1.bf16.msra.mxu0 %v544
        %4923 = vmatprep.subr.bf16.mxu0 0
        %4924 = vmatpush1.bf16.msra.mxu0 0
        %4925 = vmatprep.subr.bf16.mxu0 0
        %4926 = vmatpush1.bf16.msra.mxu0 0
        %4927 = vmatprep.subr.bf16.mxu0 0
        %4928 = vmatpush1.bf16.msra.mxu0 0
        %4929 = vmatprep.subr.bf16.mxu0 0
        %4930 = vmatpush1.bf16.msra.mxu0 0
        %4931 = vmatprep.subr.bf16.mxu0 0
        %4932 = vmatpush1.bf16.msra.mxu0 0
        %4933 = vmatprep.subr.bf16.mxu0 0
        %4934 = vmatpush1.bf16.msra.mxu0 0
        %4935 = vmatprep.subr.bf16.mxu0 0
        %4936 = vmatpush1.bf16.msra.mxu0 0
        %4937 = vmatprep.subr.bf16.mxu0 0
        %4938 = vmatpush1.bf16.msra.mxu0 0
        %4939 = vmatprep.mubr.bf16.mxu0 0
        %4940 = vmatmul.mubr.bf16.gmra.mrb[0].mxu0 %v4515
        %v4941 = vpop.f32.mrb[0].mxu0
        %v4942 = vadd.f32 0.0, %v4941
        %v4943 = vpop.f32.mrb[0].mxu0
        %v4944 = vadd.f32 0.0, %v4943
        %v4945 = vpop.f32.mrb[0].mxu0
        %v4946 = vpop.f32.mrb[0].mxu0
        %4947 = vdwg.mxu0
        %4948 = vmatprep.subr.bf16.mxu0 %v519
        %4949 = vmatpush1.bf16.msra.mxu0 %v518
        %4950 = vmatprep.subr.bf16.mxu0 %v523
        %4951 = vmatpush1.bf16.msra.mxu0 %v522
        %4952 = vmatprep.subr.bf16.mxu0 %v527
        %4953 = vmatpush1.bf16.msra.mxu0 %v526
        %4954 = vmatprep.subr.bf16.mxu0 %v531
        %4955 = vmatpush1.bf16.msra.mxu0 %v530
        %4956 = vmatprep.subr.bf16.mxu0 %v535
        %4957 = vmatpush1.bf16.msra.mxu0 %v534
        %4958 = vmatprep.subr.bf16.mxu0 %v539
        %4959 = vmatpush1.bf16.msra.mxu0 %v538
        %4960 = vmatprep.subr.bf16.mxu0 %v543
        %4961 = vmatpush1.bf16.msra.mxu0 %v542
        %4962 = vmatprep.subr.bf16.mxu0 %v547
        %4963 = vmatpush1.bf16.msra.mxu0 %v546
        %4964 = vmatprep.subr.bf16.mxu0 0
        %4965 = vmatpush1.bf16.msra.mxu0 0
        %4966 = vmatprep.subr.bf16.mxu0 0
        %4967 = vmatpush1.bf16.msra.mxu0 0
        %4968 = vmatprep.subr.bf16.mxu0 0
        %4969 = vmatpush1.bf16.msra.mxu0 0
        %4970 = vmatprep.subr.bf16.mxu0 0
        %4971 = vmatpush1.bf16.msra.mxu0 0
        %4972 = vmatprep.subr.bf16.mxu0 0
        %4973 = vmatpush1.bf16.msra.mxu0 0
        %4974 = vmatprep.subr.bf16.mxu0 0
        %4975 = vmatpush1.bf16.msra.mxu0 0
        %4976 = vmatprep.subr.bf16.mxu0 0
        %4977 = vmatpush1.bf16.msra.mxu0 0
        %4978 = vmatprep.subr.bf16.mxu0 0
        %4979 = vmatpush1.bf16.msra.mxu0 0
        %4980 = vmatprep.mubr.bf16.mxu0 0
        %4981 = vmatmul.mubr.bf16.gmra.mrb[0].mxu0 %v4515
        %v4982 = vpop.f32.mrb[0].mxu0
        %v4983 = vadd.f32 0.0, %v4982
        %v4984 = vpop.f32.mrb[0].mxu0
        %v4985 = vadd.f32 0.0, %v4984
        %v4986 = vpop.f32.mrb[0].mxu0
        %v4987 = vpop.f32.mrb[0].mxu0
        %4988 = vdwg.mxu0
        %v4989 = vadd.f32 %v4903, %v4942
        %v4990 = vadd.f32 %v4904, %v4944
        %v4991 = vadd.f32 %v4905, %v4983
        %v4992 = vadd.f32 %v4906, %v4985
        %v4993 = vxor.u32 %v4989, 2147483648
        %v4994 = vmul.f32 %v4993, 1.442695
        %v4995 = vpow.pop %v4994
        %v4996 = vadd.f32 %v4995, 1.0
        %v4997 = vrcp.pop %v4996
        %v4998 = vmul.f32 1.0, %v4997
        %v4999 = vxor.u32 %v4990, 2147483648
        %v5000 = vmul.f32 %v4999, 1.442695
        %v5001 = vpow.pop %v5000
        %v5002 = vadd.f32 %v5001, 1.0
        %v5003 = vrcp.pop %v5002
        %v5004 = vmul.f32 1.0, %v5003
        %v5005 = vtanh.pop %v4991
        %v5006 = vxor.u32 %v4992, 2147483648
        %v5007 = vmul.f32 %v5006, 1.442695
        %v5008 = vpow.pop %v5007
        %v5009 = vadd.f32 %v5008, 1.0
        %v5010 = vrcp.pop %v5009
        %v5011 = vmul.f32 1.0, %v5010
        %v5012 = vmul.f32 %v5004, %v4512
        %v5013 = vmul.f32 %v4998, %v5005
        %v5014 = vadd.f32 %v5012, %v5013
        %v5015 = vtanh.pop %v5014
        %v5016 = vmul.f32 %v5011, %v5015
        %v5017 = vpack.c.bf16 %v5016, %v5016
        %5018 = vmatprep.subr.bf16.mxu0 %v853
        %5019 = vmatpush1.bf16.msra.mxu0 %v852
        %5020 = vmatprep.subr.bf16.mxu0 %v857
        %5021 = vmatpush1.bf16.msra.mxu0 %v856
        %5022 = vmatprep.subr.bf16.mxu0 %v861
        %5023 = vmatpush1.bf16.msra.mxu0 %v860
        %5024 = vmatprep.subr.bf16.mxu0 %v865
        %5025 = vmatpush1.bf16.msra.mxu0 %v864
        %5026 = vmatprep.subr.bf16.mxu0 %v869
        %5027 = vmatpush1.bf16.msra.mxu0 %v868
        %5028 = vmatprep.subr.bf16.mxu0 %v873
        %5029 = vmatpush1.bf16.msra.mxu0 %v872
        %5030 = vmatprep.subr.bf16.mxu0 %v877
        %5031 = vmatpush1.bf16.msra.mxu0 %v876
        %5032 = vmatprep.subr.bf16.mxu0 %v881
        %5033 = vmatpush1.bf16.msra.mxu0 %v880
        %5034 = vmatprep.subr.bf16.mxu0 0
        %5035 = vmatpush1.bf16.msra.mxu0 0
        %5036 = vmatprep.subr.bf16.mxu0 0
        %5037 = vmatpush1.bf16.msra.mxu0 0
        %5038 = vmatprep.subr.bf16.mxu0 0
        %5039 = vmatpush1.bf16.msra.mxu0 0
        %5040 = vmatprep.subr.bf16.mxu0 0
        %5041 = vmatpush1.bf16.msra.mxu0 0
        %5042 = vmatprep.subr.bf16.mxu0 0
        %5043 = vmatpush1.bf16.msra.mxu0 0
        %5044 = vmatprep.subr.bf16.mxu0 0
        %5045 = vmatpush1.bf16.msra.mxu0 0
        %5046 = vmatprep.subr.bf16.mxu0 0
        %5047 = vmatpush1.bf16.msra.mxu0 0
        %5048 = vmatprep.subr.bf16.mxu0 0
        %5049 = vmatpush1.bf16.msra.mxu0 0
        %5050 = vmatprep.mubr.bf16.mxu0 0
        %5051 = vmatmul.mubr.bf16.gmra.mrb[0].mxu0 %v4708
        %v5052 = vpop.f32.mrb[0].mxu0
        %v5053 = vadd.f32 0.0, %v5052
        %v5054 = vpop.f32.mrb[0].mxu0
        %v5055 = vadd.f32 0.0, %v5054
        %v5056 = vpop.f32.mrb[0].mxu0
        %v5057 = vpop.f32.mrb[0].mxu0
        %5058 = vdwg.mxu0
        %5059 = vmatprep.subr.bf16.mxu0 %v855
        %5060 = vmatpush1.bf16.msra.mxu0 %v854
        %5061 = vmatprep.subr.bf16.mxu0 %v859
        %5062 = vmatpush1.bf16.msra.mxu0 %v858
        %5063 = vmatprep.subr.bf16.mxu0 %v863
        %5064 = vmatpush1.bf16.msra.mxu0 %v862
        %5065 = vmatprep.subr.bf16.mxu0 %v867
        %5066 = vmatpush1.bf16.msra.mxu0 %v866
        %5067 = vmatprep.subr.bf16.mxu0 %v871
        %5068 = vmatpush1.bf16.msra.mxu0 %v870
        %5069 = vmatprep.subr.bf16.mxu0 %v875
        %5070 = vmatpush1.bf16.msra.mxu0 %v874
        %5071 = vmatprep.subr.bf16.mxu0 %v879
        %5072 = vmatpush1.bf16.msra.mxu0 %v878
        %5073 = vmatprep.subr.bf16.mxu0 %v883
        %5074 = vmatpush1.bf16.msra.mxu0 %v882
        %5075 = vmatprep.subr.bf16.mxu0 0
        %5076 = vmatpush1.bf16.msra.mxu0 0
        %5077 = vmatprep.subr.bf16.mxu0 0
        %5078 = vmatpush1.bf16.msra.mxu0 0
        %5079 = vmatprep.subr.bf16.mxu0 0
        %5080 = vmatpush1.bf16.msra.mxu0 0
        %5081 = vmatprep.subr.bf16.mxu0 0
        %5082 = vmatpush1.bf16.msra.mxu0 0
        %5083 = vmatprep.subr.bf16.mxu0 0
        %5084 = vmatpush1.bf16.msra.mxu0 0
        %5085 = vmatprep.subr.bf16.mxu0 0
        %5086 = vmatpush1.bf16.msra.mxu0 0
        %5087 = vmatprep.subr.bf16.mxu0 0
        %5088 = vmatpush1.bf16.msra.mxu0 0
        %5089 = vmatprep.subr.bf16.mxu0 0
        %5090 = vmatpush1.bf16.msra.mxu0 0
        %5091 = vmatprep.mubr.bf16.mxu0 0
        %5092 = vmatmul.mubr.bf16.gmra.mrb[0].mxu0 %v4708
        %v5093 = vpop.f32.mrb[0].mxu0
        %v5094 = vadd.f32 0.0, %v5093
        %v5095 = vpop.f32.mrb[0].mxu0
        %v5096 = vadd.f32 0.0, %v5095
        %v5097 = vpop.f32.mrb[0].mxu0
        %v5098 = vpop.f32.mrb[0].mxu0
        %5099 = vdwg.mxu0
        %5100 = vmatprep.subr.bf16.mxu0 %v1095
        %5101 = vmatpush1.bf16.msra.mxu0 %v1094
        %5102 = vmatprep.subr.bf16.mxu0 %v1099
        %5103 = vmatpush1.bf16.msra.mxu0 %v1098
        %5104 = vmatprep.subr.bf16.mxu0 %v1103
        %5105 = vmatpush1.bf16.msra.mxu0 %v1102
        %5106 = vmatprep.subr.bf16.mxu0 %v1107
        %5107 = vmatpush1.bf16.msra.mxu0 %v1106
        %5108 = vmatprep.subr.bf16.mxu0 %v1111
        %5109 = vmatpush1.bf16.msra.mxu0 %v1110
        %5110 = vmatprep.subr.bf16.mxu0 %v1115
        %5111 = vmatpush1.bf16.msra.mxu0 %v1114
        %5112 = vmatprep.subr.bf16.mxu0 %v1119
        %5113 = vmatpush1.bf16.msra.mxu0 %v1118
        %5114 = vmatprep.subr.bf16.mxu0 %v1123
        %5115 = vmatpush1.bf16.msra.mxu0 %v1122
        %5116 = vmatprep.subr.bf16.mxu0 0
        %5117 = vmatpush1.bf16.msra.mxu0 0
        %5118 = vmatprep.subr.bf16.mxu0 0
        %5119 = vmatpush1.bf16.msra.mxu0 0
        %5120 = vmatprep.subr.bf16.mxu0 0
        %5121 = vmatpush1.bf16.msra.mxu0 0
        %5122 = vmatprep.subr.bf16.mxu0 0
        %5123 = vmatpush1.bf16.msra.mxu0 0
        %5124 = vmatprep.subr.bf16.mxu0 0
        %5125 = vmatpush1.bf16.msra.mxu0 0
        %5126 = vmatprep.subr.bf16.mxu0 0
        %5127 = vmatpush1.bf16.msra.mxu0 0
        %5128 = vmatprep.subr.bf16.mxu0 0
        %5129 = vmatpush1.bf16.msra.mxu0 0
        %5130 = vmatprep.subr.bf16.mxu0 0
        %5131 = vmatpush1.bf16.msra.mxu0 0
        %5132 = vmatprep.mubr.bf16.mxu0 0
        %5133 = vmatmul.mubr.bf16.gmra.mrb[0].mxu0 %v5017
        %v5134 = vpop.f32.mrb[0].mxu0
        %v5135 = vadd.f32 %v5053, %v5134
        %v5136 = vpop.f32.mrb[0].mxu0
        %v5137 = vadd.f32 %v5055, %v5136
        %v5138 = vpop.f32.mrb[0].mxu0
        %v5139 = vpop.f32.mrb[0].mxu0
        %5140 = vdwg.mxu0
        %5141 = vmatprep.subr.bf16.mxu0 %v1097
        %5142 = vmatpush1.bf16.msra.mxu0 %v1096
        %5143 = vmatprep.subr.bf16.mxu0 %v1101
        %5144 = vmatpush1.bf16.msra.mxu0 %v1100
        %5145 = vmatprep.subr.bf16.mxu0 %v1105
        %5146 = vmatpush1.bf16.msra.mxu0 %v1104
        %5147 = vmatprep.subr.bf16.mxu0 %v1109
        %5148 = vmatpush1.bf16.msra.mxu0 %v1108
        %5149 = vmatprep.subr.bf16.mxu0 %v1113
        %5150 = vmatpush1.bf16.msra.mxu0 %v1112
        %5151 = vmatprep.subr.bf16.mxu0 %v1117
        %5152 = vmatpush1.bf16.msra.mxu0 %v1116
        %5153 = vmatprep.subr.bf16.mxu0 %v1121
        %5154 = vmatpush1.bf16.msra.mxu0 %v1120
        %5155 = vmatprep.subr.bf16.mxu0 %v1125
        %5156 = vmatpush1.bf16.msra.mxu0 %v1124
        %5157 = vmatprep.subr.bf16.mxu0 0
        %5158 = vmatpush1.bf16.msra.mxu0 0
        %5159 = vmatprep.subr.bf16.mxu0 0
        %5160 = vmatpush1.bf16.msra.mxu0 0
        %5161 = vmatprep.subr.bf16.mxu0 0
        %5162 = vmatpush1.bf16.msra.mxu0 0
        %5163 = vmatprep.subr.bf16.mxu0 0
        %5164 = vmatpush1.bf16.msra.mxu0 0
        %5165 = vmatprep.subr.bf16.mxu0 0
        %5166 = vmatpush1.bf16.msra.mxu0 0
        %5167 = vmatprep.subr.bf16.mxu0 0
        %5168 = vmatpush1.bf16.msra.mxu0 0
        %5169 = vmatprep.subr.bf16.mxu0 0
        %5170 = vmatpush1.bf16.msra.mxu0 0
        %5171 = vmatprep.subr.bf16.mxu0 0
        %5172 = vmatpush1.bf16.msra.mxu0 0
        %5173 = vmatprep.mubr.bf16.mxu0 0
        %5174 = vmatmul.mubr.bf16.gmra.mrb[0].mxu0 %v5017
        %v5175 = vpop.f32.mrb[0].mxu0
        %v5176 = vadd.f32 %v5094, %v5175
        %v5177 = vpop.f32.mrb[0].mxu0
        %v5178 = vadd.f32 %v5096, %v5177
        %v5179 = vpop.f32.mrb[0].mxu0
        %v5180 = vpop.f32.mrb[0].mxu0
        %5181 = vdwg.mxu0
        %v5182 = vadd.f32 %v5135, %v1245
        %v5183 = vadd.f32 %v5137, %v1249
        %v5184 = vadd.f32 %v5176, %v1253
        %v5185 = vadd.f32 %v5178, %v1257
        %v5186 = vxor.u32 %v5182, 2147483648
        %v5187 = vmul.f32 %v5186, 1.442695
        %v5188 = vpow.pop %v5187
        %v5189 = vadd.f32 %v5188, 1.0
        %v5190 = vrcp.pop %v5189
        %v5191 = vmul.f32 1.0, %v5190
        %v5192 = vxor.u32 %v5183, 2147483648
        %v5193 = vmul.f32 %v5192, 1.442695
        %v5194 = vpow.pop %v5193
        %v5195 = vadd.f32 %v5194, 1.0
        %v5196 = vrcp.pop %v5195
        %v5197 = vmul.f32 1.0, %v5196
        %v5198 = vtanh.pop %v5184
        %v5199 = vxor.u32 %v5185, 2147483648
        %v5200 = vmul.f32 %v5199, 1.442695
        %v5201 = vpow.pop %v5200
        %v5202 = vadd.f32 %v5201, 1.0
        %v5203 = vrcp.pop %v5202
        %v5204 = vmul.f32 1.0, %v5203
        %v5205 = vmul.f32 %v5197, %v4705
        %v5206 = vmul.f32 %v5191, %v5198
        %v5207 = vadd.f32 %v5205, %v5206
        %v5208 = vtanh.pop %v5207
        %v5209 = vmul.f32 %v5204, %v5208
        %v5210 = vpack.c.bf16 %v5209, %v5209
        %v5211 = vpack.c.bf16 %v4901, %v4901
        %5212 = vmatprep.subr.bf16.mxu0 %v1453
        %5213 = vmatpush1.bf16.msra.mxu0 %v1452
        %5214 = vmatprep.subr.bf16.mxu0 %v1457
        %5215 = vmatpush1.bf16.msra.mxu0 %v1456
        %5216 = vmatprep.subr.bf16.mxu0 %v1461
        %5217 = vmatpush1.bf16.msra.mxu0 %v1460
        %5218 = vmatprep.subr.bf16.mxu0 %v1465
        %5219 = vmatpush1.bf16.msra.mxu0 %v1464
        %5220 = vmatprep.subr.bf16.mxu0 %v1469
        %5221 = vmatpush1.bf16.msra.mxu0 %v1468
        %5222 = vmatprep.subr.bf16.mxu0 %v1473
        %5223 = vmatpush1.bf16.msra.mxu0 %v1472
        %5224 = vmatprep.subr.bf16.mxu0 %v1477
        %5225 = vmatpush1.bf16.msra.mxu0 %v1476
        %5226 = vmatprep.subr.bf16.mxu0 %v1481
        %5227 = vmatpush1.bf16.msra.mxu0 %v1480
        %5228 = vmatprep.subr.bf16.mxu0 0
        %5229 = vmatpush1.bf16.msra.mxu0 0
        %5230 = vmatprep.subr.bf16.mxu0 0
        %5231 = vmatpush1.bf16.msra.mxu0 0
        %5232 = vmatprep.subr.bf16.mxu0 0
        %5233 = vmatpush1.bf16.msra.mxu0 0
        %5234 = vmatprep.subr.bf16.mxu0 0
        %5235 = vmatpush1.bf16.msra.mxu0 0
        %5236 = vmatprep.subr.bf16.mxu0 0
        %5237 = vmatpush1.bf16.msra.mxu0 0
        %5238 = vmatprep.subr.bf16.mxu0 0
        %5239 = vmatpush1.bf16.msra.mxu0 0
        %5240 = vmatprep.subr.bf16.mxu0 0
        %5241 = vmatpush1.bf16.msra.mxu0 0
        %5242 = vmatprep.subr.bf16.mxu0 0
        %5243 = vmatpush1.bf16.msra.mxu0 0
        %5244 = vmatprep.mubr.bf16.mxu0 0
        %5245 = vmatmul.mubr.bf16.gmra.mrb[0].mxu0 %v5211
        %v5246 = vpop.f32.mrb[0].mxu0
        %v5247 = vadd.f32 0.0, %v5246
        %v5248 = vpop.f32.mrb[0].mxu0
        %v5249 = vadd.f32 0.0, %v5248
        %v5250 = vpop.f32.mrb[0].mxu0
        %v5251 = vpop.f32.mrb[0].mxu0
        %5252 = vdwg.mxu0
        %5253 = vmatprep.subr.bf16.mxu0 %v1455
        %5254 = vmatpush1.bf16.msra.mxu0 %v1454
        %5255 = vmatprep.subr.bf16.mxu0 %v1459
        %5256 = vmatpush1.bf16.msra.mxu0 %v1458
        %5257 = vmatprep.subr.bf16.mxu0 %v1463
        %5258 = vmatpush1.bf16.msra.mxu0 %v1462
        %5259 = vmatprep.subr.bf16.mxu0 %v1467
        %5260 = vmatpush1.bf16.msra.mxu0 %v1466
        %5261 = vmatprep.subr.bf16.mxu0 %v1471
        %5262 = vmatpush1.bf16.msra.mxu0 %v1470
        %5263 = vmatprep.subr.bf16.mxu0 %v1475
        %5264 = vmatpush1.bf16.msra.mxu0 %v1474
        %5265 = vmatprep.subr.bf16.mxu0 %v1479
        %5266 = vmatpush1.bf16.msra.mxu0 %v1478
        %5267 = vmatprep.subr.bf16.mxu0 %v1483
        %5268 = vmatpush1.bf16.msra.mxu0 %v1482
        %5269 = vmatprep.subr.bf16.mxu0 0
        %5270 = vmatpush1.bf16.msra.mxu0 0
        %5271 = vmatprep.subr.bf16.mxu0 0
        %5272 = vmatpush1.bf16.msra.mxu0 0
        %5273 = vmatprep.subr.bf16.mxu0 0
        %5274 = vmatpush1.bf16.msra.mxu0 0
        %5275 = vmatprep.subr.bf16.mxu0 0
        %5276 = vmatpush1.bf16.msra.mxu0 0
        %5277 = vmatprep.subr.bf16.mxu0 0
        %5278 = vmatpush1.bf16.msra.mxu0 0
        %5279 = vmatprep.subr.bf16.mxu0 0
        %5280 = vmatpush1.bf16.msra.mxu0 0
        %5281 = vmatprep.subr.bf16.mxu0 0
        %5282 = vmatpush1.bf16.msra.mxu0 0
        %5283 = vmatprep.subr.bf16.mxu0 0
        %5284 = vmatpush1.bf16.msra.mxu0 0
        %5285 = vmatprep.mubr.bf16.mxu0 0
        %5286 = vmatmul.mubr.bf16.gmra.mrb[0].mxu0 %v5211
        %v5287 = vpop.f32.mrb[0].mxu0
        %v5288 = vadd.f32 0.0, %v5287
        %v5289 = vpop.f32.mrb[0].mxu0
        %v5290 = vadd.f32 0.0, %v5289
        %v5291 = vpop.f32.mrb[0].mxu0
        %v5292 = vpop.f32.mrb[0].mxu0
        %5293 = vdwg.mxu0
        %5294 = vmatprep.subr.bf16.mxu0 %v1695
        %5295 = vmatpush1.bf16.msra.mxu0 %v1694
        %5296 = vmatprep.subr.bf16.mxu0 %v1699
        %5297 = vmatpush1.bf16.msra.mxu0 %v1698
        %5298 = vmatprep.subr.bf16.mxu0 %v1703
        %5299 = vmatpush1.bf16.msra.mxu0 %v1702
        %5300 = vmatprep.subr.bf16.mxu0 %v1707
        %5301 = vmatpush1.bf16.msra.mxu0 %v1706
        %5302 = vmatprep.subr.bf16.mxu0 %v1711
        %5303 = vmatpush1.bf16.msra.mxu0 %v1710
        %5304 = vmatprep.subr.bf16.mxu0 %v1715
        %5305 = vmatpush1.bf16.msra.mxu0 %v1714
        %5306 = vmatprep.subr.bf16.mxu0 %v1719
        %5307 = vmatpush1.bf16.msra.mxu0 %v1718
        %5308 = vmatprep.subr.bf16.mxu0 %v1723
        %5309 = vmatpush1.bf16.msra.mxu0 %v1722
        %5310 = vmatprep.subr.bf16.mxu0 0
        %5311 = vmatpush1.bf16.msra.mxu0 0
        %5312 = vmatprep.subr.bf16.mxu0 0
        %5313 = vmatpush1.bf16.msra.mxu0 0
        %5314 = vmatprep.subr.bf16.mxu0 0
        %5315 = vmatpush1.bf16.msra.mxu0 0
        %5316 = vmatprep.subr.bf16.mxu0 0
        %5317 = vmatpush1.bf16.msra.mxu0 0
        %5318 = vmatprep.subr.bf16.mxu0 0
        %5319 = vmatpush1.bf16.msra.mxu0 0
        %5320 = vmatprep.subr.bf16.mxu0 0
        %5321 = vmatpush1.bf16.msra.mxu0 0
        %5322 = vmatprep.subr.bf16.mxu0 0
        %5323 = vmatpush1.bf16.msra.mxu0 0
        %5324 = vmatprep.subr.bf16.mxu0 0
        %5325 = vmatpush1.bf16.msra.mxu0 0
        %5326 = vmatprep.mubr.bf16.mxu0 0
        %5327 = vmatmul.mubr.bf16.gmra.mrb[0].mxu0 %v5210
        %v5328 = vpop.f32.mrb[0].mxu0
        %v5329 = vadd.f32 %v5247, %v5328
        %v5330 = vpop.f32.mrb[0].mxu0
        %v5331 = vadd.f32 %v5249, %v5330
        %v5332 = vpop.f32.mrb[0].mxu0
        %v5333 = vpop.f32.mrb[0].mxu0
        %5334 = vdwg.mxu0
        %5335 = vmatprep.subr.bf16.mxu0 %v1697
        %5336 = vmatpush1.bf16.msra.mxu0 %v1696
        %5337 = vmatprep.subr.bf16.mxu0 %v1701
        %5338 = vmatpush1.bf16.msra.mxu0 %v1700
        %5339 = vmatprep.subr.bf16.mxu0 %v1705
        %5340 = vmatpush1.bf16.msra.mxu0 %v1704
        %5341 = vmatprep.subr.bf16.mxu0 %v1709
        %5342 = vmatpush1.bf16.msra.mxu0 %v1708
        %5343 = vmatprep.subr.bf16.mxu0 %v1713
        %5344 = vmatpush1.bf16.msra.mxu0 %v1712
        %5345 = vmatprep.subr.bf16.mxu0 %v1717
        %5346 = vmatpush1.bf16.msra.mxu0 %v1716
        %5347 = vmatprep.subr.bf16.mxu0 %v1721
        %5348 = vmatpush1.bf16.msra.mxu0 %v1720
        %5349 = vmatprep.subr.bf16.mxu0 %v1725
        %5350 = vmatpush1.bf16.msra.mxu0 %v1724
        %5351 = vmatprep.subr.bf16.mxu0 0
        %5352 = vmatpush1.bf16.msra.mxu0 0
        %5353 = vmatprep.subr.bf16.mxu0 0
        %5354 = vmatpush1.bf16.msra.mxu0 0
        %5355 = vmatprep.subr.bf16.mxu0 0
        %5356 = vmatpush1.bf16.msra.mxu0 0
        %5357 = vmatprep.subr.bf16.mxu0 0
        %5358 = vmatpush1.bf16.msra.mxu0 0
        %5359 = vmatprep.subr.bf16.mxu0 0
        %5360 = vmatpush1.bf16.msra.mxu0 0
        %5361 = vmatprep.subr.bf16.mxu0 0
        %5362 = vmatpush1.bf16.msra.mxu0 0
        %5363 = vmatprep.subr.bf16.mxu0 0
        %5364 = vmatpush1.bf16.msra.mxu0 0
        %5365 = vmatprep.subr.bf16.mxu0 0
        %5366 = vmatpush1.bf16.msra.mxu0 0
        %5367 = vmatprep.mubr.bf16.mxu0 0
        %5368 = vmatmul.mubr.bf16.gmra.mrb[0].mxu0 %v5210
        %v5369 = vpop.f32.mrb[0].mxu0
        %v5370 = vadd.f32 %v5288, %v5369
        %v5371 = vpop.f32.mrb[0].mxu0
        %v5372 = vadd.f32 %v5290, %v5371
        %v5373 = vpop.f32.mrb[0].mxu0
        %v5374 = vpop.f32.mrb[0].mxu0
        %5375 = vdwg.mxu0
        %v5376 = vadd.f32 %v5329, %v1845
        %v5377 = vadd.f32 %v5331, %v1849
        %v5378 = vadd.f32 %v5370, %v1853
        %v5379 = vadd.f32 %v5372, %v1857
        %v5380 = vxor.u32 %v5376, 2147483648
        %v5381 = vmul.f32 %v5380, 1.442695
        %v5382 = vpow.pop %v5381
        %v5383 = vadd.f32 %v5382, 1.0
        %v5384 = vrcp.pop %v5383
        %v5385 = vmul.f32 1.0, %v5384
        %v5386 = vxor.u32 %v5377, 2147483648
        %v5387 = vmul.f32 %v5386, 1.442695
        %v5388 = vpow.pop %v5387
        %v5389 = vadd.f32 %v5388, 1.0
        %v5390 = vrcp.pop %v5389
        %v5391 = vmul.f32 1.0, %v5390
        %v5392 = vtanh.pop %v5378
        %v5393 = vxor.u32 %v5379, 2147483648
        %v5394 = vmul.f32 %v5393, 1.442695
        %v5395 = vpow.pop %v5394
        %v5396 = vadd.f32 %v5395, 1.0
        %v5397 = vrcp.pop %v5396
        %v5398 = vmul.f32 1.0, %v5397
        %v5399 = vmul.f32 %v5391, %v4899
        %v5400 = vmul.f32 %v5385, %v5392
        %v5401 = vadd.f32 %v5399, %v5400
        %v5402 = vtanh.pop %v5401
        %v5403 = vmul.f32 %v5398, %v5402
        %5404 = vst [vmem:[#allocation2] sm:$0xff] %v5016
        %5405 = vst [vmem:[#allocation5] sm:$0xff] %v5014
        %5406 = vst [vmem:[#allocation3] sm:$0xff] %v5209
        %5407 = vst [vmem:[#allocation6] sm:$0xff] %v5207
        %5408 = vst [vmem:[#allocation4] sm:$0xff] %v5403
        %5409 = vst [vmem:[#allocation7] sm:$0xff] %v5401
        %p5410 = scmp.eq.s32.totalorder %s23, 1
        // Predicated region
        $region69: #{speaker_encoder_forward.1} parent=59 // pred_check
          %p5411 = pneg %p5410
        $region70: #{speaker_encoder_forward.1} parent=59 // pred_check_branch
          %5413 = sbr.rel (%p5411) target = $region72
        $region71: #{speaker_encoder_forward.1} parent=59 // pred_region
          %v5414 = vpack.c.bf16 %v5403, %v5403
          %v5415 = vld [vmem:[%s8] sm:$0xf]
          %v5416 = vld [vmem:[%s8 + $0x4] sm:$0xf]
          %v5417 = vld [vmem:[%s8 + $0x8] sm:$0xf]
          %v5418 = vld [vmem:[%s8 + $0xc] sm:$0xf]
          %v5419 = vld [vmem:[%s8 + $0x10] sm:$0xf]
          %v5420 = vld [vmem:[%s8 + $0x14] sm:$0xf]
          %v5421 = vld [vmem:[%s8 + $0x18] sm:$0xf]
          %v5422 = vld [vmem:[%s8 + $0x1c] sm:$0xf]
          %v5423 = vld [vmem:[%s8 + $0x20] sm:$0xf]
          %v5424 = vld [vmem:[%s8 + $0x24] sm:$0xf]
          %v5425 = vld [vmem:[%s8 + $0x28] sm:$0xf]
          %v5426 = vld [vmem:[%s8 + $0x2c] sm:$0xf]
          %v5427 = vld [vmem:[%s8 + $0x30] sm:$0xf]
          %v5428 = vld [vmem:[%s8 + $0x34] sm:$0xf]
          %v5429 = vld [vmem:[%s8 + $0x38] sm:$0xf]
          %v5430 = vld [vmem:[%s8 + $0x3c] sm:$0xf]
          %v5431 = vld [vmem:[%s9] sm:$0x1]
          %v5433 = vlaneseq
          %v5434 = vshrl.u32 %v5433, 7
          %v5435 = vsub.s32 0, %v5434
          %v5436 = vrot.slane %v5431, %v5435
          %v5454 = vunpack.c.l.b16 %v5415
          %v5455 = vunpack.c.l.b16 %v5416
          %v5456 = vunpack.c.l.b16 %v5417
          %v5457 = vunpack.c.l.b16 %v5418
          %v5458 = vunpack.c.l.b16 %v5419
          %v5459 = vunpack.c.l.b16 %v5420
          %v5460 = vunpack.c.l.b16 %v5421
          %v5461 = vunpack.c.l.b16 %v5422
          %v5462 = vunpack.c.l.b16 %v5423
          %v5463 = vunpack.c.l.b16 %v5424
          %v5464 = vunpack.c.l.b16 %v5425
          %v5465 = vunpack.c.l.b16 %v5426
          %v5466 = vunpack.c.l.b16 %v5427
          %v5467 = vunpack.c.l.b16 %v5428
          %v5468 = vunpack.c.l.b16 %v5429
          %v5469 = vunpack.c.l.b16 %v5430
          %v5470 = vpack.c.b16 %v5455, %v5454
          %v5471 = vpack.c.b16 %v5457, %v5456
          %v5472 = vpack.c.b16 %v5459, %v5458
          %v5473 = vpack.c.b16 %v5461, %v5460
          %v5474 = vpack.c.b16 %v5463, %v5462
          %v5475 = vpack.c.b16 %v5465, %v5464
          %v5476 = vpack.c.b16 %v5467, %v5466
          %v5477 = vpack.c.b16 %v5469, %v5468
          %5486 = vmatprep.subr.bf16.mxu0 0
          %5487 = vmatpush1.bf16.msra.mxu0 %v5470
          %5488 = vmatprep.subr.bf16.mxu0 0
          %5489 = vmatpush1.bf16.msra.mxu0 %v5471
          %5490 = vmatprep.subr.bf16.mxu0 0
          %5491 = vmatpush1.bf16.msra.mxu0 %v5472
          %5492 = vmatprep.subr.bf16.mxu0 0
          %5493 = vmatpush1.bf16.msra.mxu0 %v5473
          %5494 = vmatprep.subr.bf16.mxu0 0
          %5495 = vmatpush1.bf16.msra.mxu0 %v5474
          %5496 = vmatprep.subr.bf16.mxu0 0
          %5497 = vmatpush1.bf16.msra.mxu0 %v5475
          %5498 = vmatprep.subr.bf16.mxu0 0
          %5499 = vmatpush1.bf16.msra.mxu0 %v5476
          %5500 = vmatprep.subr.bf16.mxu0 0
          %5501 = vmatpush1.bf16.msra.mxu0 %v5477
          %5502 = vmatprep.subr.bf16.mxu0 0
          %5503 = vmatpush1.bf16.msra.mxu0 0
          %5504 = vmatprep.subr.bf16.mxu0 0
          %5505 = vmatpush1.bf16.msra.mxu0 0
          %5506 = vmatprep.subr.bf16.mxu0 0
          %5507 = vmatpush1.bf16.msra.mxu0 0
          %5508 = vmatprep.subr.bf16.mxu0 0
          %5509 = vmatpush1.bf16.msra.mxu0 0
          %5510 = vmatprep.subr.bf16.mxu0 0
          %5511 = vmatpush1.bf16.msra.mxu0 0
          %5512 = vmatprep.subr.bf16.mxu0 0
          %5513 = vmatpush1.bf16.msra.mxu0 0
          %5514 = vmatprep.subr.bf16.mxu0 0
          %5515 = vmatpush1.bf16.msra.mxu0 0
          %5516 = vmatprep.subr.bf16.mxu0 0
          %5517 = vmatpush1.bf16.msra.mxu0 0
          %5518 = vmatprep.mubr.bf16.mxu0 0
          %5519 = vmatmul.mubr.bf16.gmra.mrb[0].mxu0 %v5414
          %v5520 = vpop.f32.mrb[0].mxu0
          %v5521 = vadd.f32 %v5436, %v5520
          %v5522 = vpop.f32.mrb[0].mxu0
          %v5523 = vpop.f32.mrb[0].mxu0
          %v5524 = vpop.f32.mrb[0].mxu0
          %5525 = vdwg.mxu0
          %v5526 = vmax.f32 %v5521, 0.0
          %v5527 = vmul.f32 %v5526, %v5526
          %5528 = vadd.xlane.f32.xlu0 %v5527
          %v5529 = vpop.xlane.xlu0 %5528
          %v5530 = vadd.f32 %v5529, 1e-12
          %v5531 = vrsqrt.pop %v5530
          %v5532 = vmul.f32 %v5526, %v5531
          %5533 = vst [vmem:[#allocation11] sm:$0xff] %v5532
        $region72: #{speaker_encoder_forward.1} parent=59 // pred_fallthru
          _
        // Predicated region
        $region73: #{speaker_encoder_forward.1} parent=59 // pred_check
          %p5534 = pneg %p251
        $region74: #{speaker_encoder_forward.1} parent=59 // pred_check_branch
          %5536 = sbr.rel (%p5534) target = $region76
        $region75: #{speaker_encoder_forward.1} parent=59 // pred_region
          %s5538 = ssub.s32 128, 128
          %5539 = vsyncadd [#allocation10], %s5538
          %s5541 = sshll.u32 [#allocation11], 4
          %s5542 = int_to_ptr.vmem [resolvable:$true] %s5541
          %5544 = dma.vmem_to_hbm [thread:$0]  %s5542, 128, %s10, [#allocation10]
        $region76: #{speaker_encoder_forward.1} parent=59 // pred_fallthru
          _
        // Predicated region
        $region77: #{speaker_encoder_forward.1} parent=59 // pred_check
          %p5545 = pneg %p251
        $region78: #{speaker_encoder_forward.1} parent=59 // pred_check_branch
          %5547 = sbr.rel (%p5545) target = $region80
        $region79: #{speaker_encoder_forward.1} parent=59 // pred_region
          %5548 = dma.done [#allocation10], 128
        $region80: #{speaker_encoder_forward.1} parent=59 // pred_fallthru
          _
      $region60: #{speaker_encoder_forward.1} parent=5 // pred_fallthru
        _
      %p5549 = scmp.le.s32.totalorder 2, %s18
      // Predicated region
      $region81: #{speaker_encoder_forward.1} parent=5 // pred_check
        %p5550 = pneg %p5549
      $region82: #{speaker_encoder_forward.1} parent=5 // pred_check_branch
        %5552 = sbr.rel (%p5550) target = $region84
      $region83: #{speaker_encoder_forward.1} parent=5 // pred_region
        %s5553 = ssub.s32 %s18, 2
      $region84: #{speaker_encoder_forward.1} parent=5 // pred_fallthru
        _
    $region6: #{speaker_encoder_forward.1} parent=1 // loop_footer
      %s22 = sadd.s32 1, %s18
    $region7: #{speaker_encoder_forward.1} parent=1 // loop_footer_branch
      %17 = sbr.rel target = $region3
    $region8: #{speaker_encoder_forward.1} parent=1 // loop_exit
      _
    %5554 = vsyncpa [#allocation9], 1
    %s5555 = scalar_lea.sflag [#allocation9], 1
    %5556 = vsyncpa %s5555, 1
    %5557 = vsyncpa [#allocation10], 1
    %s5558 = scalar_lea.sflag [#allocation10], 1
    %5559 = vsyncpa %s5558, 1

</llo_original>
